<compile_context>
chip_gen: v6e
topology: v6e:2x2x1
jax: 0.10.0
libtpu: 0.0.40
codegen_flags: <defaults>
</compile_context>

<pallas_src>
import functools

import jax
import jax.numpy as jnp
import numpy as np
from jax.experimental import pallas as pl
from jax.experimental.pallas import tpu as pltpu

EPS = 1e-5
LANE = 128


def _round_up(v, m):
    return (v + m - 1) // m * m


def _vmem_budget_bytes():
    """Generation-aware scoped-VMEM budget (v7x: 64 MiB/TC, v5e/v6e: 128 MiB)."""
    try:
        info_fn = getattr(pltpu, "get_tpu_info", None)
        cap = int(info_fn().vmem_capacity_bytes) if info_fn is not None else 64 * 1024 * 1024
    except Exception:
        cap = 64 * 1024 * 1024            # conservative fallback (v7x per-TC size)
    return (cap * 3) // 4                 # headroom for compiler-internal scratch


# ----------------------------- Pallas kernels --------------------------------

def _conv1_kernel(x_ref, w1_ref, wp_ref, h1_ref, id_ref, s1_ref, q1_ref):
    """1x1 conv + residual projection + BN1 batch-stat partials (one image)."""
    x = x_ref[0]                                                     # (HW, Cip) bf16
    h1 = jnp.dot(x, w1_ref[...], preferred_element_type=jnp.float32)
    ident = jnp.dot(x, wp_ref[...], preferred_element_type=jnp.float32)
    h1_ref[0] = h1.astype(h1_ref.dtype)                              # bf16 to HBM
    id_ref[0] = ident.astype(id_ref.dtype)                           # consumed in pass 3
    s1_ref[0] = jnp.sum(h1, axis=0, keepdims=True)                   # f32 partials
    q1_ref[0] = jnp.sum(h1 * h1, axis=0, keepdims=True)


def _conv2_kernel(h1_ref, sc1_ref, bi1_ref, w2_ref,
                  h2_ref, s2_ref, q2_ref, halo_ref, *, H, W):
    """BN1+ReLU, 3x3 conv via 9 accumulated MXU dots over a scratch halo buffer."""
    Cp = w2_ref.shape[1]
    HW = H * W
    dt = halo_ref.dtype

    y = h1_ref[0].astype(jnp.float32)
    y = jnp.maximum(y * sc1_ref[...] + bi1_ref[...], 0.0)            # bn1 + relu (f32)
    yb = y.astype(dt).reshape(H, W, Cp)

    # Zero only the halo edges (tiny stores); write the interior once.
    halo_ref[0:1, :, :] = jnp.zeros((1, W + 2, Cp), dt)
    halo_ref[H + 1:H + 2, :, :] = jnp.zeros((1, W + 2, Cp), dt)
    halo_ref[:, 0:1, :] = jnp.zeros((H + 2, 1, Cp), dt)
    halo_ref[:, W + 1:W + 2, :] = jnp.zeros((H + 2, 1, Cp), dt)
    halo_ref[1:H + 1, 1:W + 1, :] = yb

    # 9 accumulated (HW,Cp)@(Cp,Cp) dots -- no materialized (HW, 9*Cp) im2col.
    acc = jnp.zeros((HW, Cp), jnp.float32)
    for k in range(9):
        ky, kx = k // 3, k % 3
        tap = halo_ref[ky:ky + H, kx:kx + W, :].reshape(HW, Cp)
        acc = acc + jnp.dot(tap, w2_ref[k * Cp:(k + 1) * Cp, :],
                            preferred_element_type=jnp.float32)

    h2_ref[0] = acc.astype(h2_ref.dtype)
    s2_ref[0] = jnp.sum(acc, axis=0, keepdims=True)
    q2_ref[0] = jnp.sum(acc * acc, axis=0, keepdims=True)


def _conv3_kernel(h2_ref, sc2_ref, bi2_ref, w3_ref, id_ref,
                  s3_ref, m3_ref, q3_ref):
    """BN2+ReLU, 1x1 conv, + residual, BN3 batch-stat partials."""
    y = h2_ref[0].astype(jnp.float32)
    y = jnp.maximum(y * sc2_ref[...] + bi2_ref[...], 0.0)
    h3 = jnp.dot(y.astype(w3_ref.dtype), w3_ref[...],
                 preferred_element_type=jnp.float32)
    s3 = h3 + id_ref[0].astype(jnp.float32)
    s3_ref[0] = s3
    m3_ref[0] = jnp.sum(s3, axis=0, keepdims=True)
    q3_ref[0] = jnp.sum(s3 * s3, axis=0, keepdims=True)


# ------------------------------- wrapper --------------------------------------

def _scale_bias(sum_part, sq_part, count, gamma, beta):
    """Fold batch stats (per-image partials) into a single FMA: scale, bias."""
    mean = jnp.sum(sum_part, axis=0) / count          # (1, Cp)
    ex2 = jnp.sum(sq_part, axis=0) / count
    var = jnp.maximum(ex2 - mean * mean, 0.0)         # guard tiny negative (cancellation)
    scale = gamma * jax.lax.rsqrt(var + EPS)
    return scale, beta - mean * scale


def bottleneck_forward(x_nchw, params, *, mxu_dtype=jnp.bfloat16):
    """Pallas forward.  x_nchw: (N, Cin, H, W) f32 -> (N, Cout, H, W) f32."""
    N, Cin, H, W = x_nchw.shape
    Cout = params["w1"].shape[1]
    Cip, Cp = _round_up(Cin, LANE), _round_up(Cout, LANE)
    HW = H * W
    count = float(N * HW)
    f32 = jnp.float32

    # NCHW -> (N, H*W, C) tokens, channel-padded to lane multiples, bf16 operands.
    x3 = jnp.transpose(x_nchw, (0, 2, 3, 1)).reshape(N, HW, Cin)
    x3 = jnp.pad(x3, ((0, 0), (0, 0), (0, Cip - Cin))).astype(mxu_dtype)

    wp = params.get("wp")
    if wp is None:                       # in_channels == out_channels: identity residual
        wp = jnp.eye(Cin, Cout, dtype=f32)
    pad_io = lambda w: jnp.pad(w, ((0, Cip - Cin), (0, Cp - Cout)))
    w1p = pad_io(params["w1"]).astype(mxu_dtype)
    wpp = pad_io(wp).astype(mxu_dtype)
    w2p = jnp.pad(params["w2"], ((0, 0), (0, 0), (0, Cp - Cout), (0, Cp - Cout)))
    w2p = w2p.reshape(9 * Cp, Cp).astype(mxu_dtype)     # row = (ky*3+kx)*Cp + cin
    w3p = jnp.pad(params["w3"], ((0, Cp - Cout), (0, Cp - Cout))).astype(mxu_dtype)
    pad_c = lambda p: jnp.pad(p, ((0, 0), (0, Cp - Cout)))
    g1, b1, g2, b2, g3, b3 = (pad_c(params[k])
                              for k in ("g1", "b1", "g2", "b2", "g3", "b3"))

    # ---- generation-aware VMEM budget / per-image-step estimate -----------------
    budget = _vmem_budget_bytes()
    blk = HW * Cp
    step_bytes = (4 * blk * 2                      # activation in + out blocks, 2x-buffered bf16
                  + 2 * 9 * Cp * Cp * 2            # conv2 weights
                  + (H + 2) * (W + 2) * Cp * 2     # halo scratch
                  + 4 * blk * 4)                   # f32 working set (y, acc, ...)
    if step_bytes > budget:
        # TODO(synk): intra-image row tiling (1-row halo) once per-image activations
        #             exceed the per-core VMEM budget (v7x: 64 MiB per TensorCore).
        raise ValueError(f"per-image tile ({step_bytes} B) exceeds VMEM budget ({budget} B)")
    cparams = pltpu.CompilerParams(
        dimension_semantics=("parallel",),         # images -> megacore / v7x 2 TCs
        vmem_limit_bytes=int(min(budget, max(32 * 1024 * 1024, 2 * step_bytes))))

    row = lambda C: pl.BlockSpec((1, HW, C), lambda n: (n, 0, 0))
    stat = pl.BlockSpec((1, 1, Cp), lambda n: (n, 0, 0))
    rep = lambda s: pl.BlockSpec(s, lambda n: tuple(0 for _ in s))

    # ---- pass 1: conv1 (1x1) + residual projection + BN1 partials ---------------
    h1, ident, s1, q1 = pl.pallas_call(
        _conv1_kernel,
        out_shape=(jax.ShapeDtypeStruct((N, HW, Cp), mxu_dtype),
                   jax.ShapeDtypeStruct((N, HW, Cp), mxu_dtype),
                   jax.ShapeDtypeStruct((N, 1, Cp), f32),
                   jax.ShapeDtypeStruct((N, 1, Cp), f32)),
        grid_spec=pltpu.PrefetchScalarGridSpec(
            num_scalar_prefetch=0, grid=(N,),
            in_specs=[row(Cip), rep((Cip, Cp)), rep((Cip, Cp))],
            out_specs=[row(Cp), row(Cp), stat, stat]),
        compiler_params=cparams,
        cost_estimate=pl.CostEstimate(flops=4 * N * HW * Cip * Cp, transcendentals=0,
                                      bytes_accessed=N * HW * (Cip + 2 * Cp) * 2),
    )(x3, w1p, wpp)
    sc1, bi1 = _scale_bias(s1, q1, count, g1, b1)

    # ---- pass 2: BN1+ReLU, 3x3 conv (9 accumulated dots), BN2 partials ----------
    h2, s2, q2 = pl.pallas_call(
        functools.partial(_conv2_kernel, H=H, W=W),
        out_shape=(jax.ShapeDtypeStruct((N, HW, Cp), mxu_dtype),
                   jax.ShapeDtypeStruct((N, 1, Cp), f32),
                   jax.ShapeDtypeStruct((N, 1, Cp), f32)),
        grid_spec=pltpu.PrefetchScalarGridSpec(
            num_scalar_prefetch=0, grid=(N,),
            in_specs=[row(Cp), rep((1, Cp)), rep((1, Cp)), rep((9 * Cp, Cp))],
            out_specs=[row(Cp), stat, stat],
            scratch_shapes=[pltpu.VMEM((H + 2, W + 2, Cp), mxu_dtype)]),
        compiler_params=cparams,
        cost_estimate=pl.CostEstimate(flops=18 * N * HW * Cp * Cp, transcendentals=0,
                                      bytes_accessed=N * HW * Cp * 4),
    )(h1, sc1, bi1, w2p)
    sc2, bi2 = _scale_bias(s2, q2, count, g2, b2)

    # ---- pass 3: BN2+ReLU, conv3 (1x1), + residual, BN3 partials ----------------
    s3, m3, q3 = pl.pallas_call(
        _conv3_kernel,
        out_shape=(jax.ShapeDtypeStruct((N, HW, Cp), f32),
                   jax.ShapeDtypeStruct((N, 1, Cp), f32),
                   jax.ShapeDtypeStruct((N, 1, Cp), f32)),
        grid_spec=pltpu.PrefetchScalarGridSpec(
            num_scalar_prefetch=0, grid=(N,),
            in_specs=[row(Cp), rep((1, Cp)), rep((1, Cp)), rep((Cp, Cp)), row(Cp)],
            out_specs=[row(Cp), stat, stat]),
        compiler_params=cparams,
        cost_estimate=pl.CostEstimate(flops=2 * N * HW * Cp * Cp, transcendentals=0,
                                      bytes_accessed=N * HW * Cp * 8),
    )(h2, sc2, bi2, w3p, ident)
    sc3, bi3 = _scale_bias(m3, q3, count, g3, b3)

    # ---- BN3 normalize + ReLU fused (XLA) with the Cout slice / NCHW transpose --
    out = jnp.maximum(s3 * sc3 + bi3, 0.0)[..., :Cout]
    out = out.reshape(N, H, W, Cout)
    return jnp.transpose(out, (0, 3, 1, 2))


# ------------------------------ reference / init ------------------------------

def reference_forward(x_nchw, params):
    """Pure-JAX f32 reference (faithful to the PyTorch module, training-mode BN)."""
    Cin = x_nchw.shape[1]
    Cout = params["w1"].shape[1]

    def bn(y, g, b):
        mean = jnp.mean(y, axis=(0, 1, 2), keepdims=True)
        var = jnp.mean((y - mean) ** 2, axis=(0, 1, 2), keepdims=True)
        return (y - mean) * jax.lax.rsqrt(var + EPS) * g + b

    def conv(y, w, pad):
        return jax.lax.conv_general_dilated(
            y, w, window_strides=(1, 1), padding=pad,
            dimension_numbers=("NHWC", "HWIO", "NHWC"),
            precision=jax.lax.Precision.HIGHEST)

    x = jnp.transpose(x_nchw, (0, 2, 3, 1))
    h = conv(x, params["w1"].reshape(1, 1, Cin, Cout), "VALID")
    h = jnp.maximum(bn(h, params["g1"], params["b1"]), 0.0)
    h = conv(h, params["w2"], [(1, 1), (1, 1)])
    h = jnp.maximum(bn(h, params["g2"], params["b2"]), 0.0)
    h = conv(h, params["w3"].reshape(1, 1, Cout, Cout), "VALID")
    wp = params.get("wp")
    ident = x if wp is None else conv(x, wp.reshape(1, 1, Cin, Cout), "VALID")
    out = jnp.maximum(bn(h + ident, params["g3"], params["b3"]), 0.0)
    return jnp.transpose(out, (0, 3, 1, 2))


def init_params(key, in_channels, out_channels):
    ks = jax.random.split(key, 10)
    f32 = jnp.float32

    def w(k, shape, fan_in):
        return (jax.random.normal(k, shape, f32) / np.sqrt(fan_in)).astype(f32)

    params = {
        # conv weights stored in matmul-friendly layout: (in, out) / HWIO
        "w1": w(ks[0], (in_channels, out_channels), in_channels),
        "w2": w(ks[1], (3, 3, out_channels, out_channels), 9 * out_channels),
        "w3": w(ks[2], (out_channels, out_channels), out_channels),
        # batch-norm affine params (non-trivial to exercise them)
        "g1": 1.0 + 0.1 * jax.random.normal(ks[4], (1, out_channels), f32),
        "b1": 0.1 * jax.random.normal(ks[5], (1, out_channels), f32),
        "g2": 1.0 + 0.1 * jax.random.normal(ks[6], (1, out_channels), f32),
        "b2": 0.1 * jax.random.normal(ks[7], (1, out_channels), f32),
        "g3": 1.0 + 0.1 * jax.random.normal(ks[8], (1, out_channels), f32),
        "b3": 0.1 * jax.random.normal(ks[9], (1, out_channels), f32),
    }
    if in_channels != out_channels:   # matches the module's conditional proj
        params["wp"] = w(ks[3], (in_channels, out_channels), in_channels)
    return params


if __name__ == "__main__":
    key = jax.random.PRNGKey(0)
    k_x, k_p = jax.random.split(key)

    N, Cin, Cout, H, W = 2, 4, 8, 16, 16
    x = jax.random.normal(k_x, (N, Cin, H, W), jnp.float32)
    params = init_params(k_p, Cin, Cout)

    fwd = jax.jit(bottleneck_forward)
    out = jax.block_until_ready(fwd(x, params))
    ref = jax.block_until_ready(reference_forward(x, params))

    # Tolerance reflects bf16 MXU operands / bf16 intermediate storage (f32 BN math);
    # structural bugs would give O(1) errors.
    np.testing.assert_allclose(np.asarray(out), np.asarray(ref),
                               rtol=3e-2, atol=3e-2)
    assert out.shape == (N, Cout, H, W)
    print("KERNEL_OK")
</pallas_src>

<mosaic_0001>
module attributes {stable_mosaic.version = 11 : i64} {
  func.func @_conv1_kernel(%arg0: i32, %arg1: memref<1x256x128xbf16, #tpu.memory_space<vmem>>, %arg2: memref<128x128xbf16, #tpu.memory_space<vmem>>, %arg3: memref<128x128xbf16, #tpu.memory_space<vmem>>, %arg4: memref<1x256x128xbf16, #tpu.memory_space<vmem>>, %arg5: memref<1x256x128xbf16, #tpu.memory_space<vmem>>, %arg6: memref<1x1x128xf32, #tpu.memory_space<vmem>>, %arg7: memref<1x1x128xf32, #tpu.memory_space<vmem>>) attributes {dimension_semantics = [#tpu.dimension_semantics<parallel>], iteration_bounds = array<i64: 2>, scalar_prefetch = 0 : i64, scratch_operands = 0 : i64, tpu.core_type = #tpu.core_type<tc>, window_params = [{transform_indices = @transform_0, window_bounds = array<i64: 1, 256, 128>}, {pipeline_mode = #tpu.pipeline_mode<synchronous>, transform_indices = @transform_1, window_bounds = array<i64: 128, 128>}, {pipeline_mode = #tpu.pipeline_mode<synchronous>, transform_indices = @transform_2, window_bounds = array<i64: 128, 128>}, {transform_indices = @transform_3, window_bounds = array<i64: 1, 256, 128>}, {transform_indices = @transform_4, window_bounds = array<i64: 1, 256, 128>}, {transform_indices = @transform_5, window_bounds = array<i64: 1, 1, 128>}, {transform_indices = @transform_6, window_bounds = array<i64: 1, 1, 128>}]} {
    %c0 = arith.constant 0 : index
    %c0_0 = arith.constant 0 : index
    %c0_1 = arith.constant 0 : index
    %0 = vector.load %arg1[%c0, %c0_0, %c0_1] : memref<1x256x128xbf16, #tpu.memory_space<vmem>>, vector<1x256x128xbf16>
    %1 = vector.shape_cast %0 : vector<1x256x128xbf16> to vector<256x128xbf16>
    %c0_2 = arith.constant 0 : index
    %c0_3 = arith.constant 0 : index
    %2 = vector.load %arg2[%c0_2, %c0_3] : memref<128x128xbf16, #tpu.memory_space<vmem>>, vector<128x128xbf16>
    %cst = arith.constant dense<0.000000e+00> : vector<256x128xf32>
    %3 = tpu.matmul %1, %2, %cst {dimension_numbers = #tpu.dot_dimension_numbers<[1], [0], [0], [1], [0, 0, 1, 1], [], []>} : vector<256x128xbf16>, vector<128x128xbf16>, vector<256x128xf32> -> vector<256x128xf32>
    %c0_4 = arith.constant 0 : index
    %c0_5 = arith.constant 0 : index
    %4 = vector.load %arg3[%c0_4, %c0_5] : memref<128x128xbf16, #tpu.memory_space<vmem>>, vector<128x128xbf16>
    %cst_6 = arith.constant dense<0.000000e+00> : vector<256x128xf32>
    %5 = tpu.matmul %1, %4, %cst_6 {dimension_numbers = #tpu.dot_dimension_numbers<[1], [0], [0], [1], [0, 0, 1, 1], [], []>} : vector<256x128xbf16>, vector<128x128xbf16>, vector<256x128xf32> -> vector<256x128xf32>
    %6 = arith.truncf %3 : vector<256x128xf32> to vector<256x128xbf16>
    %c0_7 = arith.constant 0 : index
    %c0_8 = arith.constant 0 : index
    %c0_9 = arith.constant 0 : index
    %7 = vector.load %arg4[%c0_7, %c0_8, %c0_9] : memref<1x256x128xbf16, #tpu.memory_space<vmem>>, vector<1x256x128xbf16>
    %8 = vector.shape_cast %7 : vector<1x256x128xbf16> to vector<256x128xbf16>
    %9 = vector.shape_cast %6 : vector<256x128xbf16> to vector<1x256x128xbf16>
    tpu.vector_store %arg4[%c0_7, %c0_8, %c0_9], %9 {strides = array<i32>} : memref<1x256x128xbf16, #tpu.memory_space<vmem>>, vector<1x256x128xbf16>,
    %10 = arith.truncf %5 : vector<256x128xf32> to vector<256x128xbf16>
    %c0_10 = arith.constant 0 : index
    %c0_11 = arith.constant 0 : index
    %c0_12 = arith.constant 0 : index
    %11 = vector.load %arg5[%c0_10, %c0_11, %c0_12] : memref<1x256x128xbf16, #tpu.memory_space<vmem>>, vector<1x256x128xbf16>
    %12 = vector.shape_cast %11 : vector<1x256x128xbf16> to vector<256x128xbf16>
    %13 = vector.shape_cast %10 : vector<256x128xbf16> to vector<1x256x128xbf16>
    tpu.vector_store %arg5[%c0_10, %c0_11, %c0_12], %13 {strides = array<i32>} : memref<1x256x128xbf16, #tpu.memory_space<vmem>>, vector<1x256x128xbf16>,
    %cst_13 = arith.constant dense<0.000000e+00> : vector<128xf32>
    %14 = vector.multi_reduction <add>, %3, %cst_13 [0] : vector<256x128xf32> to vector<128xf32>
    %15 = vector.shape_cast %14 : vector<128xf32> to vector<1x128xf32>
    %c0_14 = arith.constant 0 : index
    %c0_15 = arith.constant 0 : index
    %c0_16 = arith.constant 0 : index
    %16 = vector.load %arg6[%c0_14, %c0_15, %c0_16] : memref<1x1x128xf32, #tpu.memory_space<vmem>>, vector<1x1x128xf32>
    %17 = vector.shape_cast %16 : vector<1x1x128xf32> to vector<1x128xf32>
    %18 = vector.shape_cast %15 : vector<1x128xf32> to vector<1x1x128xf32>
    tpu.vector_store %arg6[%c0_14, %c0_15, %c0_16], %18 {strides = array<i32>} : memref<1x1x128xf32, #tpu.memory_space<vmem>>, vector<1x1x128xf32>,
    %19 = arith.mulf %3, %3 : vector<256x128xf32>
    %cst_17 = arith.constant dense<0.000000e+00> : vector<128xf32>
    %20 = vector.multi_reduction <add>, %19, %cst_17 [0] : vector<256x128xf32> to vector<128xf32>
    %21 = vector.shape_cast %20 : vector<128xf32> to vector<1x128xf32>
    %c0_18 = arith.constant 0 : index
    %c0_19 = arith.constant 0 : index
    %c0_20 = arith.constant 0 : index
    %22 = vector.load %arg7[%c0_18, %c0_19, %c0_20] : memref<1x1x128xf32, #tpu.memory_space<vmem>>, vector<1x1x128xf32>
    %23 = vector.shape_cast %22 : vector<1x1x128xf32> to vector<1x128xf32>
    %24 = vector.shape_cast %21 : vector<1x128xf32> to vector<1x1x128xf32>
    tpu.vector_store %arg7[%c0_18, %c0_19, %c0_20], %24 {strides = array<i32>} : memref<1x1x128xf32, #tpu.memory_space<vmem>>, vector<1x1x128xf32>,
    return
  }
  func.func @transform_0(%arg0: i32) -> (i32, i32, i32) {
    %c0_i32 = arith.constant 0 : i32
    %c0_i32_0 = arith.constant 0 : i32
    %c0_i32_1 = arith.constant 0 : i32
    return %arg0, %c0_i32, %c0_i32_0 : i32, i32, i32
  }
  func.func @transform_1(%arg0: i32) -> (i32, i32) {
    %c0_i32 = arith.constant 0 : i32
    %c0_i32_0 = arith.constant 0 : i32
    %c0_i32_1 = arith.constant 0 : i32
    return %c0_i32, %c0_i32_0 : i32, i32
  }
  func.func @transform_2(%arg0: i32) -> (i32, i32) {
    %c0_i32 = arith.constant 0 : i32
    %c0_i32_0 = arith.constant 0 : i32
    %c0_i32_1 = arith.constant 0 : i32
    return %c0_i32, %c0_i32_0 : i32, i32
  }
  func.func @transform_3(%arg0: i32) -> (i32, i32, i32) {
    %c0_i32 = arith.constant 0 : i32
    %c0_i32_0 = arith.constant 0 : i32
    %c0_i32_1 = arith.constant 0 : i32
    return %arg0, %c0_i32, %c0_i32_0 : i32, i32, i32
  }
  func.func @transform_4(%arg0: i32) -> (i32, i32, i32) {
    %c0_i32 = arith.constant 0 : i32
    %c0_i32_0 = arith.constant 0 : i32
    %c0_i32_1 = arith.constant 0 : i32
    return %arg0, %c0_i32, %c0_i32_0 : i32, i32, i32
  }
  func.func @transform_5(%arg0: i32) -> (i32, i32, i32) {
    %c0_i32 = arith.constant 0 : i32
    %c0_i32_0 = arith.constant 0 : i32
    %c0_i32_1 = arith.constant 0 : i32
    return %arg0, %c0_i32, %c0_i32_0 : i32, i32, i32
  }
  func.func @transform_6(%arg0: i32) -> (i32, i32, i32) {
    %c0_i32 = arith.constant 0 : i32
    %c0_i32_0 = arith.constant 0 : i32
    %c0_i32_1 = arith.constant 0 : i32
    return %arg0, %c0_i32, %c0_i32_0 : i32, i32, i32
  }
}

module attributes {stable_mosaic.version = 11 : i64} {
  func.func @_conv2_kernel(%arg0: i32, %arg1: memref<1x256x128xbf16, #tpu.memory_space<vmem>>, %arg2: memref<1x128xf32, #tpu.memory_space<vmem>>, %arg3: memref<1x128xf32, #tpu.memory_space<vmem>>, %arg4: memref<1152x128xbf16, #tpu.memory_space<vmem>>, %arg5: memref<1x256x128xbf16, #tpu.memory_space<vmem>>, %arg6: memref<1x1x128xf32, #tpu.memory_space<vmem>>, %arg7: memref<1x1x128xf32, #tpu.memory_space<vmem>>, %arg8: memref<18x18x128xbf16, #tpu.memory_space<vmem>>) attributes {dimension_semantics = [#tpu.dimension_semantics<parallel>], iteration_bounds = array<i64: 2>, scalar_prefetch = 0 : i64, scratch_operands = 1 : i64, tpu.core_type = #tpu.core_type<tc>, window_params = [{transform_indices = @transform_0, window_bounds = array<i64: 1, 256, 128>}, {pipeline_mode = #tpu.pipeline_mode<synchronous>, transform_indices = @transform_1, window_bounds = array<i64: 1, 128>}, {pipeline_mode = #tpu.pipeline_mode<synchronous>, transform_indices = @transform_2, window_bounds = array<i64: 1, 128>}, {pipeline_mode = #tpu.pipeline_mode<synchronous>, transform_indices = @transform_3, window_bounds = array<i64: 1152, 128>}, {transform_indices = @transform_4, window_bounds = array<i64: 1, 256, 128>}, {transform_indices = @transform_5, window_bounds = array<i64: 1, 1, 128>}, {transform_indices = @transform_6, window_bounds = array<i64: 1, 1, 128>}]} {
    %c0 = arith.constant 0 : index
    %c0_0 = arith.constant 0 : index
    %c0_1 = arith.constant 0 : index
    %0 = vector.load %arg1[%c0, %c0_0, %c0_1] : memref<1x256x128xbf16, #tpu.memory_space<vmem>>, vector<1x256x128xbf16>
    %1 = vector.shape_cast %0 : vector<1x256x128xbf16> to vector<256x128xbf16>
    %2 = arith.extf %1 : vector<256x128xbf16> to vector<256x128xf32>
    %c0_2 = arith.constant 0 : index
    %c0_3 = arith.constant 0 : index
    %3 = vector.load %arg2[%c0_2, %c0_3] : memref<1x128xf32, #tpu.memory_space<vmem>>, vector<1x128xf32>
    %4 = vector.broadcast %3 : vector<1x128xf32> to vector<256x128xf32>
    %5 = arith.mulf %2, %4 : vector<256x128xf32>
    %c0_4 = arith.constant 0 : index
    %c0_5 = arith.constant 0 : index
    %6 = vector.load %arg3[%c0_4, %c0_5] : memref<1x128xf32, #tpu.memory_space<vmem>>, vector<1x128xf32>
    %7 = vector.broadcast %6 : vector<1x128xf32> to vector<256x128xf32>
    %8 = arith.addf %5, %7 : vector<256x128xf32>
    %cst = arith.constant 0.000000e+00 : f32
    %9 = vector.broadcast %cst : f32 to vector<256x128xf32>
    %10 = arith.maximumf %8, %9 : vector<256x128xf32>
    %11 = arith.truncf %10 : vector<256x128xf32> to vector<256x128xbf16>
    %12 = vector.shape_cast %11 : vector<256x128xbf16> to vector<16x16x128xbf16>
    %cst_6 = arith.constant 0.000000e+00 : bf16
    %13 = vector.broadcast %cst_6 : bf16 to vector<1x18x128xbf16>
    %c0_7 = arith.constant 0 : index
    %c0_8 = arith.constant 0 : index
    %c0_9 = arith.constant 0 : index
    %14 = vector.load %arg8[%c0_7, %c0_8, %c0_9] : memref<18x18x128xbf16, #tpu.memory_space<vmem>>, vector<1x18x128xbf16>
    tpu.vector_store %arg8[%c0_7, %c0_8, %c0_9], %13 {strides = array<i32>} : memref<18x18x128xbf16, #tpu.memory_space<vmem>>, vector<1x18x128xbf16>,
    %cst_10 = arith.constant 0.000000e+00 : bf16
    %15 = vector.broadcast %cst_10 : bf16 to vector<1x18x128xbf16>
    %c17 = arith.constant 17 : index
    %c0_11 = arith.constant 0 : index
    %c0_12 = arith.constant 0 : index
    %16 = vector.load %arg8[%c17, %c0_11, %c0_12] : memref<18x18x128xbf16, #tpu.memory_space<vmem>>, vector<1x18x128xbf16>
    tpu.vector_store %arg8[%c17, %c0_11, %c0_12], %15 {strides = array<i32>} : memref<18x18x128xbf16, #tpu.memory_space<vmem>>, vector<1x18x128xbf16>,
    %cst_13 = arith.constant 0.000000e+00 : bf16
    %17 = vector.broadcast %cst_13 : bf16 to vector<18x1x128xbf16>
    %c0_14 = arith.constant 0 : index
    %c0_15 = arith.constant 0 : index
    %c0_16 = arith.constant 0 : index
    %18 = vector.load %arg8[%c0_14, %c0_15, %c0_16] : memref<18x18x128xbf16, #tpu.memory_space<vmem>>, vector<18x1x128xbf16>
    tpu.vector_store %arg8[%c0_14, %c0_15, %c0_16], %17 {strides = array<i32>} : memref<18x18x128xbf16, #tpu.memory_space<vmem>>, vector<18x1x128xbf16>,
    %cst_17 = arith.constant 0.000000e+00 : bf16
    %19 = vector.broadcast %cst_17 : bf16 to vector<18x1x128xbf16>
    %c0_18 = arith.constant 0 : index
    %c17_19 = arith.constant 17 : index
    %c0_20 = arith.constant 0 : index
    %20 = vector.load %arg8[%c0_18, %c17_19, %c0_20] : memref<18x18x128xbf16, #tpu.memory_space<vmem>>, vector<18x1x128xbf16>
    tpu.vector_store %arg8[%c0_18, %c17_19, %c0_20], %19 {strides = array<i32>} : memref<18x18x128xbf16, #tpu.memory_space<vmem>>, vector<18x1x128xbf16>,
    %c1 = arith.constant 1 : index
    %c1_21 = arith.constant 1 : index
    %c0_22 = arith.constant 0 : index
    %21 = vector.load %arg8[%c1, %c1_21, %c0_22] : memref<18x18x128xbf16, #tpu.memory_space<vmem>>, vector<16x16x128xbf16>
    tpu.vector_store %arg8[%c1, %c1_21, %c0_22], %12 {strides = array<i32>} : memref<18x18x128xbf16, #tpu.memory_space<vmem>>, vector<16x16x128xbf16>,
    %cst_23 = arith.constant 0.000000e+00 : f32
    %22 = vector.broadcast %cst_23 : f32 to vector<256x128xf32>
    %c0_24 = arith.constant 0 : index
    %c0_25 = arith.constant 0 : index
    %c0_26 = arith.constant 0 : index
    %23 = vector.load %arg8[%c0_24, %c0_25, %c0_26] : memref<18x18x128xbf16, #tpu.memory_space<vmem>>, vector<16x16x128xbf16>
    %24 = vector.shape_cast %23 : vector<16x16x128xbf16> to vector<256x128xbf16>
    %c0_27 = arith.constant 0 : index
    %c0_28 = arith.constant 0 : index
    %25 = vector.load %arg4[%c0_27, %c0_28] : memref<1152x128xbf16, #tpu.memory_space<vmem>>, vector<128x128xbf16>
    %cst_29 = arith.constant dense<0.000000e+00> : vector<256x128xf32>
    %26 = tpu.matmul %24, %25, %cst_29 {dimension_numbers = #tpu.dot_dimension_numbers<[1], [0], [0], [1], [0, 0, 1, 1], [], []>} : vector<256x128xbf16>, vector<128x128xbf16>, vector<256x128xf32> -> vector<256x128xf32>
    %27 = arith.addf %22, %26 : vector<256x128xf32>
    %c0_30 = arith.constant 0 : index
    %c1_31 = arith.constant 1 : index
    %c0_32 = arith.constant 0 : index
    %28 = vector.load %arg8[%c0_30, %c1_31, %c0_32] : memref<18x18x128xbf16, #tpu.memory_space<vmem>>, vector<16x16x128xbf16>
    %29 = vector.shape_cast %28 : vector<16x16x128xbf16> to vector<256x128xbf16>
    %c128 = arith.constant 128 : index
    %c0_33 = arith.constant 0 : index
    %30 = vector.load %arg4[%c128, %c0_33] : memref<1152x128xbf16, #tpu.memory_space<vmem>>, vector<128x128xbf16>
    %cst_34 = arith.constant dense<0.000000e+00> : vector<256x128xf32>
    %31 = tpu.matmul %29, %30, %cst_34 {dimension_numbers = #tpu.dot_dimension_numbers<[1], [0], [0], [1], [0, 0, 1, 1], [], []>} : vector<256x128xbf16>, vector<128x128xbf16>, vector<256x128xf32> -> vector<256x128xf32>
    %32 = arith.addf %27, %31 : vector<256x128xf32>
    %c0_35 = arith.constant 0 : index
    %c2 = arith.constant 2 : index
    %c0_36 = arith.constant 0 : index
    %33 = vector.load %arg8[%c0_35, %c2, %c0_36] : memref<18x18x128xbf16, #tpu.memory_space<vmem>>, vector<16x16x128xbf16>
    %34 = vector.shape_cast %33 : vector<16x16x128xbf16> to vector<256x128xbf16>
    %c256 = arith.constant 256 : index
    %c0_37 = arith.constant 0 : index
    %35 = vector.load %arg4[%c256, %c0_37] : memref<1152x128xbf16, #tpu.memory_space<vmem>>, vector<128x128xbf16>
    %cst_38 = arith.constant dense<0.000000e+00> : vector<256x128xf32>
    %36 = tpu.matmul %34, %35, %cst_38 {dimension_numbers = #tpu.dot_dimension_numbers<[1], [0], [0], [1], [0, 0, 1, 1], [], []>} : vector<256x128xbf16>, vector<128x128xbf16>, vector<256x128xf32> -> vector<256x128xf32>
    %37 = arith.addf %32, %36 : vector<256x128xf32>
    %c1_39 = arith.constant 1 : index
    %c0_40 = arith.constant 0 : index
    %c0_41 = arith.constant 0 : index
    %38 = vector.load %arg8[%c1_39, %c0_40, %c0_41] : memref<18x18x128xbf16, #tpu.memory_space<vmem>>, vector<16x16x128xbf16>
    %39 = vector.shape_cast %38 : vector<16x16x128xbf16> to vector<256x128xbf16>
    %c384 = arith.constant 384 : index
    %c0_42 = arith.constant 0 : index
    %40 = vector.load %arg4[%c384, %c0_42] : memref<1152x128xbf16, #tpu.memory_space<vmem>>, vector<128x128xbf16>
    %cst_43 = arith.constant dense<0.000000e+00> : vector<256x128xf32>
    %41 = tpu.matmul %39, %40, %cst_43 {dimension_numbers = #tpu.dot_dimension_numbers<[1], [0], [0], [1], [0, 0, 1, 1], [], []>} : vector<256x128xbf16>, vector<128x128xbf16>, vector<256x128xf32> -> vector<256x128xf32>
    %42 = arith.addf %37, %41 : vector<256x128xf32>
    %c1_44 = arith.constant 1 : index
    %c1_45 = arith.constant 1 : index
    %c0_46 = arith.constant 0 : index
    %43 = vector.load %arg8[%c1_44, %c1_45, %c0_46] : memref<18x18x128xbf16, #tpu.memory_space<vmem>>, vector<16x16x128xbf16>
    %44 = vector.shape_cast %43 : vector<16x16x128xbf16> to vector<256x128xbf16>
    %c512 = arith.constant 512 : index
    %c0_47 = arith.constant 0 : index
    %45 = vector.load %arg4[%c512, %c0_47] : memref<1152x128xbf16, #tpu.memory_space<vmem>>, vector<128x128xbf16>
    %cst_48 = arith.constant dense<0.000000e+00> : vector<256x128xf32>
    %46 = tpu.matmul %44, %45, %cst_48 {dimension_numbers = #tpu.dot_dimension_numbers<[1], [0], [0], [1], [0, 0, 1, 1], [], []>} : vector<256x128xbf16>, vector<128x128xbf16>, vector<256x128xf32> -> vector<256x128xf32>
    %47 = arith.addf %42, %46 : vector<256x128xf32>
    %c1_49 = arith.constant 1 : index
    %c2_50 = arith.constant 2 : index
    %c0_51 = arith.constant 0 : index
    %48 = vector.load %arg8[%c1_49, %c2_50, %c0_51] : memref<18x18x128xbf16, #tpu.memory_space<vmem>>, vector<16x16x128xbf16>
    %49 = vector.shape_cast %48 : vector<16x16x128xbf16> to vector<256x128xbf16>
    %c640 = arith.constant 640 : index
    %c0_52 = arith.constant 0 : index
    %50 = vector.load %arg4[%c640, %c0_52] : memref<1152x128xbf16, #tpu.memory_space<vmem>>, vector<128x128xbf16>
    %cst_53 = arith.constant dense<0.000000e+00> : vector<256x128xf32>
    %51 = tpu.matmul %49, %50, %cst_53 {dimension_numbers = #tpu.dot_dimension_numbers<[1], [0], [0], [1], [0, 0, 1, 1], [], []>} : vector<256x128xbf16>, vector<128x128xbf16>, vector<256x128xf32> -> vector<256x128xf32>
    %52 = arith.addf %47, %51 : vector<256x128xf32>
    %c2_54 = arith.constant 2 : index
    %c0_55 = arith.constant 0 : index
    %c0_56 = arith.constant 0 : index
    %53 = vector.load %arg8[%c2_54, %c0_55, %c0_56] : memref<18x18x128xbf16, #tpu.memory_space<vmem>>, vector<16x16x128xbf16>
    %54 = vector.shape_cast %53 : vector<16x16x128xbf16> to vector<256x128xbf16>
    %c768 = arith.constant 768 : index
    %c0_57 = arith.constant 0 : index
    %55 = vector.load %arg4[%c768, %c0_57] : memref<1152x128xbf16, #tpu.memory_space<vmem>>, vector<128x128xbf16>
    %cst_58 = arith.constant dense<0.000000e+00> : vector<256x128xf32>
    %56 = tpu.matmul %54, %55, %cst_58 {dimension_numbers = #tpu.dot_dimension_numbers<[1], [0], [0], [1], [0, 0, 1, 1], [], []>} : vector<256x128xbf16>, vector<128x128xbf16>, vector<256x128xf32> -> vector<256x128xf32>
    %57 = arith.addf %52, %56 : vector<256x128xf32>
    %c2_59 = arith.constant 2 : index
    %c1_60 = arith.constant 1 : index
    %c0_61 = arith.constant 0 : index
    %58 = vector.load %arg8[%c2_59, %c1_60, %c0_61] : memref<18x18x128xbf16, #tpu.memory_space<vmem>>, vector<16x16x128xbf16>
    %59 = vector.shape_cast %58 : vector<16x16x128xbf16> to vector<256x128xbf16>
    %c896 = arith.constant 896 : index
    %c0_62 = arith.constant 0 : index
    %60 = vector.load %arg4[%c896, %c0_62] : memref<1152x128xbf16, #tpu.memory_space<vmem>>, vector<128x128xbf16>
    %cst_63 = arith.constant dense<0.000000e+00> : vector<256x128xf32>
    %61 = tpu.matmul %59, %60, %cst_63 {dimension_numbers = #tpu.dot_dimension_numbers<[1], [0], [0], [1], [0, 0, 1, 1], [], []>} : vector<256x128xbf16>, vector<128x128xbf16>, vector<256x128xf32> -> vector<256x128xf32>
    %62 = arith.addf %57, %61 : vector<256x128xf32>
    %c2_64 = arith.constant 2 : index
    %c2_65 = arith.constant 2 : index
    %c0_66 = arith.constant 0 : index
    %63 = vector.load %arg8[%c2_64, %c2_65, %c0_66] : memref<18x18x128xbf16, #tpu.memory_space<vmem>>, vector<16x16x128xbf16>
    %64 = vector.shape_cast %63 : vector<16x16x128xbf16> to vector<256x128xbf16>
    %c1024 = arith.constant 1024 : index
    %c0_67 = arith.constant 0 : index
    %65 = vector.load %arg4[%c1024, %c0_67] : memref<1152x128xbf16, #tpu.memory_space<vmem>>, vector<128x128xbf16>
    %cst_68 = arith.constant dense<0.000000e+00> : vector<256x128xf32>
    %66 = tpu.matmul %64, %65, %cst_68 {dimension_numbers = #tpu.dot_dimension_numbers<[1], [0], [0], [1], [0, 0, 1, 1], [], []>} : vector<256x128xbf16>, vector<128x128xbf16>, vector<256x128xf32> -> vector<256x128xf32>
    %67 = arith.addf %62, %66 : vector<256x128xf32>
    %68 = arith.truncf %67 : vector<256x128xf32> to vector<256x128xbf16>
    %c0_69 = arith.constant 0 : index
    %c0_70 = arith.constant 0 : index
    %c0_71 = arith.constant 0 : index
    %69 = vector.load %arg5[%c0_69, %c0_70, %c0_71] : memref<1x256x128xbf16, #tpu.memory_space<vmem>>, vector<1x256x128xbf16>
    %70 = vector.shape_cast %69 : vector<1x256x128xbf16> to vector<256x128xbf16>
    %71 = vector.shape_cast %68 : vector<256x128xbf16> to vector<1x256x128xbf16>
    tpu.vector_store %arg5[%c0_69, %c0_70, %c0_71], %71 {strides = array<i32>} : memref<1x256x128xbf16, #tpu.memory_space<vmem>>, vector<1x256x128xbf16>,
    %cst_72 = arith.constant dense<0.000000e+00> : vector<128xf32>
    %72 = vector.multi_reduction <add>, %67, %cst_72 [0] : vector<256x128xf32> to vector<128xf32>
    %73 = vector.shape_cast %72 : vector<128xf32> to vector<1x128xf32>
    %c0_73 = arith.constant 0 : index
    %c0_74 = arith.constant 0 : index
    %c0_75 = arith.constant 0 : index
    %74 = vector.load %arg6[%c0_73, %c0_74, %c0_75] : memref<1x1x128xf32, #tpu.memory_space<vmem>>, vector<1x1x128xf32>
    %75 = vector.shape_cast %74 : vector<1x1x128xf32> to vector<1x128xf32>
    %76 = vector.shape_cast %73 : vector<1x128xf32> to vector<1x1x128xf32>
    tpu.vector_store %arg6[%c0_73, %c0_74, %c0_75], %76 {strides = array<i32>} : memref<1x1x128xf32, #tpu.memory_space<vmem>>, vector<1x1x128xf32>,
    %77 = arith.mulf %67, %67 : vector<256x128xf32>
    %cst_76 = arith.constant dense<0.000000e+00> : vector<128xf32>
    %78 = vector.multi_reduction <add>, %77, %cst_76 [0] : vector<256x128xf32> to vector<128xf32>
    %79 = vector.shape_cast %78 : vector<128xf32> to vector<1x128xf32>
    %c0_77 = arith.constant 0 : index
    %c0_78 = arith.constant 0 : index
    %c0_79 = arith.constant 0 : index
    %80 = vector.load %arg7[%c0_77, %c0_78, %c0_79] : memref<1x1x128xf32, #tpu.memory_space<vmem>>, vector<1x1x128xf32>
    %81 = vector.shape_cast %80 : vector<1x1x128xf32> to vector<1x128xf32>
    %82 = vector.shape_cast %79 : vector<1x128xf32> to vector<1x1x128xf32>
    tpu.vector_store %arg7[%c0_77, %c0_78, %c0_79], %82 {strides = array<i32>} : memref<1x1x128xf32, #tpu.memory_space<vmem>>, vector<1x1x128xf32>,
    return
  }
  func.func @transform_0(%arg0: i32) -> (i32, i32, i32) {
    %c0_i32 = arith.constant 0 : i32
    %c0_i32_0 = arith.constant 0 : i32
    %c0_i32_1 = arith.constant 0 : i32
    return %arg0, %c0_i32, %c0_i32_0 : i32, i32, i32
  }
  func.func @transform_1(%arg0: i32) -> (i32, i32) {
    %c0_i32 = arith.constant 0 : i32
    %c0_i32_0 = arith.constant 0 : i32
    %c0_i32_1 = arith.constant 0 : i32
    return %c0_i32, %c0_i32_0 : i32, i32
  }
  func.func @transform_2(%arg0: i32) -> (i32, i32) {
    %c0_i32 = arith.constant 0 : i32
    %c0_i32_0 = arith.constant 0 : i32
    %c0_i32_1 = arith.constant 0 : i32
    return %c0_i32, %c0_i32_0 : i32, i32
  }
  func.func @transform_3(%arg0: i32) -> (i32, i32) {
    %c0_i32 = arith.constant 0 : i32
    %c0_i32_0 = arith.constant 0 : i32
    %c0_i32_1 = arith.constant 0 : i32
    return %c0_i32, %c0_i32_0 : i32, i32
  }
  func.func @transform_4(%arg0: i32) -> (i32, i32, i32) {
    %c0_i32 = arith.constant 0 : i32
    %c0_i32_0 = arith.constant 0 : i32
    %c0_i32_1 = arith.constant 0 : i32
    return %arg0, %c0_i32, %c0_i32_0 : i32, i32, i32
  }
  func.func @transform_5(%arg0: i32) -> (i32, i32, i32) {
    %c0_i32 = arith.constant 0 : i32
    %c0_i32_0 = arith.constant 0 : i32
    %c0_i32_1 = arith.constant 0 : i32
    return %arg0, %c0_i32, %c0_i32_0 : i32, i32, i32
  }
  func.func @transform_6(%arg0: i32) -> (i32, i32, i32) {
    %c0_i32 = arith.constant 0 : i32
    %c0_i32_0 = arith.constant 0 : i32
    %c0_i32_1 = arith.constant 0 : i32
    return %arg0, %c0_i32, %c0_i32_0 : i32, i32, i32
  }
}

module attributes {stable_mosaic.version = 11 : i64} {
  func.func @_conv3_kernel(%arg0: i32, %arg1: memref<1x256x128xbf16, #tpu.memory_space<vmem>>, %arg2: memref<1x128xf32, #tpu.memory_space<vmem>>, %arg3: memref<1x128xf32, #tpu.memory_space<vmem>>, %arg4: memref<128x128xbf16, #tpu.memory_space<vmem>>, %arg5: memref<1x256x128xbf16, #tpu.memory_space<vmem>>, %arg6: memref<1x256x128xf32, #tpu.memory_space<vmem>>, %arg7: memref<1x1x128xf32, #tpu.memory_space<vmem>>, %arg8: memref<1x1x128xf32, #tpu.memory_space<vmem>>) attributes {dimension_semantics = [#tpu.dimension_semantics<parallel>], iteration_bounds = array<i64: 2>, scalar_prefetch = 0 : i64, scratch_operands = 0 : i64, tpu.core_type = #tpu.core_type<tc>, window_params = [{transform_indices = @transform_0, window_bounds = array<i64: 1, 256, 128>}, {pipeline_mode = #tpu.pipeline_mode<synchronous>, transform_indices = @transform_1, window_bounds = array<i64: 1, 128>}, {pipeline_mode = #tpu.pipeline_mode<synchronous>, transform_indices = @transform_2, window_bounds = array<i64: 1, 128>}, {pipeline_mode = #tpu.pipeline_mode<synchronous>, transform_indices = @transform_3, window_bounds = array<i64: 128, 128>}, {transform_indices = @transform_4, window_bounds = array<i64: 1, 256, 128>}, {transform_indices = @transform_5, window_bounds = array<i64: 1, 256, 128>}, {transform_indices = @transform_6, window_bounds = array<i64: 1, 1, 128>}, {transform_indices = @transform_7, window_bounds = array<i64: 1, 1, 128>}]} {
    %c0 = arith.constant 0 : index
    %c0_0 = arith.constant 0 : index
    %c0_1 = arith.constant 0 : index
    %0 = vector.load %arg1[%c0, %c0_0, %c0_1] : memref<1x256x128xbf16, #tpu.memory_space<vmem>>, vector<1x256x128xbf16>
    %1 = vector.shape_cast %0 : vector<1x256x128xbf16> to vector<256x128xbf16>
    %2 = arith.extf %1 : vector<256x128xbf16> to vector<256x128xf32>
    %c0_2 = arith.constant 0 : index
    %c0_3 = arith.constant 0 : index
    %3 = vector.load %arg2[%c0_2, %c0_3] : memref<1x128xf32, #tpu.memory_space<vmem>>, vector<1x128xf32>
    %4 = vector.broadcast %3 : vector<1x128xf32> to vector<256x128xf32>
    %5 = arith.mulf %2, %4 : vector<256x128xf32>
    %c0_4 = arith.constant 0 : index
    %c0_5 = arith.constant 0 : index
    %6 = vector.load %arg3[%c0_4, %c0_5] : memref<1x128xf32, #tpu.memory_space<vmem>>, vector<1x128xf32>
    %7 = vector.broadcast %6 : vector<1x128xf32> to vector<256x128xf32>
    %8 = arith.addf %5, %7 : vector<256x128xf32>
    %cst = arith.constant 0.000000e+00 : f32
    %9 = vector.broadcast %cst : f32 to vector<256x128xf32>
    %10 = arith.maximumf %8, %9 : vector<256x128xf32>
    %11 = arith.truncf %10 : vector<256x128xf32> to vector<256x128xbf16>
    %c0_6 = arith.constant 0 : index
    %c0_7 = arith.constant 0 : index
    %12 = vector.load %arg4[%c0_6, %c0_7] : memref<128x128xbf16, #tpu.memory_space<vmem>>, vector<128x128xbf16>
    %cst_8 = arith.constant dense<0.000000e+00> : vector<256x128xf32>
    %13 = tpu.matmul %11, %12, %cst_8 {dimension_numbers = #tpu.dot_dimension_numbers<[1], [0], [0], [1], [0, 0, 1, 1], [], []>} : vector<256x128xbf16>, vector<128x128xbf16>, vector<256x128xf32> -> vector<256x128xf32>
    %c0_9 = arith.constant 0 : index
    %c0_10 = arith.constant 0 : index
    %c0_11 = arith.constant 0 : index
    %14 = vector.load %arg5[%c0_9, %c0_10, %c0_11] : memref<1x256x128xbf16, #tpu.memory_space<vmem>>, vector<1x256x128xbf16>
    %15 = vector.shape_cast %14 : vector<1x256x128xbf16> to vector<256x128xbf16>
    %16 = arith.extf %15 : vector<256x128xbf16> to vector<256x128xf32>
    %17 = arith.addf %13, %16 : vector<256x128xf32>
    %c0_12 = arith.constant 0 : index
    %c0_13 = arith.constant 0 : index
    %c0_14 = arith.constant 0 : index
    %18 = vector.load %arg6[%c0_12, %c0_13, %c0_14] : memref<1x256x128xf32, #tpu.memory_space<vmem>>, vector<1x256x128xf32>
    %19 = vector.shape_cast %18 : vector<1x256x128xf32> to vector<256x128xf32>
    %20 = vector.shape_cast %17 : vector<256x128xf32> to vector<1x256x128xf32>
    tpu.vector_store %arg6[%c0_12, %c0_13, %c0_14], %20 {strides = array<i32>} : memref<1x256x128xf32, #tpu.memory_space<vmem>>, vector<1x256x128xf32>,
    %cst_15 = arith.constant dense<0.000000e+00> : vector<128xf32>
    %21 = vector.multi_reduction <add>, %17, %cst_15 [0] : vector<256x128xf32> to vector<128xf32>
    %22 = vector.shape_cast %21 : vector<128xf32> to vector<1x128xf32>
    %c0_16 = arith.constant 0 : index
    %c0_17 = arith.constant 0 : index
    %c0_18 = arith.constant 0 : index
    %23 = vector.load %arg7[%c0_16, %c0_17, %c0_18] : memref<1x1x128xf32, #tpu.memory_space<vmem>>, vector<1x1x128xf32>
    %24 = vector.shape_cast %23 : vector<1x1x128xf32> to vector<1x128xf32>
    %25 = vector.shape_cast %22 : vector<1x128xf32> to vector<1x1x128xf32>
    tpu.vector_store %arg7[%c0_16, %c0_17, %c0_18], %25 {strides = array<i32>} : memref<1x1x128xf32, #tpu.memory_space<vmem>>, vector<1x1x128xf32>,
    %26 = arith.mulf %17, %17 : vector<256x128xf32>
    %cst_19 = arith.constant dense<0.000000e+00> : vector<128xf32>
    %27 = vector.multi_reduction <add>, %26, %cst_19 [0] : vector<256x128xf32> to vector<128xf32>
    %28 = vector.shape_cast %27 : vector<128xf32> to vector<1x128xf32>
    %c0_20 = arith.constant 0 : index
    %c0_21 = arith.constant 0 : index
    %c0_22 = arith.constant 0 : index
    %29 = vector.load %arg8[%c0_20, %c0_21, %c0_22] : memref<1x1x128xf32, #tpu.memory_space<vmem>>, vector<1x1x128xf32>
    %30 = vector.shape_cast %29 : vector<1x1x128xf32> to vector<1x128xf32>
    %31 = vector.shape_cast %28 : vector<1x128xf32> to vector<1x1x128xf32>
    tpu.vector_store %arg8[%c0_20, %c0_21, %c0_22], %31 {strides = array<i32>} : memref<1x1x128xf32, #tpu.memory_space<vmem>>, vector<1x1x128xf32>,
    return
  }
  func.func @transform_0(%arg0: i32) -> (i32, i32, i32) {
    %c0_i32 = arith.constant 0 : i32
    %c0_i32_0 = arith.constant 0 : i32
    %c0_i32_1 = arith.constant 0 : i32
    return %arg0, %c0_i32, %c0_i32_0 : i32, i32, i32
  }
  func.func @transform_1(%arg0: i32) -> (i32, i32) {
    %c0_i32 = arith.constant 0 : i32
    %c0_i32_0 = arith.constant 0 : i32
    %c0_i32_1 = arith.constant 0 : i32
    return %c0_i32, %c0_i32_0 : i32, i32
  }
  func.func @transform_2(%arg0: i32) -> (i32, i32) {
    %c0_i32 = arith.constant 0 : i32
    %c0_i32_0 = arith.constant 0 : i32
    %c0_i32_1 = arith.constant 0 : i32
    return %c0_i32, %c0_i32_0 : i32, i32
  }
  func.func @transform_3(%arg0: i32) -> (i32, i32) {
    %c0_i32 = arith.constant 0 : i32
    %c0_i32_0 = arith.constant 0 : i32
    %c0_i32_1 = arith.constant 0 : i32
    return %c0_i32, %c0_i32_0 : i32, i32
  }
  func.func @transform_4(%arg0: i32) -> (i32, i32, i32) {
    %c0_i32 = arith.constant 0 : i32
    %c0_i32_0 = arith.constant 0 : i32
    %c0_i32_1 = arith.constant 0 : i32
    return %arg0, %c0_i32, %c0_i32_0 : i32, i32, i32
  }
  func.func @transform_5(%arg0: i32) -> (i32, i32, i32) {
    %c0_i32 = arith.constant 0 : i32
    %c0_i32_0 = arith.constant 0 : i32
    %c0_i32_1 = arith.constant 0 : i32
    return %arg0, %c0_i32, %c0_i32_0 : i32, i32, i32
  }
  func.func @transform_6(%arg0: i32) -> (i32, i32, i32) {
    %c0_i32 = arith.constant 0 : i32
    %c0_i32_0 = arith.constant 0 : i32
    %c0_i32_1 = arith.constant 0 : i32
    return %arg0, %c0_i32, %c0_i32_0 : i32, i32, i32
  }
  func.func @transform_7(%arg0: i32) -> (i32, i32, i32) {
    %c0_i32 = arith.constant 0 : i32
    %c0_i32_0 = arith.constant 0 : i32
    %c0_i32_1 = arith.constant 0 : i32
    return %arg0, %c0_i32, %c0_i32_0 : i32, i32, i32
  }
}

</mosaic_0001>

<llo_original>
// kernel: bottleneck_forward.3
$region0: #{bottleneck_forward.3}
  #allocation0 [shape = 'u32[]', space=smem, size = 0x4, offset = 0x4, fixed_abs, tag = 'smem constant byte address 0x4 - core index']
  #allocation1 [shape = 'u32[144,128]{1,0:T(1,128)}', space=vmem, size = 0x12000, scoped, tag = 'internal scratch']
  %s0 = inlined_call_operand.vmem [shape: bf16[2,256,128], index: 0, kind: input, shape index: {}]
  %s1 = inlined_call_operand.vmem [shape: bf16[128,128], index: 1, kind: input, shape index: {}]
  %s2 = inlined_call_operand.vmem [shape: bf16[128,128], index: 2, kind: input, shape index: {}]
  %s3 = inlined_call_operand.vmem [shape: bf16[2,256,128], index: 3, kind: output, shape index: {0}]
  %s4 = inlined_call_operand.vmem [shape: bf16[2,256,128], index: 4, kind: output, shape index: {1}]
  %s5 = inlined_call_operand.vmem [shape: f32[2,1,128], index: 5, kind: output, shape index: {2}]
  %s6 = inlined_call_operand.vmem [shape: f32[2,1,128], index: 6, kind: output, shape index: {3}]
  %7 = xla_tuple %s3, %s4, %s5, %s6
  %s8 = sld [smem:[#allocation0]]
  $region69: #{bottleneck_forward.3} parent=0
    _
  %s10 = ssub.s32 1, %s8
  %s11 = scalar_select 0, %s10, %s8
  loop: start=0, step=1, limit=4
  $region2: #{bottleneck_forward.3} parent=0 // loop_pre_header
    _
  $region3: #{bottleneck_forward.3} parent=0 // loop_header
    %s13 = sphi 0, %s17
    %p14 = scmp.ge.s32.totalorder %s13, 4
    %s23 = sphi 0, %s25
    %s26 = sphi 0, %s23
    %s27 = sphi 0, %s26
    %s43 = sphi 0, %s27
    %s47 = sphi 0, %s47
    %s49 = sphi 0, %s47
    %s50 = sphi 0, %s49
    %s64 = sphi 0, %s50
    %s68 = sphi 0, %s68
    %s70 = sphi 0, %s68
    %s71 = sphi 0, %s70
    %s85 = sphi 0, %s71
    %s91 = sphi 0, %s93
    %s94 = sphi 0, %s91
    %s95 = sphi 0, %s94
    %s111 = sphi 0, %s95
    %s117 = sphi 0, %s119
    %s120 = sphi 0, %s117
    %s121 = sphi 0, %s120
    %s137 = sphi 0, %s121
    %s143 = sphi 0, %s145
    %s146 = sphi 0, %s143
    %s147 = sphi 0, %s146
    %s163 = sphi 0, %s147
    %s169 = sphi 0, %s171
    %s172 = sphi 0, %s169
    %s173 = sphi 0, %s172
    %s189 = sphi 0, %s173
  $region4: #{bottleneck_forward.3} parent=0 // loop_header_branch
    %16 = sbr.rel (%p14) target = $region8
  $region5: #{bottleneck_forward.3} parent=0 // loop_body
    %s18 = ssub.s32 %s13, 1
    %s19 = ssub.s32 %s13, 2
    %s20 = sadd.s32 %s13, 1
    %s21 = ssub.s32 %s13, %s20
    %p22 = scmp.eq.s32.totalorder %s21, 0
    %s24 = sadd.s32 %s23, 1
    %s25 = scalar_select %p22, %s23, %s24
    %p28 = pneg %p22
    %p29 = scmp.eq.s32.totalorder %s13, 1
    %p30 = por %p28, %p29
    %p31 = scmp.ne.s32.totalorder %s23, %s26
    %p32 = scmp.eq.s32.totalorder %s13, 0
    %p33 = por %p31, %p32
    %p34 = scmp.ne.s32.totalorder %s23, %s26
    %p35 = scmp.eq.s32.totalorder %s18, 1
    %p36 = por %p34, %p35
    %p37 = scmp.ne.s32.totalorder %s26, %s27
    %p38 = scmp.eq.s32.totalorder %s18, 0
    %p39 = por %p37, %p38
    %p40 = scmp.ne.s32.totalorder %s26, %s27
    %p41 = scmp.eq.s32.totalorder %s19, 1
    %p42 = por %p40, %p41
    %p44 = scmp.ne.s32.totalorder %s27, %s43
    %p45 = scmp.eq.s32.totalorder %s19, 0
    %p46 = por %p44, %p45
    %s48 = sadd.s32 %s47, 1
    %p51 = scmp.eq.s32.totalorder %s13, 1
    %p52 = scmp.ne.s32.totalorder %s47, %s49
    %p53 = scmp.eq.s32.totalorder %s13, 0
    %p54 = por %p52, %p53
    %p55 = scmp.ne.s32.totalorder %s47, %s49
    %p56 = scmp.eq.s32.totalorder %s18, 1
    %p57 = por %p55, %p56
    %p58 = scmp.ne.s32.totalorder %s49, %s50
    %p59 = scmp.eq.s32.totalorder %s18, 0
    %p60 = por %p58, %p59
    %p61 = scmp.ne.s32.totalorder %s49, %s50
    %p62 = scmp.eq.s32.totalorder %s19, 1
    %p63 = por %p61, %p62
    %p65 = scmp.ne.s32.totalorder %s50, %s64
    %p66 = scmp.eq.s32.totalorder %s19, 0
    %p67 = por %p65, %p66
    %s69 = sadd.s32 %s68, 1
    %p72 = scmp.eq.s32.totalorder %s13, 1
    %p73 = scmp.ne.s32.totalorder %s68, %s70
    %p74 = scmp.eq.s32.totalorder %s13, 0
    %p75 = por %p73, %p74
    %p76 = scmp.ne.s32.totalorder %s68, %s70
    %p77 = scmp.eq.s32.totalorder %s18, 1
    %p78 = por %p76, %p77
    %p79 = scmp.ne.s32.totalorder %s70, %s71
    %p80 = scmp.eq.s32.totalorder %s18, 0
    %p81 = por %p79, %p80
    %p82 = scmp.ne.s32.totalorder %s70, %s71
    %p83 = scmp.eq.s32.totalorder %s19, 1
    %p84 = por %p82, %p83
    %p86 = scmp.ne.s32.totalorder %s71, %s85
    %p87 = scmp.eq.s32.totalorder %s19, 0
    %p88 = por %p86, %p87
    %s89 = ssub.s32 %s13, %s20
    %p90 = scmp.eq.s32.totalorder %s89, 0
    %s92 = sadd.s32 %s91, 1
    %s93 = scalar_select %p90, %s91, %s92
    %p96 = pneg %p90
    %p97 = scmp.eq.s32.totalorder %s13, 1
    %p98 = por %p96, %p97
    %p99 = scmp.ne.s32.totalorder %s91, %s94
    %p100 = scmp.eq.s32.totalorder %s13, 0
    %p101 = por %p99, %p100
    %p102 = scmp.ne.s32.totalorder %s91, %s94
    %p103 = scmp.eq.s32.totalorder %s18, 1
    %p104 = por %p102, %p103
    %p105 = scmp.ne.s32.totalorder %s94, %s95
    %p106 = scmp.eq.s32.totalorder %s18, 0
    %p107 = por %p105, %p106
    %p108 = scmp.ne.s32.totalorder %s94, %s95
    %p109 = scmp.eq.s32.totalorder %s19, 1
    %p110 = por %p108, %p109
    %p112 = scmp.ne.s32.totalorder %s95, %s111
    %p113 = scmp.eq.s32.totalorder %s19, 0
    %p114 = por %p112, %p113
    %s115 = ssub.s32 %s13, %s20
    %p116 = scmp.eq.s32.totalorder %s115, 0
    %s118 = sadd.s32 %s117, 1
    %s119 = scalar_select %p116, %s117, %s118
    %p122 = pneg %p116
    %p123 = scmp.eq.s32.totalorder %s13, 1
    %p124 = por %p122, %p123
    %p125 = scmp.ne.s32.totalorder %s117, %s120
    %p126 = scmp.eq.s32.totalorder %s13, 0
    %p127 = por %p125, %p126
    %p128 = scmp.ne.s32.totalorder %s117, %s120
    %p129 = scmp.eq.s32.totalorder %s18, 1
    %p130 = por %p128, %p129
    %p131 = scmp.ne.s32.totalorder %s120, %s121
    %p132 = scmp.eq.s32.totalorder %s18, 0
    %p133 = por %p131, %p132
    %p134 = scmp.ne.s32.totalorder %s120, %s121
    %p135 = scmp.eq.s32.totalorder %s19, 1
    %p136 = por %p134, %p135
    %p138 = scmp.ne.s32.totalorder %s121, %s137
    %p139 = scmp.eq.s32.totalorder %s19, 0
    %p140 = por %p138, %p139
    %s141 = ssub.s32 %s13, %s20
    %p142 = scmp.eq.s32.totalorder %s141, 0
    %s144 = sadd.s32 %s143, 1
    %s145 = scalar_select %p142, %s143, %s144
    %p148 = pneg %p142
    %p149 = scmp.eq.s32.totalorder %s13, 1
    %p150 = por %p148, %p149
    %p151 = scmp.ne.s32.totalorder %s143, %s146
    %p152 = scmp.eq.s32.totalorder %s13, 0
    %p153 = por %p151, %p152
    %p154 = scmp.ne.s32.totalorder %s143, %s146
    %p155 = scmp.eq.s32.totalorder %s18, 1
    %p156 = por %p154, %p155
    %p157 = scmp.ne.s32.totalorder %s146, %s147
    %p158 = scmp.eq.s32.totalorder %s18, 0
    %p159 = por %p157, %p158
    %p160 = scmp.ne.s32.totalorder %s146, %s147
    %p161 = scmp.eq.s32.totalorder %s19, 1
    %p162 = por %p160, %p161
    %p164 = scmp.ne.s32.totalorder %s147, %s163
    %p165 = scmp.eq.s32.totalorder %s19, 0
    %p166 = por %p164, %p165
    %s167 = ssub.s32 %s13, %s20
    %p168 = scmp.eq.s32.totalorder %s167, 0
    %s170 = sadd.s32 %s169, 1
    %s171 = scalar_select %p168, %s169, %s170
    %p174 = pneg %p168
    %p175 = scmp.eq.s32.totalorder %s13, 1
    %p176 = por %p174, %p175
    %p177 = scmp.ne.s32.totalorder %s169, %s172
    %p178 = scmp.eq.s32.totalorder %s13, 0
    %p179 = por %p177, %p178
    %p180 = scmp.ne.s32.totalorder %s169, %s172
    %p181 = scmp.eq.s32.totalorder %s18, 1
    %p182 = por %p180, %p181
    %p183 = scmp.ne.s32.totalorder %s172, %s173
    %p184 = scmp.eq.s32.totalorder %s18, 0
    %p185 = por %p183, %p184
    %p186 = scmp.ne.s32.totalorder %s172, %s173
    %p187 = scmp.eq.s32.totalorder %s19, 1
    %p188 = por %p186, %p187
    %p190 = scmp.ne.s32.totalorder %s173, %s189
    %p191 = scmp.eq.s32.totalorder %s19, 0
    %p192 = por %p190, %p191
    %p193 = scmp.le.s32.totalorder 1, %s13
    %p194 = scmp.lt.s32.totalorder %s13, 3
    %p195 = pnand %p193, %p194
    %p196 = pneg %p195
    // Predicated region
    $region9: #{bottleneck_forward.3} parent=5 // pred_check
      _
    $region10: #{bottleneck_forward.3} parent=5 // pred_check_branch
      %198 = sbr.rel (%p195) target = $region12
    $region11: #{bottleneck_forward.3} parent=5 // pred_region
      %s199 = ssub.s32 %s13, 1
      // Predicated region
      $region13: #{bottleneck_forward.3} parent=11 // pred_check
        %p200 = pneg %p60
      $region14: #{bottleneck_forward.3} parent=11 // pred_check_branch
        %202 = sbr.rel (%p200) target = $region16
      $region15: #{bottleneck_forward.3} parent=11 // pred_region
        _
      $region16: #{bottleneck_forward.3} parent=11 // pred_fallthru
        _
      // Predicated region
      $region17: #{bottleneck_forward.3} parent=11 // pred_check
        %p203 = pneg %p81
      $region18: #{bottleneck_forward.3} parent=11 // pred_check_branch
        %205 = sbr.rel (%p203) target = $region20
      $region19: #{bottleneck_forward.3} parent=11 // pred_region
        _
      $region20: #{bottleneck_forward.3} parent=11 // pred_fallthru
        _
    $region12: #{bottleneck_forward.3} parent=5 // pred_fallthru
      _
    %p206 = scmp.lt.s32.totalorder %s13, 2
    // Predicated region
    $region21: #{bottleneck_forward.3} parent=5 // pred_check
      %p207 = pneg %p206
    $region22: #{bottleneck_forward.3} parent=5 // pred_check_branch
      %209 = sbr.rel (%p207) target = $region24
    $region23: #{bottleneck_forward.3} parent=5 // pred_region
      // Predicated region
      $region25: #{bottleneck_forward.3} parent=23 // pred_check
        %p210 = pneg %p33
      $region26: #{bottleneck_forward.3} parent=23 // pred_check_branch
        %212 = sbr.rel (%p210) target = $region28
      $region27: #{bottleneck_forward.3} parent=23 // pred_region
        %p213 = scmp.lt.s32.totalorder %s13, 1
        %s214 = scalar_select %p213, %s13, 1
        %s215 = smul.addr %s214, 32
        %s216 = smul.addr %s215, 4
        %s217 = scalar_lea.vmem %s0, %s216
      $region28: #{bottleneck_forward.3} parent=23 // pred_fallthru
        _
    $region24: #{bottleneck_forward.3} parent=5 // pred_fallthru
      _
    %p218 = scmp.le.s32.totalorder 1, %s13
    %p219 = scmp.lt.s32.totalorder %s13, 3
    %p220 = pnand %p218, %p219
    %p221 = pneg %p220
    // Predicated region
    $region29: #{bottleneck_forward.3} parent=5 // pred_check
      _
    $region30: #{bottleneck_forward.3} parent=5 // pred_check_branch
      %223 = sbr.rel (%p220) target = $region32
    $region31: #{bottleneck_forward.3} parent=5 // pred_region
      %s224 = ssub.s32 %s13, 1
      %p225 = scmp.lt.s32.totalorder %s18, 1
      %s226 = scalar_select %p225, %s18, 1
      %s227 = smul.addr %s226, 32
      %s228 = smul.addr %s227, 4
      %s229 = scalar_lea.vmem %s0, %s228
      %p230 = pneg %p39
      %p231 = pneg %p36
      %p232 = pneg %p60
      %p233 = pneg %p57
      %p234 = pneg %p81
      %p235 = pneg %p78
      %p236 = pneg %p107
      %p237 = pneg %p104
      %p238 = scmp.lt.s32.totalorder %s18, 1
      %s239 = scalar_select %p238, %s18, 1
      %s240 = smul.addr %s239, 32
      %s241 = smul.addr %s240, 4
      %s242 = scalar_lea.vmem %s3, %s241
      %p243 = pneg %p133
      %p244 = pneg %p130
      %p245 = scmp.lt.s32.totalorder %s18, 1
      %s246 = scalar_select %p245, %s18, 1
      %s247 = smul.addr %s246, 32
      %s248 = smul.addr %s247, 4
      %s249 = scalar_lea.vmem %s4, %s248
      %p250 = pneg %p159
      %p251 = pneg %p156
      %p252 = scmp.lt.s32.totalorder %s18, 1
      %s253 = scalar_select %p252, %s18, 1
      %s254 = scalar_lea.vmem %s5, %s253
      %p255 = pneg %p185
      %p256 = pneg %p182
      %p257 = scmp.lt.s32.totalorder %s18, 1
      %s258 = scalar_select %p257, %s18, 1
      %s259 = scalar_lea.vmem %s6, %s258
      %p260 = scmp.lt.s32.totalorder %s18, 1
      %s261 = scalar_select %p260, %s18, 1
      %s262 = smul.addr %s261, 32
      %s263 = smul.addr %s262, 4
      %s264 = scalar_lea.vmem %s0, %s263
      %p265 = scmp.lt.s32.totalorder %s18, 1
      %s266 = scalar_select %p265, %s18, 1
      %s267 = smul.addr %s266, 32
      %s268 = smul.addr %s267, 4
      %s269 = scalar_lea.vmem %s3, %s268
      %p270 = scmp.lt.s32.totalorder %s18, 1
      %s271 = scalar_select %p270, %s18, 1
      %s272 = smul.addr %s271, 32
      %s273 = smul.addr %s272, 4
      %s274 = scalar_lea.vmem %s4, %s273
      %p275 = scmp.lt.s32.totalorder %s18, 1
      %s276 = scalar_select %p275, %s18, 1
      %s277 = scalar_lea.vmem %s5, %s276
      %p278 = scmp.lt.s32.totalorder %s18, 1
      %s279 = scalar_select %p278, %s18, 1
      %s280 = scalar_lea.vmem %s6, %s279
      %v282 = vld [vmem:[%s264] sm:$0xf]
      %v283 = vld [vmem:[%s264 + $0x4] sm:$0xf]
      %v284 = vld [vmem:[%s264 + $0x8] sm:$0xf]
      %v285 = vld [vmem:[%s264 + $0xc] sm:$0xf]
      %v286 = vld [vmem:[%s264 + $0x10] sm:$0xf]
      %v287 = vld [vmem:[%s264 + $0x14] sm:$0xf]
      %v288 = vld [vmem:[%s264 + $0x18] sm:$0xf]
      %v289 = vld [vmem:[%s264 + $0x1c] sm:$0xf]
      %v290 = vld [vmem:[%s264 + $0x20] sm:$0xf]
      %v291 = vld [vmem:[%s264 + $0x24] sm:$0xf]
      %v292 = vld [vmem:[%s264 + $0x28] sm:$0xf]
      %v293 = vld [vmem:[%s264 + $0x2c] sm:$0xf]
      %v294 = vld [vmem:[%s264 + $0x30] sm:$0xf]
      %v295 = vld [vmem:[%s264 + $0x34] sm:$0xf]
      %v296 = vld [vmem:[%s264 + $0x38] sm:$0xf]
      %v297 = vld [vmem:[%s264 + $0x3c] sm:$0xf]
      %v298 = vld [vmem:[%s264 + $0x40] sm:$0xf]
      %v299 = vld [vmem:[%s264 + $0x44] sm:$0xf]
      %v300 = vld [vmem:[%s264 + $0x48] sm:$0xf]
      %v301 = vld [vmem:[%s264 + $0x4c] sm:$0xf]
      %v302 = vld [vmem:[%s264 + $0x50] sm:$0xf]
      %v303 = vld [vmem:[%s264 + $0x54] sm:$0xf]
      %v304 = vld [vmem:[%s264 + $0x58] sm:$0xf]
      %v305 = vld [vmem:[%s264 + $0x5c] sm:$0xf]
      %v306 = vld [vmem:[%s264 + $0x60] sm:$0xf]
      %v307 = vld [vmem:[%s264 + $0x64] sm:$0xf]
      %v308 = vld [vmem:[%s264 + $0x68] sm:$0xf]
      %v309 = vld [vmem:[%s264 + $0x6c] sm:$0xf]
      %v310 = vld [vmem:[%s264 + $0x70] sm:$0xf]
      %v311 = vld [vmem:[%s264 + $0x74] sm:$0xf]
      %v312 = vld [vmem:[%s264 + $0x78] sm:$0xf]
      %v313 = vld [vmem:[%s264 + $0x7c] sm:$0xf]
      %v314 = vld [vmem:[%s1] sm:$0xf]
      %v315 = vld [vmem:[%s1 + $0x4] sm:$0xf]
      %v316 = vld [vmem:[%s1 + $0x8] sm:$0xf]
      %v317 = vld [vmem:[%s1 + $0xc] sm:$0xf]
      %v318 = vld [vmem:[%s1 + $0x10] sm:$0xf]
      %v319 = vld [vmem:[%s1 + $0x14] sm:$0xf]
      %v320 = vld [vmem:[%s1 + $0x18] sm:$0xf]
      %v321 = vld [vmem:[%s1 + $0x1c] sm:$0xf]
      %v322 = vld [vmem:[%s1 + $0x20] sm:$0xf]
      %v323 = vld [vmem:[%s1 + $0x24] sm:$0xf]
      %v324 = vld [vmem:[%s1 + $0x28] sm:$0xf]
      %v325 = vld [vmem:[%s1 + $0x2c] sm:$0xf]
      %v326 = vld [vmem:[%s1 + $0x30] sm:$0xf]
      %v327 = vld [vmem:[%s1 + $0x34] sm:$0xf]
      %v328 = vld [vmem:[%s1 + $0x38] sm:$0xf]
      %v329 = vld [vmem:[%s1 + $0x3c] sm:$0xf]
      %v362 = vunpack.c.l.b16 %v282
      %v363 = vunpack.c.l.b16 %v283
      %v364 = vunpack.c.l.b16 %v284
      %v365 = vunpack.c.l.b16 %v285
      %v366 = vunpack.c.l.b16 %v286
      %v367 = vunpack.c.l.b16 %v287
      %v368 = vunpack.c.l.b16 %v288
      %v369 = vunpack.c.l.b16 %v289
      %v370 = vunpack.c.l.b16 %v290
      %v371 = vunpack.c.l.b16 %v291
      %v372 = vunpack.c.l.b16 %v292
      %v373 = vunpack.c.l.b16 %v293
      %v374 = vunpack.c.l.b16 %v294
      %v375 = vunpack.c.l.b16 %v295
      %v376 = vunpack.c.l.b16 %v296
      %v377 = vunpack.c.l.b16 %v297
      %v378 = vunpack.c.l.b16 %v298
      %v379 = vunpack.c.l.b16 %v299
      %v380 = vunpack.c.l.b16 %v300
      %v381 = vunpack.c.l.b16 %v301
      %v382 = vunpack.c.l.b16 %v302
      %v383 = vunpack.c.l.b16 %v303
      %v384 = vunpack.c.l.b16 %v304
      %v385 = vunpack.c.l.b16 %v305
      %v386 = vunpack.c.l.b16 %v306
      %v387 = vunpack.c.l.b16 %v307
      %v388 = vunpack.c.l.b16 %v308
      %v389 = vunpack.c.l.b16 %v309
      %v390 = vunpack.c.l.b16 %v310
      %v391 = vunpack.c.l.b16 %v311
      %v392 = vunpack.c.l.b16 %v312
      %v393 = vunpack.c.l.b16 %v313
      %v394 = vpack.c.b16 %v363, %v362
      %v395 = vpack.c.b16 %v365, %v364
      %v396 = vpack.c.b16 %v367, %v366
      %v397 = vpack.c.b16 %v369, %v368
      %v398 = vpack.c.b16 %v371, %v370
      %v399 = vpack.c.b16 %v373, %v372
      %v400 = vpack.c.b16 %v375, %v374
      %v401 = vpack.c.b16 %v377, %v376
      %v402 = vpack.c.b16 %v379, %v378
      %v403 = vpack.c.b16 %v381, %v380
      %v404 = vpack.c.b16 %v383, %v382
      %v405 = vpack.c.b16 %v385, %v384
      %v406 = vpack.c.b16 %v387, %v386
      %v407 = vpack.c.b16 %v389, %v388
      %v408 = vpack.c.b16 %v391, %v390
      %v409 = vpack.c.b16 %v393, %v392
      %v442 = vunpack.c.l.b16 %v314
      %v443 = vunpack.c.l.b16 %v315
      %v444 = vunpack.c.l.b16 %v316
      %v445 = vunpack.c.l.b16 %v317
      %v446 = vunpack.c.l.b16 %v318
      %v447 = vunpack.c.l.b16 %v319
      %v448 = vunpack.c.l.b16 %v320
      %v449 = vunpack.c.l.b16 %v321
      %v450 = vunpack.c.l.b16 %v322
      %v451 = vunpack.c.l.b16 %v323
      %v452 = vunpack.c.l.b16 %v324
      %v453 = vunpack.c.l.b16 %v325
      %v454 = vunpack.c.l.b16 %v326
      %v455 = vunpack.c.l.b16 %v327
      %v456 = vunpack.c.l.b16 %v328
      %v457 = vunpack.c.l.b16 %v329
      %v458 = vpack.c.b16 %v443, %v442
      %v459 = vpack.c.b16 %v445, %v444
      %v460 = vpack.c.b16 %v447, %v446
      %v461 = vpack.c.b16 %v449, %v448
      %v462 = vpack.c.b16 %v451, %v450
      %v463 = vpack.c.b16 %v453, %v452
      %v464 = vpack.c.b16 %v455, %v454
      %v465 = vpack.c.b16 %v457, %v456
      %474 = vmatprep.subr.bf16.mxu0 0
      %475 = vmatpush1.bf16.msra.mxu0 %v465
      %476 = vmatprep.subr.bf16.mxu0 0
      %477 = vmatpush1.bf16.msra.mxu0 %v464
      %478 = vmatprep.subr.bf16.mxu0 0
      %479 = vmatpush1.bf16.msra.mxu0 %v463
      %480 = vmatprep.subr.bf16.mxu0 0
      %481 = vmatpush1.bf16.msra.mxu0 %v462
      %482 = vmatprep.subr.bf16.mxu0 0
      %483 = vmatpush1.bf16.msra.mxu0 %v461
      %484 = vmatprep.subr.bf16.mxu0 0
      %485 = vmatpush1.bf16.msra.mxu0 %v460
      %486 = vmatprep.subr.bf16.mxu0 0
      %487 = vmatpush1.bf16.msra.mxu0 %v459
      %488 = vmatprep.subr.bf16.mxu0 0
      %489 = vmatpush1.bf16.msra.mxu0 %v458
      %490 = vmatprep.subr.bf16.mxu0 0
      %491 = vmatpush2.bf16.msra.mxu0 0
      %492 = vmatprep.subr.bf16.mxu0 0
      %493 = vmatpush2.bf16.msra.mxu0 0
      %494 = vmatprep.subr.bf16.mxu0 0
      %495 = vmatpush2.bf16.msra.mxu0 0
      %496 = vmatprep.subr.bf16.mxu0 0
      %497 = vmatpush2.bf16.msra.mxu0 0
      %498 = vmatprep.subr.bf16.mxu0 0
      %499 = vmatpush2.bf16.msra.mxu0 0
      %500 = vmatprep.subr.bf16.mxu0 0
      %501 = vmatpush2.bf16.msra.mxu0 0
      %502 = vmatprep.subr.bf16.mxu0 0
      %503 = vmatpush2.bf16.msra.mxu0 0
      %504 = vmatprep.subr.bf16.mxu0 0
      %505 = vmatpush2.bf16.msra.mxu0 0
      %506 = vmatprep.mubr.bf16.mxu0 0
      %507 = vmatmul.mubr.bf16.gmra.mxu0 %v394
      %v508 = vpop.f32.mrf.mxu0
      %v509 = vadd.f32 0.0, %v508
      %v510 = vpop.f32.mrf.mxu0
      %v511 = vpop.f32.mrf.mxu0
      %v512 = vadd.f32 0.0, %v511
      %v513 = vpop.f32.mrf.mxu0
      %514 = vmatprep.mubr.bf16.mxu0 0
      %515 = vmatmul.mubr.bf16.gmra.mxu0 %v395
      %v516 = vpop.f32.mrf.mxu0
      %v517 = vadd.f32 0.0, %v516
      %v518 = vpop.f32.mrf.mxu0
      %v519 = vpop.f32.mrf.mxu0
      %v520 = vadd.f32 0.0, %v519
      %v521 = vpop.f32.mrf.mxu0
      %522 = vmatprep.mubr.bf16.mxu0 0
      %523 = vmatmul.mubr.bf16.gmra.mxu0 %v396
      %v524 = vpop.f32.mrf.mxu0
      %v525 = vadd.f32 0.0, %v524
      %v526 = vpop.f32.mrf.mxu0
      %v527 = vpop.f32.mrf.mxu0
      %v528 = vadd.f32 0.0, %v527
      %v529 = vpop.f32.mrf.mxu0
      %530 = vmatprep.mubr.bf16.mxu0 0
      %531 = vmatmul.mubr.bf16.gmra.mxu0 %v397
      %v532 = vpop.f32.mrf.mxu0
      %v533 = vadd.f32 0.0, %v532
      %v534 = vpop.f32.mrf.mxu0
      %v535 = vpop.f32.mrf.mxu0
      %v536 = vadd.f32 0.0, %v535
      %v537 = vpop.f32.mrf.mxu0
      %538 = vmatprep.mubr.bf16.mxu0 0
      %539 = vmatmul.mubr.bf16.gmra.mxu0 %v398
      %v540 = vpop.f32.mrf.mxu0
      %v541 = vadd.f32 0.0, %v540
      %v542 = vpop.f32.mrf.mxu0
      %v543 = vpop.f32.mrf.mxu0
      %v544 = vadd.f32 0.0, %v543
      %v545 = vpop.f32.mrf.mxu0
      %546 = vmatprep.mubr.bf16.mxu0 0
      %547 = vmatmul.mubr.bf16.gmra.mxu0 %v399
      %v548 = vpop.f32.mrf.mxu0
      %v549 = vadd.f32 0.0, %v548
      %v550 = vpop.f32.mrf.mxu0
      %v551 = vpop.f32.mrf.mxu0
      %v552 = vadd.f32 0.0, %v551
      %v553 = vpop.f32.mrf.mxu0
      %554 = vmatprep.mubr.bf16.mxu0 0
      %555 = vmatmul.mubr.bf16.gmra.mxu0 %v400
      %v556 = vpop.f32.mrf.mxu0
      %v557 = vadd.f32 0.0, %v556
      %v558 = vpop.f32.mrf.mxu0
      %v559 = vpop.f32.mrf.mxu0
      %v560 = vadd.f32 0.0, %v559
      %v561 = vpop.f32.mrf.mxu0
      %562 = vmatprep.mubr.bf16.mxu0 0
      %563 = vmatmul.mubr.bf16.gmra.mxu0 %v401
      %v564 = vpop.f32.mrf.mxu0
      %v565 = vadd.f32 0.0, %v564
      %v566 = vpop.f32.mrf.mxu0
      %v567 = vpop.f32.mrf.mxu0
      %v568 = vadd.f32 0.0, %v567
      %v569 = vpop.f32.mrf.mxu0
      %570 = vmatprep.mubr.bf16.mxu0 0
      %571 = vmatmul.mubr.bf16.gmra.mxu0 %v402
      %v572 = vpop.f32.mrf.mxu0
      %v573 = vadd.f32 0.0, %v572
      %v574 = vpop.f32.mrf.mxu0
      %v575 = vpop.f32.mrf.mxu0
      %v576 = vadd.f32 0.0, %v575
      %v577 = vpop.f32.mrf.mxu0
      %578 = vmatprep.mubr.bf16.mxu0 0
      %579 = vmatmul.mubr.bf16.gmra.mxu0 %v403
      %v580 = vpop.f32.mrf.mxu0
      %v581 = vadd.f32 0.0, %v580
      %v582 = vpop.f32.mrf.mxu0
      %v583 = vpop.f32.mrf.mxu0
      %v584 = vadd.f32 0.0, %v583
      %v585 = vpop.f32.mrf.mxu0
      %586 = vmatprep.mubr.bf16.mxu0 0
      %587 = vmatmul.mubr.bf16.gmra.mxu0 %v404
      %v588 = vpop.f32.mrf.mxu0
      %v589 = vadd.f32 0.0, %v588
      %v590 = vpop.f32.mrf.mxu0
      %v591 = vpop.f32.mrf.mxu0
      %v592 = vadd.f32 0.0, %v591
      %v593 = vpop.f32.mrf.mxu0
      %594 = vmatprep.mubr.bf16.mxu0 0
      %595 = vmatmul.mubr.bf16.gmra.mxu0 %v405
      %v596 = vpop.f32.mrf.mxu0
      %v597 = vadd.f32 0.0, %v596
      %v598 = vpop.f32.mrf.mxu0
      %v599 = vpop.f32.mrf.mxu0
      %v600 = vadd.f32 0.0, %v599
      %v601 = vpop.f32.mrf.mxu0
      %602 = vmatprep.mubr.bf16.mxu0 0
      %603 = vmatmul.mubr.bf16.gmra.mxu0 %v406
      %v604 = vpop.f32.mrf.mxu0
      %v605 = vadd.f32 0.0, %v604
      %v606 = vpop.f32.mrf.mxu0
      %v607 = vpop.f32.mrf.mxu0
      %v608 = vadd.f32 0.0, %v607
      %v609 = vpop.f32.mrf.mxu0
      %610 = vmatprep.mubr.bf16.mxu0 0
      %611 = vmatmul.mubr.bf16.gmra.mxu0 %v407
      %v612 = vpop.f32.mrf.mxu0
      %v613 = vadd.f32 0.0, %v612
      %v614 = vpop.f32.mrf.mxu0
      %v615 = vpop.f32.mrf.mxu0
      %v616 = vadd.f32 0.0, %v615
      %v617 = vpop.f32.mrf.mxu0
      %618 = vmatprep.mubr.bf16.mxu0 0
      %619 = vmatmul.mubr.bf16.gmra.mxu0 %v408
      %v620 = vpop.f32.mrf.mxu0
      %v621 = vadd.f32 0.0, %v620
      %v622 = vpop.f32.mrf.mxu0
      %v623 = vpop.f32.mrf.mxu0
      %v624 = vadd.f32 0.0, %v623
      %v625 = vpop.f32.mrf.mxu0
      %626 = vmatprep.mubr.bf16.mxu0 0
      %627 = vmatmul.mubr.bf16.gmra.mxu0 %v409
      %v628 = vpop.f32.mrf.mxu0
      %v629 = vadd.f32 0.0, %v628
      %v630 = vpop.f32.mrf.mxu0
      %v631 = vpop.f32.mrf.mxu0
      %v632 = vadd.f32 0.0, %v631
      %v633 = vpop.f32.mrf.mxu0
      %634 = vdwg.mxu0
      %v635 = vld [vmem:[%s2] sm:$0xf]
      %v636 = vld [vmem:[%s2 + $0x4] sm:$0xf]
      %v637 = vld [vmem:[%s2 + $0x8] sm:$0xf]
      %v638 = vld [vmem:[%s2 + $0xc] sm:$0xf]
      %v639 = vld [vmem:[%s2 + $0x10] sm:$0xf]
      %v640 = vld [vmem:[%s2 + $0x14] sm:$0xf]
      %v641 = vld [vmem:[%s2 + $0x18] sm:$0xf]
      %v642 = vld [vmem:[%s2 + $0x1c] sm:$0xf]
      %v643 = vld [vmem:[%s2 + $0x20] sm:$0xf]
      %v644 = vld [vmem:[%s2 + $0x24] sm:$0xf]
      %v645 = vld [vmem:[%s2 + $0x28] sm:$0xf]
      %v646 = vld [vmem:[%s2 + $0x2c] sm:$0xf]
      %v647 = vld [vmem:[%s2 + $0x30] sm:$0xf]
      %v648 = vld [vmem:[%s2 + $0x34] sm:$0xf]
      %v649 = vld [vmem:[%s2 + $0x38] sm:$0xf]
      %v650 = vld [vmem:[%s2 + $0x3c] sm:$0xf]
      %v667 = vunpack.c.l.b16 %v635
      %v668 = vunpack.c.l.b16 %v636
      %v669 = vunpack.c.l.b16 %v637
      %v670 = vunpack.c.l.b16 %v638
      %v671 = vunpack.c.l.b16 %v639
      %v672 = vunpack.c.l.b16 %v640
      %v673 = vunpack.c.l.b16 %v641
      %v674 = vunpack.c.l.b16 %v642
      %v675 = vunpack.c.l.b16 %v643
      %v676 = vunpack.c.l.b16 %v644
      %v677 = vunpack.c.l.b16 %v645
      %v678 = vunpack.c.l.b16 %v646
      %v679 = vunpack.c.l.b16 %v647
      %v680 = vunpack.c.l.b16 %v648
      %v681 = vunpack.c.l.b16 %v649
      %v682 = vunpack.c.l.b16 %v650
      %v683 = vpack.c.b16 %v668, %v667
      %v684 = vpack.c.b16 %v670, %v669
      %v685 = vpack.c.b16 %v672, %v671
      %v686 = vpack.c.b16 %v674, %v673
      %v687 = vpack.c.b16 %v676, %v675
      %v688 = vpack.c.b16 %v678, %v677
      %v689 = vpack.c.b16 %v680, %v679
      %v690 = vpack.c.b16 %v682, %v681
      %699 = vmatprep.subr.bf16.mxu0 0
      %700 = vmatpush1.bf16.msra.mxu0 %v690
      %701 = vmatprep.subr.bf16.mxu0 0
      %702 = vmatpush1.bf16.msra.mxu0 %v689
      %703 = vmatprep.subr.bf16.mxu0 0
      %704 = vmatpush1.bf16.msra.mxu0 %v688
      %705 = vmatprep.subr.bf16.mxu0 0
      %706 = vmatpush1.bf16.msra.mxu0 %v687
      %707 = vmatprep.subr.bf16.mxu0 0
      %708 = vmatpush1.bf16.msra.mxu0 %v686
      %709 = vmatprep.subr.bf16.mxu0 0
      %710 = vmatpush1.bf16.msra.mxu0 %v685
      %711 = vmatprep.subr.bf16.mxu0 0
      %712 = vmatpush1.bf16.msra.mxu0 %v684
      %713 = vmatprep.subr.bf16.mxu0 0
      %714 = vmatpush1.bf16.msra.mxu0 %v683
      %715 = vmatprep.subr.bf16.mxu0 0
      %716 = vmatpush2.bf16.msra.mxu0 0
      %717 = vmatprep.subr.bf16.mxu0 0
      %718 = vmatpush2.bf16.msra.mxu0 0
      %719 = vmatprep.subr.bf16.mxu0 0
      %720 = vmatpush2.bf16.msra.mxu0 0
      %721 = vmatprep.subr.bf16.mxu0 0
      %722 = vmatpush2.bf16.msra.mxu0 0
      %723 = vmatprep.subr.bf16.mxu0 0
      %724 = vmatpush2.bf16.msra.mxu0 0
      %725 = vmatprep.subr.bf16.mxu0 0
      %726 = vmatpush2.bf16.msra.mxu0 0
      %727 = vmatprep.subr.bf16.mxu0 0
      %728 = vmatpush2.bf16.msra.mxu0 0
      %729 = vmatprep.subr.bf16.mxu0 0
      %730 = vmatpush2.bf16.msra.mxu0 0
      %731 = vmatprep.mubr.bf16.mxu0 0
      %732 = vmatmul.mubr.bf16.gmra.mxu0 %v394
      %v733 = vpop.f32.mrf.mxu0
      %v734 = vadd.f32 0.0, %v733
      %v735 = vpop.f32.mrf.mxu0
      %v736 = vpop.f32.mrf.mxu0
      %v737 = vadd.f32 0.0, %v736
      %v738 = vpop.f32.mrf.mxu0
      %739 = vmatprep.mubr.bf16.mxu0 0
      %740 = vmatmul.mubr.bf16.gmra.mxu0 %v395
      %v741 = vpop.f32.mrf.mxu0
      %v742 = vadd.f32 0.0, %v741
      %v743 = vpop.f32.mrf.mxu0
      %v744 = vpop.f32.mrf.mxu0
      %v745 = vadd.f32 0.0, %v744
      %v746 = vpop.f32.mrf.mxu0
      %747 = vmatprep.mubr.bf16.mxu0 0
      %748 = vmatmul.mubr.bf16.gmra.mxu0 %v396
      %v749 = vpop.f32.mrf.mxu0
      %v750 = vadd.f32 0.0, %v749
      %v751 = vpop.f32.mrf.mxu0
      %v752 = vpop.f32.mrf.mxu0
      %v753 = vadd.f32 0.0, %v752
      %v754 = vpop.f32.mrf.mxu0
      %755 = vmatprep.mubr.bf16.mxu0 0
      %756 = vmatmul.mubr.bf16.gmra.mxu0 %v397
      %v757 = vpop.f32.mrf.mxu0
      %v758 = vadd.f32 0.0, %v757
      %v759 = vpop.f32.mrf.mxu0
      %v760 = vpop.f32.mrf.mxu0
      %v761 = vadd.f32 0.0, %v760
      %v762 = vpop.f32.mrf.mxu0
      %763 = vmatprep.mubr.bf16.mxu0 0
      %764 = vmatmul.mubr.bf16.gmra.mxu0 %v398
      %v765 = vpop.f32.mrf.mxu0
      %v766 = vadd.f32 0.0, %v765
      %v767 = vpop.f32.mrf.mxu0
      %v768 = vpop.f32.mrf.mxu0
      %v769 = vadd.f32 0.0, %v768
      %v770 = vpop.f32.mrf.mxu0
      %771 = vmatprep.mubr.bf16.mxu0 0
      %772 = vmatmul.mubr.bf16.gmra.mxu0 %v399
      %v773 = vpop.f32.mrf.mxu0
      %v774 = vadd.f32 0.0, %v773
      %v775 = vpop.f32.mrf.mxu0
      %v776 = vpop.f32.mrf.mxu0
      %v777 = vadd.f32 0.0, %v776
      %v778 = vpop.f32.mrf.mxu0
      %779 = vmatprep.mubr.bf16.mxu0 0
      %780 = vmatmul.mubr.bf16.gmra.mxu0 %v400
      %v781 = vpop.f32.mrf.mxu0
      %v782 = vadd.f32 0.0, %v781
      %v783 = vpop.f32.mrf.mxu0
      %v784 = vpop.f32.mrf.mxu0
      %v785 = vadd.f32 0.0, %v784
      %v786 = vpop.f32.mrf.mxu0
      %787 = vmatprep.mubr.bf16.mxu0 0
      %788 = vmatmul.mubr.bf16.gmra.mxu0 %v401
      %v789 = vpop.f32.mrf.mxu0
      %v790 = vadd.f32 0.0, %v789
      %v791 = vpop.f32.mrf.mxu0
      %v792 = vpop.f32.mrf.mxu0
      %v793 = vadd.f32 0.0, %v792
      %v794 = vpop.f32.mrf.mxu0
      %795 = vmatprep.mubr.bf16.mxu0 0
      %796 = vmatmul.mubr.bf16.gmra.mxu0 %v402
      %v797 = vpop.f32.mrf.mxu0
      %v798 = vadd.f32 0.0, %v797
      %v799 = vpop.f32.mrf.mxu0
      %v800 = vpop.f32.mrf.mxu0
      %v801 = vadd.f32 0.0, %v800
      %v802 = vpop.f32.mrf.mxu0
      %803 = vmatprep.mubr.bf16.mxu0 0
      %804 = vmatmul.mubr.bf16.gmra.mxu0 %v403
      %v805 = vpop.f32.mrf.mxu0
      %v806 = vadd.f32 0.0, %v805
      %v807 = vpop.f32.mrf.mxu0
      %v808 = vpop.f32.mrf.mxu0
      %v809 = vadd.f32 0.0, %v808
      %v810 = vpop.f32.mrf.mxu0
      %811 = vmatprep.mubr.bf16.mxu0 0
      %812 = vmatmul.mubr.bf16.gmra.mxu0 %v404
      %v813 = vpop.f32.mrf.mxu0
      %v814 = vadd.f32 0.0, %v813
      %v815 = vpop.f32.mrf.mxu0
      %v816 = vpop.f32.mrf.mxu0
      %v817 = vadd.f32 0.0, %v816
      %v818 = vpop.f32.mrf.mxu0
      %819 = vmatprep.mubr.bf16.mxu0 0
      %820 = vmatmul.mubr.bf16.gmra.mxu0 %v405
      %v821 = vpop.f32.mrf.mxu0
      %v822 = vadd.f32 0.0, %v821
      %v823 = vpop.f32.mrf.mxu0
      %v824 = vpop.f32.mrf.mxu0
      %v825 = vadd.f32 0.0, %v824
      %v826 = vpop.f32.mrf.mxu0
      %827 = vmatprep.mubr.bf16.mxu0 0
      %828 = vmatmul.mubr.bf16.gmra.mxu0 %v406
      %v829 = vpop.f32.mrf.mxu0
      %v830 = vadd.f32 0.0, %v829
      %v831 = vpop.f32.mrf.mxu0
      %v832 = vpop.f32.mrf.mxu0
      %v833 = vadd.f32 0.0, %v832
      %v834 = vpop.f32.mrf.mxu0
      %835 = vmatprep.mubr.bf16.mxu0 0
      %836 = vmatmul.mubr.bf16.gmra.mxu0 %v407
      %v837 = vpop.f32.mrf.mxu0
      %v838 = vadd.f32 0.0, %v837
      %v839 = vpop.f32.mrf.mxu0
      %v840 = vpop.f32.mrf.mxu0
      %v841 = vadd.f32 0.0, %v840
      %v842 = vpop.f32.mrf.mxu0
      %843 = vmatprep.mubr.bf16.mxu0 0
      %844 = vmatmul.mubr.bf16.gmra.mxu0 %v408
      %v845 = vpop.f32.mrf.mxu0
      %v846 = vadd.f32 0.0, %v845
      %v847 = vpop.f32.mrf.mxu0
      %v848 = vpop.f32.mrf.mxu0
      %v849 = vadd.f32 0.0, %v848
      %v850 = vpop.f32.mrf.mxu0
      %851 = vmatprep.mubr.bf16.mxu0 0
      %852 = vmatmul.mubr.bf16.gmra.mxu0 %v409
      %v853 = vpop.f32.mrf.mxu0
      %v854 = vadd.f32 0.0, %v853
      %v855 = vpop.f32.mrf.mxu0
      %v856 = vpop.f32.mrf.mxu0
      %v857 = vadd.f32 0.0, %v856
      %v858 = vpop.f32.mrf.mxu0
      %859 = vdwg.mxu0
      %v860 = vpack.c.bf16 %v512, %v509
      %v861 = vpack.c.bf16 %v520, %v517
      %v862 = vpack.c.bf16 %v528, %v525
      %v863 = vpack.c.bf16 %v536, %v533
      %v864 = vpack.c.bf16 %v544, %v541
      %v865 = vpack.c.bf16 %v552, %v549
      %v866 = vpack.c.bf16 %v560, %v557
      %v867 = vpack.c.bf16 %v568, %v565
      %v868 = vpack.c.bf16 %v576, %v573
      %v869 = vpack.c.bf16 %v584, %v581
      %v870 = vpack.c.bf16 %v592, %v589
      %v871 = vpack.c.bf16 %v600, %v597
      %v872 = vpack.c.bf16 %v608, %v605
      %v873 = vpack.c.bf16 %v616, %v613
      %v874 = vpack.c.bf16 %v624, %v621
      %v875 = vpack.c.bf16 %v632, %v629
      %v892 = vunpack.c.l.b16 %v860
      %v893 = vunpack.c.h.b16 %v860
      %v894 = vunpack.c.l.b16 %v861
      %v895 = vunpack.c.h.b16 %v861
      %v896 = vunpack.c.l.b16 %v862
      %v897 = vunpack.c.h.b16 %v862
      %v898 = vunpack.c.l.b16 %v863
      %v899 = vunpack.c.h.b16 %v863
      %v900 = vunpack.c.l.b16 %v864
      %v901 = vunpack.c.h.b16 %v864
      %v902 = vunpack.c.l.b16 %v865
      %v903 = vunpack.c.h.b16 %v865
      %v904 = vunpack.c.l.b16 %v866
      %v905 = vunpack.c.h.b16 %v866
      %v906 = vunpack.c.l.b16 %v867
      %v907 = vunpack.c.h.b16 %v867
      %v908 = vunpack.c.l.b16 %v868
      %v909 = vunpack.c.h.b16 %v868
      %v910 = vunpack.c.l.b16 %v869
      %v911 = vunpack.c.h.b16 %v869
      %v912 = vunpack.c.l.b16 %v870
      %v913 = vunpack.c.h.b16 %v870
      %v914 = vunpack.c.l.b16 %v871
      %v915 = vunpack.c.h.b16 %v871
      %v916 = vunpack.c.l.b16 %v872
      %v917 = vunpack.c.h.b16 %v872
      %v918 = vunpack.c.l.b16 %v873
      %v919 = vunpack.c.h.b16 %v873
      %v920 = vunpack.c.l.b16 %v874
      %v921 = vunpack.c.h.b16 %v874
      %v922 = vunpack.c.l.b16 %v875
      %v923 = vunpack.c.h.b16 %v875
      %v924 = vpack.c.b16 %v892, %v892
      %v925 = vpack.c.b16 %v893, %v893
      %v926 = vpack.c.b16 %v894, %v894
      %v927 = vpack.c.b16 %v895, %v895
      %v928 = vpack.c.b16 %v896, %v896
      %v929 = vpack.c.b16 %v897, %v897
      %v930 = vpack.c.b16 %v898, %v898
      %v931 = vpack.c.b16 %v899, %v899
      %v932 = vpack.c.b16 %v900, %v900
      %v933 = vpack.c.b16 %v901, %v901
      %v934 = vpack.c.b16 %v902, %v902
      %v935 = vpack.c.b16 %v903, %v903
      %v936 = vpack.c.b16 %v904, %v904
      %v937 = vpack.c.b16 %v905, %v905
      %v938 = vpack.c.b16 %v906, %v906
      %v939 = vpack.c.b16 %v907, %v907
      %v940 = vpack.c.b16 %v908, %v908
      %v941 = vpack.c.b16 %v909, %v909
      %v942 = vpack.c.b16 %v910, %v910
      %v943 = vpack.c.b16 %v911, %v911
      %v944 = vpack.c.b16 %v912, %v912
      %v945 = vpack.c.b16 %v913, %v913
      %v946 = vpack.c.b16 %v914, %v914
      %v947 = vpack.c.b16 %v915, %v915
      %v948 = vpack.c.b16 %v916, %v916
      %v949 = vpack.c.b16 %v917, %v917
      %v950 = vpack.c.b16 %v918, %v918
      %v951 = vpack.c.b16 %v919, %v919
      %v952 = vpack.c.b16 %v920, %v920
      %v953 = vpack.c.b16 %v921, %v921
      %v954 = vpack.c.b16 %v922, %v922
      %v955 = vpack.c.b16 %v923, %v923
      %988 = vst [vmem:[%s269] sm:$0xf] %v924
      %989 = vst [vmem:[%s269 + $0x4] sm:$0xf] %v925
      %990 = vst [vmem:[%s269 + $0x8] sm:$0xf] %v926
      %991 = vst [vmem:[%s269 + $0xc] sm:$0xf] %v927
      %992 = vst [vmem:[%s269 + $0x10] sm:$0xf] %v928
      %993 = vst [vmem:[%s269 + $0x14] sm:$0xf] %v929
      %994 = vst [vmem:[%s269 + $0x18] sm:$0xf] %v930
      %995 = vst [vmem:[%s269 + $0x1c] sm:$0xf] %v931
      %996 = vst [vmem:[%s269 + $0x20] sm:$0xf] %v932
      %997 = vst [vmem:[%s269 + $0x24] sm:$0xf] %v933
      %998 = vst [vmem:[%s269 + $0x28] sm:$0xf] %v934
      %999 = vst [vmem:[%s269 + $0x2c] sm:$0xf] %v935
      %1000 = vst [vmem:[%s269 + $0x30] sm:$0xf] %v936
      %1001 = vst [vmem:[%s269 + $0x34] sm:$0xf] %v937
      %1002 = vst [vmem:[%s269 + $0x38] sm:$0xf] %v938
      %1003 = vst [vmem:[%s269 + $0x3c] sm:$0xf] %v939
      %1004 = vst [vmem:[%s269 + $0x40] sm:$0xf] %v940
      %1005 = vst [vmem:[%s269 + $0x44] sm:$0xf] %v941
      %1006 = vst [vmem:[%s269 + $0x48] sm:$0xf] %v942
      %1007 = vst [vmem:[%s269 + $0x4c] sm:$0xf] %v943
      %1008 = vst [vmem:[%s269 + $0x50] sm:$0xf] %v944
      %1009 = vst [vmem:[%s269 + $0x54] sm:$0xf] %v945
      %1010 = vst [vmem:[%s269 + $0x58] sm:$0xf] %v946
      %1011 = vst [vmem:[%s269 + $0x5c] sm:$0xf] %v947
      %1012 = vst [vmem:[%s269 + $0x60] sm:$0xf] %v948
      %1013 = vst [vmem:[%s269 + $0x64] sm:$0xf] %v949
      %1014 = vst [vmem:[%s269 + $0x68] sm:$0xf] %v950
      %1015 = vst [vmem:[%s269 + $0x6c] sm:$0xf] %v951
      %1016 = vst [vmem:[%s269 + $0x70] sm:$0xf] %v952
      %1017 = vst [vmem:[%s269 + $0x74] sm:$0xf] %v953
      %1018 = vst [vmem:[%s269 + $0x78] sm:$0xf] %v954
      %1019 = vst [vmem:[%s269 + $0x7c] sm:$0xf] %v955
      %v1020 = vpack.c.bf16 %v737, %v734
      %v1021 = vpack.c.bf16 %v745, %v742
      %v1022 = vpack.c.bf16 %v753, %v750
      %v1023 = vpack.c.bf16 %v761, %v758
      %v1024 = vpack.c.bf16 %v769, %v766
      %v1025 = vpack.c.bf16 %v777, %v774
      %v1026 = vpack.c.bf16 %v785, %v782
      %v1027 = vpack.c.bf16 %v793, %v790
      %v1028 = vpack.c.bf16 %v801, %v798
      %v1029 = vpack.c.bf16 %v809, %v806
      %v1030 = vpack.c.bf16 %v817, %v814
      %v1031 = vpack.c.bf16 %v825, %v822
      %v1032 = vpack.c.bf16 %v833, %v830
      %v1033 = vpack.c.bf16 %v841, %v838
      %v1034 = vpack.c.bf16 %v849, %v846
      %v1035 = vpack.c.bf16 %v857, %v854
      %v1052 = vunpack.c.l.b16 %v1020
      %v1053 = vunpack.c.h.b16 %v1020
      %v1054 = vunpack.c.l.b16 %v1021
      %v1055 = vunpack.c.h.b16 %v1021
      %v1056 = vunpack.c.l.b16 %v1022
      %v1057 = vunpack.c.h.b16 %v1022
      %v1058 = vunpack.c.l.b16 %v1023
      %v1059 = vunpack.c.h.b16 %v1023
      %v1060 = vunpack.c.l.b16 %v1024
      %v1061 = vunpack.c.h.b16 %v1024
      %v1062 = vunpack.c.l.b16 %v1025
      %v1063 = vunpack.c.h.b16 %v1025
      %v1064 = vunpack.c.l.b16 %v1026
      %v1065 = vunpack.c.h.b16 %v1026
      %v1066 = vunpack.c.l.b16 %v1027
      %v1067 = vunpack.c.h.b16 %v1027
      %v1068 = vunpack.c.l.b16 %v1028
      %v1069 = vunpack.c.h.b16 %v1028
      %v1070 = vunpack.c.l.b16 %v1029
      %v1071 = vunpack.c.h.b16 %v1029
      %v1072 = vunpack.c.l.b16 %v1030
      %v1073 = vunpack.c.h.b16 %v1030
      %v1074 = vunpack.c.l.b16 %v1031
      %v1075 = vunpack.c.h.b16 %v1031
      %v1076 = vunpack.c.l.b16 %v1032
      %v1077 = vunpack.c.h.b16 %v1032
      %v1078 = vunpack.c.l.b16 %v1033
      %v1079 = vunpack.c.h.b16 %v1033
      %v1080 = vunpack.c.l.b16 %v1034
      %v1081 = vunpack.c.h.b16 %v1034
      %v1082 = vunpack.c.l.b16 %v1035
      %v1083 = vunpack.c.h.b16 %v1035
      %v1084 = vpack.c.b16 %v1052, %v1052
      %v1085 = vpack.c.b16 %v1053, %v1053
      %v1086 = vpack.c.b16 %v1054, %v1054
      %v1087 = vpack.c.b16 %v1055, %v1055
      %v1088 = vpack.c.b16 %v1056, %v1056
      %v1089 = vpack.c.b16 %v1057, %v1057
      %v1090 = vpack.c.b16 %v1058, %v1058
      %v1091 = vpack.c.b16 %v1059, %v1059
      %v1092 = vpack.c.b16 %v1060, %v1060
      %v1093 = vpack.c.b16 %v1061, %v1061
      %v1094 = vpack.c.b16 %v1062, %v1062
      %v1095 = vpack.c.b16 %v1063, %v1063
      %v1096 = vpack.c.b16 %v1064, %v1064
      %v1097 = vpack.c.b16 %v1065, %v1065
      %v1098 = vpack.c.b16 %v1066, %v1066
      %v1099 = vpack.c.b16 %v1067, %v1067
      %v1100 = vpack.c.b16 %v1068, %v1068
      %v1101 = vpack.c.b16 %v1069, %v1069
      %v1102 = vpack.c.b16 %v1070, %v1070
      %v1103 = vpack.c.b16 %v1071, %v1071
      %v1104 = vpack.c.b16 %v1072, %v1072
      %v1105 = vpack.c.b16 %v1073, %v1073
      %v1106 = vpack.c.b16 %v1074, %v1074
      %v1107 = vpack.c.b16 %v1075, %v1075
      %v1108 = vpack.c.b16 %v1076, %v1076
      %v1109 = vpack.c.b16 %v1077, %v1077
      %v1110 = vpack.c.b16 %v1078, %v1078
      %v1111 = vpack.c.b16 %v1079, %v1079
      %v1112 = vpack.c.b16 %v1080, %v1080
      %v1113 = vpack.c.b16 %v1081, %v1081
      %v1114 = vpack.c.b16 %v1082, %v1082
      %v1115 = vpack.c.b16 %v1083, %v1083
      %1148 = vst [vmem:[%s274] sm:$0xf] %v1084
      %1149 = vst [vmem:[%s274 + $0x4] sm:$0xf] %v1085
      %1150 = vst [vmem:[%s274 + $0x8] sm:$0xf] %v1086
      %1151 = vst [vmem:[%s274 + $0xc] sm:$0xf] %v1087
      %1152 = vst [vmem:[%s274 + $0x10] sm:$0xf] %v1088
      %1153 = vst [vmem:[%s274 + $0x14] sm:$0xf] %v1089
      %1154 = vst [vmem:[%s274 + $0x18] sm:$0xf] %v1090
      %1155 = vst [vmem:[%s274 + $0x1c] sm:$0xf] %v1091
      %1156 = vst [vmem:[%s274 + $0x20] sm:$0xf] %v1092
      %1157 = vst [vmem:[%s274 + $0x24] sm:$0xf] %v1093
      %1158 = vst [vmem:[%s274 + $0x28] sm:$0xf] %v1094
      %1159 = vst [vmem:[%s274 + $0x2c] sm:$0xf] %v1095
      %1160 = vst [vmem:[%s274 + $0x30] sm:$0xf] %v1096
      %1161 = vst [vmem:[%s274 + $0x34] sm:$0xf] %v1097
      %1162 = vst [vmem:[%s274 + $0x38] sm:$0xf] %v1098
      %1163 = vst [vmem:[%s274 + $0x3c] sm:$0xf] %v1099
      %1164 = vst [vmem:[%s274 + $0x40] sm:$0xf] %v1100
      %1165 = vst [vmem:[%s274 + $0x44] sm:$0xf] %v1101
      %1166 = vst [vmem:[%s274 + $0x48] sm:$0xf] %v1102
      %1167 = vst [vmem:[%s274 + $0x4c] sm:$0xf] %v1103
      %1168 = vst [vmem:[%s274 + $0x50] sm:$0xf] %v1104
      %1169 = vst [vmem:[%s274 + $0x54] sm:$0xf] %v1105
      %1170 = vst [vmem:[%s274 + $0x58] sm:$0xf] %v1106
      %1171 = vst [vmem:[%s274 + $0x5c] sm:$0xf] %v1107
      %1172 = vst [vmem:[%s274 + $0x60] sm:$0xf] %v1108
      %1173 = vst [vmem:[%s274 + $0x64] sm:$0xf] %v1109
      %1174 = vst [vmem:[%s274 + $0x68] sm:$0xf] %v1110
      %1175 = vst [vmem:[%s274 + $0x6c] sm:$0xf] %v1111
      %1176 = vst [vmem:[%s274 + $0x70] sm:$0xf] %v1112
      %1177 = vst [vmem:[%s274 + $0x74] sm:$0xf] %v1113
      %1178 = vst [vmem:[%s274 + $0x78] sm:$0xf] %v1114
      %1179 = vst [vmem:[%s274 + $0x7c] sm:$0xf] %v1115
      %v1180 = vadd.f32 %v509, %v512
      %v1181 = vadd.f32 %v1180, %v517
      %v1182 = vadd.f32 %v1181, %v520
      %v1183 = vadd.f32 %v1182, %v525
      %v1184 = vadd.f32 %v1183, %v528
      %v1185 = vadd.f32 %v1184, %v533
      %v1186 = vadd.f32 %v1185, %v536
      %v1187 = vadd.f32 %v1186, %v541
      %v1188 = vadd.f32 %v1187, %v544
      %v1189 = vadd.f32 %v1188, %v549
      %v1190 = vadd.f32 %v1189, %v552
      %v1191 = vadd.f32 %v1190, %v557
      %v1192 = vadd.f32 %v1191, %v560
      %v1193 = vadd.f32 %v1192, %v565
      %v1194 = vadd.f32 %v1193, %v568
      %v1195 = vadd.f32 %v1194, %v573
      %v1196 = vadd.f32 %v1195, %v576
      %v1197 = vadd.f32 %v1196, %v581
      %v1198 = vadd.f32 %v1197, %v584
      %v1199 = vadd.f32 %v1198, %v589
      %v1200 = vadd.f32 %v1199, %v592
      %v1201 = vadd.f32 %v1200, %v597
      %v1202 = vadd.f32 %v1201, %v600
      %v1203 = vadd.f32 %v1202, %v605
      %v1204 = vadd.f32 %v1203, %v608
      %v1205 = vadd.f32 %v1204, %v613
      %v1206 = vadd.f32 %v1205, %v616
      %v1207 = vadd.f32 %v1206, %v621
      %v1208 = vadd.f32 %v1207, %v624
      %v1209 = vadd.f32 %v1208, %v629
      %v1210 = vadd.f32 %v1209, %v632
      %v1211 = vrot.slane %v1210, 4
      %v1212 = vadd.f32 %v1210, %v1211
      %v1213 = vrot.slane %v1212, 2
      %v1214 = vadd.f32 %v1212, %v1213
      %v1215 = vrot.slane %v1214, 1
      %v1216 = vadd.f32 %v1214, %v1215
      %1217 = vst [vmem:[%s277] sm:$0x1] %v1216
      %v1218 = vmul.f32 %v509, %v509
      %v1219 = vmul.f32 %v512, %v512
      %v1220 = vmul.f32 %v517, %v517
      %v1221 = vmul.f32 %v520, %v520
      %v1222 = vmul.f32 %v525, %v525
      %v1223 = vmul.f32 %v528, %v528
      %v1224 = vmul.f32 %v533, %v533
      %v1225 = vmul.f32 %v536, %v536
      %v1226 = vmul.f32 %v541, %v541
      %v1227 = vmul.f32 %v544, %v544
      %v1228 = vmul.f32 %v549, %v549
      %v1229 = vmul.f32 %v552, %v552
      %v1230 = vmul.f32 %v557, %v557
      %v1231 = vmul.f32 %v560, %v560
      %v1232 = vmul.f32 %v565, %v565
      %v1233 = vmul.f32 %v568, %v568
      %v1234 = vmul.f32 %v573, %v573
      %v1235 = vmul.f32 %v576, %v576
      %v1236 = vmul.f32 %v581, %v581
      %v1237 = vmul.f32 %v584, %v584
      %v1238 = vmul.f32 %v589, %v589
      %v1239 = vmul.f32 %v592, %v592
      %v1240 = vmul.f32 %v597, %v597
      %v1241 = vmul.f32 %v600, %v600
      %v1242 = vmul.f32 %v605, %v605
      %v1243 = vmul.f32 %v608, %v608
      %v1244 = vmul.f32 %v613, %v613
      %v1245 = vmul.f32 %v616, %v616
      %v1246 = vmul.f32 %v621, %v621
      %v1247 = vmul.f32 %v624, %v624
      %v1248 = vmul.f32 %v629, %v629
      %v1249 = vmul.f32 %v632, %v632
      %v1250 = vadd.f32 %v1218, %v1219
      %v1251 = vadd.f32 %v1250, %v1220
      %v1252 = vadd.f32 %v1251, %v1221
      %v1253 = vadd.f32 %v1252, %v1222
      %v1254 = vadd.f32 %v1253, %v1223
      %v1255 = vadd.f32 %v1254, %v1224
      %v1256 = vadd.f32 %v1255, %v1225
      %v1257 = vadd.f32 %v1256, %v1226
      %v1258 = vadd.f32 %v1257, %v1227
      %v1259 = vadd.f32 %v1258, %v1228
      %v1260 = vadd.f32 %v1259, %v1229
      %v1261 = vadd.f32 %v1260, %v1230
      %v1262 = vadd.f32 %v1261, %v1231
      %v1263 = vadd.f32 %v1262, %v1232
      %v1264 = vadd.f32 %v1263, %v1233
      %v1265 = vadd.f32 %v1264, %v1234
      %v1266 = vadd.f32 %v1265, %v1235
      %v1267 = vadd.f32 %v1266, %v1236
      %v1268 = vadd.f32 %v1267, %v1237
      %v1269 = vadd.f32 %v1268, %v1238
      %v1270 = vadd.f32 %v1269, %v1239
      %v1271 = vadd.f32 %v1270, %v1240
      %v1272 = vadd.f32 %v1271, %v1241
      %v1273 = vadd.f32 %v1272, %v1242
      %v1274 = vadd.f32 %v1273, %v1243
      %v1275 = vadd.f32 %v1274, %v1244
      %v1276 = vadd.f32 %v1275, %v1245
      %v1277 = vadd.f32 %v1276, %v1246
      %v1278 = vadd.f32 %v1277, %v1247
      %v1279 = vadd.f32 %v1278, %v1248
      %v1280 = vadd.f32 %v1279, %v1249
      %v1281 = vrot.slane %v1280, 4
      %v1282 = vadd.f32 %v1280, %v1281
      %v1283 = vrot.slane %v1282, 2
      %v1284 = vadd.f32 %v1282, %v1283
      %v1285 = vrot.slane %v1284, 1
      %v1286 = vadd.f32 %v1284, %v1285
      %1287 = vst [vmem:[%s280] sm:$0x1] %v1286
      %p1288 = scmp.lt.s32.totalorder %s18, 1
      %s1289 = scalar_select %p1288, %s18, 1
      %s1290 = smul.addr %s1289, 32
      %s1291 = smul.addr %s1290, 4
      %s1292 = scalar_lea.vmem %s3, %s1291
      %p1293 = scmp.lt.s32.totalorder %s18, 1
      %s1294 = scalar_select %p1293, %s18, 1
      %s1295 = smul.addr %s1294, 32
      %s1296 = smul.addr %s1295, 4
      %s1297 = scalar_lea.vmem %s4, %s1296
      %p1298 = scmp.lt.s32.totalorder %s18, 1
      %s1299 = scalar_select %p1298, %s18, 1
      %s1300 = scalar_lea.vmem %s5, %s1299
      %p1301 = scmp.lt.s32.totalorder %s18, 1
      %s1302 = scalar_select %p1301, %s18, 1
      %s1303 = scalar_lea.vmem %s6, %s1302
      // Predicated region
      $region33: #{bottleneck_forward.3} parent=31 // pred_check
        %p1304 = pneg %p104
      $region34: #{bottleneck_forward.3} parent=31 // pred_check_branch
        %1306 = sbr.rel (%p1304) target = $region36
      $region35: #{bottleneck_forward.3} parent=31 // pred_region
        _
      $region36: #{bottleneck_forward.3} parent=31 // pred_fallthru
        _
      // Predicated region
      $region37: #{bottleneck_forward.3} parent=31 // pred_check
        %p1307 = pneg %p130
      $region38: #{bottleneck_forward.3} parent=31 // pred_check_branch
        %1309 = sbr.rel (%p1307) target = $region40
      $region39: #{bottleneck_forward.3} parent=31 // pred_region
        _
      $region40: #{bottleneck_forward.3} parent=31 // pred_fallthru
        _
      // Predicated region
      $region41: #{bottleneck_forward.3} parent=31 // pred_check
        %p1310 = pneg %p156
      $region42: #{bottleneck_forward.3} parent=31 // pred_check_branch
        %1312 = sbr.rel (%p1310) target = $region44
      $region43: #{bottleneck_forward.3} parent=31 // pred_region
        _
      $region44: #{bottleneck_forward.3} parent=31 // pred_fallthru
        _
      // Predicated region
      $region45: #{bottleneck_forward.3} parent=31 // pred_check
        %p1313 = pneg %p182
      $region46: #{bottleneck_forward.3} parent=31 // pred_check_branch
        %1315 = sbr.rel (%p1313) target = $region48
      $region47: #{bottleneck_forward.3} parent=31 // pred_region
        _
      $region48: #{bottleneck_forward.3} parent=31 // pred_fallthru
        _
    $region32: #{bottleneck_forward.3} parent=5 // pred_fallthru
      _
    %p1316 = scmp.le.s32.totalorder 2, %s13
    // Predicated region
    $region49: #{bottleneck_forward.3} parent=5 // pred_check
      %p1317 = pneg %p1316
    $region50: #{bottleneck_forward.3} parent=5 // pred_check_branch
      %1319 = sbr.rel (%p1317) target = $region52
    $region51: #{bottleneck_forward.3} parent=5 // pred_region
      %s1320 = ssub.s32 %s13, 2
      // Predicated region
      $region53: #{bottleneck_forward.3} parent=51 // pred_check
        %p1321 = pneg %p110
      $region54: #{bottleneck_forward.3} parent=51 // pred_check_branch
        %1323 = sbr.rel (%p1321) target = $region56
      $region55: #{bottleneck_forward.3} parent=51 // pred_region
        %p1324 = scmp.lt.s32.totalorder %s19, 1
        %s1325 = scalar_select %p1324, %s19, 1
        %s1326 = smul.addr %s1325, 32
        %s1327 = smul.addr %s1326, 4
        %s1328 = scalar_lea.vmem %s3, %s1327
      $region56: #{bottleneck_forward.3} parent=51 // pred_fallthru
        _
      // Predicated region
      $region57: #{bottleneck_forward.3} parent=51 // pred_check
        %p1329 = pneg %p136
      $region58: #{bottleneck_forward.3} parent=51 // pred_check_branch
        %1331 = sbr.rel (%p1329) target = $region60
      $region59: #{bottleneck_forward.3} parent=51 // pred_region
        %p1332 = scmp.lt.s32.totalorder %s19, 1
        %s1333 = scalar_select %p1332, %s19, 1
        %s1334 = smul.addr %s1333, 32
        %s1335 = smul.addr %s1334, 4
        %s1336 = scalar_lea.vmem %s4, %s1335
      $region60: #{bottleneck_forward.3} parent=51 // pred_fallthru
        _
      // Predicated region
      $region61: #{bottleneck_forward.3} parent=51 // pred_check
        %p1337 = pneg %p162
      $region62: #{bottleneck_forward.3} parent=51 // pred_check_branch
        %1339 = sbr.rel (%p1337) target = $region64
      $region63: #{bottleneck_forward.3} parent=51 // pred_region
        %p1340 = scmp.lt.s32.totalorder %s19, 1
        %s1341 = scalar_select %p1340, %s19, 1
        %s1342 = scalar_lea.vmem %s5, %s1341
      $region64: #{bottleneck_forward.3} parent=51 // pred_fallthru
        _
      // Predicated region
      $region65: #{bottleneck_forward.3} parent=51 // pred_check
        %p1343 = pneg %p188
      $region66: #{bottleneck_forward.3} parent=51 // pred_check_branch
        %1345 = sbr.rel (%p1343) target = $region68
      $region67: #{bottleneck_forward.3} parent=51 // pred_region
        %p1346 = scmp.lt.s32.totalorder %s19, 1
        %s1347 = scalar_select %p1346, %s19, 1
        %s1348 = scalar_lea.vmem %s6, %s1347
      $region68: #{bottleneck_forward.3} parent=51 // pred_fallthru
        _
    $region52: #{bottleneck_forward.3} parent=5 // pred_fallthru
      _
  $region6: #{bottleneck_forward.3} parent=0 // loop_footer
    %s17 = sadd.s32 1, %s13
  $region7: #{bottleneck_forward.3} parent=0 // loop_footer_branch
    %12 = sbr.rel target = $region3
  $region8: #{bottleneck_forward.3} parent=0 // loop_exit
    _

// kernel: bottleneck_forward.5
$region0: #{bottleneck_forward.5}
  #allocation0 [shape = 'u32[]', space=smem, size = 0x4, offset = 0x4, fixed_abs, tag = 'smem constant byte address 0x4 - core index']
  #allocation1 [shape = 'u32[144,128]{1,0:T(1,128)}', space=vmem, size = 0x12000, scoped, tag = 'internal scratch']
  %s0 = inlined_call_operand.vmem [shape: bf16[2,256,128], index: 0, kind: input, shape index: {}]
  %s1 = inlined_call_operand.vmem [shape: f32[1,128], index: 1, kind: input, shape index: {}]
  %s2 = inlined_call_operand.vmem [shape: f32[1,128], index: 2, kind: input, shape index: {}]
  %s3 = inlined_call_operand.vmem [shape: bf16[128,128], index: 3, kind: input, shape index: {}]
  %s4 = inlined_call_operand.vmem [shape: bf16[2,256,128], index: 4, kind: input, shape index: {}]
  %s5 = inlined_call_operand.vmem [shape: f32[2,256,128], index: 5, kind: output, shape index: {0}]
  %s6 = inlined_call_operand.vmem [shape: f32[2,1,128], index: 6, kind: output, shape index: {1}]
  %s7 = inlined_call_operand.vmem [shape: f32[2,1,128], index: 7, kind: output, shape index: {2}]
  %8 = xla_tuple %s5, %s6, %s7
  %s9 = sld [smem:[#allocation0]]
  $region69: #{bottleneck_forward.5} parent=0
    _
  %s11 = ssub.s32 1, %s9
  %s12 = scalar_select 0, %s11, %s9
  loop: start=0, step=1, limit=4
  $region2: #{bottleneck_forward.5} parent=0 // loop_pre_header
    _
  $region3: #{bottleneck_forward.5} parent=0 // loop_header
    %s14 = sphi 0, %s18
    %p15 = scmp.ge.s32.totalorder %s14, 4
    %s24 = sphi 0, %s26
    %s27 = sphi 0, %s24
    %s28 = sphi 0, %s27
    %s44 = sphi 0, %s28
    %s48 = sphi 0, %s48
    %s50 = sphi 0, %s48
    %s51 = sphi 0, %s50
    %s65 = sphi 0, %s51
    %s69 = sphi 0, %s69
    %s71 = sphi 0, %s69
    %s72 = sphi 0, %s71
    %s86 = sphi 0, %s72
    %s90 = sphi 0, %s90
    %s92 = sphi 0, %s90
    %s93 = sphi 0, %s92
    %s107 = sphi 0, %s93
    %s113 = sphi 0, %s115
    %s116 = sphi 0, %s113
    %s117 = sphi 0, %s116
    %s133 = sphi 0, %s117
    %s139 = sphi 0, %s141
    %s142 = sphi 0, %s139
    %s143 = sphi 0, %s142
    %s159 = sphi 0, %s143
    %s165 = sphi 0, %s167
    %s168 = sphi 0, %s165
    %s169 = sphi 0, %s168
    %s185 = sphi 0, %s169
    %s191 = sphi 0, %s193
    %s194 = sphi 0, %s191
    %s195 = sphi 0, %s194
    %s211 = sphi 0, %s195
  $region4: #{bottleneck_forward.5} parent=0 // loop_header_branch
    %17 = sbr.rel (%p15) target = $region8
  $region5: #{bottleneck_forward.5} parent=0 // loop_body
    %s19 = ssub.s32 %s14, 1
    %s20 = ssub.s32 %s14, 2
    %s21 = sadd.s32 %s14, 1
    %s22 = ssub.s32 %s14, %s21
    %p23 = scmp.eq.s32.totalorder %s22, 0
    %s25 = sadd.s32 %s24, 1
    %s26 = scalar_select %p23, %s24, %s25
    %p29 = pneg %p23
    %p30 = scmp.eq.s32.totalorder %s14, 1
    %p31 = por %p29, %p30
    %p32 = scmp.ne.s32.totalorder %s24, %s27
    %p33 = scmp.eq.s32.totalorder %s14, 0
    %p34 = por %p32, %p33
    %p35 = scmp.ne.s32.totalorder %s24, %s27
    %p36 = scmp.eq.s32.totalorder %s19, 1
    %p37 = por %p35, %p36
    %p38 = scmp.ne.s32.totalorder %s27, %s28
    %p39 = scmp.eq.s32.totalorder %s19, 0
    %p40 = por %p38, %p39
    %p41 = scmp.ne.s32.totalorder %s27, %s28
    %p42 = scmp.eq.s32.totalorder %s20, 1
    %p43 = por %p41, %p42
    %p45 = scmp.ne.s32.totalorder %s28, %s44
    %p46 = scmp.eq.s32.totalorder %s20, 0
    %p47 = por %p45, %p46
    %s49 = sadd.s32 %s48, 1
    %p52 = scmp.eq.s32.totalorder %s14, 1
    %p53 = scmp.ne.s32.totalorder %s48, %s50
    %p54 = scmp.eq.s32.totalorder %s14, 0
    %p55 = por %p53, %p54
    %p56 = scmp.ne.s32.totalorder %s48, %s50
    %p57 = scmp.eq.s32.totalorder %s19, 1
    %p58 = por %p56, %p57
    %p59 = scmp.ne.s32.totalorder %s50, %s51
    %p60 = scmp.eq.s32.totalorder %s19, 0
    %p61 = por %p59, %p60
    %p62 = scmp.ne.s32.totalorder %s50, %s51
    %p63 = scmp.eq.s32.totalorder %s20, 1
    %p64 = por %p62, %p63
    %p66 = scmp.ne.s32.totalorder %s51, %s65
    %p67 = scmp.eq.s32.totalorder %s20, 0
    %p68 = por %p66, %p67
    %s70 = sadd.s32 %s69, 1
    %p73 = scmp.eq.s32.totalorder %s14, 1
    %p74 = scmp.ne.s32.totalorder %s69, %s71
    %p75 = scmp.eq.s32.totalorder %s14, 0
    %p76 = por %p74, %p75
    %p77 = scmp.ne.s32.totalorder %s69, %s71
    %p78 = scmp.eq.s32.totalorder %s19, 1
    %p79 = por %p77, %p78
    %p80 = scmp.ne.s32.totalorder %s71, %s72
    %p81 = scmp.eq.s32.totalorder %s19, 0
    %p82 = por %p80, %p81
    %p83 = scmp.ne.s32.totalorder %s71, %s72
    %p84 = scmp.eq.s32.totalorder %s20, 1
    %p85 = por %p83, %p84
    %p87 = scmp.ne.s32.totalorder %s72, %s86
    %p88 = scmp.eq.s32.totalorder %s20, 0
    %p89 = por %p87, %p88
    %s91 = sadd.s32 %s90, 1
    %p94 = scmp.eq.s32.totalorder %s14, 1
    %p95 = scmp.ne.s32.totalorder %s90, %s92
    %p96 = scmp.eq.s32.totalorder %s14, 0
    %p97 = por %p95, %p96
    %p98 = scmp.ne.s32.totalorder %s90, %s92
    %p99 = scmp.eq.s32.totalorder %s19, 1
    %p100 = por %p98, %p99
    %p101 = scmp.ne.s32.totalorder %s92, %s93
    %p102 = scmp.eq.s32.totalorder %s19, 0
    %p103 = por %p101, %p102
    %p104 = scmp.ne.s32.totalorder %s92, %s93
    %p105 = scmp.eq.s32.totalorder %s20, 1
    %p106 = por %p104, %p105
    %p108 = scmp.ne.s32.totalorder %s93, %s107
    %p109 = scmp.eq.s32.totalorder %s20, 0
    %p110 = por %p108, %p109
    %s111 = ssub.s32 %s14, %s21
    %p112 = scmp.eq.s32.totalorder %s111, 0
    %s114 = sadd.s32 %s113, 1
    %s115 = scalar_select %p112, %s113, %s114
    %p118 = pneg %p112
    %p119 = scmp.eq.s32.totalorder %s14, 1
    %p120 = por %p118, %p119
    %p121 = scmp.ne.s32.totalorder %s113, %s116
    %p122 = scmp.eq.s32.totalorder %s14, 0
    %p123 = por %p121, %p122
    %p124 = scmp.ne.s32.totalorder %s113, %s116
    %p125 = scmp.eq.s32.totalorder %s19, 1
    %p126 = por %p124, %p125
    %p127 = scmp.ne.s32.totalorder %s116, %s117
    %p128 = scmp.eq.s32.totalorder %s19, 0
    %p129 = por %p127, %p128
    %p130 = scmp.ne.s32.totalorder %s116, %s117
    %p131 = scmp.eq.s32.totalorder %s20, 1
    %p132 = por %p130, %p131
    %p134 = scmp.ne.s32.totalorder %s117, %s133
    %p135 = scmp.eq.s32.totalorder %s20, 0
    %p136 = por %p134, %p135
    %s137 = ssub.s32 %s14, %s21
    %p138 = scmp.eq.s32.totalorder %s137, 0
    %s140 = sadd.s32 %s139, 1
    %s141 = scalar_select %p138, %s139, %s140
    %p144 = pneg %p138
    %p145 = scmp.eq.s32.totalorder %s14, 1
    %p146 = por %p144, %p145
    %p147 = scmp.ne.s32.totalorder %s139, %s142
    %p148 = scmp.eq.s32.totalorder %s14, 0
    %p149 = por %p147, %p148
    %p150 = scmp.ne.s32.totalorder %s139, %s142
    %p151 = scmp.eq.s32.totalorder %s19, 1
    %p152 = por %p150, %p151
    %p153 = scmp.ne.s32.totalorder %s142, %s143
    %p154 = scmp.eq.s32.totalorder %s19, 0
    %p155 = por %p153, %p154
    %p156 = scmp.ne.s32.totalorder %s142, %s143
    %p157 = scmp.eq.s32.totalorder %s20, 1
    %p158 = por %p156, %p157
    %p160 = scmp.ne.s32.totalorder %s143, %s159
    %p161 = scmp.eq.s32.totalorder %s20, 0
    %p162 = por %p160, %p161
    %s163 = ssub.s32 %s14, %s21
    %p164 = scmp.eq.s32.totalorder %s163, 0
    %s166 = sadd.s32 %s165, 1
    %s167 = scalar_select %p164, %s165, %s166
    %p170 = pneg %p164
    %p171 = scmp.eq.s32.totalorder %s14, 1
    %p172 = por %p170, %p171
    %p173 = scmp.ne.s32.totalorder %s165, %s168
    %p174 = scmp.eq.s32.totalorder %s14, 0
    %p175 = por %p173, %p174
    %p176 = scmp.ne.s32.totalorder %s165, %s168
    %p177 = scmp.eq.s32.totalorder %s19, 1
    %p178 = por %p176, %p177
    %p179 = scmp.ne.s32.totalorder %s168, %s169
    %p180 = scmp.eq.s32.totalorder %s19, 0
    %p181 = por %p179, %p180
    %p182 = scmp.ne.s32.totalorder %s168, %s169
    %p183 = scmp.eq.s32.totalorder %s20, 1
    %p184 = por %p182, %p183
    %p186 = scmp.ne.s32.totalorder %s169, %s185
    %p187 = scmp.eq.s32.totalorder %s20, 0
    %p188 = por %p186, %p187
    %s189 = ssub.s32 %s14, %s21
    %p190 = scmp.eq.s32.totalorder %s189, 0
    %s192 = sadd.s32 %s191, 1
    %s193 = scalar_select %p190, %s191, %s192
    %p196 = pneg %p190
    %p197 = scmp.eq.s32.totalorder %s14, 1
    %p198 = por %p196, %p197
    %p199 = scmp.ne.s32.totalorder %s191, %s194
    %p200 = scmp.eq.s32.totalorder %s14, 0
    %p201 = por %p199, %p200
    %p202 = scmp.ne.s32.totalorder %s191, %s194
    %p203 = scmp.eq.s32.totalorder %s19, 1
    %p204 = por %p202, %p203
    %p205 = scmp.ne.s32.totalorder %s194, %s195
    %p206 = scmp.eq.s32.totalorder %s19, 0
    %p207 = por %p205, %p206
    %p208 = scmp.ne.s32.totalorder %s194, %s195
    %p209 = scmp.eq.s32.totalorder %s20, 1
    %p210 = por %p208, %p209
    %p212 = scmp.ne.s32.totalorder %s195, %s211
    %p213 = scmp.eq.s32.totalorder %s20, 0
    %p214 = por %p212, %p213
    %p215 = scmp.le.s32.totalorder 1, %s14
    %p216 = scmp.lt.s32.totalorder %s14, 3
    %p217 = pnand %p215, %p216
    %p218 = pneg %p217
    // Predicated region
    $region9: #{bottleneck_forward.5} parent=5 // pred_check
      _
    $region10: #{bottleneck_forward.5} parent=5 // pred_check_branch
      %220 = sbr.rel (%p217) target = $region12
    $region11: #{bottleneck_forward.5} parent=5 // pred_region
      %s221 = ssub.s32 %s14, 1
      // Predicated region
      $region13: #{bottleneck_forward.5} parent=11 // pred_check
        %p222 = pneg %p61
      $region14: #{bottleneck_forward.5} parent=11 // pred_check_branch
        %224 = sbr.rel (%p222) target = $region16
      $region15: #{bottleneck_forward.5} parent=11 // pred_region
        _
      $region16: #{bottleneck_forward.5} parent=11 // pred_fallthru
        _
      // Predicated region
      $region17: #{bottleneck_forward.5} parent=11 // pred_check
        %p225 = pneg %p82
      $region18: #{bottleneck_forward.5} parent=11 // pred_check_branch
        %227 = sbr.rel (%p225) target = $region20
      $region19: #{bottleneck_forward.5} parent=11 // pred_region
        _
      $region20: #{bottleneck_forward.5} parent=11 // pred_fallthru
        _
      // Predicated region
      $region21: #{bottleneck_forward.5} parent=11 // pred_check
        %p228 = pneg %p103
      $region22: #{bottleneck_forward.5} parent=11 // pred_check_branch
        %230 = sbr.rel (%p228) target = $region24
      $region23: #{bottleneck_forward.5} parent=11 // pred_region
        _
      $region24: #{bottleneck_forward.5} parent=11 // pred_fallthru
        _
    $region12: #{bottleneck_forward.5} parent=5 // pred_fallthru
      _
    %p231 = scmp.lt.s32.totalorder %s14, 2
    // Predicated region
    $region25: #{bottleneck_forward.5} parent=5 // pred_check
      %p232 = pneg %p231
    $region26: #{bottleneck_forward.5} parent=5 // pred_check_branch
      %234 = sbr.rel (%p232) target = $region28
    $region27: #{bottleneck_forward.5} parent=5 // pred_region
      // Predicated region
      $region29: #{bottleneck_forward.5} parent=27 // pred_check
        %p235 = pneg %p34
      $region30: #{bottleneck_forward.5} parent=27 // pred_check_branch
        %237 = sbr.rel (%p235) target = $region32
      $region31: #{bottleneck_forward.5} parent=27 // pred_region
        %p238 = scmp.lt.s32.totalorder %s14, 1
        %s239 = scalar_select %p238, %s14, 1
        %s240 = smul.addr %s239, 32
        %s241 = smul.addr %s240, 4
        %s242 = scalar_lea.vmem %s0, %s241
      $region32: #{bottleneck_forward.5} parent=27 // pred_fallthru
        _
      // Predicated region
      $region33: #{bottleneck_forward.5} parent=27 // pred_check
        %p243 = pneg %p123
      $region34: #{bottleneck_forward.5} parent=27 // pred_check_branch
        %245 = sbr.rel (%p243) target = $region36
      $region35: #{bottleneck_forward.5} parent=27 // pred_region
        %p246 = scmp.lt.s32.totalorder %s14, 1
        %s247 = scalar_select %p246, %s14, 1
        %s248 = smul.addr %s247, 32
        %s249 = smul.addr %s248, 4
        %s250 = scalar_lea.vmem %s4, %s249
      $region36: #{bottleneck_forward.5} parent=27 // pred_fallthru
        _
    $region28: #{bottleneck_forward.5} parent=5 // pred_fallthru
      _
    %p251 = scmp.le.s32.totalorder 1, %s14
    %p252 = scmp.lt.s32.totalorder %s14, 3
    %p253 = pnand %p251, %p252
    %p254 = pneg %p253
    // Predicated region
    $region37: #{bottleneck_forward.5} parent=5 // pred_check
      _
    $region38: #{bottleneck_forward.5} parent=5 // pred_check_branch
      %256 = sbr.rel (%p253) target = $region40
    $region39: #{bottleneck_forward.5} parent=5 // pred_region
      %s257 = ssub.s32 %s14, 1
      %p258 = scmp.lt.s32.totalorder %s19, 1
      %s259 = scalar_select %p258, %s19, 1
      %s260 = smul.addr %s259, 32
      %s261 = smul.addr %s260, 4
      %s262 = scalar_lea.vmem %s0, %s261
      %p263 = pneg %p40
      %p264 = pneg %p37
      %p265 = pneg %p61
      %p266 = pneg %p58
      %p267 = pneg %p82
      %p268 = pneg %p79
      %p269 = pneg %p103
      %p270 = pneg %p100
      %p271 = scmp.lt.s32.totalorder %s19, 1
      %s272 = scalar_select %p271, %s19, 1
      %s273 = smul.addr %s272, 32
      %s274 = smul.addr %s273, 4
      %s275 = scalar_lea.vmem %s4, %s274
      %p276 = pneg %p129
      %p277 = pneg %p126
      %p278 = pneg %p155
      %p279 = pneg %p152
      %p280 = scmp.lt.s32.totalorder %s19, 1
      %s281 = scalar_select %p280, %s19, 1
      %s282 = smul.addr %s281, 32
      %s283 = smul.addr %s282, 8
      %s284 = scalar_lea.vmem %s5, %s283
      %p285 = pneg %p181
      %p286 = pneg %p178
      %p287 = scmp.lt.s32.totalorder %s19, 1
      %s288 = scalar_select %p287, %s19, 1
      %s289 = scalar_lea.vmem %s6, %s288
      %p290 = pneg %p207
      %p291 = pneg %p204
      %p292 = scmp.lt.s32.totalorder %s19, 1
      %s293 = scalar_select %p292, %s19, 1
      %s294 = scalar_lea.vmem %s7, %s293
      %p295 = scmp.lt.s32.totalorder %s19, 1
      %s296 = scalar_select %p295, %s19, 1
      %s297 = smul.addr %s296, 32
      %s298 = smul.addr %s297, 4
      %s299 = scalar_lea.vmem %s0, %s298
      %p300 = scmp.lt.s32.totalorder %s19, 1
      %s301 = scalar_select %p300, %s19, 1
      %s302 = smul.addr %s301, 32
      %s303 = smul.addr %s302, 4
      %s304 = scalar_lea.vmem %s4, %s303
      %p305 = scmp.lt.s32.totalorder %s19, 1
      %s306 = scalar_select %p305, %s19, 1
      %s307 = smul.addr %s306, 32
      %s308 = smul.addr %s307, 8
      %s309 = scalar_lea.vmem %s5, %s308
      %p310 = scmp.lt.s32.totalorder %s19, 1
      %s311 = scalar_select %p310, %s19, 1
      %s312 = scalar_lea.vmem %s6, %s311
      %p313 = scmp.lt.s32.totalorder %s19, 1
      %s314 = scalar_select %p313, %s19, 1
      %s315 = scalar_lea.vmem %s7, %s314
      %v317 = vld [vmem:[%s299] sm:$0xf]
      %v318 = vld [vmem:[%s299 + $0x4] sm:$0xf]
      %v319 = vld [vmem:[%s299 + $0x8] sm:$0xf]
      %v320 = vld [vmem:[%s299 + $0xc] sm:$0xf]
      %v321 = vld [vmem:[%s299 + $0x10] sm:$0xf]
      %v322 = vld [vmem:[%s299 + $0x14] sm:$0xf]
      %v323 = vld [vmem:[%s299 + $0x18] sm:$0xf]
      %v324 = vld [vmem:[%s299 + $0x1c] sm:$0xf]
      %v325 = vld [vmem:[%s299 + $0x20] sm:$0xf]
      %v326 = vld [vmem:[%s299 + $0x24] sm:$0xf]
      %v327 = vld [vmem:[%s299 + $0x28] sm:$0xf]
      %v328 = vld [vmem:[%s299 + $0x2c] sm:$0xf]
      %v329 = vld [vmem:[%s299 + $0x30] sm:$0xf]
      %v330 = vld [vmem:[%s299 + $0x34] sm:$0xf]
      %v331 = vld [vmem:[%s299 + $0x38] sm:$0xf]
      %v332 = vld [vmem:[%s299 + $0x3c] sm:$0xf]
      %v333 = vld [vmem:[%s299 + $0x40] sm:$0xf]
      %v334 = vld [vmem:[%s299 + $0x44] sm:$0xf]
      %v335 = vld [vmem:[%s299 + $0x48] sm:$0xf]
      %v336 = vld [vmem:[%s299 + $0x4c] sm:$0xf]
      %v337 = vld [vmem:[%s299 + $0x50] sm:$0xf]
      %v338 = vld [vmem:[%s299 + $0x54] sm:$0xf]
      %v339 = vld [vmem:[%s299 + $0x58] sm:$0xf]
      %v340 = vld [vmem:[%s299 + $0x5c] sm:$0xf]
      %v341 = vld [vmem:[%s299 + $0x60] sm:$0xf]
      %v342 = vld [vmem:[%s299 + $0x64] sm:$0xf]
      %v343 = vld [vmem:[%s299 + $0x68] sm:$0xf]
      %v344 = vld [vmem:[%s299 + $0x6c] sm:$0xf]
      %v345 = vld [vmem:[%s299 + $0x70] sm:$0xf]
      %v346 = vld [vmem:[%s299 + $0x74] sm:$0xf]
      %v347 = vld [vmem:[%s299 + $0x78] sm:$0xf]
      %v348 = vld [vmem:[%s299 + $0x7c] sm:$0xf]
      %v349 = vunpack.c.l.bf16 %v317
      %v350 = vunpack.c.l.bf16 %v318
      %v351 = vunpack.c.l.bf16 %v319
      %v352 = vunpack.c.l.bf16 %v320
      %v353 = vunpack.c.l.bf16 %v321
      %v354 = vunpack.c.l.bf16 %v322
      %v355 = vunpack.c.l.bf16 %v323
      %v356 = vunpack.c.l.bf16 %v324
      %v357 = vunpack.c.l.bf16 %v325
      %v358 = vunpack.c.l.bf16 %v326
      %v359 = vunpack.c.l.bf16 %v327
      %v360 = vunpack.c.l.bf16 %v328
      %v361 = vunpack.c.l.bf16 %v329
      %v362 = vunpack.c.l.bf16 %v330
      %v363 = vunpack.c.l.bf16 %v331
      %v364 = vunpack.c.l.bf16 %v332
      %v365 = vunpack.c.l.bf16 %v333
      %v366 = vunpack.c.l.bf16 %v334
      %v367 = vunpack.c.l.bf16 %v335
      %v368 = vunpack.c.l.bf16 %v336
      %v369 = vunpack.c.l.bf16 %v337
      %v370 = vunpack.c.l.bf16 %v338
      %v371 = vunpack.c.l.bf16 %v339
      %v372 = vunpack.c.l.bf16 %v340
      %v373 = vunpack.c.l.bf16 %v341
      %v374 = vunpack.c.l.bf16 %v342
      %v375 = vunpack.c.l.bf16 %v343
      %v376 = vunpack.c.l.bf16 %v344
      %v377 = vunpack.c.l.bf16 %v345
      %v378 = vunpack.c.l.bf16 %v346
      %v379 = vunpack.c.l.bf16 %v347
      %v380 = vunpack.c.l.bf16 %v348
      %v381 = vld [vmem:[%s1] sm:$0x1]
      %v383 = vlaneseq
      %v384 = vshrl.u32 %v383, 7
      %v385 = vsub.s32 0, %v384
      %v386 = vrot.slane %v381, %v385
      %v388 = vmul.f32 %v349, %v386
      %v389 = vmul.f32 %v350, %v386
      %v390 = vmul.f32 %v351, %v386
      %v391 = vmul.f32 %v352, %v386
      %v392 = vmul.f32 %v353, %v386
      %v393 = vmul.f32 %v354, %v386
      %v394 = vmul.f32 %v355, %v386
      %v395 = vmul.f32 %v356, %v386
      %v396 = vmul.f32 %v357, %v386
      %v397 = vmul.f32 %v358, %v386
      %v398 = vmul.f32 %v359, %v386
      %v399 = vmul.f32 %v360, %v386
      %v400 = vmul.f32 %v361, %v386
      %v401 = vmul.f32 %v362, %v386
      %v402 = vmul.f32 %v363, %v386
      %v403 = vmul.f32 %v364, %v386
      %v404 = vmul.f32 %v365, %v386
      %v405 = vmul.f32 %v366, %v386
      %v406 = vmul.f32 %v367, %v386
      %v407 = vmul.f32 %v368, %v386
      %v408 = vmul.f32 %v369, %v386
      %v409 = vmul.f32 %v370, %v386
      %v410 = vmul.f32 %v371, %v386
      %v411 = vmul.f32 %v372, %v386
      %v412 = vmul.f32 %v373, %v386
      %v413 = vmul.f32 %v374, %v386
      %v414 = vmul.f32 %v375, %v386
      %v415 = vmul.f32 %v376, %v386
      %v416 = vmul.f32 %v377, %v386
      %v417 = vmul.f32 %v378, %v386
      %v418 = vmul.f32 %v379, %v386
      %v419 = vmul.f32 %v380, %v386
      %v420 = vld [vmem:[%s2] sm:$0x1]
      %v422 = vlaneseq
      %v423 = vshrl.u32 %v422, 7
      %v424 = vsub.s32 0, %v423
      %v425 = vrot.slane %v420, %v424
      %v427 = vadd.f32 %v388, %v425
      %v428 = vadd.f32 %v389, %v425
      %v429 = vadd.f32 %v390, %v425
      %v430 = vadd.f32 %v391, %v425
      %v431 = vadd.f32 %v392, %v425
      %v432 = vadd.f32 %v393, %v425
      %v433 = vadd.f32 %v394, %v425
      %v434 = vadd.f32 %v395, %v425
      %v435 = vadd.f32 %v396, %v425
      %v436 = vadd.f32 %v397, %v425
      %v437 = vadd.f32 %v398, %v425
      %v438 = vadd.f32 %v399, %v425
      %v439 = vadd.f32 %v400, %v425
      %v440 = vadd.f32 %v401, %v425
      %v441 = vadd.f32 %v402, %v425
      %v442 = vadd.f32 %v403, %v425
      %v443 = vadd.f32 %v404, %v425
      %v444 = vadd.f32 %v405, %v425
      %v445 = vadd.f32 %v406, %v425
      %v446 = vadd.f32 %v407, %v425
      %v447 = vadd.f32 %v408, %v425
      %v448 = vadd.f32 %v409, %v425
      %v449 = vadd.f32 %v410, %v425
      %v450 = vadd.f32 %v411, %v425
      %v451 = vadd.f32 %v412, %v425
      %v452 = vadd.f32 %v413, %v425
      %v453 = vadd.f32 %v414, %v425
      %v454 = vadd.f32 %v415, %v425
      %v455 = vadd.f32 %v416, %v425
      %v456 = vadd.f32 %v417, %v425
      %v457 = vadd.f32 %v418, %v425
      %v458 = vadd.f32 %v419, %v425
      %v459 = vmax.f32 %v427, 0.0
      %v460 = vmax.f32 %v428, 0.0
      %v461 = vmax.f32 %v429, 0.0
      %v462 = vmax.f32 %v430, 0.0
      %v463 = vmax.f32 %v431, 0.0
      %v464 = vmax.f32 %v432, 0.0
      %v465 = vmax.f32 %v433, 0.0
      %v466 = vmax.f32 %v434, 0.0
      %v467 = vmax.f32 %v435, 0.0
      %v468 = vmax.f32 %v436, 0.0
      %v469 = vmax.f32 %v437, 0.0
      %v470 = vmax.f32 %v438, 0.0
      %v471 = vmax.f32 %v439, 0.0
      %v472 = vmax.f32 %v440, 0.0
      %v473 = vmax.f32 %v441, 0.0
      %v474 = vmax.f32 %v442, 0.0
      %v475 = vmax.f32 %v443, 0.0
      %v476 = vmax.f32 %v444, 0.0
      %v477 = vmax.f32 %v445, 0.0
      %v478 = vmax.f32 %v446, 0.0
      %v479 = vmax.f32 %v447, 0.0
      %v480 = vmax.f32 %v448, 0.0
      %v481 = vmax.f32 %v449, 0.0
      %v482 = vmax.f32 %v450, 0.0
      %v483 = vmax.f32 %v451, 0.0
      %v484 = vmax.f32 %v452, 0.0
      %v485 = vmax.f32 %v453, 0.0
      %v486 = vmax.f32 %v454, 0.0
      %v487 = vmax.f32 %v455, 0.0
      %v488 = vmax.f32 %v456, 0.0
      %v489 = vmax.f32 %v457, 0.0
      %v490 = vmax.f32 %v458, 0.0
      %v491 = vpack.c.bf16 %v460, %v459
      %v492 = vpack.c.bf16 %v462, %v461
      %v493 = vpack.c.bf16 %v464, %v463
      %v494 = vpack.c.bf16 %v466, %v465
      %v495 = vpack.c.bf16 %v468, %v467
      %v496 = vpack.c.bf16 %v470, %v469
      %v497 = vpack.c.bf16 %v472, %v471
      %v498 = vpack.c.bf16 %v474, %v473
      %v499 = vpack.c.bf16 %v476, %v475
      %v500 = vpack.c.bf16 %v478, %v477
      %v501 = vpack.c.bf16 %v480, %v479
      %v502 = vpack.c.bf16 %v482, %v481
      %v503 = vpack.c.bf16 %v484, %v483
      %v504 = vpack.c.bf16 %v486, %v485
      %v505 = vpack.c.bf16 %v488, %v487
      %v506 = vpack.c.bf16 %v490, %v489
      %v507 = vld [vmem:[%s3] sm:$0xf]
      %v508 = vld [vmem:[%s3 + $0x4] sm:$0xf]
      %v509 = vld [vmem:[%s3 + $0x8] sm:$0xf]
      %v510 = vld [vmem:[%s3 + $0xc] sm:$0xf]
      %v511 = vld [vmem:[%s3 + $0x10] sm:$0xf]
      %v512 = vld [vmem:[%s3 + $0x14] sm:$0xf]
      %v513 = vld [vmem:[%s3 + $0x18] sm:$0xf]
      %v514 = vld [vmem:[%s3 + $0x1c] sm:$0xf]
      %v515 = vld [vmem:[%s3 + $0x20] sm:$0xf]
      %v516 = vld [vmem:[%s3 + $0x24] sm:$0xf]
      %v517 = vld [vmem:[%s3 + $0x28] sm:$0xf]
      %v518 = vld [vmem:[%s3 + $0x2c] sm:$0xf]
      %v519 = vld [vmem:[%s3 + $0x30] sm:$0xf]
      %v520 = vld [vmem:[%s3 + $0x34] sm:$0xf]
      %v521 = vld [vmem:[%s3 + $0x38] sm:$0xf]
      %v522 = vld [vmem:[%s3 + $0x3c] sm:$0xf]
      %v523 = vld [vmem:[%s304] sm:$0xf]
      %v524 = vld [vmem:[%s304 + $0x4] sm:$0xf]
      %v525 = vld [vmem:[%s304 + $0x8] sm:$0xf]
      %v526 = vld [vmem:[%s304 + $0xc] sm:$0xf]
      %v527 = vld [vmem:[%s304 + $0x10] sm:$0xf]
      %v528 = vld [vmem:[%s304 + $0x14] sm:$0xf]
      %v529 = vld [vmem:[%s304 + $0x18] sm:$0xf]
      %v530 = vld [vmem:[%s304 + $0x1c] sm:$0xf]
      %v531 = vld [vmem:[%s304 + $0x20] sm:$0xf]
      %v532 = vld [vmem:[%s304 + $0x24] sm:$0xf]
      %v533 = vld [vmem:[%s304 + $0x28] sm:$0xf]
      %v534 = vld [vmem:[%s304 + $0x2c] sm:$0xf]
      %v535 = vld [vmem:[%s304 + $0x30] sm:$0xf]
      %v536 = vld [vmem:[%s304 + $0x34] sm:$0xf]
      %v537 = vld [vmem:[%s304 + $0x38] sm:$0xf]
      %v538 = vld [vmem:[%s304 + $0x3c] sm:$0xf]
      %v539 = vld [vmem:[%s304 + $0x40] sm:$0xf]
      %v540 = vld [vmem:[%s304 + $0x44] sm:$0xf]
      %v541 = vld [vmem:[%s304 + $0x48] sm:$0xf]
      %v542 = vld [vmem:[%s304 + $0x4c] sm:$0xf]
      %v543 = vld [vmem:[%s304 + $0x50] sm:$0xf]
      %v544 = vld [vmem:[%s304 + $0x54] sm:$0xf]
      %v545 = vld [vmem:[%s304 + $0x58] sm:$0xf]
      %v546 = vld [vmem:[%s304 + $0x5c] sm:$0xf]
      %v547 = vld [vmem:[%s304 + $0x60] sm:$0xf]
      %v548 = vld [vmem:[%s304 + $0x64] sm:$0xf]
      %v549 = vld [vmem:[%s304 + $0x68] sm:$0xf]
      %v550 = vld [vmem:[%s304 + $0x6c] sm:$0xf]
      %v551 = vld [vmem:[%s304 + $0x70] sm:$0xf]
      %v552 = vld [vmem:[%s304 + $0x74] sm:$0xf]
      %v553 = vld [vmem:[%s304 + $0x78] sm:$0xf]
      %v554 = vld [vmem:[%s304 + $0x7c] sm:$0xf]
      %v555 = vunpack.c.l.bf16 %v523
      %v556 = vunpack.c.l.bf16 %v524
      %v557 = vunpack.c.l.bf16 %v525
      %v558 = vunpack.c.l.bf16 %v526
      %v559 = vunpack.c.l.bf16 %v527
      %v560 = vunpack.c.l.bf16 %v528
      %v561 = vunpack.c.l.bf16 %v529
      %v562 = vunpack.c.l.bf16 %v530
      %v563 = vunpack.c.l.bf16 %v531
      %v564 = vunpack.c.l.bf16 %v532
      %v565 = vunpack.c.l.bf16 %v533
      %v566 = vunpack.c.l.bf16 %v534
      %v567 = vunpack.c.l.bf16 %v535
      %v568 = vunpack.c.l.bf16 %v536
      %v569 = vunpack.c.l.bf16 %v537
      %v570 = vunpack.c.l.bf16 %v538
      %v571 = vunpack.c.l.bf16 %v539
      %v572 = vunpack.c.l.bf16 %v540
      %v573 = vunpack.c.l.bf16 %v541
      %v574 = vunpack.c.l.bf16 %v542
      %v575 = vunpack.c.l.bf16 %v543
      %v576 = vunpack.c.l.bf16 %v544
      %v577 = vunpack.c.l.bf16 %v545
      %v578 = vunpack.c.l.bf16 %v546
      %v579 = vunpack.c.l.bf16 %v547
      %v580 = vunpack.c.l.bf16 %v548
      %v581 = vunpack.c.l.bf16 %v549
      %v582 = vunpack.c.l.bf16 %v550
      %v583 = vunpack.c.l.bf16 %v551
      %v584 = vunpack.c.l.bf16 %v552
      %v585 = vunpack.c.l.bf16 %v553
      %v586 = vunpack.c.l.bf16 %v554
      %v603 = vunpack.c.l.b16 %v507
      %v604 = vunpack.c.l.b16 %v508
      %v605 = vunpack.c.l.b16 %v509
      %v606 = vunpack.c.l.b16 %v510
      %v607 = vunpack.c.l.b16 %v511
      %v608 = vunpack.c.l.b16 %v512
      %v609 = vunpack.c.l.b16 %v513
      %v610 = vunpack.c.l.b16 %v514
      %v611 = vunpack.c.l.b16 %v515
      %v612 = vunpack.c.l.b16 %v516
      %v613 = vunpack.c.l.b16 %v517
      %v614 = vunpack.c.l.b16 %v518
      %v615 = vunpack.c.l.b16 %v519
      %v616 = vunpack.c.l.b16 %v520
      %v617 = vunpack.c.l.b16 %v521
      %v618 = vunpack.c.l.b16 %v522
      %v619 = vpack.c.b16 %v604, %v603
      %v620 = vpack.c.b16 %v606, %v605
      %v621 = vpack.c.b16 %v608, %v607
      %v622 = vpack.c.b16 %v610, %v609
      %v623 = vpack.c.b16 %v612, %v611
      %v624 = vpack.c.b16 %v614, %v613
      %v625 = vpack.c.b16 %v616, %v615
      %v626 = vpack.c.b16 %v618, %v617
      %635 = vmatprep.subr.bf16.mxu0 0
      %636 = vmatpush1.bf16.msra.mxu0 %v626
      %637 = vmatprep.subr.bf16.mxu0 0
      %638 = vmatpush1.bf16.msra.mxu0 %v625
      %639 = vmatprep.subr.bf16.mxu0 0
      %640 = vmatpush1.bf16.msra.mxu0 %v624
      %641 = vmatprep.subr.bf16.mxu0 0
      %642 = vmatpush1.bf16.msra.mxu0 %v623
      %643 = vmatprep.subr.bf16.mxu0 0
      %644 = vmatpush1.bf16.msra.mxu0 %v622
      %645 = vmatprep.subr.bf16.mxu0 0
      %646 = vmatpush1.bf16.msra.mxu0 %v621
      %647 = vmatprep.subr.bf16.mxu0 0
      %648 = vmatpush1.bf16.msra.mxu0 %v620
      %649 = vmatprep.subr.bf16.mxu0 0
      %650 = vmatpush1.bf16.msra.mxu0 %v619
      %651 = vmatprep.subr.bf16.mxu0 0
      %652 = vmatpush2.bf16.msra.mxu0 0
      %653 = vmatprep.subr.bf16.mxu0 0
      %654 = vmatpush2.bf16.msra.mxu0 0
      %655 = vmatprep.subr.bf16.mxu0 0
      %656 = vmatpush2.bf16.msra.mxu0 0
      %657 = vmatprep.subr.bf16.mxu0 0
      %658 = vmatpush2.bf16.msra.mxu0 0
      %659 = vmatprep.subr.bf16.mxu0 0
      %660 = vmatpush2.bf16.msra.mxu0 0
      %661 = vmatprep.subr.bf16.mxu0 0
      %662 = vmatpush2.bf16.msra.mxu0 0
      %663 = vmatprep.subr.bf16.mxu0 0
      %664 = vmatpush2.bf16.msra.mxu0 0
      %665 = vmatprep.subr.bf16.mxu0 0
      %666 = vmatpush2.bf16.msra.mxu0 0
      %667 = vmatprep.mubr.bf16.mxu0 0
      %668 = vmatmul.mubr.bf16.gmra.mxu0 %v491
      %v669 = vpop.f32.mrf.mxu0
      %v670 = vadd.f32 %v555, %v669
      %v671 = vpop.f32.mrf.mxu0
      %v672 = vpop.f32.mrf.mxu0
      %v673 = vadd.f32 %v556, %v672
      %v674 = vpop.f32.mrf.mxu0
      %675 = vmatprep.mubr.bf16.mxu0 0
      %676 = vmatmul.mubr.bf16.gmra.mxu0 %v492
      %v677 = vpop.f32.mrf.mxu0
      %v678 = vadd.f32 %v557, %v677
      %v679 = vpop.f32.mrf.mxu0
      %v680 = vpop.f32.mrf.mxu0
      %v681 = vadd.f32 %v558, %v680
      %v682 = vpop.f32.mrf.mxu0
      %683 = vmatprep.mubr.bf16.mxu0 0
      %684 = vmatmul.mubr.bf16.gmra.mxu0 %v493
      %v685 = vpop.f32.mrf.mxu0
      %v686 = vadd.f32 %v559, %v685
      %v687 = vpop.f32.mrf.mxu0
      %v688 = vpop.f32.mrf.mxu0
      %v689 = vadd.f32 %v560, %v688
      %v690 = vpop.f32.mrf.mxu0
      %691 = vmatprep.mubr.bf16.mxu0 0
      %692 = vmatmul.mubr.bf16.gmra.mxu0 %v494
      %v693 = vpop.f32.mrf.mxu0
      %v694 = vadd.f32 %v561, %v693
      %v695 = vpop.f32.mrf.mxu0
      %v696 = vpop.f32.mrf.mxu0
      %v697 = vadd.f32 %v562, %v696
      %v698 = vpop.f32.mrf.mxu0
      %699 = vmatprep.mubr.bf16.mxu0 0
      %700 = vmatmul.mubr.bf16.gmra.mxu0 %v495
      %v701 = vpop.f32.mrf.mxu0
      %v702 = vadd.f32 %v563, %v701
      %v703 = vpop.f32.mrf.mxu0
      %v704 = vpop.f32.mrf.mxu0
      %v705 = vadd.f32 %v564, %v704
      %v706 = vpop.f32.mrf.mxu0
      %707 = vmatprep.mubr.bf16.mxu0 0
      %708 = vmatmul.mubr.bf16.gmra.mxu0 %v496
      %v709 = vpop.f32.mrf.mxu0
      %v710 = vadd.f32 %v565, %v709
      %v711 = vpop.f32.mrf.mxu0
      %v712 = vpop.f32.mrf.mxu0
      %v713 = vadd.f32 %v566, %v712
      %v714 = vpop.f32.mrf.mxu0
      %715 = vmatprep.mubr.bf16.mxu0 0
      %716 = vmatmul.mubr.bf16.gmra.mxu0 %v497
      %v717 = vpop.f32.mrf.mxu0
      %v718 = vadd.f32 %v567, %v717
      %v719 = vpop.f32.mrf.mxu0
      %v720 = vpop.f32.mrf.mxu0
      %v721 = vadd.f32 %v568, %v720
      %v722 = vpop.f32.mrf.mxu0
      %723 = vmatprep.mubr.bf16.mxu0 0
      %724 = vmatmul.mubr.bf16.gmra.mxu0 %v498
      %v725 = vpop.f32.mrf.mxu0
      %v726 = vadd.f32 %v569, %v725
      %v727 = vpop.f32.mrf.mxu0
      %v728 = vpop.f32.mrf.mxu0
      %v729 = vadd.f32 %v570, %v728
      %v730 = vpop.f32.mrf.mxu0
      %731 = vmatprep.mubr.bf16.mxu0 0
      %732 = vmatmul.mubr.bf16.gmra.mxu0 %v499
      %v733 = vpop.f32.mrf.mxu0
      %v734 = vadd.f32 %v571, %v733
      %v735 = vpop.f32.mrf.mxu0
      %v736 = vpop.f32.mrf.mxu0
      %v737 = vadd.f32 %v572, %v736
      %v738 = vpop.f32.mrf.mxu0
      %739 = vmatprep.mubr.bf16.mxu0 0
      %740 = vmatmul.mubr.bf16.gmra.mxu0 %v500
      %v741 = vpop.f32.mrf.mxu0
      %v742 = vadd.f32 %v573, %v741
      %v743 = vpop.f32.mrf.mxu0
      %v744 = vpop.f32.mrf.mxu0
      %v745 = vadd.f32 %v574, %v744
      %v746 = vpop.f32.mrf.mxu0
      %747 = vmatprep.mubr.bf16.mxu0 0
      %748 = vmatmul.mubr.bf16.gmra.mxu0 %v501
      %v749 = vpop.f32.mrf.mxu0
      %v750 = vadd.f32 %v575, %v749
      %v751 = vpop.f32.mrf.mxu0
      %v752 = vpop.f32.mrf.mxu0
      %v753 = vadd.f32 %v576, %v752
      %v754 = vpop.f32.mrf.mxu0
      %755 = vmatprep.mubr.bf16.mxu0 0
      %756 = vmatmul.mubr.bf16.gmra.mxu0 %v502
      %v757 = vpop.f32.mrf.mxu0
      %v758 = vadd.f32 %v577, %v757
      %v759 = vpop.f32.mrf.mxu0
      %v760 = vpop.f32.mrf.mxu0
      %v761 = vadd.f32 %v578, %v760
      %v762 = vpop.f32.mrf.mxu0
      %763 = vmatprep.mubr.bf16.mxu0 0
      %764 = vmatmul.mubr.bf16.gmra.mxu0 %v503
      %v765 = vpop.f32.mrf.mxu0
      %v766 = vadd.f32 %v579, %v765
      %v767 = vpop.f32.mrf.mxu0
      %v768 = vpop.f32.mrf.mxu0
      %v769 = vadd.f32 %v580, %v768
      %v770 = vpop.f32.mrf.mxu0
      %771 = vmatprep.mubr.bf16.mxu0 0
      %772 = vmatmul.mubr.bf16.gmra.mxu0 %v504
      %v773 = vpop.f32.mrf.mxu0
      %v774 = vadd.f32 %v581, %v773
      %v775 = vpop.f32.mrf.mxu0
      %v776 = vpop.f32.mrf.mxu0
      %v777 = vadd.f32 %v582, %v776
      %v778 = vpop.f32.mrf.mxu0
      %779 = vmatprep.mubr.bf16.mxu0 0
      %780 = vmatmul.mubr.bf16.gmra.mxu0 %v505
      %v781 = vpop.f32.mrf.mxu0
      %v782 = vadd.f32 %v583, %v781
      %v783 = vpop.f32.mrf.mxu0
      %v784 = vpop.f32.mrf.mxu0
      %v785 = vadd.f32 %v584, %v784
      %v786 = vpop.f32.mrf.mxu0
      %787 = vmatprep.mubr.bf16.mxu0 0
      %788 = vmatmul.mubr.bf16.gmra.mxu0 %v506
      %v789 = vpop.f32.mrf.mxu0
      %v790 = vadd.f32 %v585, %v789
      %v791 = vpop.f32.mrf.mxu0
      %v792 = vpop.f32.mrf.mxu0
      %v793 = vadd.f32 %v586, %v792
      %v794 = vpop.f32.mrf.mxu0
      %795 = vdwg.mxu0
      %796 = vst [vmem:[%s309] sm:$0xff] %v670
      %797 = vst [vmem:[%s309 + $0x8] sm:$0xff] %v673
      %798 = vst [vmem:[%s309 + $0x10] sm:$0xff] %v678
      %799 = vst [vmem:[%s309 + $0x18] sm:$0xff] %v681
      %800 = vst [vmem:[%s309 + $0x20] sm:$0xff] %v686
      %801 = vst [vmem:[%s309 + $0x28] sm:$0xff] %v689
      %802 = vst [vmem:[%s309 + $0x30] sm:$0xff] %v694
      %803 = vst [vmem:[%s309 + $0x38] sm:$0xff] %v697
      %804 = vst [vmem:[%s309 + $0x40] sm:$0xff] %v702
      %805 = vst [vmem:[%s309 + $0x48] sm:$0xff] %v705
      %806 = vst [vmem:[%s309 + $0x50] sm:$0xff] %v710
      %807 = vst [vmem:[%s309 + $0x58] sm:$0xff] %v713
      %808 = vst [vmem:[%s309 + $0x60] sm:$0xff] %v718
      %809 = vst [vmem:[%s309 + $0x68] sm:$0xff] %v721
      %810 = vst [vmem:[%s309 + $0x70] sm:$0xff] %v726
      %811 = vst [vmem:[%s309 + $0x78] sm:$0xff] %v729
      %812 = vst [vmem:[%s309 + $0x80] sm:$0xff] %v734
      %813 = vst [vmem:[%s309 + $0x88] sm:$0xff] %v737
      %814 = vst [vmem:[%s309 + $0x90] sm:$0xff] %v742
      %815 = vst [vmem:[%s309 + $0x98] sm:$0xff] %v745
      %816 = vst [vmem:[%s309 + $0xa0] sm:$0xff] %v750
      %817 = vst [vmem:[%s309 + $0xa8] sm:$0xff] %v753
      %818 = vst [vmem:[%s309 + $0xb0] sm:$0xff] %v758
      %819 = vst [vmem:[%s309 + $0xb8] sm:$0xff] %v761
      %820 = vst [vmem:[%s309 + $0xc0] sm:$0xff] %v766
      %821 = vst [vmem:[%s309 + $0xc8] sm:$0xff] %v769
      %822 = vst [vmem:[%s309 + $0xd0] sm:$0xff] %v774
      %823 = vst [vmem:[%s309 + $0xd8] sm:$0xff] %v777
      %824 = vst [vmem:[%s309 + $0xe0] sm:$0xff] %v782
      %825 = vst [vmem:[%s309 + $0xe8] sm:$0xff] %v785
      %826 = vst [vmem:[%s309 + $0xf0] sm:$0xff] %v790
      %827 = vst [vmem:[%s309 + $0xf8] sm:$0xff] %v793
      %v828 = vadd.f32 %v670, %v673
      %v829 = vadd.f32 %v828, %v678
      %v830 = vadd.f32 %v829, %v681
      %v831 = vadd.f32 %v830, %v686
      %v832 = vadd.f32 %v831, %v689
      %v833 = vadd.f32 %v832, %v694
      %v834 = vadd.f32 %v833, %v697
      %v835 = vadd.f32 %v834, %v702
      %v836 = vadd.f32 %v835, %v705
      %v837 = vadd.f32 %v836, %v710
      %v838 = vadd.f32 %v837, %v713
      %v839 = vadd.f32 %v838, %v718
      %v840 = vadd.f32 %v839, %v721
      %v841 = vadd.f32 %v840, %v726
      %v842 = vadd.f32 %v841, %v729
      %v843 = vadd.f32 %v842, %v734
      %v844 = vadd.f32 %v843, %v737
      %v845 = vadd.f32 %v844, %v742
      %v846 = vadd.f32 %v845, %v745
      %v847 = vadd.f32 %v846, %v750
      %v848 = vadd.f32 %v847, %v753
      %v849 = vadd.f32 %v848, %v758
      %v850 = vadd.f32 %v849, %v761
      %v851 = vadd.f32 %v850, %v766
      %v852 = vadd.f32 %v851, %v769
      %v853 = vadd.f32 %v852, %v774
      %v854 = vadd.f32 %v853, %v777
      %v855 = vadd.f32 %v854, %v782
      %v856 = vadd.f32 %v855, %v785
      %v857 = vadd.f32 %v856, %v790
      %v858 = vadd.f32 %v857, %v793
      %v859 = vrot.slane %v858, 4
      %v860 = vadd.f32 %v858, %v859
      %v861 = vrot.slane %v860, 2
      %v862 = vadd.f32 %v860, %v861
      %v863 = vrot.slane %v862, 1
      %v864 = vadd.f32 %v862, %v863
      %865 = vst [vmem:[%s312] sm:$0x1] %v864
      %v866 = vmul.f32 %v670, %v670
      %v867 = vmul.f32 %v673, %v673
      %v868 = vmul.f32 %v678, %v678
      %v869 = vmul.f32 %v681, %v681
      %v870 = vmul.f32 %v686, %v686
      %v871 = vmul.f32 %v689, %v689
      %v872 = vmul.f32 %v694, %v694
      %v873 = vmul.f32 %v697, %v697
      %v874 = vmul.f32 %v702, %v702
      %v875 = vmul.f32 %v705, %v705
      %v876 = vmul.f32 %v710, %v710
      %v877 = vmul.f32 %v713, %v713
      %v878 = vmul.f32 %v718, %v718
      %v879 = vmul.f32 %v721, %v721
      %v880 = vmul.f32 %v726, %v726
      %v881 = vmul.f32 %v729, %v729
      %v882 = vmul.f32 %v734, %v734
      %v883 = vmul.f32 %v737, %v737
      %v884 = vmul.f32 %v742, %v742
      %v885 = vmul.f32 %v745, %v745
      %v886 = vmul.f32 %v750, %v750
      %v887 = vmul.f32 %v753, %v753
      %v888 = vmul.f32 %v758, %v758
      %v889 = vmul.f32 %v761, %v761
      %v890 = vmul.f32 %v766, %v766
      %v891 = vmul.f32 %v769, %v769
      %v892 = vmul.f32 %v774, %v774
      %v893 = vmul.f32 %v777, %v777
      %v894 = vmul.f32 %v782, %v782
      %v895 = vmul.f32 %v785, %v785
      %v896 = vmul.f32 %v790, %v790
      %v897 = vmul.f32 %v793, %v793
      %v898 = vadd.f32 %v866, %v867
      %v899 = vadd.f32 %v898, %v868
      %v900 = vadd.f32 %v899, %v869
      %v901 = vadd.f32 %v900, %v870
      %v902 = vadd.f32 %v901, %v871
      %v903 = vadd.f32 %v902, %v872
      %v904 = vadd.f32 %v903, %v873
      %v905 = vadd.f32 %v904, %v874
      %v906 = vadd.f32 %v905, %v875
      %v907 = vadd.f32 %v906, %v876
      %v908 = vadd.f32 %v907, %v877
      %v909 = vadd.f32 %v908, %v878
      %v910 = vadd.f32 %v909, %v879
      %v911 = vadd.f32 %v910, %v880
      %v912 = vadd.f32 %v911, %v881
      %v913 = vadd.f32 %v912, %v882
      %v914 = vadd.f32 %v913, %v883
      %v915 = vadd.f32 %v914, %v884
      %v916 = vadd.f32 %v915, %v885
      %v917 = vadd.f32 %v916, %v886
      %v918 = vadd.f32 %v917, %v887
      %v919 = vadd.f32 %v918, %v888
      %v920 = vadd.f32 %v919, %v889
      %v921 = vadd.f32 %v920, %v890
      %v922 = vadd.f32 %v921, %v891
      %v923 = vadd.f32 %v922, %v892
      %v924 = vadd.f32 %v923, %v893
      %v925 = vadd.f32 %v924, %v894
      %v926 = vadd.f32 %v925, %v895
      %v927 = vadd.f32 %v926, %v896
      %v928 = vadd.f32 %v927, %v897
      %v929 = vrot.slane %v928, 4
      %v930 = vadd.f32 %v928, %v929
      %v931 = vrot.slane %v930, 2
      %v932 = vadd.f32 %v930, %v931
      %v933 = vrot.slane %v932, 1
      %v934 = vadd.f32 %v932, %v933
      %935 = vst [vmem:[%s315] sm:$0x1] %v934
      %p936 = scmp.lt.s32.totalorder %s19, 1
      %s937 = scalar_select %p936, %s19, 1
      %s938 = smul.addr %s937, 32
      %s939 = smul.addr %s938, 8
      %s940 = scalar_lea.vmem %s5, %s939
      %p941 = scmp.lt.s32.totalorder %s19, 1
      %s942 = scalar_select %p941, %s19, 1
      %s943 = scalar_lea.vmem %s6, %s942
      %p944 = scmp.lt.s32.totalorder %s19, 1
      %s945 = scalar_select %p944, %s19, 1
      %s946 = scalar_lea.vmem %s7, %s945
      // Predicated region
      $region41: #{bottleneck_forward.5} parent=39 // pred_check
        %p947 = pneg %p152
      $region42: #{bottleneck_forward.5} parent=39 // pred_check_branch
        %949 = sbr.rel (%p947) target = $region44
      $region43: #{bottleneck_forward.5} parent=39 // pred_region
        _
      $region44: #{bottleneck_forward.5} parent=39 // pred_fallthru
        _
      // Predicated region
      $region45: #{bottleneck_forward.5} parent=39 // pred_check
        %p950 = pneg %p178
      $region46: #{bottleneck_forward.5} parent=39 // pred_check_branch
        %952 = sbr.rel (%p950) target = $region48
      $region47: #{bottleneck_forward.5} parent=39 // pred_region
        _
      $region48: #{bottleneck_forward.5} parent=39 // pred_fallthru
        _
      // Predicated region
      $region49: #{bottleneck_forward.5} parent=39 // pred_check
        %p953 = pneg %p204
      $region50: #{bottleneck_forward.5} parent=39 // pred_check_branch
        %955 = sbr.rel (%p953) target = $region52
      $region51: #{bottleneck_forward.5} parent=39 // pred_region
        _
      $region52: #{bottleneck_forward.5} parent=39 // pred_fallthru
        _
    $region40: #{bottleneck_forward.5} parent=5 // pred_fallthru
      _
    %p956 = scmp.le.s32.totalorder 2, %s14
    // Predicated region
    $region53: #{bottleneck_forward.5} parent=5 // pred_check
      %p957 = pneg %p956
    $region54: #{bottleneck_forward.5} parent=5 // pred_check_branch
      %959 = sbr.rel (%p957) target = $region56
    $region55: #{bottleneck_forward.5} parent=5 // pred_region
      %s960 = ssub.s32 %s14, 2
      // Predicated region
      $region57: #{bottleneck_forward.5} parent=55 // pred_check
        %p961 = pneg %p158
      $region58: #{bottleneck_forward.5} parent=55 // pred_check_branch
        %963 = sbr.rel (%p961) target = $region60
      $region59: #{bottleneck_forward.5} parent=55 // pred_region
        %p964 = scmp.lt.s32.totalorder %s20, 1
        %s965 = scalar_select %p964, %s20, 1
        %s966 = smul.addr %s965, 32
        %s967 = smul.addr %s966, 8
        %s968 = scalar_lea.vmem %s5, %s967
      $region60: #{bottleneck_forward.5} parent=55 // pred_fallthru
        _
      // Predicated region
      $region61: #{bottleneck_forward.5} parent=55 // pred_check
        %p969 = pneg %p184
      $region62: #{bottleneck_forward.5} parent=55 // pred_check_branch
        %971 = sbr.rel (%p969) target = $region64
      $region63: #{bottleneck_forward.5} parent=55 // pred_region
        %p972 = scmp.lt.s32.totalorder %s20, 1
        %s973 = scalar_select %p972, %s20, 1
        %s974 = scalar_lea.vmem %s6, %s973
      $region64: #{bottleneck_forward.5} parent=55 // pred_fallthru
        _
      // Predicated region
      $region65: #{bottleneck_forward.5} parent=55 // pred_check
        %p975 = pneg %p210
      $region66: #{bottleneck_forward.5} parent=55 // pred_check_branch
        %977 = sbr.rel (%p975) target = $region68
      $region67: #{bottleneck_forward.5} parent=55 // pred_region
        %p978 = scmp.lt.s32.totalorder %s20, 1
        %s979 = scalar_select %p978, %s20, 1
        %s980 = scalar_lea.vmem %s7, %s979
      $region68: #{bottleneck_forward.5} parent=55 // pred_fallthru
        _
    $region56: #{bottleneck_forward.5} parent=5 // pred_fallthru
      _
  $region6: #{bottleneck_forward.5} parent=0 // loop_footer
    %s18 = sadd.s32 1, %s14
  $region7: #{bottleneck_forward.5} parent=0 // loop_footer_branch
    %13 = sbr.rel target = $region3
  $region8: #{bottleneck_forward.5} parent=0 // loop_exit
    _

// kernel: bottleneck_forward.4
$region0: #{bottleneck_forward.4}
  #allocation0 [shape = 'u32[]', space=smem, size = 0x4, offset = 0x4, fixed_abs, tag = 'smem constant byte address 0x4 - core index']
  #allocation1 [shape = 'u32[144,128]{1,0:T(1,128)}', space=vmem, size = 0x12000, scoped, tag = 'internal scratch']
  #allocation2 [shape = 'bf16[18,18,128]{2,1,0:T(8,128)(2,1)}', space=vmem, size = 0x1b000, scoped, tag = 'scratch operand']
  %s0 = inlined_call_operand.vmem [shape: bf16[2,256,128], index: 0, kind: input, shape index: {}]
  %s1 = inlined_call_operand.vmem [shape: f32[1,128], index: 1, kind: input, shape index: {}]
  %s2 = inlined_call_operand.vmem [shape: f32[1,128], index: 2, kind: input, shape index: {}]
  %s3 = inlined_call_operand.vmem [shape: bf16[1152,128], index: 3, kind: input, shape index: {}]
  %s4 = inlined_call_operand.vmem [shape: bf16[2,256,128], index: 4, kind: output, shape index: {0}]
  %s5 = inlined_call_operand.vmem [shape: f32[2,1,128], index: 5, kind: output, shape index: {1}]
  %s6 = inlined_call_operand.vmem [shape: f32[2,1,128], index: 6, kind: output, shape index: {2}]
  %7 = xla_tuple %s4, %s5, %s6
  %s8 = sld [smem:[#allocation0]]
  $region65: #{bottleneck_forward.4} parent=0
    _
  %s10 = ssub.s32 1, %s8
  %s11 = scalar_select 0, %s10, %s8
  loop: start=0, step=1, limit=4
  $region2: #{bottleneck_forward.4} parent=0 // loop_pre_header
    _
  $region3: #{bottleneck_forward.4} parent=0 // loop_header
    %s13 = sphi 0, %s17
    %p14 = scmp.ge.s32.totalorder %s13, 4
    %s23 = sphi 0, %s25
    %s26 = sphi 0, %s23
    %s27 = sphi 0, %s26
    %s43 = sphi 0, %s27
    %s47 = sphi 0, %s47
    %s49 = sphi 0, %s47
    %s50 = sphi 0, %s49
    %s64 = sphi 0, %s50
    %s68 = sphi 0, %s68
    %s70 = sphi 0, %s68
    %s71 = sphi 0, %s70
    %s85 = sphi 0, %s71
    %s89 = sphi 0, %s89
    %s91 = sphi 0, %s89
    %s92 = sphi 0, %s91
    %s106 = sphi 0, %s92
    %s112 = sphi 0, %s114
    %s115 = sphi 0, %s112
    %s116 = sphi 0, %s115
    %s132 = sphi 0, %s116
    %s138 = sphi 0, %s140
    %s141 = sphi 0, %s138
    %s142 = sphi 0, %s141
    %s158 = sphi 0, %s142
    %s164 = sphi 0, %s166
    %s167 = sphi 0, %s164
    %s168 = sphi 0, %s167
    %s184 = sphi 0, %s168
  $region4: #{bottleneck_forward.4} parent=0 // loop_header_branch
    %16 = sbr.rel (%p14) target = $region8
  $region5: #{bottleneck_forward.4} parent=0 // loop_body
    %s18 = ssub.s32 %s13, 1
    %s19 = ssub.s32 %s13, 2
    %s20 = sadd.s32 %s13, 1
    %s21 = ssub.s32 %s13, %s20
    %p22 = scmp.eq.s32.totalorder %s21, 0
    %s24 = sadd.s32 %s23, 1
    %s25 = scalar_select %p22, %s23, %s24
    %p28 = pneg %p22
    %p29 = scmp.eq.s32.totalorder %s13, 1
    %p30 = por %p28, %p29
    %p31 = scmp.ne.s32.totalorder %s23, %s26
    %p32 = scmp.eq.s32.totalorder %s13, 0
    %p33 = por %p31, %p32
    %p34 = scmp.ne.s32.totalorder %s23, %s26
    %p35 = scmp.eq.s32.totalorder %s18, 1
    %p36 = por %p34, %p35
    %p37 = scmp.ne.s32.totalorder %s26, %s27
    %p38 = scmp.eq.s32.totalorder %s18, 0
    %p39 = por %p37, %p38
    %p40 = scmp.ne.s32.totalorder %s26, %s27
    %p41 = scmp.eq.s32.totalorder %s19, 1
    %p42 = por %p40, %p41
    %p44 = scmp.ne.s32.totalorder %s27, %s43
    %p45 = scmp.eq.s32.totalorder %s19, 0
    %p46 = por %p44, %p45
    %s48 = sadd.s32 %s47, 1
    %p51 = scmp.eq.s32.totalorder %s13, 1
    %p52 = scmp.ne.s32.totalorder %s47, %s49
    %p53 = scmp.eq.s32.totalorder %s13, 0
    %p54 = por %p52, %p53
    %p55 = scmp.ne.s32.totalorder %s47, %s49
    %p56 = scmp.eq.s32.totalorder %s18, 1
    %p57 = por %p55, %p56
    %p58 = scmp.ne.s32.totalorder %s49, %s50
    %p59 = scmp.eq.s32.totalorder %s18, 0
    %p60 = por %p58, %p59
    %p61 = scmp.ne.s32.totalorder %s49, %s50
    %p62 = scmp.eq.s32.totalorder %s19, 1
    %p63 = por %p61, %p62
    %p65 = scmp.ne.s32.totalorder %s50, %s64
    %p66 = scmp.eq.s32.totalorder %s19, 0
    %p67 = por %p65, %p66
    %s69 = sadd.s32 %s68, 1
    %p72 = scmp.eq.s32.totalorder %s13, 1
    %p73 = scmp.ne.s32.totalorder %s68, %s70
    %p74 = scmp.eq.s32.totalorder %s13, 0
    %p75 = por %p73, %p74
    %p76 = scmp.ne.s32.totalorder %s68, %s70
    %p77 = scmp.eq.s32.totalorder %s18, 1
    %p78 = por %p76, %p77
    %p79 = scmp.ne.s32.totalorder %s70, %s71
    %p80 = scmp.eq.s32.totalorder %s18, 0
    %p81 = por %p79, %p80
    %p82 = scmp.ne.s32.totalorder %s70, %s71
    %p83 = scmp.eq.s32.totalorder %s19, 1
    %p84 = por %p82, %p83
    %p86 = scmp.ne.s32.totalorder %s71, %s85
    %p87 = scmp.eq.s32.totalorder %s19, 0
    %p88 = por %p86, %p87
    %s90 = sadd.s32 %s89, 1
    %p93 = scmp.eq.s32.totalorder %s13, 1
    %p94 = scmp.ne.s32.totalorder %s89, %s91
    %p95 = scmp.eq.s32.totalorder %s13, 0
    %p96 = por %p94, %p95
    %p97 = scmp.ne.s32.totalorder %s89, %s91
    %p98 = scmp.eq.s32.totalorder %s18, 1
    %p99 = por %p97, %p98
    %p100 = scmp.ne.s32.totalorder %s91, %s92
    %p101 = scmp.eq.s32.totalorder %s18, 0
    %p102 = por %p100, %p101
    %p103 = scmp.ne.s32.totalorder %s91, %s92
    %p104 = scmp.eq.s32.totalorder %s19, 1
    %p105 = por %p103, %p104
    %p107 = scmp.ne.s32.totalorder %s92, %s106
    %p108 = scmp.eq.s32.totalorder %s19, 0
    %p109 = por %p107, %p108
    %s110 = ssub.s32 %s13, %s20
    %p111 = scmp.eq.s32.totalorder %s110, 0
    %s113 = sadd.s32 %s112, 1
    %s114 = scalar_select %p111, %s112, %s113
    %p117 = pneg %p111
    %p118 = scmp.eq.s32.totalorder %s13, 1
    %p119 = por %p117, %p118
    %p120 = scmp.ne.s32.totalorder %s112, %s115
    %p121 = scmp.eq.s32.totalorder %s13, 0
    %p122 = por %p120, %p121
    %p123 = scmp.ne.s32.totalorder %s112, %s115
    %p124 = scmp.eq.s32.totalorder %s18, 1
    %p125 = por %p123, %p124
    %p126 = scmp.ne.s32.totalorder %s115, %s116
    %p127 = scmp.eq.s32.totalorder %s18, 0
    %p128 = por %p126, %p127
    %p129 = scmp.ne.s32.totalorder %s115, %s116
    %p130 = scmp.eq.s32.totalorder %s19, 1
    %p131 = por %p129, %p130
    %p133 = scmp.ne.s32.totalorder %s116, %s132
    %p134 = scmp.eq.s32.totalorder %s19, 0
    %p135 = por %p133, %p134
    %s136 = ssub.s32 %s13, %s20
    %p137 = scmp.eq.s32.totalorder %s136, 0
    %s139 = sadd.s32 %s138, 1
    %s140 = scalar_select %p137, %s138, %s139
    %p143 = pneg %p137
    %p144 = scmp.eq.s32.totalorder %s13, 1
    %p145 = por %p143, %p144
    %p146 = scmp.ne.s32.totalorder %s138, %s141
    %p147 = scmp.eq.s32.totalorder %s13, 0
    %p148 = por %p146, %p147
    %p149 = scmp.ne.s32.totalorder %s138, %s141
    %p150 = scmp.eq.s32.totalorder %s18, 1
    %p151 = por %p149, %p150
    %p152 = scmp.ne.s32.totalorder %s141, %s142
    %p153 = scmp.eq.s32.totalorder %s18, 0
    %p154 = por %p152, %p153
    %p155 = scmp.ne.s32.totalorder %s141, %s142
    %p156 = scmp.eq.s32.totalorder %s19, 1
    %p157 = por %p155, %p156
    %p159 = scmp.ne.s32.totalorder %s142, %s158
    %p160 = scmp.eq.s32.totalorder %s19, 0
    %p161 = por %p159, %p160
    %s162 = ssub.s32 %s13, %s20
    %p163 = scmp.eq.s32.totalorder %s162, 0
    %s165 = sadd.s32 %s164, 1
    %s166 = scalar_select %p163, %s164, %s165
    %p169 = pneg %p163
    %p170 = scmp.eq.s32.totalorder %s13, 1
    %p171 = por %p169, %p170
    %p172 = scmp.ne.s32.totalorder %s164, %s167
    %p173 = scmp.eq.s32.totalorder %s13, 0
    %p174 = por %p172, %p173
    %p175 = scmp.ne.s32.totalorder %s164, %s167
    %p176 = scmp.eq.s32.totalorder %s18, 1
    %p177 = por %p175, %p176
    %p178 = scmp.ne.s32.totalorder %s167, %s168
    %p179 = scmp.eq.s32.totalorder %s18, 0
    %p180 = por %p178, %p179
    %p181 = scmp.ne.s32.totalorder %s167, %s168
    %p182 = scmp.eq.s32.totalorder %s19, 1
    %p183 = por %p181, %p182
    %p185 = scmp.ne.s32.totalorder %s168, %s184
    %p186 = scmp.eq.s32.totalorder %s19, 0
    %p187 = por %p185, %p186
    %p188 = scmp.le.s32.totalorder 1, %s13
    %p189 = scmp.lt.s32.totalorder %s13, 3
    %p190 = pnand %p188, %p189
    %p191 = pneg %p190
    // Predicated region
    $region9: #{bottleneck_forward.4} parent=5 // pred_check
      _
    $region10: #{bottleneck_forward.4} parent=5 // pred_check_branch
      %193 = sbr.rel (%p190) target = $region12
    $region11: #{bottleneck_forward.4} parent=5 // pred_region
      %s194 = ssub.s32 %s13, 1
      // Predicated region
      $region13: #{bottleneck_forward.4} parent=11 // pred_check
        %p195 = pneg %p60
      $region14: #{bottleneck_forward.4} parent=11 // pred_check_branch
        %197 = sbr.rel (%p195) target = $region16
      $region15: #{bottleneck_forward.4} parent=11 // pred_region
        _
      $region16: #{bottleneck_forward.4} parent=11 // pred_fallthru
        _
      // Predicated region
      $region17: #{bottleneck_forward.4} parent=11 // pred_check
        %p198 = pneg %p81
      $region18: #{bottleneck_forward.4} parent=11 // pred_check_branch
        %200 = sbr.rel (%p198) target = $region20
      $region19: #{bottleneck_forward.4} parent=11 // pred_region
        _
      $region20: #{bottleneck_forward.4} parent=11 // pred_fallthru
        _
      // Predicated region
      $region21: #{bottleneck_forward.4} parent=11 // pred_check
        %p201 = pneg %p102
      $region22: #{bottleneck_forward.4} parent=11 // pred_check_branch
        %203 = sbr.rel (%p201) target = $region24
      $region23: #{bottleneck_forward.4} parent=11 // pred_region
        _
      $region24: #{bottleneck_forward.4} parent=11 // pred_fallthru
        _
    $region12: #{bottleneck_forward.4} parent=5 // pred_fallthru
      _
    %p204 = scmp.lt.s32.totalorder %s13, 2
    // Predicated region
    $region25: #{bottleneck_forward.4} parent=5 // pred_check
      %p205 = pneg %p204
    $region26: #{bottleneck_forward.4} parent=5 // pred_check_branch
      %207 = sbr.rel (%p205) target = $region28
    $region27: #{bottleneck_forward.4} parent=5 // pred_region
      // Predicated region
      $region29: #{bottleneck_forward.4} parent=27 // pred_check
        %p208 = pneg %p33
      $region30: #{bottleneck_forward.4} parent=27 // pred_check_branch
        %210 = sbr.rel (%p208) target = $region32
      $region31: #{bottleneck_forward.4} parent=27 // pred_region
        %p211 = scmp.lt.s32.totalorder %s13, 1
        %s212 = scalar_select %p211, %s13, 1
        %s213 = smul.addr %s212, 32
        %s214 = smul.addr %s213, 4
        %s215 = scalar_lea.vmem %s0, %s214
      $region32: #{bottleneck_forward.4} parent=27 // pred_fallthru
        _
    $region28: #{bottleneck_forward.4} parent=5 // pred_fallthru
      _
    %p216 = scmp.le.s32.totalorder 1, %s13
    %p217 = scmp.lt.s32.totalorder %s13, 3
    %p218 = pnand %p216, %p217
    %p219 = pneg %p218
    // Predicated region
    $region33: #{bottleneck_forward.4} parent=5 // pred_check
      _
    $region34: #{bottleneck_forward.4} parent=5 // pred_check_branch
      %221 = sbr.rel (%p218) target = $region36
    $region35: #{bottleneck_forward.4} parent=5 // pred_region
      %s222 = ssub.s32 %s13, 1
      %p223 = scmp.lt.s32.totalorder %s18, 1
      %s224 = scalar_select %p223, %s18, 1
      %s225 = smul.addr %s224, 32
      %s226 = smul.addr %s225, 4
      %s227 = scalar_lea.vmem %s0, %s226
      %p228 = pneg %p39
      %p229 = pneg %p36
      %p230 = pneg %p60
      %p231 = pneg %p57
      %p232 = pneg %p81
      %p233 = pneg %p78
      %p234 = pneg %p102
      %p235 = pneg %p99
      %p236 = pneg %p128
      %p237 = pneg %p125
      %p238 = scmp.lt.s32.totalorder %s18, 1
      %s239 = scalar_select %p238, %s18, 1
      %s240 = smul.addr %s239, 32
      %s241 = smul.addr %s240, 4
      %s242 = scalar_lea.vmem %s4, %s241
      %p243 = pneg %p154
      %p244 = pneg %p151
      %p245 = scmp.lt.s32.totalorder %s18, 1
      %s246 = scalar_select %p245, %s18, 1
      %s247 = scalar_lea.vmem %s5, %s246
      %p248 = pneg %p180
      %p249 = pneg %p177
      %p250 = scmp.lt.s32.totalorder %s18, 1
      %s251 = scalar_select %p250, %s18, 1
      %s252 = scalar_lea.vmem %s6, %s251
      %p253 = scmp.lt.s32.totalorder %s18, 1
      %s254 = scalar_select %p253, %s18, 1
      %s255 = smul.addr %s254, 32
      %s256 = smul.addr %s255, 4
      %s257 = scalar_lea.vmem %s0, %s256
      %p258 = scmp.lt.s32.totalorder %s18, 1
      %s259 = scalar_select %p258, %s18, 1
      %s260 = smul.addr %s259, 32
      %s261 = smul.addr %s260, 4
      %s262 = scalar_lea.vmem %s4, %s261
      %p263 = scmp.lt.s32.totalorder %s18, 1
      %s264 = scalar_select %p263, %s18, 1
      %s265 = scalar_lea.vmem %s5, %s264
      %p266 = scmp.lt.s32.totalorder %s18, 1
      %s267 = scalar_select %p266, %s18, 1
      %s268 = scalar_lea.vmem %s6, %s267
      %v270 = vld [vmem:[%s257] sm:$0xf]
      %v271 = vld [vmem:[%s257 + $0x4] sm:$0xf]
      %v272 = vld [vmem:[%s257 + $0x8] sm:$0xf]
      %v273 = vld [vmem:[%s257 + $0xc] sm:$0xf]
      %v274 = vld [vmem:[%s257 + $0x10] sm:$0xf]
      %v275 = vld [vmem:[%s257 + $0x14] sm:$0xf]
      %v276 = vld [vmem:[%s257 + $0x18] sm:$0xf]
      %v277 = vld [vmem:[%s257 + $0x1c] sm:$0xf]
      %v278 = vld [vmem:[%s257 + $0x20] sm:$0xf]
      %v279 = vld [vmem:[%s257 + $0x24] sm:$0xf]
      %v280 = vld [vmem:[%s257 + $0x28] sm:$0xf]
      %v281 = vld [vmem:[%s257 + $0x2c] sm:$0xf]
      %v282 = vld [vmem:[%s257 + $0x30] sm:$0xf]
      %v283 = vld [vmem:[%s257 + $0x34] sm:$0xf]
      %v284 = vld [vmem:[%s257 + $0x38] sm:$0xf]
      %v285 = vld [vmem:[%s257 + $0x3c] sm:$0xf]
      %v286 = vld [vmem:[%s257 + $0x40] sm:$0xf]
      %v287 = vld [vmem:[%s257 + $0x44] sm:$0xf]
      %v288 = vld [vmem:[%s257 + $0x48] sm:$0xf]
      %v289 = vld [vmem:[%s257 + $0x4c] sm:$0xf]
      %v290 = vld [vmem:[%s257 + $0x50] sm:$0xf]
      %v291 = vld [vmem:[%s257 + $0x54] sm:$0xf]
      %v292 = vld [vmem:[%s257 + $0x58] sm:$0xf]
      %v293 = vld [vmem:[%s257 + $0x5c] sm:$0xf]
      %v294 = vld [vmem:[%s257 + $0x60] sm:$0xf]
      %v295 = vld [vmem:[%s257 + $0x64] sm:$0xf]
      %v296 = vld [vmem:[%s257 + $0x68] sm:$0xf]
      %v297 = vld [vmem:[%s257 + $0x6c] sm:$0xf]
      %v298 = vld [vmem:[%s257 + $0x70] sm:$0xf]
      %v299 = vld [vmem:[%s257 + $0x74] sm:$0xf]
      %v300 = vld [vmem:[%s257 + $0x78] sm:$0xf]
      %v301 = vld [vmem:[%s257 + $0x7c] sm:$0xf]
      %v302 = vunpack.c.l.bf16 %v270
      %v303 = vunpack.c.l.bf16 %v271
      %v304 = vunpack.c.l.bf16 %v272
      %v305 = vunpack.c.l.bf16 %v273
      %v306 = vunpack.c.l.bf16 %v274
      %v307 = vunpack.c.l.bf16 %v275
      %v308 = vunpack.c.l.bf16 %v276
      %v309 = vunpack.c.l.bf16 %v277
      %v310 = vunpack.c.l.bf16 %v278
      %v311 = vunpack.c.l.bf16 %v279
      %v312 = vunpack.c.l.bf16 %v280
      %v313 = vunpack.c.l.bf16 %v281
      %v314 = vunpack.c.l.bf16 %v282
      %v315 = vunpack.c.l.bf16 %v283
      %v316 = vunpack.c.l.bf16 %v284
      %v317 = vunpack.c.l.bf16 %v285
      %v318 = vunpack.c.l.bf16 %v286
      %v319 = vunpack.c.l.bf16 %v287
      %v320 = vunpack.c.l.bf16 %v288
      %v321 = vunpack.c.l.bf16 %v289
      %v322 = vunpack.c.l.bf16 %v290
      %v323 = vunpack.c.l.bf16 %v291
      %v324 = vunpack.c.l.bf16 %v292
      %v325 = vunpack.c.l.bf16 %v293
      %v326 = vunpack.c.l.bf16 %v294
      %v327 = vunpack.c.l.bf16 %v295
      %v328 = vunpack.c.l.bf16 %v296
      %v329 = vunpack.c.l.bf16 %v297
      %v330 = vunpack.c.l.bf16 %v298
      %v331 = vunpack.c.l.bf16 %v299
      %v332 = vunpack.c.l.bf16 %v300
      %v333 = vunpack.c.l.bf16 %v301
      %v334 = vld [vmem:[%s1] sm:$0x1]
      %v336 = vlaneseq
      %v337 = vshrl.u32 %v336, 7
      %v338 = vsub.s32 0, %v337
      %v339 = vrot.slane %v334, %v338
      %v341 = vmul.f32 %v302, %v339
      %v342 = vmul.f32 %v303, %v339
      %v343 = vmul.f32 %v304, %v339
      %v344 = vmul.f32 %v305, %v339
      %v345 = vmul.f32 %v306, %v339
      %v346 = vmul.f32 %v307, %v339
      %v347 = vmul.f32 %v308, %v339
      %v348 = vmul.f32 %v309, %v339
      %v349 = vmul.f32 %v310, %v339
      %v350 = vmul.f32 %v311, %v339
      %v351 = vmul.f32 %v312, %v339
      %v352 = vmul.f32 %v313, %v339
      %v353 = vmul.f32 %v314, %v339
      %v354 = vmul.f32 %v315, %v339
      %v355 = vmul.f32 %v316, %v339
      %v356 = vmul.f32 %v317, %v339
      %v357 = vmul.f32 %v318, %v339
      %v358 = vmul.f32 %v319, %v339
      %v359 = vmul.f32 %v320, %v339
      %v360 = vmul.f32 %v321, %v339
      %v361 = vmul.f32 %v322, %v339
      %v362 = vmul.f32 %v323, %v339
      %v363 = vmul.f32 %v324, %v339
      %v364 = vmul.f32 %v325, %v339
      %v365 = vmul.f32 %v326, %v339
      %v366 = vmul.f32 %v327, %v339
      %v367 = vmul.f32 %v328, %v339
      %v368 = vmul.f32 %v329, %v339
      %v369 = vmul.f32 %v330, %v339
      %v370 = vmul.f32 %v331, %v339
      %v371 = vmul.f32 %v332, %v339
      %v372 = vmul.f32 %v333, %v339
      %v373 = vld [vmem:[%s2] sm:$0x1]
      %v375 = vlaneseq
      %v376 = vshrl.u32 %v375, 7
      %v377 = vsub.s32 0, %v376
      %v378 = vrot.slane %v373, %v377
      %v380 = vadd.f32 %v341, %v378
      %v381 = vadd.f32 %v342, %v378
      %v382 = vadd.f32 %v343, %v378
      %v383 = vadd.f32 %v344, %v378
      %v384 = vadd.f32 %v345, %v378
      %v385 = vadd.f32 %v346, %v378
      %v386 = vadd.f32 %v347, %v378
      %v387 = vadd.f32 %v348, %v378
      %v388 = vadd.f32 %v349, %v378
      %v389 = vadd.f32 %v350, %v378
      %v390 = vadd.f32 %v351, %v378
      %v391 = vadd.f32 %v352, %v378
      %v392 = vadd.f32 %v353, %v378
      %v393 = vadd.f32 %v354, %v378
      %v394 = vadd.f32 %v355, %v378
      %v395 = vadd.f32 %v356, %v378
      %v396 = vadd.f32 %v357, %v378
      %v397 = vadd.f32 %v358, %v378
      %v398 = vadd.f32 %v359, %v378
      %v399 = vadd.f32 %v360, %v378
      %v400 = vadd.f32 %v361, %v378
      %v401 = vadd.f32 %v362, %v378
      %v402 = vadd.f32 %v363, %v378
      %v403 = vadd.f32 %v364, %v378
      %v404 = vadd.f32 %v365, %v378
      %v405 = vadd.f32 %v366, %v378
      %v406 = vadd.f32 %v367, %v378
      %v407 = vadd.f32 %v368, %v378
      %v408 = vadd.f32 %v369, %v378
      %v409 = vadd.f32 %v370, %v378
      %v410 = vadd.f32 %v371, %v378
      %v411 = vadd.f32 %v372, %v378
      %v412 = vmax.f32 %v380, 0.0
      %v413 = vmax.f32 %v381, 0.0
      %v414 = vmax.f32 %v382, 0.0
      %v415 = vmax.f32 %v383, 0.0
      %v416 = vmax.f32 %v384, 0.0
      %v417 = vmax.f32 %v385, 0.0
      %v418 = vmax.f32 %v386, 0.0
      %v419 = vmax.f32 %v387, 0.0
      %v420 = vmax.f32 %v388, 0.0
      %v421 = vmax.f32 %v389, 0.0
      %v422 = vmax.f32 %v390, 0.0
      %v423 = vmax.f32 %v391, 0.0
      %v424 = vmax.f32 %v392, 0.0
      %v425 = vmax.f32 %v393, 0.0
      %v426 = vmax.f32 %v394, 0.0
      %v427 = vmax.f32 %v395, 0.0
      %v428 = vmax.f32 %v396, 0.0
      %v429 = vmax.f32 %v397, 0.0
      %v430 = vmax.f32 %v398, 0.0
      %v431 = vmax.f32 %v399, 0.0
      %v432 = vmax.f32 %v400, 0.0
      %v433 = vmax.f32 %v401, 0.0
      %v434 = vmax.f32 %v402, 0.0
      %v435 = vmax.f32 %v403, 0.0
      %v436 = vmax.f32 %v404, 0.0
      %v437 = vmax.f32 %v405, 0.0
      %v438 = vmax.f32 %v406, 0.0
      %v439 = vmax.f32 %v407, 0.0
      %v440 = vmax.f32 %v408, 0.0
      %v441 = vmax.f32 %v409, 0.0
      %v442 = vmax.f32 %v410, 0.0
      %v443 = vmax.f32 %v411, 0.0
      %v444 = vpack.c.bf16 %v413, %v412
      %v445 = vpack.c.bf16 %v415, %v414
      %v446 = vpack.c.bf16 %v417, %v416
      %v447 = vpack.c.bf16 %v419, %v418
      %v448 = vpack.c.bf16 %v421, %v420
      %v449 = vpack.c.bf16 %v423, %v422
      %v450 = vpack.c.bf16 %v425, %v424
      %v451 = vpack.c.bf16 %v427, %v426
      %v452 = vpack.c.bf16 %v429, %v428
      %v453 = vpack.c.bf16 %v431, %v430
      %v454 = vpack.c.bf16 %v433, %v432
      %v455 = vpack.c.bf16 %v435, %v434
      %v456 = vpack.c.bf16 %v437, %v436
      %v457 = vpack.c.bf16 %v439, %v438
      %v458 = vpack.c.bf16 %v441, %v440
      %v459 = vpack.c.bf16 %v443, %v442
      %460 = vst [vmem:[#allocation2] sm:$0xf] 0
      %461 = vst [vmem:[#allocation2 + $0x4] sm:$0xf] 0
      %462 = vst [vmem:[#allocation2 + $0x8] sm:$0x1] 0
      %s463 = scalar_lea.vmem [#allocation2], 204
      %464 = vst [vmem:[%s463] sm:$0xf] 0
      %465 = vst [vmem:[%s463 + $0x4] sm:$0xf] 0
      %466 = vst [vmem:[%s463 + $0x8] sm:$0x1] 0
      %vm467 = vcmask 1040384
      %vm468 = vsmask.f32 256
      %vm469 = vmand %vm467, %vm468
      %v470 = vld [vmem:[#allocation2] sm:$0x1]
      %v471 = vsel %vm469, 0, %v470
      %472 = vst [vmem:[#allocation2] sm:$0x1] %v471
      %v473 = vld [vmem:[#allocation2 + $0xc] sm:$0x1]
      %v474 = vsel %vm469, 0, %v473
      %475 = vst [vmem:[#allocation2 + $0xc] sm:$0x1] %v474
      %v476 = vld [vmem:[#allocation2 + $0x18] sm:$0x1]
      %v477 = vsel %vm469, 0, %v476
      %478 = vst [vmem:[#allocation2 + $0x18] sm:$0x1] %v477
      %v479 = vld [vmem:[#allocation2 + $0x24] sm:$0x1]
      %v480 = vsel %vm469, 0, %v479
      %481 = vst [vmem:[#allocation2 + $0x24] sm:$0x1] %v480
      %v482 = vld [vmem:[#allocation2 + $0x30] sm:$0x1]
      %v483 = vsel %vm469, 0, %v482
      %484 = vst [vmem:[#allocation2 + $0x30] sm:$0x1] %v483
      %v485 = vld [vmem:[#allocation2 + $0x3c] sm:$0x1]
      %v486 = vsel %vm469, 0, %v485
      %487 = vst [vmem:[#allocation2 + $0x3c] sm:$0x1] %v486
      %v488 = vld [vmem:[#allocation2 + $0x48] sm:$0x1]
      %v489 = vsel %vm469, 0, %v488
      %490 = vst [vmem:[#allocation2 + $0x48] sm:$0x1] %v489
      %v491 = vld [vmem:[#allocation2 + $0x54] sm:$0x1]
      %v492 = vsel %vm469, 0, %v491
      %493 = vst [vmem:[#allocation2 + $0x54] sm:$0x1] %v492
      %v494 = vld [vmem:[#allocation2 + $0x60] sm:$0x1]
      %v495 = vsel %vm469, 0, %v494
      %496 = vst [vmem:[#allocation2 + $0x60] sm:$0x1] %v495
      %v497 = vld [vmem:[#allocation2 + $0x6c] sm:$0x1]
      %v498 = vsel %vm469, 0, %v497
      %499 = vst [vmem:[#allocation2 + $0x6c] sm:$0x1] %v498
      %v500 = vld [vmem:[#allocation2 + $0x78] sm:$0x1]
      %v501 = vsel %vm469, 0, %v500
      %502 = vst [vmem:[#allocation2 + $0x78] sm:$0x1] %v501
      %v503 = vld [vmem:[#allocation2 + $0x84] sm:$0x1]
      %v504 = vsel %vm469, 0, %v503
      %505 = vst [vmem:[#allocation2 + $0x84] sm:$0x1] %v504
      %v506 = vld [vmem:[#allocation2 + $0x90] sm:$0x1]
      %v507 = vsel %vm469, 0, %v506
      %508 = vst [vmem:[#allocation2 + $0x90] sm:$0x1] %v507
      %v509 = vld [vmem:[#allocation2 + $0x9c] sm:$0x1]
      %v510 = vsel %vm469, 0, %v509
      %511 = vst [vmem:[#allocation2 + $0x9c] sm:$0x1] %v510
      %v512 = vld [vmem:[#allocation2 + $0xa8] sm:$0x1]
      %v513 = vsel %vm469, 0, %v512
      %514 = vst [vmem:[#allocation2 + $0xa8] sm:$0x1] %v513
      %v515 = vld [vmem:[#allocation2 + $0xb4] sm:$0x1]
      %v516 = vsel %vm469, 0, %v515
      %517 = vst [vmem:[#allocation2 + $0xb4] sm:$0x1] %v516
      %v518 = vld [vmem:[#allocation2 + $0xc0] sm:$0x1]
      %v519 = vsel %vm469, 0, %v518
      %520 = vst [vmem:[#allocation2 + $0xc0] sm:$0x1] %v519
      %v521 = vld [vmem:[#allocation2 + $0xcc] sm:$0x1]
      %v522 = vsel %vm469, 0, %v521
      %523 = vst [vmem:[#allocation2 + $0xcc] sm:$0x1] %v522
      %vm524 = vsmask.f32 7938
      %vm525 = vmand %vm467, %vm524
      %v526 = vld [vmem:[#allocation2 + $0x8] sm:$0x1]
      %v527 = vsel %vm525, 0, %v526
      %528 = vst [vmem:[#allocation2 + $0x8] sm:$0x1] %v527
      %v529 = vld [vmem:[#allocation2 + $0x14] sm:$0x1]
      %v530 = vsel %vm525, 0, %v529
      %531 = vst [vmem:[#allocation2 + $0x14] sm:$0x1] %v530
      %v532 = vld [vmem:[#allocation2 + $0x20] sm:$0x1]
      %v533 = vsel %vm525, 0, %v532
      %534 = vst [vmem:[#allocation2 + $0x20] sm:$0x1] %v533
      %v535 = vld [vmem:[#allocation2 + $0x2c] sm:$0x1]
      %v536 = vsel %vm525, 0, %v535
      %537 = vst [vmem:[#allocation2 + $0x2c] sm:$0x1] %v536
      %v538 = vld [vmem:[#allocation2 + $0x38] sm:$0x1]
      %v539 = vsel %vm525, 0, %v538
      %540 = vst [vmem:[#allocation2 + $0x38] sm:$0x1] %v539
      %v541 = vld [vmem:[#allocation2 + $0x44] sm:$0x1]
      %v542 = vsel %vm525, 0, %v541
      %543 = vst [vmem:[#allocation2 + $0x44] sm:$0x1] %v542
      %v544 = vld [vmem:[#allocation2 + $0x50] sm:$0x1]
      %v545 = vsel %vm525, 0, %v544
      %546 = vst [vmem:[#allocation2 + $0x50] sm:$0x1] %v545
      %v547 = vld [vmem:[#allocation2 + $0x5c] sm:$0x1]
      %v548 = vsel %vm525, 0, %v547
      %549 = vst [vmem:[#allocation2 + $0x5c] sm:$0x1] %v548
      %v550 = vld [vmem:[#allocation2 + $0x68] sm:$0x1]
      %v551 = vsel %vm525, 0, %v550
      %552 = vst [vmem:[#allocation2 + $0x68] sm:$0x1] %v551
      %v553 = vld [vmem:[#allocation2 + $0x74] sm:$0x1]
      %v554 = vsel %vm525, 0, %v553
      %555 = vst [vmem:[#allocation2 + $0x74] sm:$0x1] %v554
      %v556 = vld [vmem:[#allocation2 + $0x80] sm:$0x1]
      %v557 = vsel %vm525, 0, %v556
      %558 = vst [vmem:[#allocation2 + $0x80] sm:$0x1] %v557
      %v559 = vld [vmem:[#allocation2 + $0x8c] sm:$0x1]
      %v560 = vsel %vm525, 0, %v559
      %561 = vst [vmem:[#allocation2 + $0x8c] sm:$0x1] %v560
      %v562 = vld [vmem:[#allocation2 + $0x98] sm:$0x1]
      %v563 = vsel %vm525, 0, %v562
      %564 = vst [vmem:[#allocation2 + $0x98] sm:$0x1] %v563
      %v565 = vld [vmem:[#allocation2 + $0xa4] sm:$0x1]
      %v566 = vsel %vm525, 0, %v565
      %567 = vst [vmem:[#allocation2 + $0xa4] sm:$0x1] %v566
      %v568 = vld [vmem:[#allocation2 + $0xb0] sm:$0x1]
      %v569 = vsel %vm525, 0, %v568
      %570 = vst [vmem:[#allocation2 + $0xb0] sm:$0x1] %v569
      %v571 = vld [vmem:[#allocation2 + $0xbc] sm:$0x1]
      %v572 = vsel %vm525, 0, %v571
      %573 = vst [vmem:[#allocation2 + $0xbc] sm:$0x1] %v572
      %v574 = vld [vmem:[#allocation2 + $0xc8] sm:$0x1]
      %v575 = vsel %vm525, 0, %v574
      %576 = vst [vmem:[#allocation2 + $0xc8] sm:$0x1] %v575
      %v577 = vld [vmem:[#allocation2 + $0xd4] sm:$0x1]
      %v578 = vsel %vm525, 0, %v577
      %579 = vst [vmem:[#allocation2 + $0xd4] sm:$0x1] %v578
      %v596 = vunpack.c.l.b16 %v444
      %v597 = vunpack.c.h.b16 %v444
      %v598 = vunpack.c.l.b16 %v445
      %v599 = vunpack.c.h.b16 %v445
      %v600 = vunpack.c.l.b16 %v446
      %v601 = vunpack.c.h.b16 %v446
      %v602 = vunpack.c.l.b16 %v447
      %v603 = vunpack.c.h.b16 %v447
      %v604 = vunpack.c.l.b16 %v448
      %v605 = vunpack.c.h.b16 %v448
      %v606 = vunpack.c.l.b16 %v449
      %v607 = vunpack.c.h.b16 %v449
      %v608 = vunpack.c.l.b16 %v450
      %v609 = vunpack.c.h.b16 %v450
      %v610 = vunpack.c.l.b16 %v451
      %v611 = vunpack.c.h.b16 %v451
      %v612 = vunpack.c.l.b16 %v452
      %v613 = vunpack.c.h.b16 %v452
      %v614 = vunpack.c.l.b16 %v453
      %v615 = vunpack.c.h.b16 %v453
      %v616 = vunpack.c.l.b16 %v454
      %v617 = vunpack.c.h.b16 %v454
      %v618 = vunpack.c.l.b16 %v455
      %v619 = vunpack.c.h.b16 %v455
      %v620 = vunpack.c.l.b16 %v456
      %v621 = vunpack.c.h.b16 %v456
      %v622 = vunpack.c.l.b16 %v457
      %v623 = vunpack.c.h.b16 %v457
      %v624 = vunpack.c.l.b16 %v458
      %v625 = vunpack.c.h.b16 %v458
      %v626 = vunpack.c.l.b16 %v459
      %v627 = vunpack.c.h.b16 %v459
      %v628 = vpack.c.b16 %v596, %v596
      %v629 = vpack.c.b16 %v597, %v597
      %v630 = vpack.c.b16 %v598, %v598
      %v631 = vpack.c.b16 %v599, %v599
      %v632 = vpack.c.b16 %v600, %v600
      %v633 = vpack.c.b16 %v601, %v601
      %v634 = vpack.c.b16 %v602, %v602
      %v635 = vpack.c.b16 %v603, %v603
      %v636 = vpack.c.b16 %v604, %v604
      %v637 = vpack.c.b16 %v605, %v605
      %v638 = vpack.c.b16 %v606, %v606
      %v639 = vpack.c.b16 %v607, %v607
      %v640 = vpack.c.b16 %v608, %v608
      %v641 = vpack.c.b16 %v609, %v609
      %v642 = vpack.c.b16 %v610, %v610
      %v643 = vpack.c.b16 %v611, %v611
      %v644 = vpack.c.b16 %v612, %v612
      %v645 = vpack.c.b16 %v613, %v613
      %v646 = vpack.c.b16 %v614, %v614
      %v647 = vpack.c.b16 %v615, %v615
      %v648 = vpack.c.b16 %v616, %v616
      %v649 = vpack.c.b16 %v617, %v617
      %v650 = vpack.c.b16 %v618, %v618
      %v651 = vpack.c.b16 %v619, %v619
      %v652 = vpack.c.b16 %v620, %v620
      %v653 = vpack.c.b16 %v621, %v621
      %v654 = vpack.c.b16 %v622, %v622
      %v655 = vpack.c.b16 %v623, %v623
      %v656 = vpack.c.b16 %v624, %v624
      %v657 = vpack.c.b16 %v625, %v625
      %v658 = vpack.c.b16 %v626, %v626
      %v659 = vpack.c.b16 %v627, %v627
      %vm660 = vsmask.f32 4368
      %vm661 = vmor %vm468, %vm660
      %v663 = vshrl.u32 %v628, 16
      %v665 = vrot.slane %v663, 7
      %v666 = vshll.u32 %v628, 16
      %v668 = vor.u32 %v665, %v666
      %v669 = vrot.slane %v665, 4
      %v671 = vshrl.u32 %v629, 16
      %v673 = vrot.slane %v671, 7
      %v674 = vshll.u32 %v629, 16
      %v676 = vor.u32 %v673, %v674
      %v677 = vsel %vm661, %v669, %v676
      %v678 = vrot.slane %v673, 4
      %v680 = vshrl.u32 %v630, 16
      %v682 = vrot.slane %v680, 7
      %v683 = vshll.u32 %v630, 16
      %v685 = vor.u32 %v682, %v683
      %v686 = vrot.slane %v682, 4
      %v688 = vshrl.u32 %v631, 16
      %v690 = vrot.slane %v688, 7
      %v691 = vshll.u32 %v631, 16
      %v693 = vor.u32 %v690, %v691
      %v694 = vsel %vm661, %v686, %v693
      %v695 = vrot.slane %v690, 4
      %v697 = vshrl.u32 %v632, 16
      %v699 = vrot.slane %v697, 7
      %v700 = vshll.u32 %v632, 16
      %v702 = vor.u32 %v699, %v700
      %v703 = vrot.slane %v699, 4
      %v705 = vshrl.u32 %v633, 16
      %v707 = vrot.slane %v705, 7
      %v708 = vshll.u32 %v633, 16
      %v710 = vor.u32 %v707, %v708
      %v711 = vsel %vm661, %v703, %v710
      %v712 = vrot.slane %v707, 4
      %v714 = vshrl.u32 %v634, 16
      %v716 = vrot.slane %v714, 7
      %v717 = vshll.u32 %v634, 16
      %v719 = vor.u32 %v716, %v717
      %v720 = vrot.slane %v716, 4
      %v722 = vshrl.u32 %v635, 16
      %v724 = vrot.slane %v722, 7
      %v725 = vshll.u32 %v635, 16
      %v727 = vor.u32 %v724, %v725
      %v728 = vsel %vm661, %v720, %v727
      %v729 = vrot.slane %v724, 4
      %v731 = vshrl.u32 %v636, 16
      %v733 = vrot.slane %v731, 7
      %v734 = vshll.u32 %v636, 16
      %v736 = vor.u32 %v733, %v734
      %v737 = vrot.slane %v733, 4
      %v739 = vshrl.u32 %v637, 16
      %v741 = vrot.slane %v739, 7
      %v742 = vshll.u32 %v637, 16
      %v744 = vor.u32 %v741, %v742
      %v745 = vsel %vm661, %v737, %v744
      %v746 = vrot.slane %v741, 4
      %v748 = vshrl.u32 %v638, 16
      %v750 = vrot.slane %v748, 7
      %v751 = vshll.u32 %v638, 16
      %v753 = vor.u32 %v750, %v751
      %v754 = vrot.slane %v750, 4
      %v756 = vshrl.u32 %v639, 16
      %v758 = vrot.slane %v756, 7
      %v759 = vshll.u32 %v639, 16
      %v761 = vor.u32 %v758, %v759
      %v762 = vsel %vm661, %v754, %v761
      %v763 = vrot.slane %v758, 4
      %v765 = vshrl.u32 %v640, 16
      %v767 = vrot.slane %v765, 7
      %v768 = vshll.u32 %v640, 16
      %v770 = vor.u32 %v767, %v768
      %v771 = vrot.slane %v767, 4
      %v773 = vshrl.u32 %v641, 16
      %v775 = vrot.slane %v773, 7
      %v776 = vshll.u32 %v641, 16
      %v778 = vor.u32 %v775, %v776
      %v779 = vsel %vm661, %v771, %v778
      %v780 = vrot.slane %v775, 4
      %v782 = vshrl.u32 %v642, 16
      %v784 = vrot.slane %v782, 7
      %v785 = vshll.u32 %v642, 16
      %v787 = vor.u32 %v784, %v785
      %v788 = vrot.slane %v784, 4
      %v790 = vshrl.u32 %v643, 16
      %v792 = vrot.slane %v790, 7
      %v793 = vshll.u32 %v643, 16
      %v795 = vor.u32 %v792, %v793
      %v796 = vsel %vm661, %v788, %v795
      %v797 = vrot.slane %v792, 4
      %v799 = vshrl.u32 %v644, 16
      %v801 = vrot.slane %v799, 7
      %v802 = vshll.u32 %v644, 16
      %v804 = vor.u32 %v801, %v802
      %v805 = vrot.slane %v801, 4
      %v807 = vshrl.u32 %v645, 16
      %v809 = vrot.slane %v807, 7
      %v810 = vshll.u32 %v645, 16
      %v812 = vor.u32 %v809, %v810
      %v813 = vsel %vm661, %v805, %v812
      %v814 = vrot.slane %v809, 4
      %v816 = vshrl.u32 %v646, 16
      %v818 = vrot.slane %v816, 7
      %v819 = vshll.u32 %v646, 16
      %v821 = vor.u32 %v818, %v819
      %v822 = vrot.slane %v818, 4
      %v824 = vshrl.u32 %v647, 16
      %v826 = vrot.slane %v824, 7
      %v827 = vshll.u32 %v647, 16
      %v829 = vor.u32 %v826, %v827
      %v830 = vsel %vm661, %v822, %v829
      %v831 = vrot.slane %v826, 4
      %v833 = vshrl.u32 %v648, 16
      %v835 = vrot.slane %v833, 7
      %v836 = vshll.u32 %v648, 16
      %v838 = vor.u32 %v835, %v836
      %v839 = vrot.slane %v835, 4
      %v841 = vshrl.u32 %v649, 16
      %v843 = vrot.slane %v841, 7
      %v844 = vshll.u32 %v649, 16
      %v846 = vor.u32 %v843, %v844
      %v847 = vsel %vm661, %v839, %v846
      %v848 = vrot.slane %v843, 4
      %v850 = vshrl.u32 %v650, 16
      %v852 = vrot.slane %v850, 7
      %v853 = vshll.u32 %v650, 16
      %v855 = vor.u32 %v852, %v853
      %v856 = vrot.slane %v852, 4
      %v858 = vshrl.u32 %v651, 16
      %v860 = vrot.slane %v858, 7
      %v861 = vshll.u32 %v651, 16
      %v863 = vor.u32 %v860, %v861
      %v864 = vsel %vm661, %v856, %v863
      %v865 = vrot.slane %v860, 4
      %v867 = vshrl.u32 %v652, 16
      %v869 = vrot.slane %v867, 7
      %v870 = vshll.u32 %v652, 16
      %v872 = vor.u32 %v869, %v870
      %v873 = vrot.slane %v869, 4
      %v875 = vshrl.u32 %v653, 16
      %v877 = vrot.slane %v875, 7
      %v878 = vshll.u32 %v653, 16
      %v880 = vor.u32 %v877, %v878
      %v881 = vsel %vm661, %v873, %v880
      %v882 = vrot.slane %v877, 4
      %v884 = vshrl.u32 %v654, 16
      %v886 = vrot.slane %v884, 7
      %v887 = vshll.u32 %v654, 16
      %v889 = vor.u32 %v886, %v887
      %v890 = vrot.slane %v886, 4
      %v892 = vshrl.u32 %v655, 16
      %v894 = vrot.slane %v892, 7
      %v895 = vshll.u32 %v655, 16
      %v897 = vor.u32 %v894, %v895
      %v898 = vsel %vm661, %v890, %v897
      %v899 = vrot.slane %v894, 4
      %v901 = vshrl.u32 %v656, 16
      %v903 = vrot.slane %v901, 7
      %v904 = vshll.u32 %v656, 16
      %v906 = vor.u32 %v903, %v904
      %v907 = vrot.slane %v903, 4
      %v909 = vshrl.u32 %v657, 16
      %v911 = vrot.slane %v909, 7
      %v912 = vshll.u32 %v657, 16
      %v914 = vor.u32 %v911, %v912
      %v915 = vsel %vm661, %v907, %v914
      %v916 = vrot.slane %v911, 4
      %v918 = vshrl.u32 %v658, 16
      %v920 = vrot.slane %v918, 7
      %v921 = vshll.u32 %v658, 16
      %v923 = vor.u32 %v920, %v921
      %v924 = vrot.slane %v920, 4
      %v926 = vshrl.u32 %v659, 16
      %v928 = vrot.slane %v926, 7
      %v929 = vshll.u32 %v659, 16
      %v931 = vor.u32 %v928, %v929
      %v932 = vsel %vm661, %v924, %v931
      %v933 = vrot.slane %v928, 4
      %s982 = scalar_lea.vmem [#allocation2], 12
      %vm983 = vcmask 1043456
      %vm984 = vmand %vm983, %vm524
      %v985 = vld [vmem:[%s982] sm:$0xf]
      %v986 = vsel %vm984, %v668, %v985
      %987 = vst [vmem:[%s982] sm:$0xf] %v986
      %988 = vst [vmem:[%s982 + $0x4] sm:$0xf] %v677
      %v989 = vld [vmem:[%s982 + $0x8] sm:$0x1]
      %v990 = vsel %vm469, %v678, %v989
      %991 = vst [vmem:[%s982 + $0x8] sm:$0x1] %v990
      %v992 = vld [vmem:[%s982 + $0xc] sm:$0xf]
      %v993 = vsel %vm984, %v685, %v992
      %994 = vst [vmem:[%s982 + $0xc] sm:$0xf] %v993
      %995 = vst [vmem:[%s982 + $0x10] sm:$0xf] %v694
      %v996 = vld [vmem:[%s982 + $0x14] sm:$0x1]
      %v997 = vsel %vm469, %v695, %v996
      %998 = vst [vmem:[%s982 + $0x14] sm:$0x1] %v997
      %v999 = vld [vmem:[%s982 + $0x18] sm:$0xf]
      %v1000 = vsel %vm984, %v702, %v999
      %1001 = vst [vmem:[%s982 + $0x18] sm:$0xf] %v1000
      %1002 = vst [vmem:[%s982 + $0x1c] sm:$0xf] %v711
      %v1003 = vld [vmem:[%s982 + $0x20] sm:$0x1]
      %v1004 = vsel %vm469, %v712, %v1003
      %1005 = vst [vmem:[%s982 + $0x20] sm:$0x1] %v1004
      %v1006 = vld [vmem:[%s982 + $0x24] sm:$0xf]
      %v1007 = vsel %vm984, %v719, %v1006
      %1008 = vst [vmem:[%s982 + $0x24] sm:$0xf] %v1007
      %1009 = vst [vmem:[%s982 + $0x28] sm:$0xf] %v728
      %v1010 = vld [vmem:[%s982 + $0x2c] sm:$0x1]
      %v1011 = vsel %vm469, %v729, %v1010
      %1012 = vst [vmem:[%s982 + $0x2c] sm:$0x1] %v1011
      %v1013 = vld [vmem:[%s982 + $0x30] sm:$0xf]
      %v1014 = vsel %vm984, %v736, %v1013
      %1015 = vst [vmem:[%s982 + $0x30] sm:$0xf] %v1014
      %1016 = vst [vmem:[%s982 + $0x34] sm:$0xf] %v745
      %v1017 = vld [vmem:[%s982 + $0x38] sm:$0x1]
      %v1018 = vsel %vm469, %v746, %v1017
      %1019 = vst [vmem:[%s982 + $0x38] sm:$0x1] %v1018
      %v1020 = vld [vmem:[%s982 + $0x3c] sm:$0xf]
      %v1021 = vsel %vm984, %v753, %v1020
      %1022 = vst [vmem:[%s982 + $0x3c] sm:$0xf] %v1021
      %1023 = vst [vmem:[%s982 + $0x40] sm:$0xf] %v762
      %v1024 = vld [vmem:[%s982 + $0x44] sm:$0x1]
      %v1025 = vsel %vm469, %v763, %v1024
      %1026 = vst [vmem:[%s982 + $0x44] sm:$0x1] %v1025
      %v1027 = vld [vmem:[%s982 + $0x48] sm:$0xf]
      %v1028 = vsel %vm984, %v770, %v1027
      %1029 = vst [vmem:[%s982 + $0x48] sm:$0xf] %v1028
      %1030 = vst [vmem:[%s982 + $0x4c] sm:$0xf] %v779
      %v1031 = vld [vmem:[%s982 + $0x50] sm:$0x1]
      %v1032 = vsel %vm469, %v780, %v1031
      %1033 = vst [vmem:[%s982 + $0x50] sm:$0x1] %v1032
      %v1034 = vld [vmem:[%s982 + $0x54] sm:$0xf]
      %v1035 = vsel %vm984, %v787, %v1034
      %1036 = vst [vmem:[%s982 + $0x54] sm:$0xf] %v1035
      %1037 = vst [vmem:[%s982 + $0x58] sm:$0xf] %v796
      %v1038 = vld [vmem:[%s982 + $0x5c] sm:$0x1]
      %v1039 = vsel %vm469, %v797, %v1038
      %1040 = vst [vmem:[%s982 + $0x5c] sm:$0x1] %v1039
      %v1041 = vld [vmem:[%s982 + $0x60] sm:$0xf]
      %v1042 = vsel %vm984, %v804, %v1041
      %1043 = vst [vmem:[%s982 + $0x60] sm:$0xf] %v1042
      %1044 = vst [vmem:[%s982 + $0x64] sm:$0xf] %v813
      %v1045 = vld [vmem:[%s982 + $0x68] sm:$0x1]
      %v1046 = vsel %vm469, %v814, %v1045
      %1047 = vst [vmem:[%s982 + $0x68] sm:$0x1] %v1046
      %v1048 = vld [vmem:[%s982 + $0x6c] sm:$0xf]
      %v1049 = vsel %vm984, %v821, %v1048
      %1050 = vst [vmem:[%s982 + $0x6c] sm:$0xf] %v1049
      %1051 = vst [vmem:[%s982 + $0x70] sm:$0xf] %v830
      %v1052 = vld [vmem:[%s982 + $0x74] sm:$0x1]
      %v1053 = vsel %vm469, %v831, %v1052
      %1054 = vst [vmem:[%s982 + $0x74] sm:$0x1] %v1053
      %v1055 = vld [vmem:[%s982 + $0x78] sm:$0xf]
      %v1056 = vsel %vm984, %v838, %v1055
      %1057 = vst [vmem:[%s982 + $0x78] sm:$0xf] %v1056
      %1058 = vst [vmem:[%s982 + $0x7c] sm:$0xf] %v847
      %v1059 = vld [vmem:[%s982 + $0x80] sm:$0x1]
      %v1060 = vsel %vm469, %v848, %v1059
      %1061 = vst [vmem:[%s982 + $0x80] sm:$0x1] %v1060
      %v1062 = vld [vmem:[%s982 + $0x84] sm:$0xf]
      %v1063 = vsel %vm984, %v855, %v1062
      %1064 = vst [vmem:[%s982 + $0x84] sm:$0xf] %v1063
      %1065 = vst [vmem:[%s982 + $0x88] sm:$0xf] %v864
      %v1066 = vld [vmem:[%s982 + $0x8c] sm:$0x1]
      %v1067 = vsel %vm469, %v865, %v1066
      %1068 = vst [vmem:[%s982 + $0x8c] sm:$0x1] %v1067
      %v1069 = vld [vmem:[%s982 + $0x90] sm:$0xf]
      %v1070 = vsel %vm984, %v872, %v1069
      %1071 = vst [vmem:[%s982 + $0x90] sm:$0xf] %v1070
      %1072 = vst [vmem:[%s982 + $0x94] sm:$0xf] %v881
      %v1073 = vld [vmem:[%s982 + $0x98] sm:$0x1]
      %v1074 = vsel %vm469, %v882, %v1073
      %1075 = vst [vmem:[%s982 + $0x98] sm:$0x1] %v1074
      %v1076 = vld [vmem:[%s982 + $0x9c] sm:$0xf]
      %v1077 = vsel %vm984, %v889, %v1076
      %1078 = vst [vmem:[%s982 + $0x9c] sm:$0xf] %v1077
      %1079 = vst [vmem:[%s982 + $0xa0] sm:$0xf] %v898
      %v1080 = vld [vmem:[%s982 + $0xa4] sm:$0x1]
      %v1081 = vsel %vm469, %v899, %v1080
      %1082 = vst [vmem:[%s982 + $0xa4] sm:$0x1] %v1081
      %v1083 = vld [vmem:[%s982 + $0xa8] sm:$0xf]
      %v1084 = vsel %vm984, %v906, %v1083
      %1085 = vst [vmem:[%s982 + $0xa8] sm:$0xf] %v1084
      %1086 = vst [vmem:[%s982 + $0xac] sm:$0xf] %v915
      %v1087 = vld [vmem:[%s982 + $0xb0] sm:$0x1]
      %v1088 = vsel %vm469, %v916, %v1087
      %1089 = vst [vmem:[%s982 + $0xb0] sm:$0x1] %v1088
      %v1090 = vld [vmem:[%s982 + $0xb4] sm:$0xf]
      %v1091 = vsel %vm984, %v923, %v1090
      %1092 = vst [vmem:[%s982 + $0xb4] sm:$0xf] %v1091
      %1093 = vst [vmem:[%s982 + $0xb8] sm:$0xf] %v932
      %v1094 = vld [vmem:[%s982 + $0xbc] sm:$0x1]
      %v1095 = vsel %vm469, %v933, %v1094
      %1096 = vst [vmem:[%s982 + $0xbc] sm:$0x1] %v1095
      %v1097 = vld [vmem:[#allocation2] sm:$0xf]
      %v1098 = vld [vmem:[#allocation2 + $0x4] sm:$0xf]
      %v1099 = vld [vmem:[#allocation2 + $0xc] sm:$0xf]
      %v1100 = vld [vmem:[#allocation2 + $0x10] sm:$0xf]
      %v1101 = vld [vmem:[#allocation2 + $0x18] sm:$0xf]
      %v1102 = vld [vmem:[#allocation2 + $0x1c] sm:$0xf]
      %v1103 = vld [vmem:[#allocation2 + $0x24] sm:$0xf]
      %v1104 = vld [vmem:[#allocation2 + $0x28] sm:$0xf]
      %v1105 = vld [vmem:[#allocation2 + $0x30] sm:$0xf]
      %v1106 = vld [vmem:[#allocation2 + $0x34] sm:$0xf]
      %v1107 = vld [vmem:[#allocation2 + $0x3c] sm:$0xf]
      %v1108 = vld [vmem:[#allocation2 + $0x40] sm:$0xf]
      %v1109 = vld [vmem:[#allocation2 + $0x48] sm:$0xf]
      %v1110 = vld [vmem:[#allocation2 + $0x4c] sm:$0xf]
      %v1111 = vld [vmem:[#allocation2 + $0x54] sm:$0xf]
      %v1112 = vld [vmem:[#allocation2 + $0x58] sm:$0xf]
      %v1113 = vld [vmem:[#allocation2 + $0x60] sm:$0xf]
      %v1114 = vld [vmem:[#allocation2 + $0x64] sm:$0xf]
      %v1115 = vld [vmem:[#allocation2 + $0x6c] sm:$0xf]
      %v1116 = vld [vmem:[#allocation2 + $0x70] sm:$0xf]
      %v1117 = vld [vmem:[#allocation2 + $0x78] sm:$0xf]
      %v1118 = vld [vmem:[#allocation2 + $0x7c] sm:$0xf]
      %v1119 = vld [vmem:[#allocation2 + $0x84] sm:$0xf]
      %v1120 = vld [vmem:[#allocation2 + $0x88] sm:$0xf]
      %v1121 = vld [vmem:[#allocation2 + $0x90] sm:$0xf]
      %v1122 = vld [vmem:[#allocation2 + $0x94] sm:$0xf]
      %v1123 = vld [vmem:[#allocation2 + $0x9c] sm:$0xf]
      %v1124 = vld [vmem:[#allocation2 + $0xa0] sm:$0xf]
      %v1125 = vld [vmem:[#allocation2 + $0xa8] sm:$0xf]
      %v1126 = vld [vmem:[#allocation2 + $0xac] sm:$0xf]
      %v1127 = vld [vmem:[#allocation2 + $0xb4] sm:$0xf]
      %v1128 = vld [vmem:[#allocation2 + $0xb8] sm:$0xf]
      %v1129 = vld [vmem:[%s3] sm:$0xf]
      %v1130 = vld [vmem:[%s3 + $0x4] sm:$0xf]
      %v1131 = vld [vmem:[%s3 + $0x8] sm:$0xf]
      %v1132 = vld [vmem:[%s3 + $0xc] sm:$0xf]
      %v1133 = vld [vmem:[%s3 + $0x10] sm:$0xf]
      %v1134 = vld [vmem:[%s3 + $0x14] sm:$0xf]
      %v1135 = vld [vmem:[%s3 + $0x18] sm:$0xf]
      %v1136 = vld [vmem:[%s3 + $0x1c] sm:$0xf]
      %v1137 = vld [vmem:[%s3 + $0x20] sm:$0xf]
      %v1138 = vld [vmem:[%s3 + $0x24] sm:$0xf]
      %v1139 = vld [vmem:[%s3 + $0x28] sm:$0xf]
      %v1140 = vld [vmem:[%s3 + $0x2c] sm:$0xf]
      %v1141 = vld [vmem:[%s3 + $0x30] sm:$0xf]
      %v1142 = vld [vmem:[%s3 + $0x34] sm:$0xf]
      %v1143 = vld [vmem:[%s3 + $0x38] sm:$0xf]
      %v1144 = vld [vmem:[%s3 + $0x3c] sm:$0xf]
      %v1145 = vld [vmem:[#allocation2 + $0x8] sm:$0x1]
      %v1146 = vld [vmem:[#allocation2 + $0x14] sm:$0x1]
      %v1147 = vld [vmem:[#allocation2 + $0x20] sm:$0x1]
      %v1148 = vld [vmem:[#allocation2 + $0x2c] sm:$0x1]
      %v1149 = vld [vmem:[#allocation2 + $0x38] sm:$0x1]
      %v1150 = vld [vmem:[#allocation2 + $0x44] sm:$0x1]
      %v1151 = vld [vmem:[#allocation2 + $0x50] sm:$0x1]
      %v1152 = vld [vmem:[#allocation2 + $0x5c] sm:$0x1]
      %v1153 = vld [vmem:[#allocation2 + $0x68] sm:$0x1]
      %v1154 = vld [vmem:[#allocation2 + $0x74] sm:$0x1]
      %v1155 = vld [vmem:[#allocation2 + $0x80] sm:$0x1]
      %v1156 = vld [vmem:[#allocation2 + $0x8c] sm:$0x1]
      %v1157 = vld [vmem:[#allocation2 + $0x98] sm:$0x1]
      %v1158 = vld [vmem:[#allocation2 + $0xa4] sm:$0x1]
      %v1159 = vld [vmem:[#allocation2 + $0xb0] sm:$0x1]
      %v1160 = vld [vmem:[#allocation2 + $0xbc] sm:$0x1]
      %vm1161 = vsmask.f32 3328
      %vm1162 = vsmask.f32 7440
      %vm1163 = vmor %vm1161, %vm1162
      %v1165 = vshrl.u32 %v1097, 16
      %v1167 = vrot.slane %v1165, 4
      %v1168 = vshll.u32 %v1097, 16
      %v1170 = vrot.slane %v1168, 5
      %v1171 = vor.u32 %v1167, %v1170
      %v1172 = vrot.slane %v1171, 4
      %v1174 = vshll.u32 %v1098, 16
      %v1176 = vrot.slane %v1174, 5
      %v1177 = vsel %vm1163, %v1172, %v1176
      %v1178 = vshrl.u32 %v1098, 16
      %v1180 = vrot.slane %v1178, 4
      %v1181 = vor.u32 %v1180, %v1176
      %v1182 = vrot.slane %v1181, 4
      %v1184 = vshll.u32 %v1145, 16
      %v1186 = vrot.slane %v1184, 5
      %v1187 = vsel %vm1163, %v1182, %v1186
      %v1189 = vshrl.u32 %v1099, 16
      %v1191 = vrot.slane %v1189, 4
      %v1192 = vshll.u32 %v1099, 16
      %v1194 = vrot.slane %v1192, 5
      %v1195 = vor.u32 %v1191, %v1194
      %v1196 = vrot.slane %v1195, 4
      %v1198 = vshll.u32 %v1100, 16
      %v1200 = vrot.slane %v1198, 5
      %v1201 = vsel %vm1163, %v1196, %v1200
      %v1202 = vshrl.u32 %v1100, 16
      %v1204 = vrot.slane %v1202, 4
      %v1205 = vor.u32 %v1204, %v1200
      %v1206 = vrot.slane %v1205, 4
      %v1208 = vshll.u32 %v1146, 16
      %v1210 = vrot.slane %v1208, 5
      %v1211 = vsel %vm1163, %v1206, %v1210
      %v1213 = vshrl.u32 %v1101, 16
      %v1215 = vrot.slane %v1213, 4
      %v1216 = vshll.u32 %v1101, 16
      %v1218 = vrot.slane %v1216, 5
      %v1219 = vor.u32 %v1215, %v1218
      %v1220 = vrot.slane %v1219, 4
      %v1222 = vshll.u32 %v1102, 16
      %v1224 = vrot.slane %v1222, 5
      %v1225 = vsel %vm1163, %v1220, %v1224
      %v1226 = vshrl.u32 %v1102, 16
      %v1228 = vrot.slane %v1226, 4
      %v1229 = vor.u32 %v1228, %v1224
      %v1230 = vrot.slane %v1229, 4
      %v1232 = vshll.u32 %v1147, 16
      %v1234 = vrot.slane %v1232, 5
      %v1235 = vsel %vm1163, %v1230, %v1234
      %v1237 = vshrl.u32 %v1103, 16
      %v1239 = vrot.slane %v1237, 4
      %v1240 = vshll.u32 %v1103, 16
      %v1242 = vrot.slane %v1240, 5
      %v1243 = vor.u32 %v1239, %v1242
      %v1244 = vrot.slane %v1243, 4
      %v1246 = vshll.u32 %v1104, 16
      %v1248 = vrot.slane %v1246, 5
      %v1249 = vsel %vm1163, %v1244, %v1248
      %v1250 = vshrl.u32 %v1104, 16
      %v1252 = vrot.slane %v1250, 4
      %v1253 = vor.u32 %v1252, %v1248
      %v1254 = vrot.slane %v1253, 4
      %v1256 = vshll.u32 %v1148, 16
      %v1258 = vrot.slane %v1256, 5
      %v1259 = vsel %vm1163, %v1254, %v1258
      %v1261 = vshrl.u32 %v1105, 16
      %v1263 = vrot.slane %v1261, 4
      %v1264 = vshll.u32 %v1105, 16
      %v1266 = vrot.slane %v1264, 5
      %v1267 = vor.u32 %v1263, %v1266
      %v1268 = vrot.slane %v1267, 4
      %v1270 = vshll.u32 %v1106, 16
      %v1272 = vrot.slane %v1270, 5
      %v1273 = vsel %vm1163, %v1268, %v1272
      %v1274 = vshrl.u32 %v1106, 16
      %v1276 = vrot.slane %v1274, 4
      %v1277 = vor.u32 %v1276, %v1272
      %v1278 = vrot.slane %v1277, 4
      %v1280 = vshll.u32 %v1149, 16
      %v1282 = vrot.slane %v1280, 5
      %v1283 = vsel %vm1163, %v1278, %v1282
      %v1285 = vshrl.u32 %v1107, 16
      %v1287 = vrot.slane %v1285, 4
      %v1288 = vshll.u32 %v1107, 16
      %v1290 = vrot.slane %v1288, 5
      %v1291 = vor.u32 %v1287, %v1290
      %v1292 = vrot.slane %v1291, 4
      %v1294 = vshll.u32 %v1108, 16
      %v1296 = vrot.slane %v1294, 5
      %v1297 = vsel %vm1163, %v1292, %v1296
      %v1298 = vshrl.u32 %v1108, 16
      %v1300 = vrot.slane %v1298, 4
      %v1301 = vor.u32 %v1300, %v1296
      %v1302 = vrot.slane %v1301, 4
      %v1304 = vshll.u32 %v1150, 16
      %v1306 = vrot.slane %v1304, 5
      %v1307 = vsel %vm1163, %v1302, %v1306
      %v1309 = vshrl.u32 %v1109, 16
      %v1311 = vrot.slane %v1309, 4
      %v1312 = vshll.u32 %v1109, 16
      %v1314 = vrot.slane %v1312, 5
      %v1315 = vor.u32 %v1311, %v1314
      %v1316 = vrot.slane %v1315, 4
      %v1318 = vshll.u32 %v1110, 16
      %v1320 = vrot.slane %v1318, 5
      %v1321 = vsel %vm1163, %v1316, %v1320
      %v1322 = vshrl.u32 %v1110, 16
      %v1324 = vrot.slane %v1322, 4
      %v1325 = vor.u32 %v1324, %v1320
      %v1326 = vrot.slane %v1325, 4
      %v1328 = vshll.u32 %v1151, 16
      %v1330 = vrot.slane %v1328, 5
      %v1331 = vsel %vm1163, %v1326, %v1330
      %v1333 = vshrl.u32 %v1111, 16
      %v1335 = vrot.slane %v1333, 4
      %v1336 = vshll.u32 %v1111, 16
      %v1338 = vrot.slane %v1336, 5
      %v1339 = vor.u32 %v1335, %v1338
      %v1340 = vrot.slane %v1339, 4
      %v1342 = vshll.u32 %v1112, 16
      %v1344 = vrot.slane %v1342, 5
      %v1345 = vsel %vm1163, %v1340, %v1344
      %v1346 = vshrl.u32 %v1112, 16
      %v1348 = vrot.slane %v1346, 4
      %v1349 = vor.u32 %v1348, %v1344
      %v1350 = vrot.slane %v1349, 4
      %v1352 = vshll.u32 %v1152, 16
      %v1354 = vrot.slane %v1352, 5
      %v1355 = vsel %vm1163, %v1350, %v1354
      %v1357 = vshrl.u32 %v1113, 16
      %v1359 = vrot.slane %v1357, 4
      %v1360 = vshll.u32 %v1113, 16
      %v1362 = vrot.slane %v1360, 5
      %v1363 = vor.u32 %v1359, %v1362
      %v1364 = vrot.slane %v1363, 4
      %v1366 = vshll.u32 %v1114, 16
      %v1368 = vrot.slane %v1366, 5
      %v1369 = vsel %vm1163, %v1364, %v1368
      %v1370 = vshrl.u32 %v1114, 16
      %v1372 = vrot.slane %v1370, 4
      %v1373 = vor.u32 %v1372, %v1368
      %v1374 = vrot.slane %v1373, 4
      %v1376 = vshll.u32 %v1153, 16
      %v1378 = vrot.slane %v1376, 5
      %v1379 = vsel %vm1163, %v1374, %v1378
      %v1381 = vshrl.u32 %v1115, 16
      %v1383 = vrot.slane %v1381, 4
      %v1384 = vshll.u32 %v1115, 16
      %v1386 = vrot.slane %v1384, 5
      %v1387 = vor.u32 %v1383, %v1386
      %v1388 = vrot.slane %v1387, 4
      %v1390 = vshll.u32 %v1116, 16
      %v1392 = vrot.slane %v1390, 5
      %v1393 = vsel %vm1163, %v1388, %v1392
      %v1394 = vshrl.u32 %v1116, 16
      %v1396 = vrot.slane %v1394, 4
      %v1397 = vor.u32 %v1396, %v1392
      %v1398 = vrot.slane %v1397, 4
      %v1400 = vshll.u32 %v1154, 16
      %v1402 = vrot.slane %v1400, 5
      %v1403 = vsel %vm1163, %v1398, %v1402
      %v1405 = vshrl.u32 %v1117, 16
      %v1407 = vrot.slane %v1405, 4
      %v1408 = vshll.u32 %v1117, 16
      %v1410 = vrot.slane %v1408, 5
      %v1411 = vor.u32 %v1407, %v1410
      %v1412 = vrot.slane %v1411, 4
      %v1414 = vshll.u32 %v1118, 16
      %v1416 = vrot.slane %v1414, 5
      %v1417 = vsel %vm1163, %v1412, %v1416
      %v1418 = vshrl.u32 %v1118, 16
      %v1420 = vrot.slane %v1418, 4
      %v1421 = vor.u32 %v1420, %v1416
      %v1422 = vrot.slane %v1421, 4
      %v1424 = vshll.u32 %v1155, 16
      %v1426 = vrot.slane %v1424, 5
      %v1427 = vsel %vm1163, %v1422, %v1426
      %v1429 = vshrl.u32 %v1119, 16
      %v1431 = vrot.slane %v1429, 4
      %v1432 = vshll.u32 %v1119, 16
      %v1434 = vrot.slane %v1432, 5
      %v1435 = vor.u32 %v1431, %v1434
      %v1436 = vrot.slane %v1435, 4
      %v1438 = vshll.u32 %v1120, 16
      %v1440 = vrot.slane %v1438, 5
      %v1441 = vsel %vm1163, %v1436, %v1440
      %v1442 = vshrl.u32 %v1120, 16
      %v1444 = vrot.slane %v1442, 4
      %v1445 = vor.u32 %v1444, %v1440
      %v1446 = vrot.slane %v1445, 4
      %v1448 = vshll.u32 %v1156, 16
      %v1450 = vrot.slane %v1448, 5
      %v1451 = vsel %vm1163, %v1446, %v1450
      %v1453 = vshrl.u32 %v1121, 16
      %v1455 = vrot.slane %v1453, 4
      %v1456 = vshll.u32 %v1121, 16
      %v1458 = vrot.slane %v1456, 5
      %v1459 = vor.u32 %v1455, %v1458
      %v1460 = vrot.slane %v1459, 4
      %v1462 = vshll.u32 %v1122, 16
      %v1464 = vrot.slane %v1462, 5
      %v1465 = vsel %vm1163, %v1460, %v1464
      %v1466 = vshrl.u32 %v1122, 16
      %v1468 = vrot.slane %v1466, 4
      %v1469 = vor.u32 %v1468, %v1464
      %v1470 = vrot.slane %v1469, 4
      %v1472 = vshll.u32 %v1157, 16
      %v1474 = vrot.slane %v1472, 5
      %v1475 = vsel %vm1163, %v1470, %v1474
      %v1477 = vshrl.u32 %v1123, 16
      %v1479 = vrot.slane %v1477, 4
      %v1480 = vshll.u32 %v1123, 16
      %v1482 = vrot.slane %v1480, 5
      %v1483 = vor.u32 %v1479, %v1482
      %v1484 = vrot.slane %v1483, 4
      %v1486 = vshll.u32 %v1124, 16
      %v1488 = vrot.slane %v1486, 5
      %v1489 = vsel %vm1163, %v1484, %v1488
      %v1490 = vshrl.u32 %v1124, 16
      %v1492 = vrot.slane %v1490, 4
      %v1493 = vor.u32 %v1492, %v1488
      %v1494 = vrot.slane %v1493, 4
      %v1496 = vshll.u32 %v1158, 16
      %v1498 = vrot.slane %v1496, 5
      %v1499 = vsel %vm1163, %v1494, %v1498
      %v1501 = vshrl.u32 %v1125, 16
      %v1503 = vrot.slane %v1501, 4
      %v1504 = vshll.u32 %v1125, 16
      %v1506 = vrot.slane %v1504, 5
      %v1507 = vor.u32 %v1503, %v1506
      %v1508 = vrot.slane %v1507, 4
      %v1510 = vshll.u32 %v1126, 16
      %v1512 = vrot.slane %v1510, 5
      %v1513 = vsel %vm1163, %v1508, %v1512
      %v1514 = vshrl.u32 %v1126, 16
      %v1516 = vrot.slane %v1514, 4
      %v1517 = vor.u32 %v1516, %v1512
      %v1518 = vrot.slane %v1517, 4
      %v1520 = vshll.u32 %v1159, 16
      %v1522 = vrot.slane %v1520, 5
      %v1523 = vsel %vm1163, %v1518, %v1522
      %v1525 = vshrl.u32 %v1127, 16
      %v1527 = vrot.slane %v1525, 4
      %v1528 = vshll.u32 %v1127, 16
      %v1530 = vrot.slane %v1528, 5
      %v1531 = vor.u32 %v1527, %v1530
      %v1532 = vrot.slane %v1531, 4
      %v1534 = vshll.u32 %v1128, 16
      %v1536 = vrot.slane %v1534, 5
      %v1537 = vsel %vm1163, %v1532, %v1536
      %v1538 = vshrl.u32 %v1128, 16
      %v1540 = vrot.slane %v1538, 4
      %v1541 = vor.u32 %v1540, %v1536
      %v1542 = vrot.slane %v1541, 4
      %v1544 = vshll.u32 %v1160, 16
      %v1546 = vrot.slane %v1544, 5
      %v1547 = vsel %vm1163, %v1542, %v1546
      %v1548 = vld [vmem:[%s3 + $0x40] sm:$0xf]
      %v1549 = vld [vmem:[%s3 + $0x44] sm:$0xf]
      %v1550 = vld [vmem:[%s3 + $0x48] sm:$0xf]
      %v1551 = vld [vmem:[%s3 + $0x4c] sm:$0xf]
      %v1552 = vld [vmem:[%s3 + $0x50] sm:$0xf]
      %v1553 = vld [vmem:[%s3 + $0x54] sm:$0xf]
      %v1554 = vld [vmem:[%s3 + $0x58] sm:$0xf]
      %v1555 = vld [vmem:[%s3 + $0x5c] sm:$0xf]
      %v1556 = vld [vmem:[%s3 + $0x60] sm:$0xf]
      %v1557 = vld [vmem:[%s3 + $0x64] sm:$0xf]
      %v1558 = vld [vmem:[%s3 + $0x68] sm:$0xf]
      %v1559 = vld [vmem:[%s3 + $0x6c] sm:$0xf]
      %v1560 = vld [vmem:[%s3 + $0x70] sm:$0xf]
      %v1561 = vld [vmem:[%s3 + $0x74] sm:$0xf]
      %v1562 = vld [vmem:[%s3 + $0x78] sm:$0xf]
      %v1563 = vld [vmem:[%s3 + $0x7c] sm:$0xf]
      %v1564 = vunpack.c.l.b16 %v1177
      %v1565 = vunpack.c.l.b16 %v1187
      %v1566 = vunpack.c.l.b16 %v1201
      %v1567 = vunpack.c.l.b16 %v1211
      %v1568 = vunpack.c.l.b16 %v1225
      %v1569 = vunpack.c.l.b16 %v1235
      %v1570 = vunpack.c.l.b16 %v1249
      %v1571 = vunpack.c.l.b16 %v1259
      %v1572 = vunpack.c.l.b16 %v1273
      %v1573 = vunpack.c.l.b16 %v1283
      %v1574 = vunpack.c.l.b16 %v1297
      %v1575 = vunpack.c.l.b16 %v1307
      %v1576 = vunpack.c.l.b16 %v1321
      %v1577 = vunpack.c.l.b16 %v1331
      %v1578 = vunpack.c.l.b16 %v1345
      %v1579 = vunpack.c.l.b16 %v1355
      %v1580 = vunpack.c.l.b16 %v1369
      %v1581 = vunpack.c.l.b16 %v1379
      %v1582 = vunpack.c.l.b16 %v1393
      %v1583 = vunpack.c.l.b16 %v1403
      %v1584 = vunpack.c.l.b16 %v1417
      %v1585 = vunpack.c.l.b16 %v1427
      %v1586 = vunpack.c.l.b16 %v1441
      %v1587 = vunpack.c.l.b16 %v1451
      %v1588 = vunpack.c.l.b16 %v1465
      %v1589 = vunpack.c.l.b16 %v1475
      %v1590 = vunpack.c.l.b16 %v1489
      %v1591 = vunpack.c.l.b16 %v1499
      %v1592 = vunpack.c.l.b16 %v1513
      %v1593 = vunpack.c.l.b16 %v1523
      %v1594 = vunpack.c.l.b16 %v1537
      %v1595 = vunpack.c.l.b16 %v1547
      %v1596 = vpack.c.b16 %v1565, %v1564
      %v1597 = vpack.c.b16 %v1567, %v1566
      %v1598 = vpack.c.b16 %v1569, %v1568
      %v1599 = vpack.c.b16 %v1571, %v1570
      %v1600 = vpack.c.b16 %v1573, %v1572
      %v1601 = vpack.c.b16 %v1575, %v1574
      %v1602 = vpack.c.b16 %v1577, %v1576
      %v1603 = vpack.c.b16 %v1579, %v1578
      %v1604 = vpack.c.b16 %v1581, %v1580
      %v1605 = vpack.c.b16 %v1583, %v1582
      %v1606 = vpack.c.b16 %v1585, %v1584
      %v1607 = vpack.c.b16 %v1587, %v1586
      %v1608 = vpack.c.b16 %v1589, %v1588
      %v1609 = vpack.c.b16 %v1591, %v1590
      %v1610 = vpack.c.b16 %v1593, %v1592
      %v1611 = vpack.c.b16 %v1595, %v1594
      %v1644 = vunpack.c.l.b16 %v1548
      %v1645 = vunpack.c.l.b16 %v1549
      %v1646 = vunpack.c.l.b16 %v1550
      %v1647 = vunpack.c.l.b16 %v1551
      %v1648 = vunpack.c.l.b16 %v1552
      %v1649 = vunpack.c.l.b16 %v1553
      %v1650 = vunpack.c.l.b16 %v1554
      %v1651 = vunpack.c.l.b16 %v1555
      %v1652 = vunpack.c.l.b16 %v1556
      %v1653 = vunpack.c.l.b16 %v1557
      %v1654 = vunpack.c.l.b16 %v1558
      %v1655 = vunpack.c.l.b16 %v1559
      %v1656 = vunpack.c.l.b16 %v1560
      %v1657 = vunpack.c.l.b16 %v1561
      %v1658 = vunpack.c.l.b16 %v1562
      %v1659 = vunpack.c.l.b16 %v1563
      %v1660 = vpack.c.b16 %v1645, %v1644
      %v1661 = vpack.c.b16 %v1647, %v1646
      %v1662 = vpack.c.b16 %v1649, %v1648
      %v1663 = vpack.c.b16 %v1651, %v1650
      %v1664 = vpack.c.b16 %v1653, %v1652
      %v1665 = vpack.c.b16 %v1655, %v1654
      %v1666 = vpack.c.b16 %v1657, %v1656
      %v1667 = vpack.c.b16 %v1659, %v1658
      %1676 = vmatprep.subr.bf16.mxu0 0
      %1677 = vmatpush1.bf16.msra.mxu0 %v1667
      %1678 = vmatprep.subr.bf16.mxu0 0
      %1679 = vmatpush1.bf16.msra.mxu0 %v1666
      %1680 = vmatprep.subr.bf16.mxu0 0
      %1681 = vmatpush1.bf16.msra.mxu0 %v1665
      %1682 = vmatprep.subr.bf16.mxu0 0
      %1683 = vmatpush1.bf16.msra.mxu0 %v1664
      %1684 = vmatprep.subr.bf16.mxu0 0
      %1685 = vmatpush1.bf16.msra.mxu0 %v1663
      %1686 = vmatprep.subr.bf16.mxu0 0
      %1687 = vmatpush1.bf16.msra.mxu0 %v1662
      %1688 = vmatprep.subr.bf16.mxu0 0
      %1689 = vmatpush1.bf16.msra.mxu0 %v1661
      %1690 = vmatprep.subr.bf16.mxu0 0
      %1691 = vmatpush1.bf16.msra.mxu0 %v1660
      %1692 = vmatprep.subr.bf16.mxu0 0
      %1693 = vmatpush2.bf16.msra.mxu0 0
      %1694 = vmatprep.subr.bf16.mxu0 0
      %1695 = vmatpush2.bf16.msra.mxu0 0
      %1696 = vmatprep.subr.bf16.mxu0 0
      %1697 = vmatpush2.bf16.msra.mxu0 0
      %1698 = vmatprep.subr.bf16.mxu0 0
      %1699 = vmatpush2.bf16.msra.mxu0 0
      %1700 = vmatprep.subr.bf16.mxu0 0
      %1701 = vmatpush2.bf16.msra.mxu0 0
      %1702 = vmatprep.subr.bf16.mxu0 0
      %1703 = vmatpush2.bf16.msra.mxu0 0
      %1704 = vmatprep.subr.bf16.mxu0 0
      %1705 = vmatpush2.bf16.msra.mxu0 0
      %1706 = vmatprep.subr.bf16.mxu0 0
      %1707 = vmatpush2.bf16.msra.mxu0 0
      %1708 = vmatprep.mubr.bf16.mxu0 0
      %1709 = vmatmul.mubr.bf16.gmra.mxu0 %v1596
      %v1710 = vpop.f32.mrf.mxu0
      %v1711 = vadd.f32 0.0, %v1710
      %v1712 = vpop.f32.mrf.mxu0
      %v1713 = vpop.f32.mrf.mxu0
      %v1714 = vadd.f32 0.0, %v1713
      %v1715 = vpop.f32.mrf.mxu0
      %1716 = vmatprep.mubr.bf16.mxu0 0
      %1717 = vmatmul.mubr.bf16.gmra.mxu0 %v1597
      %v1718 = vpop.f32.mrf.mxu0
      %v1719 = vadd.f32 0.0, %v1718
      %v1720 = vpop.f32.mrf.mxu0
      %v1721 = vpop.f32.mrf.mxu0
      %v1722 = vadd.f32 0.0, %v1721
      %v1723 = vpop.f32.mrf.mxu0
      %1724 = vmatprep.mubr.bf16.mxu0 0
      %1725 = vmatmul.mubr.bf16.gmra.mxu0 %v1598
      %v1726 = vpop.f32.mrf.mxu0
      %v1727 = vadd.f32 0.0, %v1726
      %v1728 = vpop.f32.mrf.mxu0
      %v1729 = vpop.f32.mrf.mxu0
      %v1730 = vadd.f32 0.0, %v1729
      %v1731 = vpop.f32.mrf.mxu0
      %1732 = vmatprep.mubr.bf16.mxu0 0
      %1733 = vmatmul.mubr.bf16.gmra.mxu0 %v1599
      %v1734 = vpop.f32.mrf.mxu0
      %v1735 = vadd.f32 0.0, %v1734
      %v1736 = vpop.f32.mrf.mxu0
      %v1737 = vpop.f32.mrf.mxu0
      %v1738 = vadd.f32 0.0, %v1737
      %v1739 = vpop.f32.mrf.mxu0
      %1740 = vmatprep.mubr.bf16.mxu0 0
      %1741 = vmatmul.mubr.bf16.gmra.mxu0 %v1600
      %v1742 = vpop.f32.mrf.mxu0
      %v1743 = vadd.f32 0.0, %v1742
      %v1744 = vpop.f32.mrf.mxu0
      %v1745 = vpop.f32.mrf.mxu0
      %v1746 = vadd.f32 0.0, %v1745
      %v1747 = vpop.f32.mrf.mxu0
      %1748 = vmatprep.mubr.bf16.mxu0 0
      %1749 = vmatmul.mubr.bf16.gmra.mxu0 %v1601
      %v1750 = vpop.f32.mrf.mxu0
      %v1751 = vadd.f32 0.0, %v1750
      %v1752 = vpop.f32.mrf.mxu0
      %v1753 = vpop.f32.mrf.mxu0
      %v1754 = vadd.f32 0.0, %v1753
      %v1755 = vpop.f32.mrf.mxu0
      %1756 = vmatprep.mubr.bf16.mxu0 0
      %1757 = vmatmul.mubr.bf16.gmra.mxu0 %v1602
      %v1758 = vpop.f32.mrf.mxu0
      %v1759 = vadd.f32 0.0, %v1758
      %v1760 = vpop.f32.mrf.mxu0
      %v1761 = vpop.f32.mrf.mxu0
      %v1762 = vadd.f32 0.0, %v1761
      %v1763 = vpop.f32.mrf.mxu0
      %1764 = vmatprep.mubr.bf16.mxu0 0
      %1765 = vmatmul.mubr.bf16.gmra.mxu0 %v1603
      %v1766 = vpop.f32.mrf.mxu0
      %v1767 = vadd.f32 0.0, %v1766
      %v1768 = vpop.f32.mrf.mxu0
      %v1769 = vpop.f32.mrf.mxu0
      %v1770 = vadd.f32 0.0, %v1769
      %v1771 = vpop.f32.mrf.mxu0
      %1772 = vmatprep.mubr.bf16.mxu0 0
      %1773 = vmatmul.mubr.bf16.gmra.mxu0 %v1604
      %v1774 = vpop.f32.mrf.mxu0
      %v1775 = vadd.f32 0.0, %v1774
      %v1776 = vpop.f32.mrf.mxu0
      %v1777 = vpop.f32.mrf.mxu0
      %v1778 = vadd.f32 0.0, %v1777
      %v1779 = vpop.f32.mrf.mxu0
      %1780 = vmatprep.mubr.bf16.mxu0 0
      %1781 = vmatmul.mubr.bf16.gmra.mxu0 %v1605
      %v1782 = vpop.f32.mrf.mxu0
      %v1783 = vadd.f32 0.0, %v1782
      %v1784 = vpop.f32.mrf.mxu0
      %v1785 = vpop.f32.mrf.mxu0
      %v1786 = vadd.f32 0.0, %v1785
      %v1787 = vpop.f32.mrf.mxu0
      %1788 = vmatprep.mubr.bf16.mxu0 0
      %1789 = vmatmul.mubr.bf16.gmra.mxu0 %v1606
      %v1790 = vpop.f32.mrf.mxu0
      %v1791 = vadd.f32 0.0, %v1790
      %v1792 = vpop.f32.mrf.mxu0
      %v1793 = vpop.f32.mrf.mxu0
      %v1794 = vadd.f32 0.0, %v1793
      %v1795 = vpop.f32.mrf.mxu0
      %1796 = vmatprep.mubr.bf16.mxu0 0
      %1797 = vmatmul.mubr.bf16.gmra.mxu0 %v1607
      %v1798 = vpop.f32.mrf.mxu0
      %v1799 = vadd.f32 0.0, %v1798
      %v1800 = vpop.f32.mrf.mxu0
      %v1801 = vpop.f32.mrf.mxu0
      %v1802 = vadd.f32 0.0, %v1801
      %v1803 = vpop.f32.mrf.mxu0
      %1804 = vmatprep.mubr.bf16.mxu0 0
      %1805 = vmatmul.mubr.bf16.gmra.mxu0 %v1608
      %v1806 = vpop.f32.mrf.mxu0
      %v1807 = vadd.f32 0.0, %v1806
      %v1808 = vpop.f32.mrf.mxu0
      %v1809 = vpop.f32.mrf.mxu0
      %v1810 = vadd.f32 0.0, %v1809
      %v1811 = vpop.f32.mrf.mxu0
      %1812 = vmatprep.mubr.bf16.mxu0 0
      %1813 = vmatmul.mubr.bf16.gmra.mxu0 %v1609
      %v1814 = vpop.f32.mrf.mxu0
      %v1815 = vadd.f32 0.0, %v1814
      %v1816 = vpop.f32.mrf.mxu0
      %v1817 = vpop.f32.mrf.mxu0
      %v1818 = vadd.f32 0.0, %v1817
      %v1819 = vpop.f32.mrf.mxu0
      %1820 = vmatprep.mubr.bf16.mxu0 0
      %1821 = vmatmul.mubr.bf16.gmra.mxu0 %v1610
      %v1822 = vpop.f32.mrf.mxu0
      %v1823 = vadd.f32 0.0, %v1822
      %v1824 = vpop.f32.mrf.mxu0
      %v1825 = vpop.f32.mrf.mxu0
      %v1826 = vadd.f32 0.0, %v1825
      %v1827 = vpop.f32.mrf.mxu0
      %1828 = vmatprep.mubr.bf16.mxu0 0
      %1829 = vmatmul.mubr.bf16.gmra.mxu0 %v1611
      %v1830 = vpop.f32.mrf.mxu0
      %v1831 = vadd.f32 0.0, %v1830
      %v1832 = vpop.f32.mrf.mxu0
      %v1833 = vpop.f32.mrf.mxu0
      %v1834 = vadd.f32 0.0, %v1833
      %v1835 = vpop.f32.mrf.mxu0
      %1836 = vdwg.mxu0
      %v1869 = vunpack.c.l.b16 %v1097
      %v1870 = vunpack.c.l.b16 %v1098
      %v1871 = vunpack.c.l.b16 %v1099
      %v1872 = vunpack.c.l.b16 %v1100
      %v1873 = vunpack.c.l.b16 %v1101
      %v1874 = vunpack.c.l.b16 %v1102
      %v1875 = vunpack.c.l.b16 %v1103
      %v1876 = vunpack.c.l.b16 %v1104
      %v1877 = vunpack.c.l.b16 %v1105
      %v1878 = vunpack.c.l.b16 %v1106
      %v1879 = vunpack.c.l.b16 %v1107
      %v1880 = vunpack.c.l.b16 %v1108
      %v1881 = vunpack.c.l.b16 %v1109
      %v1882 = vunpack.c.l.b16 %v1110
      %v1883 = vunpack.c.l.b16 %v1111
      %v1884 = vunpack.c.l.b16 %v1112
      %v1885 = vunpack.c.l.b16 %v1113
      %v1886 = vunpack.c.l.b16 %v1114
      %v1887 = vunpack.c.l.b16 %v1115
      %v1888 = vunpack.c.l.b16 %v1116
      %v1889 = vunpack.c.l.b16 %v1117
      %v1890 = vunpack.c.l.b16 %v1118
      %v1891 = vunpack.c.l.b16 %v1119
      %v1892 = vunpack.c.l.b16 %v1120
      %v1893 = vunpack.c.l.b16 %v1121
      %v1894 = vunpack.c.l.b16 %v1122
      %v1895 = vunpack.c.l.b16 %v1123
      %v1896 = vunpack.c.l.b16 %v1124
      %v1897 = vunpack.c.l.b16 %v1125
      %v1898 = vunpack.c.l.b16 %v1126
      %v1899 = vunpack.c.l.b16 %v1127
      %v1900 = vunpack.c.l.b16 %v1128
      %v1901 = vpack.c.b16 %v1870, %v1869
      %v1902 = vpack.c.b16 %v1872, %v1871
      %v1903 = vpack.c.b16 %v1874, %v1873
      %v1904 = vpack.c.b16 %v1876, %v1875
      %v1905 = vpack.c.b16 %v1878, %v1877
      %v1906 = vpack.c.b16 %v1880, %v1879
      %v1907 = vpack.c.b16 %v1882, %v1881
      %v1908 = vpack.c.b16 %v1884, %v1883
      %v1909 = vpack.c.b16 %v1886, %v1885
      %v1910 = vpack.c.b16 %v1888, %v1887
      %v1911 = vpack.c.b16 %v1890, %v1889
      %v1912 = vpack.c.b16 %v1892, %v1891
      %v1913 = vpack.c.b16 %v1894, %v1893
      %v1914 = vpack.c.b16 %v1896, %v1895
      %v1915 = vpack.c.b16 %v1898, %v1897
      %v1916 = vpack.c.b16 %v1900, %v1899
      %v1949 = vunpack.c.l.b16 %v1129
      %v1950 = vunpack.c.l.b16 %v1130
      %v1951 = vunpack.c.l.b16 %v1131
      %v1952 = vunpack.c.l.b16 %v1132
      %v1953 = vunpack.c.l.b16 %v1133
      %v1954 = vunpack.c.l.b16 %v1134
      %v1955 = vunpack.c.l.b16 %v1135
      %v1956 = vunpack.c.l.b16 %v1136
      %v1957 = vunpack.c.l.b16 %v1137
      %v1958 = vunpack.c.l.b16 %v1138
      %v1959 = vunpack.c.l.b16 %v1139
      %v1960 = vunpack.c.l.b16 %v1140
      %v1961 = vunpack.c.l.b16 %v1141
      %v1962 = vunpack.c.l.b16 %v1142
      %v1963 = vunpack.c.l.b16 %v1143
      %v1964 = vunpack.c.l.b16 %v1144
      %v1965 = vpack.c.b16 %v1950, %v1949
      %v1966 = vpack.c.b16 %v1952, %v1951
      %v1967 = vpack.c.b16 %v1954, %v1953
      %v1968 = vpack.c.b16 %v1956, %v1955
      %v1969 = vpack.c.b16 %v1958, %v1957
      %v1970 = vpack.c.b16 %v1960, %v1959
      %v1971 = vpack.c.b16 %v1962, %v1961
      %v1972 = vpack.c.b16 %v1964, %v1963
      %1981 = vmatprep.subr.bf16.mxu0 0
      %1982 = vmatpush1.bf16.msra.mxu0 %v1972
      %1983 = vmatprep.subr.bf16.mxu0 0
      %1984 = vmatpush1.bf16.msra.mxu0 %v1971
      %1985 = vmatprep.subr.bf16.mxu0 0
      %1986 = vmatpush1.bf16.msra.mxu0 %v1970
      %1987 = vmatprep.subr.bf16.mxu0 0
      %1988 = vmatpush1.bf16.msra.mxu0 %v1969
      %1989 = vmatprep.subr.bf16.mxu0 0
      %1990 = vmatpush1.bf16.msra.mxu0 %v1968
      %1991 = vmatprep.subr.bf16.mxu0 0
      %1992 = vmatpush1.bf16.msra.mxu0 %v1967
      %1993 = vmatprep.subr.bf16.mxu0 0
      %1994 = vmatpush1.bf16.msra.mxu0 %v1966
      %1995 = vmatprep.subr.bf16.mxu0 0
      %1996 = vmatpush1.bf16.msra.mxu0 %v1965
      %1997 = vmatprep.subr.bf16.mxu0 0
      %1998 = vmatpush2.bf16.msra.mxu0 0
      %1999 = vmatprep.subr.bf16.mxu0 0
      %2000 = vmatpush2.bf16.msra.mxu0 0
      %2001 = vmatprep.subr.bf16.mxu0 0
      %2002 = vmatpush2.bf16.msra.mxu0 0
      %2003 = vmatprep.subr.bf16.mxu0 0
      %2004 = vmatpush2.bf16.msra.mxu0 0
      %2005 = vmatprep.subr.bf16.mxu0 0
      %2006 = vmatpush2.bf16.msra.mxu0 0
      %2007 = vmatprep.subr.bf16.mxu0 0
      %2008 = vmatpush2.bf16.msra.mxu0 0
      %2009 = vmatprep.subr.bf16.mxu0 0
      %2010 = vmatpush2.bf16.msra.mxu0 0
      %2011 = vmatprep.subr.bf16.mxu0 0
      %2012 = vmatpush2.bf16.msra.mxu0 0
      %2013 = vmatprep.mubr.bf16.mxu0 0
      %2014 = vmatmul.mubr.bf16.gmra.mxu0 %v1901
      %v2015 = vpop.f32.mrf.mxu0
      %v2016 = vadd.f32 %v1711, %v2015
      %v2017 = vpop.f32.mrf.mxu0
      %v2018 = vpop.f32.mrf.mxu0
      %v2019 = vadd.f32 %v1714, %v2018
      %v2020 = vpop.f32.mrf.mxu0
      %2021 = vmatprep.mubr.bf16.mxu0 0
      %2022 = vmatmul.mubr.bf16.gmra.mxu0 %v1902
      %v2023 = vpop.f32.mrf.mxu0
      %v2024 = vadd.f32 %v1719, %v2023
      %v2025 = vpop.f32.mrf.mxu0
      %v2026 = vpop.f32.mrf.mxu0
      %v2027 = vadd.f32 %v1722, %v2026
      %v2028 = vpop.f32.mrf.mxu0
      %2029 = vmatprep.mubr.bf16.mxu0 0
      %2030 = vmatmul.mubr.bf16.gmra.mxu0 %v1903
      %v2031 = vpop.f32.mrf.mxu0
      %v2032 = vadd.f32 %v1727, %v2031
      %v2033 = vpop.f32.mrf.mxu0
      %v2034 = vpop.f32.mrf.mxu0
      %v2035 = vadd.f32 %v1730, %v2034
      %v2036 = vpop.f32.mrf.mxu0
      %2037 = vmatprep.mubr.bf16.mxu0 0
      %2038 = vmatmul.mubr.bf16.gmra.mxu0 %v1904
      %v2039 = vpop.f32.mrf.mxu0
      %v2040 = vadd.f32 %v1735, %v2039
      %v2041 = vpop.f32.mrf.mxu0
      %v2042 = vpop.f32.mrf.mxu0
      %v2043 = vadd.f32 %v1738, %v2042
      %v2044 = vpop.f32.mrf.mxu0
      %2045 = vmatprep.mubr.bf16.mxu0 0
      %2046 = vmatmul.mubr.bf16.gmra.mxu0 %v1905
      %v2047 = vpop.f32.mrf.mxu0
      %v2048 = vadd.f32 %v1743, %v2047
      %v2049 = vpop.f32.mrf.mxu0
      %v2050 = vpop.f32.mrf.mxu0
      %v2051 = vadd.f32 %v1746, %v2050
      %v2052 = vpop.f32.mrf.mxu0
      %2053 = vmatprep.mubr.bf16.mxu0 0
      %2054 = vmatmul.mubr.bf16.gmra.mxu0 %v1906
      %v2055 = vpop.f32.mrf.mxu0
      %v2056 = vadd.f32 %v1751, %v2055
      %v2057 = vpop.f32.mrf.mxu0
      %v2058 = vpop.f32.mrf.mxu0
      %v2059 = vadd.f32 %v1754, %v2058
      %v2060 = vpop.f32.mrf.mxu0
      %2061 = vmatprep.mubr.bf16.mxu0 0
      %2062 = vmatmul.mubr.bf16.gmra.mxu0 %v1907
      %v2063 = vpop.f32.mrf.mxu0
      %v2064 = vadd.f32 %v1759, %v2063
      %v2065 = vpop.f32.mrf.mxu0
      %v2066 = vpop.f32.mrf.mxu0
      %v2067 = vadd.f32 %v1762, %v2066
      %v2068 = vpop.f32.mrf.mxu0
      %2069 = vmatprep.mubr.bf16.mxu0 0
      %2070 = vmatmul.mubr.bf16.gmra.mxu0 %v1908
      %v2071 = vpop.f32.mrf.mxu0
      %v2072 = vadd.f32 %v1767, %v2071
      %v2073 = vpop.f32.mrf.mxu0
      %v2074 = vpop.f32.mrf.mxu0
      %v2075 = vadd.f32 %v1770, %v2074
      %v2076 = vpop.f32.mrf.mxu0
      %2077 = vmatprep.mubr.bf16.mxu0 0
      %2078 = vmatmul.mubr.bf16.gmra.mxu0 %v1909
      %v2079 = vpop.f32.mrf.mxu0
      %v2080 = vadd.f32 %v1775, %v2079
      %v2081 = vpop.f32.mrf.mxu0
      %v2082 = vpop.f32.mrf.mxu0
      %v2083 = vadd.f32 %v1778, %v2082
      %v2084 = vpop.f32.mrf.mxu0
      %2085 = vmatprep.mubr.bf16.mxu0 0
      %2086 = vmatmul.mubr.bf16.gmra.mxu0 %v1910
      %v2087 = vpop.f32.mrf.mxu0
      %v2088 = vadd.f32 %v1783, %v2087
      %v2089 = vpop.f32.mrf.mxu0
      %v2090 = vpop.f32.mrf.mxu0
      %v2091 = vadd.f32 %v1786, %v2090
      %v2092 = vpop.f32.mrf.mxu0
      %2093 = vmatprep.mubr.bf16.mxu0 0
      %2094 = vmatmul.mubr.bf16.gmra.mxu0 %v1911
      %v2095 = vpop.f32.mrf.mxu0
      %v2096 = vadd.f32 %v1791, %v2095
      %v2097 = vpop.f32.mrf.mxu0
      %v2098 = vpop.f32.mrf.mxu0
      %v2099 = vadd.f32 %v1794, %v2098
      %v2100 = vpop.f32.mrf.mxu0
      %2101 = vmatprep.mubr.bf16.mxu0 0
      %2102 = vmatmul.mubr.bf16.gmra.mxu0 %v1912
      %v2103 = vpop.f32.mrf.mxu0
      %v2104 = vadd.f32 %v1799, %v2103
      %v2105 = vpop.f32.mrf.mxu0
      %v2106 = vpop.f32.mrf.mxu0
      %v2107 = vadd.f32 %v1802, %v2106
      %v2108 = vpop.f32.mrf.mxu0
      %2109 = vmatprep.mubr.bf16.mxu0 0
      %2110 = vmatmul.mubr.bf16.gmra.mxu0 %v1913
      %v2111 = vpop.f32.mrf.mxu0
      %v2112 = vadd.f32 %v1807, %v2111
      %v2113 = vpop.f32.mrf.mxu0
      %v2114 = vpop.f32.mrf.mxu0
      %v2115 = vadd.f32 %v1810, %v2114
      %v2116 = vpop.f32.mrf.mxu0
      %2117 = vmatprep.mubr.bf16.mxu0 0
      %2118 = vmatmul.mubr.bf16.gmra.mxu0 %v1914
      %v2119 = vpop.f32.mrf.mxu0
      %v2120 = vadd.f32 %v1815, %v2119
      %v2121 = vpop.f32.mrf.mxu0
      %v2122 = vpop.f32.mrf.mxu0
      %v2123 = vadd.f32 %v1818, %v2122
      %v2124 = vpop.f32.mrf.mxu0
      %2125 = vmatprep.mubr.bf16.mxu0 0
      %2126 = vmatmul.mubr.bf16.gmra.mxu0 %v1915
      %v2127 = vpop.f32.mrf.mxu0
      %v2128 = vadd.f32 %v1823, %v2127
      %v2129 = vpop.f32.mrf.mxu0
      %v2130 = vpop.f32.mrf.mxu0
      %v2131 = vadd.f32 %v1826, %v2130
      %v2132 = vpop.f32.mrf.mxu0
      %2133 = vmatprep.mubr.bf16.mxu0 0
      %2134 = vmatmul.mubr.bf16.gmra.mxu0 %v1916
      %v2135 = vpop.f32.mrf.mxu0
      %v2136 = vadd.f32 %v1831, %v2135
      %v2137 = vpop.f32.mrf.mxu0
      %v2138 = vpop.f32.mrf.mxu0
      %v2139 = vadd.f32 %v1834, %v2138
      %v2140 = vpop.f32.mrf.mxu0
      %2141 = vdwg.mxu0
      %v2142 = vld [vmem:[#allocation2] sm:$0xe]
      %v2143 = vld [vmem:[#allocation2 + $0xc] sm:$0xe]
      %v2144 = vld [vmem:[#allocation2 + $0x18] sm:$0xe]
      %v2145 = vld [vmem:[#allocation2 + $0x24] sm:$0xe]
      %v2146 = vld [vmem:[#allocation2 + $0x30] sm:$0xe]
      %v2147 = vld [vmem:[#allocation2 + $0x3c] sm:$0xe]
      %v2148 = vld [vmem:[#allocation2 + $0x48] sm:$0xe]
      %v2149 = vld [vmem:[#allocation2 + $0x54] sm:$0xe]
      %v2150 = vld [vmem:[#allocation2 + $0x60] sm:$0xe]
      %v2151 = vld [vmem:[#allocation2 + $0x6c] sm:$0xe]
      %v2152 = vld [vmem:[#allocation2 + $0x78] sm:$0xe]
      %v2153 = vld [vmem:[#allocation2 + $0x84] sm:$0xe]
      %v2154 = vld [vmem:[#allocation2 + $0x90] sm:$0xe]
      %v2155 = vld [vmem:[#allocation2 + $0x9c] sm:$0xe]
      %v2156 = vld [vmem:[#allocation2 + $0xa8] sm:$0xe]
      %v2157 = vld [vmem:[#allocation2 + $0xb4] sm:$0xe]
      %vm2190 = vcmask 1042432
      %vm2191 = vcmask 1046532
      %vm2192 = vmor %vm2190, %vm2191
      %v2193 = vrot.slane %v2142, 5
      %v2194 = vrot.slane %v2193, 4
      %v2195 = vrot.slane %v1098, 5
      %v2196 = vsel %vm2192, %v2194, %v2195
      %v2197 = vrot.slane %v2195, 4
      %v2198 = vrot.slane %v1145, 5
      %v2199 = vsel %vm2192, %v2197, %v2198
      %v2200 = vrot.slane %v2143, 5
      %v2201 = vrot.slane %v2200, 4
      %v2202 = vrot.slane %v1100, 5
      %v2203 = vsel %vm2192, %v2201, %v2202
      %v2204 = vrot.slane %v2202, 4
      %v2205 = vrot.slane %v1146, 5
      %v2206 = vsel %vm2192, %v2204, %v2205
      %v2207 = vrot.slane %v2144, 5
      %v2208 = vrot.slane %v2207, 4
      %v2209 = vrot.slane %v1102, 5
      %v2210 = vsel %vm2192, %v2208, %v2209
      %v2211 = vrot.slane %v2209, 4
      %v2212 = vrot.slane %v1147, 5
      %v2213 = vsel %vm2192, %v2211, %v2212
      %v2214 = vrot.slane %v2145, 5
      %v2215 = vrot.slane %v2214, 4
      %v2216 = vrot.slane %v1104, 5
      %v2217 = vsel %vm2192, %v2215, %v2216
      %v2218 = vrot.slane %v2216, 4
      %v2219 = vrot.slane %v1148, 5
      %v2220 = vsel %vm2192, %v2218, %v2219
      %v2221 = vrot.slane %v2146, 5
      %v2222 = vrot.slane %v2221, 4
      %v2223 = vrot.slane %v1106, 5
      %v2224 = vsel %vm2192, %v2222, %v2223
      %v2225 = vrot.slane %v2223, 4
      %v2226 = vrot.slane %v1149, 5
      %v2227 = vsel %vm2192, %v2225, %v2226
      %v2228 = vrot.slane %v2147, 5
      %v2229 = vrot.slane %v2228, 4
      %v2230 = vrot.slane %v1108, 5
      %v2231 = vsel %vm2192, %v2229, %v2230
      %v2232 = vrot.slane %v2230, 4
      %v2233 = vrot.slane %v1150, 5
      %v2234 = vsel %vm2192, %v2232, %v2233
      %v2235 = vrot.slane %v2148, 5
      %v2236 = vrot.slane %v2235, 4
      %v2237 = vrot.slane %v1110, 5
      %v2238 = vsel %vm2192, %v2236, %v2237
      %v2239 = vrot.slane %v2237, 4
      %v2240 = vrot.slane %v1151, 5
      %v2241 = vsel %vm2192, %v2239, %v2240
      %v2242 = vrot.slane %v2149, 5
      %v2243 = vrot.slane %v2242, 4
      %v2244 = vrot.slane %v1112, 5
      %v2245 = vsel %vm2192, %v2243, %v2244
      %v2246 = vrot.slane %v2244, 4
      %v2247 = vrot.slane %v1152, 5
      %v2248 = vsel %vm2192, %v2246, %v2247
      %v2249 = vrot.slane %v2150, 5
      %v2250 = vrot.slane %v2249, 4
      %v2251 = vrot.slane %v1114, 5
      %v2252 = vsel %vm2192, %v2250, %v2251
      %v2253 = vrot.slane %v2251, 4
      %v2254 = vrot.slane %v1153, 5
      %v2255 = vsel %vm2192, %v2253, %v2254
      %v2256 = vrot.slane %v2151, 5
      %v2257 = vrot.slane %v2256, 4
      %v2258 = vrot.slane %v1116, 5
      %v2259 = vsel %vm2192, %v2257, %v2258
      %v2260 = vrot.slane %v2258, 4
      %v2261 = vrot.slane %v1154, 5
      %v2262 = vsel %vm2192, %v2260, %v2261
      %v2263 = vrot.slane %v2152, 5
      %v2264 = vrot.slane %v2263, 4
      %v2265 = vrot.slane %v1118, 5
      %v2266 = vsel %vm2192, %v2264, %v2265
      %v2267 = vrot.slane %v2265, 4
      %v2268 = vrot.slane %v1155, 5
      %v2269 = vsel %vm2192, %v2267, %v2268
      %v2270 = vrot.slane %v2153, 5
      %v2271 = vrot.slane %v2270, 4
      %v2272 = vrot.slane %v1120, 5
      %v2273 = vsel %vm2192, %v2271, %v2272
      %v2274 = vrot.slane %v2272, 4
      %v2275 = vrot.slane %v1156, 5
      %v2276 = vsel %vm2192, %v2274, %v2275
      %v2277 = vrot.slane %v2154, 5
      %v2278 = vrot.slane %v2277, 4
      %v2279 = vrot.slane %v1122, 5
      %v2280 = vsel %vm2192, %v2278, %v2279
      %v2281 = vrot.slane %v2279, 4
      %v2282 = vrot.slane %v1157, 5
      %v2283 = vsel %vm2192, %v2281, %v2282
      %v2284 = vrot.slane %v2155, 5
      %v2285 = vrot.slane %v2284, 4
      %v2286 = vrot.slane %v1124, 5
      %v2287 = vsel %vm2192, %v2285, %v2286
      %v2288 = vrot.slane %v2286, 4
      %v2289 = vrot.slane %v1158, 5
      %v2290 = vsel %vm2192, %v2288, %v2289
      %v2291 = vrot.slane %v2156, 5
      %v2292 = vrot.slane %v2291, 4
      %v2293 = vrot.slane %v1126, 5
      %v2294 = vsel %vm2192, %v2292, %v2293
      %v2295 = vrot.slane %v2293, 4
      %v2296 = vrot.slane %v1159, 5
      %v2297 = vsel %vm2192, %v2295, %v2296
      %v2298 = vrot.slane %v2157, 5
      %v2299 = vrot.slane %v2298, 4
      %v2300 = vrot.slane %v1128, 5
      %v2301 = vsel %vm2192, %v2299, %v2300
      %v2302 = vrot.slane %v2300, 4
      %v2303 = vrot.slane %v1160, 5
      %v2304 = vsel %vm2192, %v2302, %v2303
      %v2305 = vld [vmem:[%s3 + $0x80] sm:$0xf]
      %v2306 = vld [vmem:[%s3 + $0x84] sm:$0xf]
      %v2307 = vld [vmem:[%s3 + $0x88] sm:$0xf]
      %v2308 = vld [vmem:[%s3 + $0x8c] sm:$0xf]
      %v2309 = vld [vmem:[%s3 + $0x90] sm:$0xf]
      %v2310 = vld [vmem:[%s3 + $0x94] sm:$0xf]
      %v2311 = vld [vmem:[%s3 + $0x98] sm:$0xf]
      %v2312 = vld [vmem:[%s3 + $0x9c] sm:$0xf]
      %v2313 = vld [vmem:[%s3 + $0xa0] sm:$0xf]
      %v2314 = vld [vmem:[%s3 + $0xa4] sm:$0xf]
      %v2315 = vld [vmem:[%s3 + $0xa8] sm:$0xf]
      %v2316 = vld [vmem:[%s3 + $0xac] sm:$0xf]
      %v2317 = vld [vmem:[%s3 + $0xb0] sm:$0xf]
      %v2318 = vld [vmem:[%s3 + $0xb4] sm:$0xf]
      %v2319 = vld [vmem:[%s3 + $0xb8] sm:$0xf]
      %v2320 = vld [vmem:[%s3 + $0xbc] sm:$0xf]
      %v2321 = vunpack.c.l.b16 %v2196
      %v2322 = vunpack.c.l.b16 %v2199
      %v2323 = vunpack.c.l.b16 %v2203
      %v2324 = vunpack.c.l.b16 %v2206
      %v2325 = vunpack.c.l.b16 %v2210
      %v2326 = vunpack.c.l.b16 %v2213
      %v2327 = vunpack.c.l.b16 %v2217
      %v2328 = vunpack.c.l.b16 %v2220
      %v2329 = vunpack.c.l.b16 %v2224
      %v2330 = vunpack.c.l.b16 %v2227
      %v2331 = vunpack.c.l.b16 %v2231
      %v2332 = vunpack.c.l.b16 %v2234
      %v2333 = vunpack.c.l.b16 %v2238
      %v2334 = vunpack.c.l.b16 %v2241
      %v2335 = vunpack.c.l.b16 %v2245
      %v2336 = vunpack.c.l.b16 %v2248
      %v2337 = vunpack.c.l.b16 %v2252
      %v2338 = vunpack.c.l.b16 %v2255
      %v2339 = vunpack.c.l.b16 %v2259
      %v2340 = vunpack.c.l.b16 %v2262
      %v2341 = vunpack.c.l.b16 %v2266
      %v2342 = vunpack.c.l.b16 %v2269
      %v2343 = vunpack.c.l.b16 %v2273
      %v2344 = vunpack.c.l.b16 %v2276
      %v2345 = vunpack.c.l.b16 %v2280
      %v2346 = vunpack.c.l.b16 %v2283
      %v2347 = vunpack.c.l.b16 %v2287
      %v2348 = vunpack.c.l.b16 %v2290
      %v2349 = vunpack.c.l.b16 %v2294
      %v2350 = vunpack.c.l.b16 %v2297
      %v2351 = vunpack.c.l.b16 %v2301
      %v2352 = vunpack.c.l.b16 %v2304
      %v2353 = vpack.c.b16 %v2322, %v2321
      %v2354 = vpack.c.b16 %v2324, %v2323
      %v2355 = vpack.c.b16 %v2326, %v2325
      %v2356 = vpack.c.b16 %v2328, %v2327
      %v2357 = vpack.c.b16 %v2330, %v2329
      %v2358 = vpack.c.b16 %v2332, %v2331
      %v2359 = vpack.c.b16 %v2334, %v2333
      %v2360 = vpack.c.b16 %v2336, %v2335
      %v2361 = vpack.c.b16 %v2338, %v2337
      %v2362 = vpack.c.b16 %v2340, %v2339
      %v2363 = vpack.c.b16 %v2342, %v2341
      %v2364 = vpack.c.b16 %v2344, %v2343
      %v2365 = vpack.c.b16 %v2346, %v2345
      %v2366 = vpack.c.b16 %v2348, %v2347
      %v2367 = vpack.c.b16 %v2350, %v2349
      %v2368 = vpack.c.b16 %v2352, %v2351
      %v2401 = vunpack.c.l.b16 %v2305
      %v2402 = vunpack.c.l.b16 %v2306
      %v2403 = vunpack.c.l.b16 %v2307
      %v2404 = vunpack.c.l.b16 %v2308
      %v2405 = vunpack.c.l.b16 %v2309
      %v2406 = vunpack.c.l.b16 %v2310
      %v2407 = vunpack.c.l.b16 %v2311
      %v2408 = vunpack.c.l.b16 %v2312
      %v2409 = vunpack.c.l.b16 %v2313
      %v2410 = vunpack.c.l.b16 %v2314
      %v2411 = vunpack.c.l.b16 %v2315
      %v2412 = vunpack.c.l.b16 %v2316
      %v2413 = vunpack.c.l.b16 %v2317
      %v2414 = vunpack.c.l.b16 %v2318
      %v2415 = vunpack.c.l.b16 %v2319
      %v2416 = vunpack.c.l.b16 %v2320
      %v2417 = vpack.c.b16 %v2402, %v2401
      %v2418 = vpack.c.b16 %v2404, %v2403
      %v2419 = vpack.c.b16 %v2406, %v2405
      %v2420 = vpack.c.b16 %v2408, %v2407
      %v2421 = vpack.c.b16 %v2410, %v2409
      %v2422 = vpack.c.b16 %v2412, %v2411
      %v2423 = vpack.c.b16 %v2414, %v2413
      %v2424 = vpack.c.b16 %v2416, %v2415
      %2433 = vmatprep.subr.bf16.mxu0 0
      %2434 = vmatpush1.bf16.msra.mxu0 %v2424
      %2435 = vmatprep.subr.bf16.mxu0 0
      %2436 = vmatpush1.bf16.msra.mxu0 %v2423
      %2437 = vmatprep.subr.bf16.mxu0 0
      %2438 = vmatpush1.bf16.msra.mxu0 %v2422
      %2439 = vmatprep.subr.bf16.mxu0 0
      %2440 = vmatpush1.bf16.msra.mxu0 %v2421
      %2441 = vmatprep.subr.bf16.mxu0 0
      %2442 = vmatpush1.bf16.msra.mxu0 %v2420
      %2443 = vmatprep.subr.bf16.mxu0 0
      %2444 = vmatpush1.bf16.msra.mxu0 %v2419
      %2445 = vmatprep.subr.bf16.mxu0 0
      %2446 = vmatpush1.bf16.msra.mxu0 %v2418
      %2447 = vmatprep.subr.bf16.mxu0 0
      %2448 = vmatpush1.bf16.msra.mxu0 %v2417
      %2449 = vmatprep.subr.bf16.mxu0 0
      %2450 = vmatpush2.bf16.msra.mxu0 0
      %2451 = vmatprep.subr.bf16.mxu0 0
      %2452 = vmatpush2.bf16.msra.mxu0 0
      %2453 = vmatprep.subr.bf16.mxu0 0
      %2454 = vmatpush2.bf16.msra.mxu0 0
      %2455 = vmatprep.subr.bf16.mxu0 0
      %2456 = vmatpush2.bf16.msra.mxu0 0
      %2457 = vmatprep.subr.bf16.mxu0 0
      %2458 = vmatpush2.bf16.msra.mxu0 0
      %2459 = vmatprep.subr.bf16.mxu0 0
      %2460 = vmatpush2.bf16.msra.mxu0 0
      %2461 = vmatprep.subr.bf16.mxu0 0
      %2462 = vmatpush2.bf16.msra.mxu0 0
      %2463 = vmatprep.subr.bf16.mxu0 0
      %2464 = vmatpush2.bf16.msra.mxu0 0
      %2465 = vmatprep.mubr.bf16.mxu0 0
      %2466 = vmatmul.mubr.bf16.gmra.mxu0 %v2353
      %v2467 = vpop.f32.mrf.mxu0
      %v2468 = vadd.f32 0.0, %v2467
      %v2469 = vpop.f32.mrf.mxu0
      %v2470 = vpop.f32.mrf.mxu0
      %v2471 = vadd.f32 0.0, %v2470
      %v2472 = vpop.f32.mrf.mxu0
      %2473 = vmatprep.mubr.bf16.mxu0 0
      %2474 = vmatmul.mubr.bf16.gmra.mxu0 %v2354
      %v2475 = vpop.f32.mrf.mxu0
      %v2476 = vadd.f32 0.0, %v2475
      %v2477 = vpop.f32.mrf.mxu0
      %v2478 = vpop.f32.mrf.mxu0
      %v2479 = vadd.f32 0.0, %v2478
      %v2480 = vpop.f32.mrf.mxu0
      %2481 = vmatprep.mubr.bf16.mxu0 0
      %2482 = vmatmul.mubr.bf16.gmra.mxu0 %v2355
      %v2483 = vpop.f32.mrf.mxu0
      %v2484 = vadd.f32 0.0, %v2483
      %v2485 = vpop.f32.mrf.mxu0
      %v2486 = vpop.f32.mrf.mxu0
      %v2487 = vadd.f32 0.0, %v2486
      %v2488 = vpop.f32.mrf.mxu0
      %2489 = vmatprep.mubr.bf16.mxu0 0
      %2490 = vmatmul.mubr.bf16.gmra.mxu0 %v2356
      %v2491 = vpop.f32.mrf.mxu0
      %v2492 = vadd.f32 0.0, %v2491
      %v2493 = vpop.f32.mrf.mxu0
      %v2494 = vpop.f32.mrf.mxu0
      %v2495 = vadd.f32 0.0, %v2494
      %v2496 = vpop.f32.mrf.mxu0
      %2497 = vmatprep.mubr.bf16.mxu0 0
      %2498 = vmatmul.mubr.bf16.gmra.mxu0 %v2357
      %v2499 = vpop.f32.mrf.mxu0
      %v2500 = vadd.f32 0.0, %v2499
      %v2501 = vpop.f32.mrf.mxu0
      %v2502 = vpop.f32.mrf.mxu0
      %v2503 = vadd.f32 0.0, %v2502
      %v2504 = vpop.f32.mrf.mxu0
      %2505 = vmatprep.mubr.bf16.mxu0 0
      %2506 = vmatmul.mubr.bf16.gmra.mxu0 %v2358
      %v2507 = vpop.f32.mrf.mxu0
      %v2508 = vadd.f32 0.0, %v2507
      %v2509 = vpop.f32.mrf.mxu0
      %v2510 = vpop.f32.mrf.mxu0
      %v2511 = vadd.f32 0.0, %v2510
      %v2512 = vpop.f32.mrf.mxu0
      %2513 = vmatprep.mubr.bf16.mxu0 0
      %2514 = vmatmul.mubr.bf16.gmra.mxu0 %v2359
      %v2515 = vpop.f32.mrf.mxu0
      %v2516 = vadd.f32 0.0, %v2515
      %v2517 = vpop.f32.mrf.mxu0
      %v2518 = vpop.f32.mrf.mxu0
      %v2519 = vadd.f32 0.0, %v2518
      %v2520 = vpop.f32.mrf.mxu0
      %2521 = vmatprep.mubr.bf16.mxu0 0
      %2522 = vmatmul.mubr.bf16.gmra.mxu0 %v2360
      %v2523 = vpop.f32.mrf.mxu0
      %v2524 = vadd.f32 0.0, %v2523
      %v2525 = vpop.f32.mrf.mxu0
      %v2526 = vpop.f32.mrf.mxu0
      %v2527 = vadd.f32 0.0, %v2526
      %v2528 = vpop.f32.mrf.mxu0
      %2529 = vmatprep.mubr.bf16.mxu0 0
      %2530 = vmatmul.mubr.bf16.gmra.mxu0 %v2361
      %v2531 = vpop.f32.mrf.mxu0
      %v2532 = vadd.f32 0.0, %v2531
      %v2533 = vpop.f32.mrf.mxu0
      %v2534 = vpop.f32.mrf.mxu0
      %v2535 = vadd.f32 0.0, %v2534
      %v2536 = vpop.f32.mrf.mxu0
      %2537 = vmatprep.mubr.bf16.mxu0 0
      %2538 = vmatmul.mubr.bf16.gmra.mxu0 %v2362
      %v2539 = vpop.f32.mrf.mxu0
      %v2540 = vadd.f32 0.0, %v2539
      %v2541 = vpop.f32.mrf.mxu0
      %v2542 = vpop.f32.mrf.mxu0
      %v2543 = vadd.f32 0.0, %v2542
      %v2544 = vpop.f32.mrf.mxu0
      %2545 = vmatprep.mubr.bf16.mxu0 0
      %2546 = vmatmul.mubr.bf16.gmra.mxu0 %v2363
      %v2547 = vpop.f32.mrf.mxu0
      %v2548 = vadd.f32 0.0, %v2547
      %v2549 = vpop.f32.mrf.mxu0
      %v2550 = vpop.f32.mrf.mxu0
      %v2551 = vadd.f32 0.0, %v2550
      %v2552 = vpop.f32.mrf.mxu0
      %2553 = vmatprep.mubr.bf16.mxu0 0
      %2554 = vmatmul.mubr.bf16.gmra.mxu0 %v2364
      %v2555 = vpop.f32.mrf.mxu0
      %v2556 = vadd.f32 0.0, %v2555
      %v2557 = vpop.f32.mrf.mxu0
      %v2558 = vpop.f32.mrf.mxu0
      %v2559 = vadd.f32 0.0, %v2558
      %v2560 = vpop.f32.mrf.mxu0
      %2561 = vmatprep.mubr.bf16.mxu0 0
      %2562 = vmatmul.mubr.bf16.gmra.mxu0 %v2365
      %v2563 = vpop.f32.mrf.mxu0
      %v2564 = vadd.f32 0.0, %v2563
      %v2565 = vpop.f32.mrf.mxu0
      %v2566 = vpop.f32.mrf.mxu0
      %v2567 = vadd.f32 0.0, %v2566
      %v2568 = vpop.f32.mrf.mxu0
      %2569 = vmatprep.mubr.bf16.mxu0 0
      %2570 = vmatmul.mubr.bf16.gmra.mxu0 %v2366
      %v2571 = vpop.f32.mrf.mxu0
      %v2572 = vadd.f32 0.0, %v2571
      %v2573 = vpop.f32.mrf.mxu0
      %v2574 = vpop.f32.mrf.mxu0
      %v2575 = vadd.f32 0.0, %v2574
      %v2576 = vpop.f32.mrf.mxu0
      %2577 = vmatprep.mubr.bf16.mxu0 0
      %2578 = vmatmul.mubr.bf16.gmra.mxu0 %v2367
      %v2579 = vpop.f32.mrf.mxu0
      %v2580 = vadd.f32 0.0, %v2579
      %v2581 = vpop.f32.mrf.mxu0
      %v2582 = vpop.f32.mrf.mxu0
      %v2583 = vadd.f32 0.0, %v2582
      %v2584 = vpop.f32.mrf.mxu0
      %2585 = vmatprep.mubr.bf16.mxu0 0
      %2586 = vmatmul.mubr.bf16.gmra.mxu0 %v2368
      %v2587 = vpop.f32.mrf.mxu0
      %v2588 = vadd.f32 0.0, %v2587
      %v2589 = vpop.f32.mrf.mxu0
      %v2590 = vpop.f32.mrf.mxu0
      %v2591 = vadd.f32 0.0, %v2590
      %v2592 = vpop.f32.mrf.mxu0
      %2593 = vdwg.mxu0
      %v2594 = vadd.f32 %v2016, %v2468
      %v2595 = vadd.f32 %v2019, %v2471
      %v2596 = vadd.f32 %v2024, %v2476
      %v2597 = vadd.f32 %v2027, %v2479
      %v2598 = vadd.f32 %v2032, %v2484
      %v2599 = vadd.f32 %v2035, %v2487
      %v2600 = vadd.f32 %v2040, %v2492
      %v2601 = vadd.f32 %v2043, %v2495
      %v2602 = vadd.f32 %v2048, %v2500
      %v2603 = vadd.f32 %v2051, %v2503
      %v2604 = vadd.f32 %v2056, %v2508
      %v2605 = vadd.f32 %v2059, %v2511
      %v2606 = vadd.f32 %v2064, %v2516
      %v2607 = vadd.f32 %v2067, %v2519
      %v2608 = vadd.f32 %v2072, %v2524
      %v2609 = vadd.f32 %v2075, %v2527
      %v2610 = vadd.f32 %v2080, %v2532
      %v2611 = vadd.f32 %v2083, %v2535
      %v2612 = vadd.f32 %v2088, %v2540
      %v2613 = vadd.f32 %v2091, %v2543
      %v2614 = vadd.f32 %v2096, %v2548
      %v2615 = vadd.f32 %v2099, %v2551
      %v2616 = vadd.f32 %v2104, %v2556
      %v2617 = vadd.f32 %v2107, %v2559
      %v2618 = vadd.f32 %v2112, %v2564
      %v2619 = vadd.f32 %v2115, %v2567
      %v2620 = vadd.f32 %v2120, %v2572
      %v2621 = vadd.f32 %v2123, %v2575
      %v2622 = vadd.f32 %v2128, %v2580
      %v2623 = vadd.f32 %v2131, %v2583
      %v2624 = vadd.f32 %v2136, %v2588
      %v2625 = vadd.f32 %v2139, %v2591
      %v2626 = vld [vmem:[%s982] sm:$0xf]
      %v2627 = vld [vmem:[%s982 + $0x4] sm:$0xf]
      %v2628 = vld [vmem:[%s982 + $0xc] sm:$0xf]
      %v2629 = vld [vmem:[%s982 + $0x10] sm:$0xf]
      %v2630 = vld [vmem:[%s982 + $0x18] sm:$0xf]
      %v2631 = vld [vmem:[%s982 + $0x1c] sm:$0xf]
      %v2632 = vld [vmem:[%s982 + $0x24] sm:$0xf]
      %v2633 = vld [vmem:[%s982 + $0x28] sm:$0xf]
      %v2634 = vld [vmem:[%s982 + $0x30] sm:$0xf]
      %v2635 = vld [vmem:[%s982 + $0x34] sm:$0xf]
      %v2636 = vld [vmem:[%s982 + $0x3c] sm:$0xf]
      %v2637 = vld [vmem:[%s982 + $0x40] sm:$0xf]
      %v2638 = vld [vmem:[%s982 + $0x48] sm:$0xf]
      %v2639 = vld [vmem:[%s982 + $0x4c] sm:$0xf]
      %v2640 = vld [vmem:[%s982 + $0x54] sm:$0xf]
      %v2641 = vld [vmem:[%s982 + $0x58] sm:$0xf]
      %v2642 = vld [vmem:[%s982 + $0x60] sm:$0xf]
      %v2643 = vld [vmem:[%s982 + $0x64] sm:$0xf]
      %v2644 = vld [vmem:[%s982 + $0x6c] sm:$0xf]
      %v2645 = vld [vmem:[%s982 + $0x70] sm:$0xf]
      %v2646 = vld [vmem:[%s982 + $0x78] sm:$0xf]
      %v2647 = vld [vmem:[%s982 + $0x7c] sm:$0xf]
      %v2648 = vld [vmem:[%s982 + $0x84] sm:$0xf]
      %v2649 = vld [vmem:[%s982 + $0x88] sm:$0xf]
      %v2650 = vld [vmem:[%s982 + $0x90] sm:$0xf]
      %v2651 = vld [vmem:[%s982 + $0x94] sm:$0xf]
      %v2652 = vld [vmem:[%s982 + $0x9c] sm:$0xf]
      %v2653 = vld [vmem:[%s982 + $0xa0] sm:$0xf]
      %v2654 = vld [vmem:[%s982 + $0xa8] sm:$0xf]
      %v2655 = vld [vmem:[%s982 + $0xac] sm:$0xf]
      %v2656 = vld [vmem:[%s982 + $0xb4] sm:$0xf]
      %v2657 = vld [vmem:[%s982 + $0xb8] sm:$0xf]
      %v2658 = vld [vmem:[%s3 + $0xc0] sm:$0xf]
      %v2659 = vld [vmem:[%s3 + $0xc4] sm:$0xf]
      %v2660 = vld [vmem:[%s3 + $0xc8] sm:$0xf]
      %v2661 = vld [vmem:[%s3 + $0xcc] sm:$0xf]
      %v2662 = vld [vmem:[%s3 + $0xd0] sm:$0xf]
      %v2663 = vld [vmem:[%s3 + $0xd4] sm:$0xf]
      %v2664 = vld [vmem:[%s3 + $0xd8] sm:$0xf]
      %v2665 = vld [vmem:[%s3 + $0xdc] sm:$0xf]
      %v2666 = vld [vmem:[%s3 + $0xe0] sm:$0xf]
      %v2667 = vld [vmem:[%s3 + $0xe4] sm:$0xf]
      %v2668 = vld [vmem:[%s3 + $0xe8] sm:$0xf]
      %v2669 = vld [vmem:[%s3 + $0xec] sm:$0xf]
      %v2670 = vld [vmem:[%s3 + $0xf0] sm:$0xf]
      %v2671 = vld [vmem:[%s3 + $0xf4] sm:$0xf]
      %v2672 = vld [vmem:[%s3 + $0xf8] sm:$0xf]
      %v2673 = vld [vmem:[%s3 + $0xfc] sm:$0xf]
      %v2706 = vunpack.c.l.b16 %v2626
      %v2707 = vunpack.c.l.b16 %v2627
      %v2708 = vunpack.c.l.b16 %v2628
      %v2709 = vunpack.c.l.b16 %v2629
      %v2710 = vunpack.c.l.b16 %v2630
      %v2711 = vunpack.c.l.b16 %v2631
      %v2712 = vunpack.c.l.b16 %v2632
      %v2713 = vunpack.c.l.b16 %v2633
      %v2714 = vunpack.c.l.b16 %v2634
      %v2715 = vunpack.c.l.b16 %v2635
      %v2716 = vunpack.c.l.b16 %v2636
      %v2717 = vunpack.c.l.b16 %v2637
      %v2718 = vunpack.c.l.b16 %v2638
      %v2719 = vunpack.c.l.b16 %v2639
      %v2720 = vunpack.c.l.b16 %v2640
      %v2721 = vunpack.c.l.b16 %v2641
      %v2722 = vunpack.c.l.b16 %v2642
      %v2723 = vunpack.c.l.b16 %v2643
      %v2724 = vunpack.c.l.b16 %v2644
      %v2725 = vunpack.c.l.b16 %v2645
      %v2726 = vunpack.c.l.b16 %v2646
      %v2727 = vunpack.c.l.b16 %v2647
      %v2728 = vunpack.c.l.b16 %v2648
      %v2729 = vunpack.c.l.b16 %v2649
      %v2730 = vunpack.c.l.b16 %v2650
      %v2731 = vunpack.c.l.b16 %v2651
      %v2732 = vunpack.c.l.b16 %v2652
      %v2733 = vunpack.c.l.b16 %v2653
      %v2734 = vunpack.c.l.b16 %v2654
      %v2735 = vunpack.c.l.b16 %v2655
      %v2736 = vunpack.c.l.b16 %v2656
      %v2737 = vunpack.c.l.b16 %v2657
      %v2738 = vpack.c.b16 %v2707, %v2706
      %v2739 = vpack.c.b16 %v2709, %v2708
      %v2740 = vpack.c.b16 %v2711, %v2710
      %v2741 = vpack.c.b16 %v2713, %v2712
      %v2742 = vpack.c.b16 %v2715, %v2714
      %v2743 = vpack.c.b16 %v2717, %v2716
      %v2744 = vpack.c.b16 %v2719, %v2718
      %v2745 = vpack.c.b16 %v2721, %v2720
      %v2746 = vpack.c.b16 %v2723, %v2722
      %v2747 = vpack.c.b16 %v2725, %v2724
      %v2748 = vpack.c.b16 %v2727, %v2726
      %v2749 = vpack.c.b16 %v2729, %v2728
      %v2750 = vpack.c.b16 %v2731, %v2730
      %v2751 = vpack.c.b16 %v2733, %v2732
      %v2752 = vpack.c.b16 %v2735, %v2734
      %v2753 = vpack.c.b16 %v2737, %v2736
      %v2786 = vunpack.c.l.b16 %v2658
      %v2787 = vunpack.c.l.b16 %v2659
      %v2788 = vunpack.c.l.b16 %v2660
      %v2789 = vunpack.c.l.b16 %v2661
      %v2790 = vunpack.c.l.b16 %v2662
      %v2791 = vunpack.c.l.b16 %v2663
      %v2792 = vunpack.c.l.b16 %v2664
      %v2793 = vunpack.c.l.b16 %v2665
      %v2794 = vunpack.c.l.b16 %v2666
      %v2795 = vunpack.c.l.b16 %v2667
      %v2796 = vunpack.c.l.b16 %v2668
      %v2797 = vunpack.c.l.b16 %v2669
      %v2798 = vunpack.c.l.b16 %v2670
      %v2799 = vunpack.c.l.b16 %v2671
      %v2800 = vunpack.c.l.b16 %v2672
      %v2801 = vunpack.c.l.b16 %v2673
      %v2802 = vpack.c.b16 %v2787, %v2786
      %v2803 = vpack.c.b16 %v2789, %v2788
      %v2804 = vpack.c.b16 %v2791, %v2790
      %v2805 = vpack.c.b16 %v2793, %v2792
      %v2806 = vpack.c.b16 %v2795, %v2794
      %v2807 = vpack.c.b16 %v2797, %v2796
      %v2808 = vpack.c.b16 %v2799, %v2798
      %v2809 = vpack.c.b16 %v2801, %v2800
      %2818 = vmatprep.subr.bf16.mxu0 0
      %2819 = vmatpush1.bf16.msra.mxu0 %v2809
      %2820 = vmatprep.subr.bf16.mxu0 0
      %2821 = vmatpush1.bf16.msra.mxu0 %v2808
      %2822 = vmatprep.subr.bf16.mxu0 0
      %2823 = vmatpush1.bf16.msra.mxu0 %v2807
      %2824 = vmatprep.subr.bf16.mxu0 0
      %2825 = vmatpush1.bf16.msra.mxu0 %v2806
      %2826 = vmatprep.subr.bf16.mxu0 0
      %2827 = vmatpush1.bf16.msra.mxu0 %v2805
      %2828 = vmatprep.subr.bf16.mxu0 0
      %2829 = vmatpush1.bf16.msra.mxu0 %v2804
      %2830 = vmatprep.subr.bf16.mxu0 0
      %2831 = vmatpush1.bf16.msra.mxu0 %v2803
      %2832 = vmatprep.subr.bf16.mxu0 0
      %2833 = vmatpush1.bf16.msra.mxu0 %v2802
      %2834 = vmatprep.subr.bf16.mxu0 0
      %2835 = vmatpush2.bf16.msra.mxu0 0
      %2836 = vmatprep.subr.bf16.mxu0 0
      %2837 = vmatpush2.bf16.msra.mxu0 0
      %2838 = vmatprep.subr.bf16.mxu0 0
      %2839 = vmatpush2.bf16.msra.mxu0 0
      %2840 = vmatprep.subr.bf16.mxu0 0
      %2841 = vmatpush2.bf16.msra.mxu0 0
      %2842 = vmatprep.subr.bf16.mxu0 0
      %2843 = vmatpush2.bf16.msra.mxu0 0
      %2844 = vmatprep.subr.bf16.mxu0 0
      %2845 = vmatpush2.bf16.msra.mxu0 0
      %2846 = vmatprep.subr.bf16.mxu0 0
      %2847 = vmatpush2.bf16.msra.mxu0 0
      %2848 = vmatprep.subr.bf16.mxu0 0
      %2849 = vmatpush2.bf16.msra.mxu0 0
      %2850 = vmatprep.mubr.bf16.mxu0 0
      %2851 = vmatmul.mubr.bf16.gmra.mxu0 %v2738
      %v2852 = vpop.f32.mrf.mxu0
      %v2853 = vadd.f32 0.0, %v2852
      %v2854 = vpop.f32.mrf.mxu0
      %v2855 = vpop.f32.mrf.mxu0
      %v2856 = vadd.f32 0.0, %v2855
      %v2857 = vpop.f32.mrf.mxu0
      %2858 = vmatprep.mubr.bf16.mxu0 0
      %2859 = vmatmul.mubr.bf16.gmra.mxu0 %v2739
      %v2860 = vpop.f32.mrf.mxu0
      %v2861 = vadd.f32 0.0, %v2860
      %v2862 = vpop.f32.mrf.mxu0
      %v2863 = vpop.f32.mrf.mxu0
      %v2864 = vadd.f32 0.0, %v2863
      %v2865 = vpop.f32.mrf.mxu0
      %2866 = vmatprep.mubr.bf16.mxu0 0
      %2867 = vmatmul.mubr.bf16.gmra.mxu0 %v2740
      %v2868 = vpop.f32.mrf.mxu0
      %v2869 = vadd.f32 0.0, %v2868
      %v2870 = vpop.f32.mrf.mxu0
      %v2871 = vpop.f32.mrf.mxu0
      %v2872 = vadd.f32 0.0, %v2871
      %v2873 = vpop.f32.mrf.mxu0
      %2874 = vmatprep.mubr.bf16.mxu0 0
      %2875 = vmatmul.mubr.bf16.gmra.mxu0 %v2741
      %v2876 = vpop.f32.mrf.mxu0
      %v2877 = vadd.f32 0.0, %v2876
      %v2878 = vpop.f32.mrf.mxu0
      %v2879 = vpop.f32.mrf.mxu0
      %v2880 = vadd.f32 0.0, %v2879
      %v2881 = vpop.f32.mrf.mxu0
      %2882 = vmatprep.mubr.bf16.mxu0 0
      %2883 = vmatmul.mubr.bf16.gmra.mxu0 %v2742
      %v2884 = vpop.f32.mrf.mxu0
      %v2885 = vadd.f32 0.0, %v2884
      %v2886 = vpop.f32.mrf.mxu0
      %v2887 = vpop.f32.mrf.mxu0
      %v2888 = vadd.f32 0.0, %v2887
      %v2889 = vpop.f32.mrf.mxu0
      %2890 = vmatprep.mubr.bf16.mxu0 0
      %2891 = vmatmul.mubr.bf16.gmra.mxu0 %v2743
      %v2892 = vpop.f32.mrf.mxu0
      %v2893 = vadd.f32 0.0, %v2892
      %v2894 = vpop.f32.mrf.mxu0
      %v2895 = vpop.f32.mrf.mxu0
      %v2896 = vadd.f32 0.0, %v2895
      %v2897 = vpop.f32.mrf.mxu0
      %2898 = vmatprep.mubr.bf16.mxu0 0
      %2899 = vmatmul.mubr.bf16.gmra.mxu0 %v2744
      %v2900 = vpop.f32.mrf.mxu0
      %v2901 = vadd.f32 0.0, %v2900
      %v2902 = vpop.f32.mrf.mxu0
      %v2903 = vpop.f32.mrf.mxu0
      %v2904 = vadd.f32 0.0, %v2903
      %v2905 = vpop.f32.mrf.mxu0
      %2906 = vmatprep.mubr.bf16.mxu0 0
      %2907 = vmatmul.mubr.bf16.gmra.mxu0 %v2745
      %v2908 = vpop.f32.mrf.mxu0
      %v2909 = vadd.f32 0.0, %v2908
      %v2910 = vpop.f32.mrf.mxu0
      %v2911 = vpop.f32.mrf.mxu0
      %v2912 = vadd.f32 0.0, %v2911
      %v2913 = vpop.f32.mrf.mxu0
      %2914 = vmatprep.mubr.bf16.mxu0 0
      %2915 = vmatmul.mubr.bf16.gmra.mxu0 %v2746
      %v2916 = vpop.f32.mrf.mxu0
      %v2917 = vadd.f32 0.0, %v2916
      %v2918 = vpop.f32.mrf.mxu0
      %v2919 = vpop.f32.mrf.mxu0
      %v2920 = vadd.f32 0.0, %v2919
      %v2921 = vpop.f32.mrf.mxu0
      %2922 = vmatprep.mubr.bf16.mxu0 0
      %2923 = vmatmul.mubr.bf16.gmra.mxu0 %v2747
      %v2924 = vpop.f32.mrf.mxu0
      %v2925 = vadd.f32 0.0, %v2924
      %v2926 = vpop.f32.mrf.mxu0
      %v2927 = vpop.f32.mrf.mxu0
      %v2928 = vadd.f32 0.0, %v2927
      %v2929 = vpop.f32.mrf.mxu0
      %2930 = vmatprep.mubr.bf16.mxu0 0
      %2931 = vmatmul.mubr.bf16.gmra.mxu0 %v2748
      %v2932 = vpop.f32.mrf.mxu0
      %v2933 = vadd.f32 0.0, %v2932
      %v2934 = vpop.f32.mrf.mxu0
      %v2935 = vpop.f32.mrf.mxu0
      %v2936 = vadd.f32 0.0, %v2935
      %v2937 = vpop.f32.mrf.mxu0
      %2938 = vmatprep.mubr.bf16.mxu0 0
      %2939 = vmatmul.mubr.bf16.gmra.mxu0 %v2749
      %v2940 = vpop.f32.mrf.mxu0
      %v2941 = vadd.f32 0.0, %v2940
      %v2942 = vpop.f32.mrf.mxu0
      %v2943 = vpop.f32.mrf.mxu0
      %v2944 = vadd.f32 0.0, %v2943
      %v2945 = vpop.f32.mrf.mxu0
      %2946 = vmatprep.mubr.bf16.mxu0 0
      %2947 = vmatmul.mubr.bf16.gmra.mxu0 %v2750
      %v2948 = vpop.f32.mrf.mxu0
      %v2949 = vadd.f32 0.0, %v2948
      %v2950 = vpop.f32.mrf.mxu0
      %v2951 = vpop.f32.mrf.mxu0
      %v2952 = vadd.f32 0.0, %v2951
      %v2953 = vpop.f32.mrf.mxu0
      %2954 = vmatprep.mubr.bf16.mxu0 0
      %2955 = vmatmul.mubr.bf16.gmra.mxu0 %v2751
      %v2956 = vpop.f32.mrf.mxu0
      %v2957 = vadd.f32 0.0, %v2956
      %v2958 = vpop.f32.mrf.mxu0
      %v2959 = vpop.f32.mrf.mxu0
      %v2960 = vadd.f32 0.0, %v2959
      %v2961 = vpop.f32.mrf.mxu0
      %2962 = vmatprep.mubr.bf16.mxu0 0
      %2963 = vmatmul.mubr.bf16.gmra.mxu0 %v2752
      %v2964 = vpop.f32.mrf.mxu0
      %v2965 = vadd.f32 0.0, %v2964
      %v2966 = vpop.f32.mrf.mxu0
      %v2967 = vpop.f32.mrf.mxu0
      %v2968 = vadd.f32 0.0, %v2967
      %v2969 = vpop.f32.mrf.mxu0
      %2970 = vmatprep.mubr.bf16.mxu0 0
      %2971 = vmatmul.mubr.bf16.gmra.mxu0 %v2753
      %v2972 = vpop.f32.mrf.mxu0
      %v2973 = vadd.f32 0.0, %v2972
      %v2974 = vpop.f32.mrf.mxu0
      %v2975 = vpop.f32.mrf.mxu0
      %v2976 = vadd.f32 0.0, %v2975
      %v2977 = vpop.f32.mrf.mxu0
      %2978 = vdwg.mxu0
      %v2979 = vadd.f32 %v2594, %v2853
      %v2980 = vadd.f32 %v2595, %v2856
      %v2981 = vadd.f32 %v2596, %v2861
      %v2982 = vadd.f32 %v2597, %v2864
      %v2983 = vadd.f32 %v2598, %v2869
      %v2984 = vadd.f32 %v2599, %v2872
      %v2985 = vadd.f32 %v2600, %v2877
      %v2986 = vadd.f32 %v2601, %v2880
      %v2987 = vadd.f32 %v2602, %v2885
      %v2988 = vadd.f32 %v2603, %v2888
      %v2989 = vadd.f32 %v2604, %v2893
      %v2990 = vadd.f32 %v2605, %v2896
      %v2991 = vadd.f32 %v2606, %v2901
      %v2992 = vadd.f32 %v2607, %v2904
      %v2993 = vadd.f32 %v2608, %v2909
      %v2994 = vadd.f32 %v2609, %v2912
      %v2995 = vadd.f32 %v2610, %v2917
      %v2996 = vadd.f32 %v2611, %v2920
      %v2997 = vadd.f32 %v2612, %v2925
      %v2998 = vadd.f32 %v2613, %v2928
      %v2999 = vadd.f32 %v2614, %v2933
      %v3000 = vadd.f32 %v2615, %v2936
      %v3001 = vadd.f32 %v2616, %v2941
      %v3002 = vadd.f32 %v2617, %v2944
      %v3003 = vadd.f32 %v2618, %v2949
      %v3004 = vadd.f32 %v2619, %v2952
      %v3005 = vadd.f32 %v2620, %v2957
      %v3006 = vadd.f32 %v2621, %v2960
      %v3007 = vadd.f32 %v2622, %v2965
      %v3008 = vadd.f32 %v2623, %v2968
      %v3009 = vadd.f32 %v2624, %v2973
      %v3010 = vadd.f32 %v2625, %v2976
      %v3011 = vld [vmem:[%s982] sm:$0xf]
      %v3012 = vld [vmem:[%s982 + $0x4] sm:$0xf]
      %v3013 = vld [vmem:[%s982 + $0x8] sm:$0x1]
      %v3014 = vld [vmem:[%s982 + $0xc] sm:$0xf]
      %v3015 = vld [vmem:[%s982 + $0x10] sm:$0xf]
      %v3016 = vld [vmem:[%s982 + $0x14] sm:$0x1]
      %v3017 = vld [vmem:[%s982 + $0x18] sm:$0xf]
      %v3018 = vld [vmem:[%s982 + $0x1c] sm:$0xf]
      %v3019 = vld [vmem:[%s982 + $0x20] sm:$0x1]
      %v3020 = vld [vmem:[%s982 + $0x24] sm:$0xf]
      %v3021 = vld [vmem:[%s982 + $0x28] sm:$0xf]
      %v3022 = vld [vmem:[%s982 + $0x2c] sm:$0x1]
      %v3023 = vld [vmem:[%s982 + $0x30] sm:$0xf]
      %v3024 = vld [vmem:[%s982 + $0x34] sm:$0xf]
      %v3025 = vld [vmem:[%s982 + $0x38] sm:$0x1]
      %v3026 = vld [vmem:[%s982 + $0x3c] sm:$0xf]
      %v3027 = vld [vmem:[%s982 + $0x40] sm:$0xf]
      %v3028 = vld [vmem:[%s982 + $0x44] sm:$0x1]
      %v3029 = vld [vmem:[%s982 + $0x48] sm:$0xf]
      %v3030 = vld [vmem:[%s982 + $0x4c] sm:$0xf]
      %v3031 = vld [vmem:[%s982 + $0x50] sm:$0x1]
      %v3032 = vld [vmem:[%s982 + $0x54] sm:$0xf]
      %v3033 = vld [vmem:[%s982 + $0x58] sm:$0xf]
      %v3034 = vld [vmem:[%s982 + $0x5c] sm:$0x1]
      %v3035 = vld [vmem:[%s982 + $0x60] sm:$0xf]
      %v3036 = vld [vmem:[%s982 + $0x64] sm:$0xf]
      %v3037 = vld [vmem:[%s982 + $0x68] sm:$0x1]
      %v3038 = vld [vmem:[%s982 + $0x6c] sm:$0xf]
      %v3039 = vld [vmem:[%s982 + $0x70] sm:$0xf]
      %v3040 = vld [vmem:[%s982 + $0x74] sm:$0x1]
      %v3041 = vld [vmem:[%s982 + $0x78] sm:$0xf]
      %v3042 = vld [vmem:[%s982 + $0x7c] sm:$0xf]
      %v3043 = vld [vmem:[%s982 + $0x80] sm:$0x1]
      %v3044 = vld [vmem:[%s982 + $0x84] sm:$0xf]
      %v3045 = vld [vmem:[%s982 + $0x88] sm:$0xf]
      %v3046 = vld [vmem:[%s982 + $0x8c] sm:$0x1]
      %v3047 = vld [vmem:[%s982 + $0x90] sm:$0xf]
      %v3048 = vld [vmem:[%s982 + $0x94] sm:$0xf]
      %v3049 = vld [vmem:[%s982 + $0x98] sm:$0x1]
      %v3050 = vld [vmem:[%s982 + $0x9c] sm:$0xf]
      %v3051 = vld [vmem:[%s982 + $0xa0] sm:$0xf]
      %v3052 = vld [vmem:[%s982 + $0xa4] sm:$0x1]
      %v3053 = vld [vmem:[%s982 + $0xa8] sm:$0xf]
      %v3054 = vld [vmem:[%s982 + $0xac] sm:$0xf]
      %v3055 = vld [vmem:[%s982 + $0xb0] sm:$0x1]
      %v3056 = vld [vmem:[%s982 + $0xb4] sm:$0xf]
      %v3057 = vld [vmem:[%s982 + $0xb8] sm:$0xf]
      %v3058 = vld [vmem:[%s982 + $0xbc] sm:$0x1]
      %v3060 = vshrl.u32 %v3011, 16
      %v3062 = vrot.slane %v3060, 4
      %v3063 = vshll.u32 %v3011, 16
      %v3065 = vrot.slane %v3063, 5
      %v3066 = vor.u32 %v3062, %v3065
      %v3067 = vrot.slane %v3066, 4
      %v3069 = vshll.u32 %v3012, 16
      %v3071 = vrot.slane %v3069, 5
      %v3072 = vsel %vm1163, %v3067, %v3071
      %v3073 = vshrl.u32 %v3012, 16
      %v3075 = vrot.slane %v3073, 4
      %v3076 = vor.u32 %v3075, %v3071
      %v3077 = vrot.slane %v3076, 4
      %v3079 = vshll.u32 %v3013, 16
      %v3081 = vrot.slane %v3079, 5
      %v3082 = vsel %vm1163, %v3077, %v3081
      %v3084 = vshrl.u32 %v3014, 16
      %v3086 = vrot.slane %v3084, 4
      %v3087 = vshll.u32 %v3014, 16
      %v3089 = vrot.slane %v3087, 5
      %v3090 = vor.u32 %v3086, %v3089
      %v3091 = vrot.slane %v3090, 4
      %v3093 = vshll.u32 %v3015, 16
      %v3095 = vrot.slane %v3093, 5
      %v3096 = vsel %vm1163, %v3091, %v3095
      %v3097 = vshrl.u32 %v3015, 16
      %v3099 = vrot.slane %v3097, 4
      %v3100 = vor.u32 %v3099, %v3095
      %v3101 = vrot.slane %v3100, 4
      %v3103 = vshll.u32 %v3016, 16
      %v3105 = vrot.slane %v3103, 5
      %v3106 = vsel %vm1163, %v3101, %v3105
      %v3108 = vshrl.u32 %v3017, 16
      %v3110 = vrot.slane %v3108, 4
      %v3111 = vshll.u32 %v3017, 16
      %v3113 = vrot.slane %v3111, 5
      %v3114 = vor.u32 %v3110, %v3113
      %v3115 = vrot.slane %v3114, 4
      %v3117 = vshll.u32 %v3018, 16
      %v3119 = vrot.slane %v3117, 5
      %v3120 = vsel %vm1163, %v3115, %v3119
      %v3121 = vshrl.u32 %v3018, 16
      %v3123 = vrot.slane %v3121, 4
      %v3124 = vor.u32 %v3123, %v3119
      %v3125 = vrot.slane %v3124, 4
      %v3127 = vshll.u32 %v3019, 16
      %v3129 = vrot.slane %v3127, 5
      %v3130 = vsel %vm1163, %v3125, %v3129
      %v3132 = vshrl.u32 %v3020, 16
      %v3134 = vrot.slane %v3132, 4
      %v3135 = vshll.u32 %v3020, 16
      %v3137 = vrot.slane %v3135, 5
      %v3138 = vor.u32 %v3134, %v3137
      %v3139 = vrot.slane %v3138, 4
      %v3141 = vshll.u32 %v3021, 16
      %v3143 = vrot.slane %v3141, 5
      %v3144 = vsel %vm1163, %v3139, %v3143
      %v3145 = vshrl.u32 %v3021, 16
      %v3147 = vrot.slane %v3145, 4
      %v3148 = vor.u32 %v3147, %v3143
      %v3149 = vrot.slane %v3148, 4
      %v3151 = vshll.u32 %v3022, 16
      %v3153 = vrot.slane %v3151, 5
      %v3154 = vsel %vm1163, %v3149, %v3153
      %v3156 = vshrl.u32 %v3023, 16
      %v3158 = vrot.slane %v3156, 4
      %v3159 = vshll.u32 %v3023, 16
      %v3161 = vrot.slane %v3159, 5
      %v3162 = vor.u32 %v3158, %v3161
      %v3163 = vrot.slane %v3162, 4
      %v3165 = vshll.u32 %v3024, 16
      %v3167 = vrot.slane %v3165, 5
      %v3168 = vsel %vm1163, %v3163, %v3167
      %v3169 = vshrl.u32 %v3024, 16
      %v3171 = vrot.slane %v3169, 4
      %v3172 = vor.u32 %v3171, %v3167
      %v3173 = vrot.slane %v3172, 4
      %v3175 = vshll.u32 %v3025, 16
      %v3177 = vrot.slane %v3175, 5
      %v3178 = vsel %vm1163, %v3173, %v3177
      %v3180 = vshrl.u32 %v3026, 16
      %v3182 = vrot.slane %v3180, 4
      %v3183 = vshll.u32 %v3026, 16
      %v3185 = vrot.slane %v3183, 5
      %v3186 = vor.u32 %v3182, %v3185
      %v3187 = vrot.slane %v3186, 4
      %v3189 = vshll.u32 %v3027, 16
      %v3191 = vrot.slane %v3189, 5
      %v3192 = vsel %vm1163, %v3187, %v3191
      %v3193 = vshrl.u32 %v3027, 16
      %v3195 = vrot.slane %v3193, 4
      %v3196 = vor.u32 %v3195, %v3191
      %v3197 = vrot.slane %v3196, 4
      %v3199 = vshll.u32 %v3028, 16
      %v3201 = vrot.slane %v3199, 5
      %v3202 = vsel %vm1163, %v3197, %v3201
      %v3204 = vshrl.u32 %v3029, 16
      %v3206 = vrot.slane %v3204, 4
      %v3207 = vshll.u32 %v3029, 16
      %v3209 = vrot.slane %v3207, 5
      %v3210 = vor.u32 %v3206, %v3209
      %v3211 = vrot.slane %v3210, 4
      %v3213 = vshll.u32 %v3030, 16
      %v3215 = vrot.slane %v3213, 5
      %v3216 = vsel %vm1163, %v3211, %v3215
      %v3217 = vshrl.u32 %v3030, 16
      %v3219 = vrot.slane %v3217, 4
      %v3220 = vor.u32 %v3219, %v3215
      %v3221 = vrot.slane %v3220, 4
      %v3223 = vshll.u32 %v3031, 16
      %v3225 = vrot.slane %v3223, 5
      %v3226 = vsel %vm1163, %v3221, %v3225
      %v3228 = vshrl.u32 %v3032, 16
      %v3230 = vrot.slane %v3228, 4
      %v3231 = vshll.u32 %v3032, 16
      %v3233 = vrot.slane %v3231, 5
      %v3234 = vor.u32 %v3230, %v3233
      %v3235 = vrot.slane %v3234, 4
      %v3237 = vshll.u32 %v3033, 16
      %v3239 = vrot.slane %v3237, 5
      %v3240 = vsel %vm1163, %v3235, %v3239
      %v3241 = vshrl.u32 %v3033, 16
      %v3243 = vrot.slane %v3241, 4
      %v3244 = vor.u32 %v3243, %v3239
      %v3245 = vrot.slane %v3244, 4
      %v3247 = vshll.u32 %v3034, 16
      %v3249 = vrot.slane %v3247, 5
      %v3250 = vsel %vm1163, %v3245, %v3249
      %v3252 = vshrl.u32 %v3035, 16
      %v3254 = vrot.slane %v3252, 4
      %v3255 = vshll.u32 %v3035, 16
      %v3257 = vrot.slane %v3255, 5
      %v3258 = vor.u32 %v3254, %v3257
      %v3259 = vrot.slane %v3258, 4
      %v3261 = vshll.u32 %v3036, 16
      %v3263 = vrot.slane %v3261, 5
      %v3264 = vsel %vm1163, %v3259, %v3263
      %v3265 = vshrl.u32 %v3036, 16
      %v3267 = vrot.slane %v3265, 4
      %v3268 = vor.u32 %v3267, %v3263
      %v3269 = vrot.slane %v3268, 4
      %v3271 = vshll.u32 %v3037, 16
      %v3273 = vrot.slane %v3271, 5
      %v3274 = vsel %vm1163, %v3269, %v3273
      %v3276 = vshrl.u32 %v3038, 16
      %v3278 = vrot.slane %v3276, 4
      %v3279 = vshll.u32 %v3038, 16
      %v3281 = vrot.slane %v3279, 5
      %v3282 = vor.u32 %v3278, %v3281
      %v3283 = vrot.slane %v3282, 4
      %v3285 = vshll.u32 %v3039, 16
      %v3287 = vrot.slane %v3285, 5
      %v3288 = vsel %vm1163, %v3283, %v3287
      %v3289 = vshrl.u32 %v3039, 16
      %v3291 = vrot.slane %v3289, 4
      %v3292 = vor.u32 %v3291, %v3287
      %v3293 = vrot.slane %v3292, 4
      %v3295 = vshll.u32 %v3040, 16
      %v3297 = vrot.slane %v3295, 5
      %v3298 = vsel %vm1163, %v3293, %v3297
      %v3300 = vshrl.u32 %v3041, 16
      %v3302 = vrot.slane %v3300, 4
      %v3303 = vshll.u32 %v3041, 16
      %v3305 = vrot.slane %v3303, 5
      %v3306 = vor.u32 %v3302, %v3305
      %v3307 = vrot.slane %v3306, 4
      %v3309 = vshll.u32 %v3042, 16
      %v3311 = vrot.slane %v3309, 5
      %v3312 = vsel %vm1163, %v3307, %v3311
      %v3313 = vshrl.u32 %v3042, 16
      %v3315 = vrot.slane %v3313, 4
      %v3316 = vor.u32 %v3315, %v3311
      %v3317 = vrot.slane %v3316, 4
      %v3319 = vshll.u32 %v3043, 16
      %v3321 = vrot.slane %v3319, 5
      %v3322 = vsel %vm1163, %v3317, %v3321
      %v3324 = vshrl.u32 %v3044, 16
      %v3326 = vrot.slane %v3324, 4
      %v3327 = vshll.u32 %v3044, 16
      %v3329 = vrot.slane %v3327, 5
      %v3330 = vor.u32 %v3326, %v3329
      %v3331 = vrot.slane %v3330, 4
      %v3333 = vshll.u32 %v3045, 16
      %v3335 = vrot.slane %v3333, 5
      %v3336 = vsel %vm1163, %v3331, %v3335
      %v3337 = vshrl.u32 %v3045, 16
      %v3339 = vrot.slane %v3337, 4
      %v3340 = vor.u32 %v3339, %v3335
      %v3341 = vrot.slane %v3340, 4
      %v3343 = vshll.u32 %v3046, 16
      %v3345 = vrot.slane %v3343, 5
      %v3346 = vsel %vm1163, %v3341, %v3345
      %v3348 = vshrl.u32 %v3047, 16
      %v3350 = vrot.slane %v3348, 4
      %v3351 = vshll.u32 %v3047, 16
      %v3353 = vrot.slane %v3351, 5
      %v3354 = vor.u32 %v3350, %v3353
      %v3355 = vrot.slane %v3354, 4
      %v3357 = vshll.u32 %v3048, 16
      %v3359 = vrot.slane %v3357, 5
      %v3360 = vsel %vm1163, %v3355, %v3359
      %v3361 = vshrl.u32 %v3048, 16
      %v3363 = vrot.slane %v3361, 4
      %v3364 = vor.u32 %v3363, %v3359
      %v3365 = vrot.slane %v3364, 4
      %v3367 = vshll.u32 %v3049, 16
      %v3369 = vrot.slane %v3367, 5
      %v3370 = vsel %vm1163, %v3365, %v3369
      %v3372 = vshrl.u32 %v3050, 16
      %v3374 = vrot.slane %v3372, 4
      %v3375 = vshll.u32 %v3050, 16
      %v3377 = vrot.slane %v3375, 5
      %v3378 = vor.u32 %v3374, %v3377
      %v3379 = vrot.slane %v3378, 4
      %v3381 = vshll.u32 %v3051, 16
      %v3383 = vrot.slane %v3381, 5
      %v3384 = vsel %vm1163, %v3379, %v3383
      %v3385 = vshrl.u32 %v3051, 16
      %v3387 = vrot.slane %v3385, 4
      %v3388 = vor.u32 %v3387, %v3383
      %v3389 = vrot.slane %v3388, 4
      %v3391 = vshll.u32 %v3052, 16
      %v3393 = vrot.slane %v3391, 5
      %v3394 = vsel %vm1163, %v3389, %v3393
      %v3396 = vshrl.u32 %v3053, 16
      %v3398 = vrot.slane %v3396, 4
      %v3399 = vshll.u32 %v3053, 16
      %v3401 = vrot.slane %v3399, 5
      %v3402 = vor.u32 %v3398, %v3401
      %v3403 = vrot.slane %v3402, 4
      %v3405 = vshll.u32 %v3054, 16
      %v3407 = vrot.slane %v3405, 5
      %v3408 = vsel %vm1163, %v3403, %v3407
      %v3409 = vshrl.u32 %v3054, 16
      %v3411 = vrot.slane %v3409, 4
      %v3412 = vor.u32 %v3411, %v3407
      %v3413 = vrot.slane %v3412, 4
      %v3415 = vshll.u32 %v3055, 16
      %v3417 = vrot.slane %v3415, 5
      %v3418 = vsel %vm1163, %v3413, %v3417
      %v3420 = vshrl.u32 %v3056, 16
      %v3422 = vrot.slane %v3420, 4
      %v3423 = vshll.u32 %v3056, 16
      %v3425 = vrot.slane %v3423, 5
      %v3426 = vor.u32 %v3422, %v3425
      %v3427 = vrot.slane %v3426, 4
      %v3429 = vshll.u32 %v3057, 16
      %v3431 = vrot.slane %v3429, 5
      %v3432 = vsel %vm1163, %v3427, %v3431
      %v3433 = vshrl.u32 %v3057, 16
      %v3435 = vrot.slane %v3433, 4
      %v3436 = vor.u32 %v3435, %v3431
      %v3437 = vrot.slane %v3436, 4
      %v3439 = vshll.u32 %v3058, 16
      %v3441 = vrot.slane %v3439, 5
      %v3442 = vsel %vm1163, %v3437, %v3441
      %v3443 = vld [vmem:[%s3 + $0x100] sm:$0xf]
      %v3444 = vld [vmem:[%s3 + $0x104] sm:$0xf]
      %v3445 = vld [vmem:[%s3 + $0x108] sm:$0xf]
      %v3446 = vld [vmem:[%s3 + $0x10c] sm:$0xf]
      %v3447 = vld [vmem:[%s3 + $0x110] sm:$0xf]
      %v3448 = vld [vmem:[%s3 + $0x114] sm:$0xf]
      %v3449 = vld [vmem:[%s3 + $0x118] sm:$0xf]
      %v3450 = vld [vmem:[%s3 + $0x11c] sm:$0xf]
      %v3451 = vld [vmem:[%s3 + $0x120] sm:$0xf]
      %v3452 = vld [vmem:[%s3 + $0x124] sm:$0xf]
      %v3453 = vld [vmem:[%s3 + $0x128] sm:$0xf]
      %v3454 = vld [vmem:[%s3 + $0x12c] sm:$0xf]
      %v3455 = vld [vmem:[%s3 + $0x130] sm:$0xf]
      %v3456 = vld [vmem:[%s3 + $0x134] sm:$0xf]
      %v3457 = vld [vmem:[%s3 + $0x138] sm:$0xf]
      %v3458 = vld [vmem:[%s3 + $0x13c] sm:$0xf]
      %v3459 = vunpack.c.l.b16 %v3072
      %v3460 = vunpack.c.l.b16 %v3082
      %v3461 = vunpack.c.l.b16 %v3096
      %v3462 = vunpack.c.l.b16 %v3106
      %v3463 = vunpack.c.l.b16 %v3120
      %v3464 = vunpack.c.l.b16 %v3130
      %v3465 = vunpack.c.l.b16 %v3144
      %v3466 = vunpack.c.l.b16 %v3154
      %v3467 = vunpack.c.l.b16 %v3168
      %v3468 = vunpack.c.l.b16 %v3178
      %v3469 = vunpack.c.l.b16 %v3192
      %v3470 = vunpack.c.l.b16 %v3202
      %v3471 = vunpack.c.l.b16 %v3216
      %v3472 = vunpack.c.l.b16 %v3226
      %v3473 = vunpack.c.l.b16 %v3240
      %v3474 = vunpack.c.l.b16 %v3250
      %v3475 = vunpack.c.l.b16 %v3264
      %v3476 = vunpack.c.l.b16 %v3274
      %v3477 = vunpack.c.l.b16 %v3288
      %v3478 = vunpack.c.l.b16 %v3298
      %v3479 = vunpack.c.l.b16 %v3312
      %v3480 = vunpack.c.l.b16 %v3322
      %v3481 = vunpack.c.l.b16 %v3336
      %v3482 = vunpack.c.l.b16 %v3346
      %v3483 = vunpack.c.l.b16 %v3360
      %v3484 = vunpack.c.l.b16 %v3370
      %v3485 = vunpack.c.l.b16 %v3384
      %v3486 = vunpack.c.l.b16 %v3394
      %v3487 = vunpack.c.l.b16 %v3408
      %v3488 = vunpack.c.l.b16 %v3418
      %v3489 = vunpack.c.l.b16 %v3432
      %v3490 = vunpack.c.l.b16 %v3442
      %v3491 = vpack.c.b16 %v3460, %v3459
      %v3492 = vpack.c.b16 %v3462, %v3461
      %v3493 = vpack.c.b16 %v3464, %v3463
      %v3494 = vpack.c.b16 %v3466, %v3465
      %v3495 = vpack.c.b16 %v3468, %v3467
      %v3496 = vpack.c.b16 %v3470, %v3469
      %v3497 = vpack.c.b16 %v3472, %v3471
      %v3498 = vpack.c.b16 %v3474, %v3473
      %v3499 = vpack.c.b16 %v3476, %v3475
      %v3500 = vpack.c.b16 %v3478, %v3477
      %v3501 = vpack.c.b16 %v3480, %v3479
      %v3502 = vpack.c.b16 %v3482, %v3481
      %v3503 = vpack.c.b16 %v3484, %v3483
      %v3504 = vpack.c.b16 %v3486, %v3485
      %v3505 = vpack.c.b16 %v3488, %v3487
      %v3506 = vpack.c.b16 %v3490, %v3489
      %v3539 = vunpack.c.l.b16 %v3443
      %v3540 = vunpack.c.l.b16 %v3444
      %v3541 = vunpack.c.l.b16 %v3445
      %v3542 = vunpack.c.l.b16 %v3446
      %v3543 = vunpack.c.l.b16 %v3447
      %v3544 = vunpack.c.l.b16 %v3448
      %v3545 = vunpack.c.l.b16 %v3449
      %v3546 = vunpack.c.l.b16 %v3450
      %v3547 = vunpack.c.l.b16 %v3451
      %v3548 = vunpack.c.l.b16 %v3452
      %v3549 = vunpack.c.l.b16 %v3453
      %v3550 = vunpack.c.l.b16 %v3454
      %v3551 = vunpack.c.l.b16 %v3455
      %v3552 = vunpack.c.l.b16 %v3456
      %v3553 = vunpack.c.l.b16 %v3457
      %v3554 = vunpack.c.l.b16 %v3458
      %v3555 = vpack.c.b16 %v3540, %v3539
      %v3556 = vpack.c.b16 %v3542, %v3541
      %v3557 = vpack.c.b16 %v3544, %v3543
      %v3558 = vpack.c.b16 %v3546, %v3545
      %v3559 = vpack.c.b16 %v3548, %v3547
      %v3560 = vpack.c.b16 %v3550, %v3549
      %v3561 = vpack.c.b16 %v3552, %v3551
      %v3562 = vpack.c.b16 %v3554, %v3553
      %3571 = vmatprep.subr.bf16.mxu0 0
      %3572 = vmatpush1.bf16.msra.mxu0 %v3562
      %3573 = vmatprep.subr.bf16.mxu0 0
      %3574 = vmatpush1.bf16.msra.mxu0 %v3561
      %3575 = vmatprep.subr.bf16.mxu0 0
      %3576 = vmatpush1.bf16.msra.mxu0 %v3560
      %3577 = vmatprep.subr.bf16.mxu0 0
      %3578 = vmatpush1.bf16.msra.mxu0 %v3559
      %3579 = vmatprep.subr.bf16.mxu0 0
      %3580 = vmatpush1.bf16.msra.mxu0 %v3558
      %3581 = vmatprep.subr.bf16.mxu0 0
      %3582 = vmatpush1.bf16.msra.mxu0 %v3557
      %3583 = vmatprep.subr.bf16.mxu0 0
      %3584 = vmatpush1.bf16.msra.mxu0 %v3556
      %3585 = vmatprep.subr.bf16.mxu0 0
      %3586 = vmatpush1.bf16.msra.mxu0 %v3555
      %3587 = vmatprep.subr.bf16.mxu0 0
      %3588 = vmatpush2.bf16.msra.mxu0 0
      %3589 = vmatprep.subr.bf16.mxu0 0
      %3590 = vmatpush2.bf16.msra.mxu0 0
      %3591 = vmatprep.subr.bf16.mxu0 0
      %3592 = vmatpush2.bf16.msra.mxu0 0
      %3593 = vmatprep.subr.bf16.mxu0 0
      %3594 = vmatpush2.bf16.msra.mxu0 0
      %3595 = vmatprep.subr.bf16.mxu0 0
      %3596 = vmatpush2.bf16.msra.mxu0 0
      %3597 = vmatprep.subr.bf16.mxu0 0
      %3598 = vmatpush2.bf16.msra.mxu0 0
      %3599 = vmatprep.subr.bf16.mxu0 0
      %3600 = vmatpush2.bf16.msra.mxu0 0
      %3601 = vmatprep.subr.bf16.mxu0 0
      %3602 = vmatpush2.bf16.msra.mxu0 0
      %3603 = vmatprep.mubr.bf16.mxu0 0
      %3604 = vmatmul.mubr.bf16.gmra.mxu0 %v3491
      %v3605 = vpop.f32.mrf.mxu0
      %v3606 = vadd.f32 0.0, %v3605
      %v3607 = vpop.f32.mrf.mxu0
      %v3608 = vpop.f32.mrf.mxu0
      %v3609 = vadd.f32 0.0, %v3608
      %v3610 = vpop.f32.mrf.mxu0
      %3611 = vmatprep.mubr.bf16.mxu0 0
      %3612 = vmatmul.mubr.bf16.gmra.mxu0 %v3492
      %v3613 = vpop.f32.mrf.mxu0
      %v3614 = vadd.f32 0.0, %v3613
      %v3615 = vpop.f32.mrf.mxu0
      %v3616 = vpop.f32.mrf.mxu0
      %v3617 = vadd.f32 0.0, %v3616
      %v3618 = vpop.f32.mrf.mxu0
      %3619 = vmatprep.mubr.bf16.mxu0 0
      %3620 = vmatmul.mubr.bf16.gmra.mxu0 %v3493
      %v3621 = vpop.f32.mrf.mxu0
      %v3622 = vadd.f32 0.0, %v3621
      %v3623 = vpop.f32.mrf.mxu0
      %v3624 = vpop.f32.mrf.mxu0
      %v3625 = vadd.f32 0.0, %v3624
      %v3626 = vpop.f32.mrf.mxu0
      %3627 = vmatprep.mubr.bf16.mxu0 0
      %3628 = vmatmul.mubr.bf16.gmra.mxu0 %v3494
      %v3629 = vpop.f32.mrf.mxu0
      %v3630 = vadd.f32 0.0, %v3629
      %v3631 = vpop.f32.mrf.mxu0
      %v3632 = vpop.f32.mrf.mxu0
      %v3633 = vadd.f32 0.0, %v3632
      %v3634 = vpop.f32.mrf.mxu0
      %3635 = vmatprep.mubr.bf16.mxu0 0
      %3636 = vmatmul.mubr.bf16.gmra.mxu0 %v3495
      %v3637 = vpop.f32.mrf.mxu0
      %v3638 = vadd.f32 0.0, %v3637
      %v3639 = vpop.f32.mrf.mxu0
      %v3640 = vpop.f32.mrf.mxu0
      %v3641 = vadd.f32 0.0, %v3640
      %v3642 = vpop.f32.mrf.mxu0
      %3643 = vmatprep.mubr.bf16.mxu0 0
      %3644 = vmatmul.mubr.bf16.gmra.mxu0 %v3496
      %v3645 = vpop.f32.mrf.mxu0
      %v3646 = vadd.f32 0.0, %v3645
      %v3647 = vpop.f32.mrf.mxu0
      %v3648 = vpop.f32.mrf.mxu0
      %v3649 = vadd.f32 0.0, %v3648
      %v3650 = vpop.f32.mrf.mxu0
      %3651 = vmatprep.mubr.bf16.mxu0 0
      %3652 = vmatmul.mubr.bf16.gmra.mxu0 %v3497
      %v3653 = vpop.f32.mrf.mxu0
      %v3654 = vadd.f32 0.0, %v3653
      %v3655 = vpop.f32.mrf.mxu0
      %v3656 = vpop.f32.mrf.mxu0
      %v3657 = vadd.f32 0.0, %v3656
      %v3658 = vpop.f32.mrf.mxu0
      %3659 = vmatprep.mubr.bf16.mxu0 0
      %3660 = vmatmul.mubr.bf16.gmra.mxu0 %v3498
      %v3661 = vpop.f32.mrf.mxu0
      %v3662 = vadd.f32 0.0, %v3661
      %v3663 = vpop.f32.mrf.mxu0
      %v3664 = vpop.f32.mrf.mxu0
      %v3665 = vadd.f32 0.0, %v3664
      %v3666 = vpop.f32.mrf.mxu0
      %3667 = vmatprep.mubr.bf16.mxu0 0
      %3668 = vmatmul.mubr.bf16.gmra.mxu0 %v3499
      %v3669 = vpop.f32.mrf.mxu0
      %v3670 = vadd.f32 0.0, %v3669
      %v3671 = vpop.f32.mrf.mxu0
      %v3672 = vpop.f32.mrf.mxu0
      %v3673 = vadd.f32 0.0, %v3672
      %v3674 = vpop.f32.mrf.mxu0
      %3675 = vmatprep.mubr.bf16.mxu0 0
      %3676 = vmatmul.mubr.bf16.gmra.mxu0 %v3500
      %v3677 = vpop.f32.mrf.mxu0
      %v3678 = vadd.f32 0.0, %v3677
      %v3679 = vpop.f32.mrf.mxu0
      %v3680 = vpop.f32.mrf.mxu0
      %v3681 = vadd.f32 0.0, %v3680
      %v3682 = vpop.f32.mrf.mxu0
      %3683 = vmatprep.mubr.bf16.mxu0 0
      %3684 = vmatmul.mubr.bf16.gmra.mxu0 %v3501
      %v3685 = vpop.f32.mrf.mxu0
      %v3686 = vadd.f32 0.0, %v3685
      %v3687 = vpop.f32.mrf.mxu0
      %v3688 = vpop.f32.mrf.mxu0
      %v3689 = vadd.f32 0.0, %v3688
      %v3690 = vpop.f32.mrf.mxu0
      %3691 = vmatprep.mubr.bf16.mxu0 0
      %3692 = vmatmul.mubr.bf16.gmra.mxu0 %v3502
      %v3693 = vpop.f32.mrf.mxu0
      %v3694 = vadd.f32 0.0, %v3693
      %v3695 = vpop.f32.mrf.mxu0
      %v3696 = vpop.f32.mrf.mxu0
      %v3697 = vadd.f32 0.0, %v3696
      %v3698 = vpop.f32.mrf.mxu0
      %3699 = vmatprep.mubr.bf16.mxu0 0
      %3700 = vmatmul.mubr.bf16.gmra.mxu0 %v3503
      %v3701 = vpop.f32.mrf.mxu0
      %v3702 = vadd.f32 0.0, %v3701
      %v3703 = vpop.f32.mrf.mxu0
      %v3704 = vpop.f32.mrf.mxu0
      %v3705 = vadd.f32 0.0, %v3704
      %v3706 = vpop.f32.mrf.mxu0
      %3707 = vmatprep.mubr.bf16.mxu0 0
      %3708 = vmatmul.mubr.bf16.gmra.mxu0 %v3504
      %v3709 = vpop.f32.mrf.mxu0
      %v3710 = vadd.f32 0.0, %v3709
      %v3711 = vpop.f32.mrf.mxu0
      %v3712 = vpop.f32.mrf.mxu0
      %v3713 = vadd.f32 0.0, %v3712
      %v3714 = vpop.f32.mrf.mxu0
      %3715 = vmatprep.mubr.bf16.mxu0 0
      %3716 = vmatmul.mubr.bf16.gmra.mxu0 %v3505
      %v3717 = vpop.f32.mrf.mxu0
      %v3718 = vadd.f32 0.0, %v3717
      %v3719 = vpop.f32.mrf.mxu0
      %v3720 = vpop.f32.mrf.mxu0
      %v3721 = vadd.f32 0.0, %v3720
      %v3722 = vpop.f32.mrf.mxu0
      %3723 = vmatprep.mubr.bf16.mxu0 0
      %3724 = vmatmul.mubr.bf16.gmra.mxu0 %v3506
      %v3725 = vpop.f32.mrf.mxu0
      %v3726 = vadd.f32 0.0, %v3725
      %v3727 = vpop.f32.mrf.mxu0
      %v3728 = vpop.f32.mrf.mxu0
      %v3729 = vadd.f32 0.0, %v3728
      %v3730 = vpop.f32.mrf.mxu0
      %3731 = vdwg.mxu0
      %v3732 = vadd.f32 %v2979, %v3606
      %v3733 = vadd.f32 %v2980, %v3609
      %v3734 = vadd.f32 %v2981, %v3614
      %v3735 = vadd.f32 %v2982, %v3617
      %v3736 = vadd.f32 %v2983, %v3622
      %v3737 = vadd.f32 %v2984, %v3625
      %v3738 = vadd.f32 %v2985, %v3630
      %v3739 = vadd.f32 %v2986, %v3633
      %v3740 = vadd.f32 %v2987, %v3638
      %v3741 = vadd.f32 %v2988, %v3641
      %v3742 = vadd.f32 %v2989, %v3646
      %v3743 = vadd.f32 %v2990, %v3649
      %v3744 = vadd.f32 %v2991, %v3654
      %v3745 = vadd.f32 %v2992, %v3657
      %v3746 = vadd.f32 %v2993, %v3662
      %v3747 = vadd.f32 %v2994, %v3665
      %v3748 = vadd.f32 %v2995, %v3670
      %v3749 = vadd.f32 %v2996, %v3673
      %v3750 = vadd.f32 %v2997, %v3678
      %v3751 = vadd.f32 %v2998, %v3681
      %v3752 = vadd.f32 %v2999, %v3686
      %v3753 = vadd.f32 %v3000, %v3689
      %v3754 = vadd.f32 %v3001, %v3694
      %v3755 = vadd.f32 %v3002, %v3697
      %v3756 = vadd.f32 %v3003, %v3702
      %v3757 = vadd.f32 %v3004, %v3705
      %v3758 = vadd.f32 %v3005, %v3710
      %v3759 = vadd.f32 %v3006, %v3713
      %v3760 = vadd.f32 %v3007, %v3718
      %v3761 = vadd.f32 %v3008, %v3721
      %v3762 = vadd.f32 %v3009, %v3726
      %v3763 = vadd.f32 %v3010, %v3729
      %v3764 = vld [vmem:[%s982] sm:$0xe]
      %v3765 = vld [vmem:[%s982 + $0xc] sm:$0xe]
      %v3766 = vld [vmem:[%s982 + $0x18] sm:$0xe]
      %v3767 = vld [vmem:[%s982 + $0x24] sm:$0xe]
      %v3768 = vld [vmem:[%s982 + $0x30] sm:$0xe]
      %v3769 = vld [vmem:[%s982 + $0x3c] sm:$0xe]
      %v3770 = vld [vmem:[%s982 + $0x48] sm:$0xe]
      %v3771 = vld [vmem:[%s982 + $0x54] sm:$0xe]
      %v3772 = vld [vmem:[%s982 + $0x60] sm:$0xe]
      %v3773 = vld [vmem:[%s982 + $0x6c] sm:$0xe]
      %v3774 = vld [vmem:[%s982 + $0x78] sm:$0xe]
      %v3775 = vld [vmem:[%s982 + $0x84] sm:$0xe]
      %v3776 = vld [vmem:[%s982 + $0x90] sm:$0xe]
      %v3777 = vld [vmem:[%s982 + $0x9c] sm:$0xe]
      %v3778 = vld [vmem:[%s982 + $0xa8] sm:$0xe]
      %v3779 = vld [vmem:[%s982 + $0xb4] sm:$0xe]
      %v3828 = vrot.slane %v3764, 5
      %v3829 = vrot.slane %v3828, 4
      %v3830 = vrot.slane %v3012, 5
      %v3831 = vsel %vm2192, %v3829, %v3830
      %v3832 = vrot.slane %v3830, 4
      %v3833 = vrot.slane %v3013, 5
      %v3834 = vsel %vm2192, %v3832, %v3833
      %v3835 = vrot.slane %v3765, 5
      %v3836 = vrot.slane %v3835, 4
      %v3837 = vrot.slane %v3015, 5
      %v3838 = vsel %vm2192, %v3836, %v3837
      %v3839 = vrot.slane %v3837, 4
      %v3840 = vrot.slane %v3016, 5
      %v3841 = vsel %vm2192, %v3839, %v3840
      %v3842 = vrot.slane %v3766, 5
      %v3843 = vrot.slane %v3842, 4
      %v3844 = vrot.slane %v3018, 5
      %v3845 = vsel %vm2192, %v3843, %v3844
      %v3846 = vrot.slane %v3844, 4
      %v3847 = vrot.slane %v3019, 5
      %v3848 = vsel %vm2192, %v3846, %v3847
      %v3849 = vrot.slane %v3767, 5
      %v3850 = vrot.slane %v3849, 4
      %v3851 = vrot.slane %v3021, 5
      %v3852 = vsel %vm2192, %v3850, %v3851
      %v3853 = vrot.slane %v3851, 4
      %v3854 = vrot.slane %v3022, 5
      %v3855 = vsel %vm2192, %v3853, %v3854
      %v3856 = vrot.slane %v3768, 5
      %v3857 = vrot.slane %v3856, 4
      %v3858 = vrot.slane %v3024, 5
      %v3859 = vsel %vm2192, %v3857, %v3858
      %v3860 = vrot.slane %v3858, 4
      %v3861 = vrot.slane %v3025, 5
      %v3862 = vsel %vm2192, %v3860, %v3861
      %v3863 = vrot.slane %v3769, 5
      %v3864 = vrot.slane %v3863, 4
      %v3865 = vrot.slane %v3027, 5
      %v3866 = vsel %vm2192, %v3864, %v3865
      %v3867 = vrot.slane %v3865, 4
      %v3868 = vrot.slane %v3028, 5
      %v3869 = vsel %vm2192, %v3867, %v3868
      %v3870 = vrot.slane %v3770, 5
      %v3871 = vrot.slane %v3870, 4
      %v3872 = vrot.slane %v3030, 5
      %v3873 = vsel %vm2192, %v3871, %v3872
      %v3874 = vrot.slane %v3872, 4
      %v3875 = vrot.slane %v3031, 5
      %v3876 = vsel %vm2192, %v3874, %v3875
      %v3877 = vrot.slane %v3771, 5
      %v3878 = vrot.slane %v3877, 4
      %v3879 = vrot.slane %v3033, 5
      %v3880 = vsel %vm2192, %v3878, %v3879
      %v3881 = vrot.slane %v3879, 4
      %v3882 = vrot.slane %v3034, 5
      %v3883 = vsel %vm2192, %v3881, %v3882
      %v3884 = vrot.slane %v3772, 5
      %v3885 = vrot.slane %v3884, 4
      %v3886 = vrot.slane %v3036, 5
      %v3887 = vsel %vm2192, %v3885, %v3886
      %v3888 = vrot.slane %v3886, 4
      %v3889 = vrot.slane %v3037, 5
      %v3890 = vsel %vm2192, %v3888, %v3889
      %v3891 = vrot.slane %v3773, 5
      %v3892 = vrot.slane %v3891, 4
      %v3893 = vrot.slane %v3039, 5
      %v3894 = vsel %vm2192, %v3892, %v3893
      %v3895 = vrot.slane %v3893, 4
      %v3896 = vrot.slane %v3040, 5
      %v3897 = vsel %vm2192, %v3895, %v3896
      %v3898 = vrot.slane %v3774, 5
      %v3899 = vrot.slane %v3898, 4
      %v3900 = vrot.slane %v3042, 5
      %v3901 = vsel %vm2192, %v3899, %v3900
      %v3902 = vrot.slane %v3900, 4
      %v3903 = vrot.slane %v3043, 5
      %v3904 = vsel %vm2192, %v3902, %v3903
      %v3905 = vrot.slane %v3775, 5
      %v3906 = vrot.slane %v3905, 4
      %v3907 = vrot.slane %v3045, 5
      %v3908 = vsel %vm2192, %v3906, %v3907
      %v3909 = vrot.slane %v3907, 4
      %v3910 = vrot.slane %v3046, 5
      %v3911 = vsel %vm2192, %v3909, %v3910
      %v3912 = vrot.slane %v3776, 5
      %v3913 = vrot.slane %v3912, 4
      %v3914 = vrot.slane %v3048, 5
      %v3915 = vsel %vm2192, %v3913, %v3914
      %v3916 = vrot.slane %v3914, 4
      %v3917 = vrot.slane %v3049, 5
      %v3918 = vsel %vm2192, %v3916, %v3917
      %v3919 = vrot.slane %v3777, 5
      %v3920 = vrot.slane %v3919, 4
      %v3921 = vrot.slane %v3051, 5
      %v3922 = vsel %vm2192, %v3920, %v3921
      %v3923 = vrot.slane %v3921, 4
      %v3924 = vrot.slane %v3052, 5
      %v3925 = vsel %vm2192, %v3923, %v3924
      %v3926 = vrot.slane %v3778, 5
      %v3927 = vrot.slane %v3926, 4
      %v3928 = vrot.slane %v3054, 5
      %v3929 = vsel %vm2192, %v3927, %v3928
      %v3930 = vrot.slane %v3928, 4
      %v3931 = vrot.slane %v3055, 5
      %v3932 = vsel %vm2192, %v3930, %v3931
      %v3933 = vrot.slane %v3779, 5
      %v3934 = vrot.slane %v3933, 4
      %v3935 = vrot.slane %v3057, 5
      %v3936 = vsel %vm2192, %v3934, %v3935
      %v3937 = vrot.slane %v3935, 4
      %v3938 = vrot.slane %v3058, 5
      %v3939 = vsel %vm2192, %v3937, %v3938
      %v3940 = vld [vmem:[%s3 + $0x140] sm:$0xf]
      %v3941 = vld [vmem:[%s3 + $0x144] sm:$0xf]
      %v3942 = vld [vmem:[%s3 + $0x148] sm:$0xf]
      %v3943 = vld [vmem:[%s3 + $0x14c] sm:$0xf]
      %v3944 = vld [vmem:[%s3 + $0x150] sm:$0xf]
      %v3945 = vld [vmem:[%s3 + $0x154] sm:$0xf]
      %v3946 = vld [vmem:[%s3 + $0x158] sm:$0xf]
      %v3947 = vld [vmem:[%s3 + $0x15c] sm:$0xf]
      %v3948 = vld [vmem:[%s3 + $0x160] sm:$0xf]
      %v3949 = vld [vmem:[%s3 + $0x164] sm:$0xf]
      %v3950 = vld [vmem:[%s3 + $0x168] sm:$0xf]
      %v3951 = vld [vmem:[%s3 + $0x16c] sm:$0xf]
      %v3952 = vld [vmem:[%s3 + $0x170] sm:$0xf]
      %v3953 = vld [vmem:[%s3 + $0x174] sm:$0xf]
      %v3954 = vld [vmem:[%s3 + $0x178] sm:$0xf]
      %v3955 = vld [vmem:[%s3 + $0x17c] sm:$0xf]
      %v3956 = vunpack.c.l.b16 %v3831
      %v3957 = vunpack.c.l.b16 %v3834
      %v3958 = vunpack.c.l.b16 %v3838
      %v3959 = vunpack.c.l.b16 %v3841
      %v3960 = vunpack.c.l.b16 %v3845
      %v3961 = vunpack.c.l.b16 %v3848
      %v3962 = vunpack.c.l.b16 %v3852
      %v3963 = vunpack.c.l.b16 %v3855
      %v3964 = vunpack.c.l.b16 %v3859
      %v3965 = vunpack.c.l.b16 %v3862
      %v3966 = vunpack.c.l.b16 %v3866
      %v3967 = vunpack.c.l.b16 %v3869
      %v3968 = vunpack.c.l.b16 %v3873
      %v3969 = vunpack.c.l.b16 %v3876
      %v3970 = vunpack.c.l.b16 %v3880
      %v3971 = vunpack.c.l.b16 %v3883
      %v3972 = vunpack.c.l.b16 %v3887
      %v3973 = vunpack.c.l.b16 %v3890
      %v3974 = vunpack.c.l.b16 %v3894
      %v3975 = vunpack.c.l.b16 %v3897
      %v3976 = vunpack.c.l.b16 %v3901
      %v3977 = vunpack.c.l.b16 %v3904
      %v3978 = vunpack.c.l.b16 %v3908
      %v3979 = vunpack.c.l.b16 %v3911
      %v3980 = vunpack.c.l.b16 %v3915
      %v3981 = vunpack.c.l.b16 %v3918
      %v3982 = vunpack.c.l.b16 %v3922
      %v3983 = vunpack.c.l.b16 %v3925
      %v3984 = vunpack.c.l.b16 %v3929
      %v3985 = vunpack.c.l.b16 %v3932
      %v3986 = vunpack.c.l.b16 %v3936
      %v3987 = vunpack.c.l.b16 %v3939
      %v3988 = vpack.c.b16 %v3957, %v3956
      %v3989 = vpack.c.b16 %v3959, %v3958
      %v3990 = vpack.c.b16 %v3961, %v3960
      %v3991 = vpack.c.b16 %v3963, %v3962
      %v3992 = vpack.c.b16 %v3965, %v3964
      %v3993 = vpack.c.b16 %v3967, %v3966
      %v3994 = vpack.c.b16 %v3969, %v3968
      %v3995 = vpack.c.b16 %v3971, %v3970
      %v3996 = vpack.c.b16 %v3973, %v3972
      %v3997 = vpack.c.b16 %v3975, %v3974
      %v3998 = vpack.c.b16 %v3977, %v3976
      %v3999 = vpack.c.b16 %v3979, %v3978
      %v4000 = vpack.c.b16 %v3981, %v3980
      %v4001 = vpack.c.b16 %v3983, %v3982
      %v4002 = vpack.c.b16 %v3985, %v3984
      %v4003 = vpack.c.b16 %v3987, %v3986
      %v4036 = vunpack.c.l.b16 %v3940
      %v4037 = vunpack.c.l.b16 %v3941
      %v4038 = vunpack.c.l.b16 %v3942
      %v4039 = vunpack.c.l.b16 %v3943
      %v4040 = vunpack.c.l.b16 %v3944
      %v4041 = vunpack.c.l.b16 %v3945
      %v4042 = vunpack.c.l.b16 %v3946
      %v4043 = vunpack.c.l.b16 %v3947
      %v4044 = vunpack.c.l.b16 %v3948
      %v4045 = vunpack.c.l.b16 %v3949
      %v4046 = vunpack.c.l.b16 %v3950
      %v4047 = vunpack.c.l.b16 %v3951
      %v4048 = vunpack.c.l.b16 %v3952
      %v4049 = vunpack.c.l.b16 %v3953
      %v4050 = vunpack.c.l.b16 %v3954
      %v4051 = vunpack.c.l.b16 %v3955
      %v4052 = vpack.c.b16 %v4037, %v4036
      %v4053 = vpack.c.b16 %v4039, %v4038
      %v4054 = vpack.c.b16 %v4041, %v4040
      %v4055 = vpack.c.b16 %v4043, %v4042
      %v4056 = vpack.c.b16 %v4045, %v4044
      %v4057 = vpack.c.b16 %v4047, %v4046
      %v4058 = vpack.c.b16 %v4049, %v4048
      %v4059 = vpack.c.b16 %v4051, %v4050
      %4068 = vmatprep.subr.bf16.mxu0 0
      %4069 = vmatpush1.bf16.msra.mxu0 %v4059
      %4070 = vmatprep.subr.bf16.mxu0 0
      %4071 = vmatpush1.bf16.msra.mxu0 %v4058
      %4072 = vmatprep.subr.bf16.mxu0 0
      %4073 = vmatpush1.bf16.msra.mxu0 %v4057
      %4074 = vmatprep.subr.bf16.mxu0 0
      %4075 = vmatpush1.bf16.msra.mxu0 %v4056
      %4076 = vmatprep.subr.bf16.mxu0 0
      %4077 = vmatpush1.bf16.msra.mxu0 %v4055
      %4078 = vmatprep.subr.bf16.mxu0 0
      %4079 = vmatpush1.bf16.msra.mxu0 %v4054
      %4080 = vmatprep.subr.bf16.mxu0 0
      %4081 = vmatpush1.bf16.msra.mxu0 %v4053
      %4082 = vmatprep.subr.bf16.mxu0 0
      %4083 = vmatpush1.bf16.msra.mxu0 %v4052
      %4084 = vmatprep.subr.bf16.mxu0 0
      %4085 = vmatpush2.bf16.msra.mxu0 0
      %4086 = vmatprep.subr.bf16.mxu0 0
      %4087 = vmatpush2.bf16.msra.mxu0 0
      %4088 = vmatprep.subr.bf16.mxu0 0
      %4089 = vmatpush2.bf16.msra.mxu0 0
      %4090 = vmatprep.subr.bf16.mxu0 0
      %4091 = vmatpush2.bf16.msra.mxu0 0
      %4092 = vmatprep.subr.bf16.mxu0 0
      %4093 = vmatpush2.bf16.msra.mxu0 0
      %4094 = vmatprep.subr.bf16.mxu0 0
      %4095 = vmatpush2.bf16.msra.mxu0 0
      %4096 = vmatprep.subr.bf16.mxu0 0
      %4097 = vmatpush2.bf16.msra.mxu0 0
      %4098 = vmatprep.subr.bf16.mxu0 0
      %4099 = vmatpush2.bf16.msra.mxu0 0
      %4100 = vmatprep.mubr.bf16.mxu0 0
      %4101 = vmatmul.mubr.bf16.gmra.mxu0 %v3988
      %v4102 = vpop.f32.mrf.mxu0
      %v4103 = vadd.f32 0.0, %v4102
      %v4104 = vpop.f32.mrf.mxu0
      %v4105 = vpop.f32.mrf.mxu0
      %v4106 = vadd.f32 0.0, %v4105
      %v4107 = vpop.f32.mrf.mxu0
      %4108 = vmatprep.mubr.bf16.mxu0 0
      %4109 = vmatmul.mubr.bf16.gmra.mxu0 %v3989
      %v4110 = vpop.f32.mrf.mxu0
      %v4111 = vadd.f32 0.0, %v4110
      %v4112 = vpop.f32.mrf.mxu0
      %v4113 = vpop.f32.mrf.mxu0
      %v4114 = vadd.f32 0.0, %v4113
      %v4115 = vpop.f32.mrf.mxu0
      %4116 = vmatprep.mubr.bf16.mxu0 0
      %4117 = vmatmul.mubr.bf16.gmra.mxu0 %v3990
      %v4118 = vpop.f32.mrf.mxu0
      %v4119 = vadd.f32 0.0, %v4118
      %v4120 = vpop.f32.mrf.mxu0
      %v4121 = vpop.f32.mrf.mxu0
      %v4122 = vadd.f32 0.0, %v4121
      %v4123 = vpop.f32.mrf.mxu0
      %4124 = vmatprep.mubr.bf16.mxu0 0
      %4125 = vmatmul.mubr.bf16.gmra.mxu0 %v3991
      %v4126 = vpop.f32.mrf.mxu0
      %v4127 = vadd.f32 0.0, %v4126
      %v4128 = vpop.f32.mrf.mxu0
      %v4129 = vpop.f32.mrf.mxu0
      %v4130 = vadd.f32 0.0, %v4129
      %v4131 = vpop.f32.mrf.mxu0
      %4132 = vmatprep.mubr.bf16.mxu0 0
      %4133 = vmatmul.mubr.bf16.gmra.mxu0 %v3992
      %v4134 = vpop.f32.mrf.mxu0
      %v4135 = vadd.f32 0.0, %v4134
      %v4136 = vpop.f32.mrf.mxu0
      %v4137 = vpop.f32.mrf.mxu0
      %v4138 = vadd.f32 0.0, %v4137
      %v4139 = vpop.f32.mrf.mxu0
      %4140 = vmatprep.mubr.bf16.mxu0 0
      %4141 = vmatmul.mubr.bf16.gmra.mxu0 %v3993
      %v4142 = vpop.f32.mrf.mxu0
      %v4143 = vadd.f32 0.0, %v4142
      %v4144 = vpop.f32.mrf.mxu0
      %v4145 = vpop.f32.mrf.mxu0
      %v4146 = vadd.f32 0.0, %v4145
      %v4147 = vpop.f32.mrf.mxu0
      %4148 = vmatprep.mubr.bf16.mxu0 0
      %4149 = vmatmul.mubr.bf16.gmra.mxu0 %v3994
      %v4150 = vpop.f32.mrf.mxu0
      %v4151 = vadd.f32 0.0, %v4150
      %v4152 = vpop.f32.mrf.mxu0
      %v4153 = vpop.f32.mrf.mxu0
      %v4154 = vadd.f32 0.0, %v4153
      %v4155 = vpop.f32.mrf.mxu0
      %4156 = vmatprep.mubr.bf16.mxu0 0
      %4157 = vmatmul.mubr.bf16.gmra.mxu0 %v3995
      %v4158 = vpop.f32.mrf.mxu0
      %v4159 = vadd.f32 0.0, %v4158
      %v4160 = vpop.f32.mrf.mxu0
      %v4161 = vpop.f32.mrf.mxu0
      %v4162 = vadd.f32 0.0, %v4161
      %v4163 = vpop.f32.mrf.mxu0
      %4164 = vmatprep.mubr.bf16.mxu0 0
      %4165 = vmatmul.mubr.bf16.gmra.mxu0 %v3996
      %v4166 = vpop.f32.mrf.mxu0
      %v4167 = vadd.f32 0.0, %v4166
      %v4168 = vpop.f32.mrf.mxu0
      %v4169 = vpop.f32.mrf.mxu0
      %v4170 = vadd.f32 0.0, %v4169
      %v4171 = vpop.f32.mrf.mxu0
      %4172 = vmatprep.mubr.bf16.mxu0 0
      %4173 = vmatmul.mubr.bf16.gmra.mxu0 %v3997
      %v4174 = vpop.f32.mrf.mxu0
      %v4175 = vadd.f32 0.0, %v4174
      %v4176 = vpop.f32.mrf.mxu0
      %v4177 = vpop.f32.mrf.mxu0
      %v4178 = vadd.f32 0.0, %v4177
      %v4179 = vpop.f32.mrf.mxu0
      %4180 = vmatprep.mubr.bf16.mxu0 0
      %4181 = vmatmul.mubr.bf16.gmra.mxu0 %v3998
      %v4182 = vpop.f32.mrf.mxu0
      %v4183 = vadd.f32 0.0, %v4182
      %v4184 = vpop.f32.mrf.mxu0
      %v4185 = vpop.f32.mrf.mxu0
      %v4186 = vadd.f32 0.0, %v4185
      %v4187 = vpop.f32.mrf.mxu0
      %4188 = vmatprep.mubr.bf16.mxu0 0
      %4189 = vmatmul.mubr.bf16.gmra.mxu0 %v3999
      %v4190 = vpop.f32.mrf.mxu0
      %v4191 = vadd.f32 0.0, %v4190
      %v4192 = vpop.f32.mrf.mxu0
      %v4193 = vpop.f32.mrf.mxu0
      %v4194 = vadd.f32 0.0, %v4193
      %v4195 = vpop.f32.mrf.mxu0
      %4196 = vmatprep.mubr.bf16.mxu0 0
      %4197 = vmatmul.mubr.bf16.gmra.mxu0 %v4000
      %v4198 = vpop.f32.mrf.mxu0
      %v4199 = vadd.f32 0.0, %v4198
      %v4200 = vpop.f32.mrf.mxu0
      %v4201 = vpop.f32.mrf.mxu0
      %v4202 = vadd.f32 0.0, %v4201
      %v4203 = vpop.f32.mrf.mxu0
      %4204 = vmatprep.mubr.bf16.mxu0 0
      %4205 = vmatmul.mubr.bf16.gmra.mxu0 %v4001
      %v4206 = vpop.f32.mrf.mxu0
      %v4207 = vadd.f32 0.0, %v4206
      %v4208 = vpop.f32.mrf.mxu0
      %v4209 = vpop.f32.mrf.mxu0
      %v4210 = vadd.f32 0.0, %v4209
      %v4211 = vpop.f32.mrf.mxu0
      %4212 = vmatprep.mubr.bf16.mxu0 0
      %4213 = vmatmul.mubr.bf16.gmra.mxu0 %v4002
      %v4214 = vpop.f32.mrf.mxu0
      %v4215 = vadd.f32 0.0, %v4214
      %v4216 = vpop.f32.mrf.mxu0
      %v4217 = vpop.f32.mrf.mxu0
      %v4218 = vadd.f32 0.0, %v4217
      %v4219 = vpop.f32.mrf.mxu0
      %4220 = vmatprep.mubr.bf16.mxu0 0
      %4221 = vmatmul.mubr.bf16.gmra.mxu0 %v4003
      %v4222 = vpop.f32.mrf.mxu0
      %v4223 = vadd.f32 0.0, %v4222
      %v4224 = vpop.f32.mrf.mxu0
      %v4225 = vpop.f32.mrf.mxu0
      %v4226 = vadd.f32 0.0, %v4225
      %v4227 = vpop.f32.mrf.mxu0
      %4228 = vdwg.mxu0
      %v4229 = vadd.f32 %v3732, %v4103
      %v4230 = vadd.f32 %v3733, %v4106
      %v4231 = vadd.f32 %v3734, %v4111
      %v4232 = vadd.f32 %v3735, %v4114
      %v4233 = vadd.f32 %v3736, %v4119
      %v4234 = vadd.f32 %v3737, %v4122
      %v4235 = vadd.f32 %v3738, %v4127
      %v4236 = vadd.f32 %v3739, %v4130
      %v4237 = vadd.f32 %v3740, %v4135
      %v4238 = vadd.f32 %v3741, %v4138
      %v4239 = vadd.f32 %v3742, %v4143
      %v4240 = vadd.f32 %v3743, %v4146
      %v4241 = vadd.f32 %v3744, %v4151
      %v4242 = vadd.f32 %v3745, %v4154
      %v4243 = vadd.f32 %v3746, %v4159
      %v4244 = vadd.f32 %v3747, %v4162
      %v4245 = vadd.f32 %v3748, %v4167
      %v4246 = vadd.f32 %v3749, %v4170
      %v4247 = vadd.f32 %v3750, %v4175
      %v4248 = vadd.f32 %v3751, %v4178
      %v4249 = vadd.f32 %v3752, %v4183
      %v4250 = vadd.f32 %v3753, %v4186
      %v4251 = vadd.f32 %v3754, %v4191
      %v4252 = vadd.f32 %v3755, %v4194
      %v4253 = vadd.f32 %v3756, %v4199
      %v4254 = vadd.f32 %v3757, %v4202
      %v4255 = vadd.f32 %v3758, %v4207
      %v4256 = vadd.f32 %v3759, %v4210
      %v4257 = vadd.f32 %v3760, %v4215
      %v4258 = vadd.f32 %v3761, %v4218
      %v4259 = vadd.f32 %v3762, %v4223
      %v4260 = vadd.f32 %v3763, %v4226
      %s4261 = scalar_lea.vmem [#allocation2], 24
      %v4262 = vld [vmem:[%s4261] sm:$0xf]
      %v4263 = vld [vmem:[%s4261 + $0x4] sm:$0xf]
      %v4264 = vld [vmem:[%s4261 + $0xc] sm:$0xf]
      %v4265 = vld [vmem:[%s4261 + $0x10] sm:$0xf]
      %v4266 = vld [vmem:[%s4261 + $0x18] sm:$0xf]
      %v4267 = vld [vmem:[%s4261 + $0x1c] sm:$0xf]
      %v4268 = vld [vmem:[%s4261 + $0x24] sm:$0xf]
      %v4269 = vld [vmem:[%s4261 + $0x28] sm:$0xf]
      %v4270 = vld [vmem:[%s4261 + $0x30] sm:$0xf]
      %v4271 = vld [vmem:[%s4261 + $0x34] sm:$0xf]
      %v4272 = vld [vmem:[%s4261 + $0x3c] sm:$0xf]
      %v4273 = vld [vmem:[%s4261 + $0x40] sm:$0xf]
      %v4274 = vld [vmem:[%s4261 + $0x48] sm:$0xf]
      %v4275 = vld [vmem:[%s4261 + $0x4c] sm:$0xf]
      %v4276 = vld [vmem:[%s4261 + $0x54] sm:$0xf]
      %v4277 = vld [vmem:[%s4261 + $0x58] sm:$0xf]
      %v4278 = vld [vmem:[%s4261 + $0x60] sm:$0xf]
      %v4279 = vld [vmem:[%s4261 + $0x64] sm:$0xf]
      %v4280 = vld [vmem:[%s4261 + $0x6c] sm:$0xf]
      %v4281 = vld [vmem:[%s4261 + $0x70] sm:$0xf]
      %v4282 = vld [vmem:[%s4261 + $0x78] sm:$0xf]
      %v4283 = vld [vmem:[%s4261 + $0x7c] sm:$0xf]
      %v4284 = vld [vmem:[%s4261 + $0x84] sm:$0xf]
      %v4285 = vld [vmem:[%s4261 + $0x88] sm:$0xf]
      %v4286 = vld [vmem:[%s4261 + $0x90] sm:$0xf]
      %v4287 = vld [vmem:[%s4261 + $0x94] sm:$0xf]
      %v4288 = vld [vmem:[%s4261 + $0x9c] sm:$0xf]
      %v4289 = vld [vmem:[%s4261 + $0xa0] sm:$0xf]
      %v4290 = vld [vmem:[%s4261 + $0xa8] sm:$0xf]
      %v4291 = vld [vmem:[%s4261 + $0xac] sm:$0xf]
      %v4292 = vld [vmem:[%s4261 + $0xb4] sm:$0xf]
      %v4293 = vld [vmem:[%s4261 + $0xb8] sm:$0xf]
      %v4294 = vld [vmem:[%s3 + $0x180] sm:$0xf]
      %v4295 = vld [vmem:[%s3 + $0x184] sm:$0xf]
      %v4296 = vld [vmem:[%s3 + $0x188] sm:$0xf]
      %v4297 = vld [vmem:[%s3 + $0x18c] sm:$0xf]
      %v4298 = vld [vmem:[%s3 + $0x190] sm:$0xf]
      %v4299 = vld [vmem:[%s3 + $0x194] sm:$0xf]
      %v4300 = vld [vmem:[%s3 + $0x198] sm:$0xf]
      %v4301 = vld [vmem:[%s3 + $0x19c] sm:$0xf]
      %v4302 = vld [vmem:[%s3 + $0x1a0] sm:$0xf]
      %v4303 = vld [vmem:[%s3 + $0x1a4] sm:$0xf]
      %v4304 = vld [vmem:[%s3 + $0x1a8] sm:$0xf]
      %v4305 = vld [vmem:[%s3 + $0x1ac] sm:$0xf]
      %v4306 = vld [vmem:[%s3 + $0x1b0] sm:$0xf]
      %v4307 = vld [vmem:[%s3 + $0x1b4] sm:$0xf]
      %v4308 = vld [vmem:[%s3 + $0x1b8] sm:$0xf]
      %v4309 = vld [vmem:[%s3 + $0x1bc] sm:$0xf]
      %v4342 = vunpack.c.l.b16 %v4262
      %v4343 = vunpack.c.l.b16 %v4263
      %v4344 = vunpack.c.l.b16 %v4264
      %v4345 = vunpack.c.l.b16 %v4265
      %v4346 = vunpack.c.l.b16 %v4266
      %v4347 = vunpack.c.l.b16 %v4267
      %v4348 = vunpack.c.l.b16 %v4268
      %v4349 = vunpack.c.l.b16 %v4269
      %v4350 = vunpack.c.l.b16 %v4270
      %v4351 = vunpack.c.l.b16 %v4271
      %v4352 = vunpack.c.l.b16 %v4272
      %v4353 = vunpack.c.l.b16 %v4273
      %v4354 = vunpack.c.l.b16 %v4274
      %v4355 = vunpack.c.l.b16 %v4275
      %v4356 = vunpack.c.l.b16 %v4276
      %v4357 = vunpack.c.l.b16 %v4277
      %v4358 = vunpack.c.l.b16 %v4278
      %v4359 = vunpack.c.l.b16 %v4279
      %v4360 = vunpack.c.l.b16 %v4280
      %v4361 = vunpack.c.l.b16 %v4281
      %v4362 = vunpack.c.l.b16 %v4282
      %v4363 = vunpack.c.l.b16 %v4283
      %v4364 = vunpack.c.l.b16 %v4284
      %v4365 = vunpack.c.l.b16 %v4285
      %v4366 = vunpack.c.l.b16 %v4286
      %v4367 = vunpack.c.l.b16 %v4287
      %v4368 = vunpack.c.l.b16 %v4288
      %v4369 = vunpack.c.l.b16 %v4289
      %v4370 = vunpack.c.l.b16 %v4290
      %v4371 = vunpack.c.l.b16 %v4291
      %v4372 = vunpack.c.l.b16 %v4292
      %v4373 = vunpack.c.l.b16 %v4293
      %v4374 = vpack.c.b16 %v4343, %v4342
      %v4375 = vpack.c.b16 %v4345, %v4344
      %v4376 = vpack.c.b16 %v4347, %v4346
      %v4377 = vpack.c.b16 %v4349, %v4348
      %v4378 = vpack.c.b16 %v4351, %v4350
      %v4379 = vpack.c.b16 %v4353, %v4352
      %v4380 = vpack.c.b16 %v4355, %v4354
      %v4381 = vpack.c.b16 %v4357, %v4356
      %v4382 = vpack.c.b16 %v4359, %v4358
      %v4383 = vpack.c.b16 %v4361, %v4360
      %v4384 = vpack.c.b16 %v4363, %v4362
      %v4385 = vpack.c.b16 %v4365, %v4364
      %v4386 = vpack.c.b16 %v4367, %v4366
      %v4387 = vpack.c.b16 %v4369, %v4368
      %v4388 = vpack.c.b16 %v4371, %v4370
      %v4389 = vpack.c.b16 %v4373, %v4372
      %v4422 = vunpack.c.l.b16 %v4294
      %v4423 = vunpack.c.l.b16 %v4295
      %v4424 = vunpack.c.l.b16 %v4296
      %v4425 = vunpack.c.l.b16 %v4297
      %v4426 = vunpack.c.l.b16 %v4298
      %v4427 = vunpack.c.l.b16 %v4299
      %v4428 = vunpack.c.l.b16 %v4300
      %v4429 = vunpack.c.l.b16 %v4301
      %v4430 = vunpack.c.l.b16 %v4302
      %v4431 = vunpack.c.l.b16 %v4303
      %v4432 = vunpack.c.l.b16 %v4304
      %v4433 = vunpack.c.l.b16 %v4305
      %v4434 = vunpack.c.l.b16 %v4306
      %v4435 = vunpack.c.l.b16 %v4307
      %v4436 = vunpack.c.l.b16 %v4308
      %v4437 = vunpack.c.l.b16 %v4309
      %v4438 = vpack.c.b16 %v4423, %v4422
      %v4439 = vpack.c.b16 %v4425, %v4424
      %v4440 = vpack.c.b16 %v4427, %v4426
      %v4441 = vpack.c.b16 %v4429, %v4428
      %v4442 = vpack.c.b16 %v4431, %v4430
      %v4443 = vpack.c.b16 %v4433, %v4432
      %v4444 = vpack.c.b16 %v4435, %v4434
      %v4445 = vpack.c.b16 %v4437, %v4436
      %4454 = vmatprep.subr.bf16.mxu0 0
      %4455 = vmatpush1.bf16.msra.mxu0 %v4445
      %4456 = vmatprep.subr.bf16.mxu0 0
      %4457 = vmatpush1.bf16.msra.mxu0 %v4444
      %4458 = vmatprep.subr.bf16.mxu0 0
      %4459 = vmatpush1.bf16.msra.mxu0 %v4443
      %4460 = vmatprep.subr.bf16.mxu0 0
      %4461 = vmatpush1.bf16.msra.mxu0 %v4442
      %4462 = vmatprep.subr.bf16.mxu0 0
      %4463 = vmatpush1.bf16.msra.mxu0 %v4441
      %4464 = vmatprep.subr.bf16.mxu0 0
      %4465 = vmatpush1.bf16.msra.mxu0 %v4440
      %4466 = vmatprep.subr.bf16.mxu0 0
      %4467 = vmatpush1.bf16.msra.mxu0 %v4439
      %4468 = vmatprep.subr.bf16.mxu0 0
      %4469 = vmatpush1.bf16.msra.mxu0 %v4438
      %4470 = vmatprep.subr.bf16.mxu0 0
      %4471 = vmatpush2.bf16.msra.mxu0 0
      %4472 = vmatprep.subr.bf16.mxu0 0
      %4473 = vmatpush2.bf16.msra.mxu0 0
      %4474 = vmatprep.subr.bf16.mxu0 0
      %4475 = vmatpush2.bf16.msra.mxu0 0
      %4476 = vmatprep.subr.bf16.mxu0 0
      %4477 = vmatpush2.bf16.msra.mxu0 0
      %4478 = vmatprep.subr.bf16.mxu0 0
      %4479 = vmatpush2.bf16.msra.mxu0 0
      %4480 = vmatprep.subr.bf16.mxu0 0
      %4481 = vmatpush2.bf16.msra.mxu0 0
      %4482 = vmatprep.subr.bf16.mxu0 0
      %4483 = vmatpush2.bf16.msra.mxu0 0
      %4484 = vmatprep.subr.bf16.mxu0 0
      %4485 = vmatpush2.bf16.msra.mxu0 0
      %4486 = vmatprep.mubr.bf16.mxu0 0
      %4487 = vmatmul.mubr.bf16.gmra.mxu0 %v4374
      %v4488 = vpop.f32.mrf.mxu0
      %v4489 = vadd.f32 0.0, %v4488
      %v4490 = vpop.f32.mrf.mxu0
      %v4491 = vpop.f32.mrf.mxu0
      %v4492 = vadd.f32 0.0, %v4491
      %v4493 = vpop.f32.mrf.mxu0
      %4494 = vmatprep.mubr.bf16.mxu0 0
      %4495 = vmatmul.mubr.bf16.gmra.mxu0 %v4375
      %v4496 = vpop.f32.mrf.mxu0
      %v4497 = vadd.f32 0.0, %v4496
      %v4498 = vpop.f32.mrf.mxu0
      %v4499 = vpop.f32.mrf.mxu0
      %v4500 = vadd.f32 0.0, %v4499
      %v4501 = vpop.f32.mrf.mxu0
      %4502 = vmatprep.mubr.bf16.mxu0 0
      %4503 = vmatmul.mubr.bf16.gmra.mxu0 %v4376
      %v4504 = vpop.f32.mrf.mxu0
      %v4505 = vadd.f32 0.0, %v4504
      %v4506 = vpop.f32.mrf.mxu0
      %v4507 = vpop.f32.mrf.mxu0
      %v4508 = vadd.f32 0.0, %v4507
      %v4509 = vpop.f32.mrf.mxu0
      %4510 = vmatprep.mubr.bf16.mxu0 0
      %4511 = vmatmul.mubr.bf16.gmra.mxu0 %v4377
      %v4512 = vpop.f32.mrf.mxu0
      %v4513 = vadd.f32 0.0, %v4512
      %v4514 = vpop.f32.mrf.mxu0
      %v4515 = vpop.f32.mrf.mxu0
      %v4516 = vadd.f32 0.0, %v4515
      %v4517 = vpop.f32.mrf.mxu0
      %4518 = vmatprep.mubr.bf16.mxu0 0
      %4519 = vmatmul.mubr.bf16.gmra.mxu0 %v4378
      %v4520 = vpop.f32.mrf.mxu0
      %v4521 = vadd.f32 0.0, %v4520
      %v4522 = vpop.f32.mrf.mxu0
      %v4523 = vpop.f32.mrf.mxu0
      %v4524 = vadd.f32 0.0, %v4523
      %v4525 = vpop.f32.mrf.mxu0
      %4526 = vmatprep.mubr.bf16.mxu0 0
      %4527 = vmatmul.mubr.bf16.gmra.mxu0 %v4379
      %v4528 = vpop.f32.mrf.mxu0
      %v4529 = vadd.f32 0.0, %v4528
      %v4530 = vpop.f32.mrf.mxu0
      %v4531 = vpop.f32.mrf.mxu0
      %v4532 = vadd.f32 0.0, %v4531
      %v4533 = vpop.f32.mrf.mxu0
      %4534 = vmatprep.mubr.bf16.mxu0 0
      %4535 = vmatmul.mubr.bf16.gmra.mxu0 %v4380
      %v4536 = vpop.f32.mrf.mxu0
      %v4537 = vadd.f32 0.0, %v4536
      %v4538 = vpop.f32.mrf.mxu0
      %v4539 = vpop.f32.mrf.mxu0
      %v4540 = vadd.f32 0.0, %v4539
      %v4541 = vpop.f32.mrf.mxu0
      %4542 = vmatprep.mubr.bf16.mxu0 0
      %4543 = vmatmul.mubr.bf16.gmra.mxu0 %v4381
      %v4544 = vpop.f32.mrf.mxu0
      %v4545 = vadd.f32 0.0, %v4544
      %v4546 = vpop.f32.mrf.mxu0
      %v4547 = vpop.f32.mrf.mxu0
      %v4548 = vadd.f32 0.0, %v4547
      %v4549 = vpop.f32.mrf.mxu0
      %4550 = vmatprep.mubr.bf16.mxu0 0
      %4551 = vmatmul.mubr.bf16.gmra.mxu0 %v4382
      %v4552 = vpop.f32.mrf.mxu0
      %v4553 = vadd.f32 0.0, %v4552
      %v4554 = vpop.f32.mrf.mxu0
      %v4555 = vpop.f32.mrf.mxu0
      %v4556 = vadd.f32 0.0, %v4555
      %v4557 = vpop.f32.mrf.mxu0
      %4558 = vmatprep.mubr.bf16.mxu0 0
      %4559 = vmatmul.mubr.bf16.gmra.mxu0 %v4383
      %v4560 = vpop.f32.mrf.mxu0
      %v4561 = vadd.f32 0.0, %v4560
      %v4562 = vpop.f32.mrf.mxu0
      %v4563 = vpop.f32.mrf.mxu0
      %v4564 = vadd.f32 0.0, %v4563
      %v4565 = vpop.f32.mrf.mxu0
      %4566 = vmatprep.mubr.bf16.mxu0 0
      %4567 = vmatmul.mubr.bf16.gmra.mxu0 %v4384
      %v4568 = vpop.f32.mrf.mxu0
      %v4569 = vadd.f32 0.0, %v4568
      %v4570 = vpop.f32.mrf.mxu0
      %v4571 = vpop.f32.mrf.mxu0
      %v4572 = vadd.f32 0.0, %v4571
      %v4573 = vpop.f32.mrf.mxu0
      %4574 = vmatprep.mubr.bf16.mxu0 0
      %4575 = vmatmul.mubr.bf16.gmra.mxu0 %v4385
      %v4576 = vpop.f32.mrf.mxu0
      %v4577 = vadd.f32 0.0, %v4576
      %v4578 = vpop.f32.mrf.mxu0
      %v4579 = vpop.f32.mrf.mxu0
      %v4580 = vadd.f32 0.0, %v4579
      %v4581 = vpop.f32.mrf.mxu0
      %4582 = vmatprep.mubr.bf16.mxu0 0
      %4583 = vmatmul.mubr.bf16.gmra.mxu0 %v4386
      %v4584 = vpop.f32.mrf.mxu0
      %v4585 = vadd.f32 0.0, %v4584
      %v4586 = vpop.f32.mrf.mxu0
      %v4587 = vpop.f32.mrf.mxu0
      %v4588 = vadd.f32 0.0, %v4587
      %v4589 = vpop.f32.mrf.mxu0
      %4590 = vmatprep.mubr.bf16.mxu0 0
      %4591 = vmatmul.mubr.bf16.gmra.mxu0 %v4387
      %v4592 = vpop.f32.mrf.mxu0
      %v4593 = vadd.f32 0.0, %v4592
      %v4594 = vpop.f32.mrf.mxu0
      %v4595 = vpop.f32.mrf.mxu0
      %v4596 = vadd.f32 0.0, %v4595
      %v4597 = vpop.f32.mrf.mxu0
      %4598 = vmatprep.mubr.bf16.mxu0 0
      %4599 = vmatmul.mubr.bf16.gmra.mxu0 %v4388
      %v4600 = vpop.f32.mrf.mxu0
      %v4601 = vadd.f32 0.0, %v4600
      %v4602 = vpop.f32.mrf.mxu0
      %v4603 = vpop.f32.mrf.mxu0
      %v4604 = vadd.f32 0.0, %v4603
      %v4605 = vpop.f32.mrf.mxu0
      %4606 = vmatprep.mubr.bf16.mxu0 0
      %4607 = vmatmul.mubr.bf16.gmra.mxu0 %v4389
      %v4608 = vpop.f32.mrf.mxu0
      %v4609 = vadd.f32 0.0, %v4608
      %v4610 = vpop.f32.mrf.mxu0
      %v4611 = vpop.f32.mrf.mxu0
      %v4612 = vadd.f32 0.0, %v4611
      %v4613 = vpop.f32.mrf.mxu0
      %4614 = vdwg.mxu0
      %v4615 = vadd.f32 %v4229, %v4489
      %v4616 = vadd.f32 %v4230, %v4492
      %v4617 = vadd.f32 %v4231, %v4497
      %v4618 = vadd.f32 %v4232, %v4500
      %v4619 = vadd.f32 %v4233, %v4505
      %v4620 = vadd.f32 %v4234, %v4508
      %v4621 = vadd.f32 %v4235, %v4513
      %v4622 = vadd.f32 %v4236, %v4516
      %v4623 = vadd.f32 %v4237, %v4521
      %v4624 = vadd.f32 %v4238, %v4524
      %v4625 = vadd.f32 %v4239, %v4529
      %v4626 = vadd.f32 %v4240, %v4532
      %v4627 = vadd.f32 %v4241, %v4537
      %v4628 = vadd.f32 %v4242, %v4540
      %v4629 = vadd.f32 %v4243, %v4545
      %v4630 = vadd.f32 %v4244, %v4548
      %v4631 = vadd.f32 %v4245, %v4553
      %v4632 = vadd.f32 %v4246, %v4556
      %v4633 = vadd.f32 %v4247, %v4561
      %v4634 = vadd.f32 %v4248, %v4564
      %v4635 = vadd.f32 %v4249, %v4569
      %v4636 = vadd.f32 %v4250, %v4572
      %v4637 = vadd.f32 %v4251, %v4577
      %v4638 = vadd.f32 %v4252, %v4580
      %v4639 = vadd.f32 %v4253, %v4585
      %v4640 = vadd.f32 %v4254, %v4588
      %v4641 = vadd.f32 %v4255, %v4593
      %v4642 = vadd.f32 %v4256, %v4596
      %v4643 = vadd.f32 %v4257, %v4601
      %v4644 = vadd.f32 %v4258, %v4604
      %v4645 = vadd.f32 %v4259, %v4609
      %v4646 = vadd.f32 %v4260, %v4612
      %v4647 = vld [vmem:[%s4261] sm:$0xf]
      %v4648 = vld [vmem:[%s4261 + $0x4] sm:$0xf]
      %v4649 = vld [vmem:[%s4261 + $0x8] sm:$0x1]
      %v4650 = vld [vmem:[%s4261 + $0xc] sm:$0xf]
      %v4651 = vld [vmem:[%s4261 + $0x10] sm:$0xf]
      %v4652 = vld [vmem:[%s4261 + $0x14] sm:$0x1]
      %v4653 = vld [vmem:[%s4261 + $0x18] sm:$0xf]
      %v4654 = vld [vmem:[%s4261 + $0x1c] sm:$0xf]
      %v4655 = vld [vmem:[%s4261 + $0x20] sm:$0x1]
      %v4656 = vld [vmem:[%s4261 + $0x24] sm:$0xf]
      %v4657 = vld [vmem:[%s4261 + $0x28] sm:$0xf]
      %v4658 = vld [vmem:[%s4261 + $0x2c] sm:$0x1]
      %v4659 = vld [vmem:[%s4261 + $0x30] sm:$0xf]
      %v4660 = vld [vmem:[%s4261 + $0x34] sm:$0xf]
      %v4661 = vld [vmem:[%s4261 + $0x38] sm:$0x1]
      %v4662 = vld [vmem:[%s4261 + $0x3c] sm:$0xf]
      %v4663 = vld [vmem:[%s4261 + $0x40] sm:$0xf]
      %v4664 = vld [vmem:[%s4261 + $0x44] sm:$0x1]
      %v4665 = vld [vmem:[%s4261 + $0x48] sm:$0xf]
      %v4666 = vld [vmem:[%s4261 + $0x4c] sm:$0xf]
      %v4667 = vld [vmem:[%s4261 + $0x50] sm:$0x1]
      %v4668 = vld [vmem:[%s4261 + $0x54] sm:$0xf]
      %v4669 = vld [vmem:[%s4261 + $0x58] sm:$0xf]
      %v4670 = vld [vmem:[%s4261 + $0x5c] sm:$0x1]
      %v4671 = vld [vmem:[%s4261 + $0x60] sm:$0xf]
      %v4672 = vld [vmem:[%s4261 + $0x64] sm:$0xf]
      %v4673 = vld [vmem:[%s4261 + $0x68] sm:$0x1]
      %v4674 = vld [vmem:[%s4261 + $0x6c] sm:$0xf]
      %v4675 = vld [vmem:[%s4261 + $0x70] sm:$0xf]
      %v4676 = vld [vmem:[%s4261 + $0x74] sm:$0x1]
      %v4677 = vld [vmem:[%s4261 + $0x78] sm:$0xf]
      %v4678 = vld [vmem:[%s4261 + $0x7c] sm:$0xf]
      %v4679 = vld [vmem:[%s4261 + $0x80] sm:$0x1]
      %v4680 = vld [vmem:[%s4261 + $0x84] sm:$0xf]
      %v4681 = vld [vmem:[%s4261 + $0x88] sm:$0xf]
      %v4682 = vld [vmem:[%s4261 + $0x8c] sm:$0x1]
      %v4683 = vld [vmem:[%s4261 + $0x90] sm:$0xf]
      %v4684 = vld [vmem:[%s4261 + $0x94] sm:$0xf]
      %v4685 = vld [vmem:[%s4261 + $0x98] sm:$0x1]
      %v4686 = vld [vmem:[%s4261 + $0x9c] sm:$0xf]
      %v4687 = vld [vmem:[%s4261 + $0xa0] sm:$0xf]
      %v4688 = vld [vmem:[%s4261 + $0xa4] sm:$0x1]
      %v4689 = vld [vmem:[%s4261 + $0xa8] sm:$0xf]
      %v4690 = vld [vmem:[%s4261 + $0xac] sm:$0xf]
      %v4691 = vld [vmem:[%s4261 + $0xb0] sm:$0x1]
      %v4692 = vld [vmem:[%s4261 + $0xb4] sm:$0xf]
      %v4693 = vld [vmem:[%s4261 + $0xb8] sm:$0xf]
      %v4694 = vld [vmem:[%s4261 + $0xbc] sm:$0x1]
      %v4696 = vshrl.u32 %v4647, 16
      %v4698 = vrot.slane %v4696, 4
      %v4699 = vshll.u32 %v4647, 16
      %v4701 = vrot.slane %v4699, 5
      %v4702 = vor.u32 %v4698, %v4701
      %v4703 = vrot.slane %v4702, 4
      %v4705 = vshll.u32 %v4648, 16
      %v4707 = vrot.slane %v4705, 5
      %v4708 = vsel %vm1163, %v4703, %v4707
      %v4709 = vshrl.u32 %v4648, 16
      %v4711 = vrot.slane %v4709, 4
      %v4712 = vor.u32 %v4711, %v4707
      %v4713 = vrot.slane %v4712, 4
      %v4715 = vshll.u32 %v4649, 16
      %v4717 = vrot.slane %v4715, 5
      %v4718 = vsel %vm1163, %v4713, %v4717
      %v4720 = vshrl.u32 %v4650, 16
      %v4722 = vrot.slane %v4720, 4
      %v4723 = vshll.u32 %v4650, 16
      %v4725 = vrot.slane %v4723, 5
      %v4726 = vor.u32 %v4722, %v4725
      %v4727 = vrot.slane %v4726, 4
      %v4729 = vshll.u32 %v4651, 16
      %v4731 = vrot.slane %v4729, 5
      %v4732 = vsel %vm1163, %v4727, %v4731
      %v4733 = vshrl.u32 %v4651, 16
      %v4735 = vrot.slane %v4733, 4
      %v4736 = vor.u32 %v4735, %v4731
      %v4737 = vrot.slane %v4736, 4
      %v4739 = vshll.u32 %v4652, 16
      %v4741 = vrot.slane %v4739, 5
      %v4742 = vsel %vm1163, %v4737, %v4741
      %v4744 = vshrl.u32 %v4653, 16
      %v4746 = vrot.slane %v4744, 4
      %v4747 = vshll.u32 %v4653, 16
      %v4749 = vrot.slane %v4747, 5
      %v4750 = vor.u32 %v4746, %v4749
      %v4751 = vrot.slane %v4750, 4
      %v4753 = vshll.u32 %v4654, 16
      %v4755 = vrot.slane %v4753, 5
      %v4756 = vsel %vm1163, %v4751, %v4755
      %v4757 = vshrl.u32 %v4654, 16
      %v4759 = vrot.slane %v4757, 4
      %v4760 = vor.u32 %v4759, %v4755
      %v4761 = vrot.slane %v4760, 4
      %v4763 = vshll.u32 %v4655, 16
      %v4765 = vrot.slane %v4763, 5
      %v4766 = vsel %vm1163, %v4761, %v4765
      %v4768 = vshrl.u32 %v4656, 16
      %v4770 = vrot.slane %v4768, 4
      %v4771 = vshll.u32 %v4656, 16
      %v4773 = vrot.slane %v4771, 5
      %v4774 = vor.u32 %v4770, %v4773
      %v4775 = vrot.slane %v4774, 4
      %v4777 = vshll.u32 %v4657, 16
      %v4779 = vrot.slane %v4777, 5
      %v4780 = vsel %vm1163, %v4775, %v4779
      %v4781 = vshrl.u32 %v4657, 16
      %v4783 = vrot.slane %v4781, 4
      %v4784 = vor.u32 %v4783, %v4779
      %v4785 = vrot.slane %v4784, 4
      %v4787 = vshll.u32 %v4658, 16
      %v4789 = vrot.slane %v4787, 5
      %v4790 = vsel %vm1163, %v4785, %v4789
      %v4792 = vshrl.u32 %v4659, 16
      %v4794 = vrot.slane %v4792, 4
      %v4795 = vshll.u32 %v4659, 16
      %v4797 = vrot.slane %v4795, 5
      %v4798 = vor.u32 %v4794, %v4797
      %v4799 = vrot.slane %v4798, 4
      %v4801 = vshll.u32 %v4660, 16
      %v4803 = vrot.slane %v4801, 5
      %v4804 = vsel %vm1163, %v4799, %v4803
      %v4805 = vshrl.u32 %v4660, 16
      %v4807 = vrot.slane %v4805, 4
      %v4808 = vor.u32 %v4807, %v4803
      %v4809 = vrot.slane %v4808, 4
      %v4811 = vshll.u32 %v4661, 16
      %v4813 = vrot.slane %v4811, 5
      %v4814 = vsel %vm1163, %v4809, %v4813
      %v4816 = vshrl.u32 %v4662, 16
      %v4818 = vrot.slane %v4816, 4
      %v4819 = vshll.u32 %v4662, 16
      %v4821 = vrot.slane %v4819, 5
      %v4822 = vor.u32 %v4818, %v4821
      %v4823 = vrot.slane %v4822, 4
      %v4825 = vshll.u32 %v4663, 16
      %v4827 = vrot.slane %v4825, 5
      %v4828 = vsel %vm1163, %v4823, %v4827
      %v4829 = vshrl.u32 %v4663, 16
      %v4831 = vrot.slane %v4829, 4
      %v4832 = vor.u32 %v4831, %v4827
      %v4833 = vrot.slane %v4832, 4
      %v4835 = vshll.u32 %v4664, 16
      %v4837 = vrot.slane %v4835, 5
      %v4838 = vsel %vm1163, %v4833, %v4837
      %v4840 = vshrl.u32 %v4665, 16
      %v4842 = vrot.slane %v4840, 4
      %v4843 = vshll.u32 %v4665, 16
      %v4845 = vrot.slane %v4843, 5
      %v4846 = vor.u32 %v4842, %v4845
      %v4847 = vrot.slane %v4846, 4
      %v4849 = vshll.u32 %v4666, 16
      %v4851 = vrot.slane %v4849, 5
      %v4852 = vsel %vm1163, %v4847, %v4851
      %v4853 = vshrl.u32 %v4666, 16
      %v4855 = vrot.slane %v4853, 4
      %v4856 = vor.u32 %v4855, %v4851
      %v4857 = vrot.slane %v4856, 4
      %v4859 = vshll.u32 %v4667, 16
      %v4861 = vrot.slane %v4859, 5
      %v4862 = vsel %vm1163, %v4857, %v4861
      %v4864 = vshrl.u32 %v4668, 16
      %v4866 = vrot.slane %v4864, 4
      %v4867 = vshll.u32 %v4668, 16
      %v4869 = vrot.slane %v4867, 5
      %v4870 = vor.u32 %v4866, %v4869
      %v4871 = vrot.slane %v4870, 4
      %v4873 = vshll.u32 %v4669, 16
      %v4875 = vrot.slane %v4873, 5
      %v4876 = vsel %vm1163, %v4871, %v4875
      %v4877 = vshrl.u32 %v4669, 16
      %v4879 = vrot.slane %v4877, 4
      %v4880 = vor.u32 %v4879, %v4875
      %v4881 = vrot.slane %v4880, 4
      %v4883 = vshll.u32 %v4670, 16
      %v4885 = vrot.slane %v4883, 5
      %v4886 = vsel %vm1163, %v4881, %v4885
      %v4888 = vshrl.u32 %v4671, 16
      %v4890 = vrot.slane %v4888, 4
      %v4891 = vshll.u32 %v4671, 16
      %v4893 = vrot.slane %v4891, 5
      %v4894 = vor.u32 %v4890, %v4893
      %v4895 = vrot.slane %v4894, 4
      %v4897 = vshll.u32 %v4672, 16
      %v4899 = vrot.slane %v4897, 5
      %v4900 = vsel %vm1163, %v4895, %v4899
      %v4901 = vshrl.u32 %v4672, 16
      %v4903 = vrot.slane %v4901, 4
      %v4904 = vor.u32 %v4903, %v4899
      %v4905 = vrot.slane %v4904, 4
      %v4907 = vshll.u32 %v4673, 16
      %v4909 = vrot.slane %v4907, 5
      %v4910 = vsel %vm1163, %v4905, %v4909
      %v4912 = vshrl.u32 %v4674, 16
      %v4914 = vrot.slane %v4912, 4
      %v4915 = vshll.u32 %v4674, 16
      %v4917 = vrot.slane %v4915, 5
      %v4918 = vor.u32 %v4914, %v4917
      %v4919 = vrot.slane %v4918, 4
      %v4921 = vshll.u32 %v4675, 16
      %v4923 = vrot.slane %v4921, 5
      %v4924 = vsel %vm1163, %v4919, %v4923
      %v4925 = vshrl.u32 %v4675, 16
      %v4927 = vrot.slane %v4925, 4
      %v4928 = vor.u32 %v4927, %v4923
      %v4929 = vrot.slane %v4928, 4
      %v4931 = vshll.u32 %v4676, 16
      %v4933 = vrot.slane %v4931, 5
      %v4934 = vsel %vm1163, %v4929, %v4933
      %v4936 = vshrl.u32 %v4677, 16
      %v4938 = vrot.slane %v4936, 4
      %v4939 = vshll.u32 %v4677, 16
      %v4941 = vrot.slane %v4939, 5
      %v4942 = vor.u32 %v4938, %v4941
      %v4943 = vrot.slane %v4942, 4
      %v4945 = vshll.u32 %v4678, 16
      %v4947 = vrot.slane %v4945, 5
      %v4948 = vsel %vm1163, %v4943, %v4947
      %v4949 = vshrl.u32 %v4678, 16
      %v4951 = vrot.slane %v4949, 4
      %v4952 = vor.u32 %v4951, %v4947
      %v4953 = vrot.slane %v4952, 4
      %v4955 = vshll.u32 %v4679, 16
      %v4957 = vrot.slane %v4955, 5
      %v4958 = vsel %vm1163, %v4953, %v4957
      %v4960 = vshrl.u32 %v4680, 16
      %v4962 = vrot.slane %v4960, 4
      %v4963 = vshll.u32 %v4680, 16
      %v4965 = vrot.slane %v4963, 5
      %v4966 = vor.u32 %v4962, %v4965
      %v4967 = vrot.slane %v4966, 4
      %v4969 = vshll.u32 %v4681, 16
      %v4971 = vrot.slane %v4969, 5
      %v4972 = vsel %vm1163, %v4967, %v4971
      %v4973 = vshrl.u32 %v4681, 16
      %v4975 = vrot.slane %v4973, 4
      %v4976 = vor.u32 %v4975, %v4971
      %v4977 = vrot.slane %v4976, 4
      %v4979 = vshll.u32 %v4682, 16
      %v4981 = vrot.slane %v4979, 5
      %v4982 = vsel %vm1163, %v4977, %v4981
      %v4984 = vshrl.u32 %v4683, 16
      %v4986 = vrot.slane %v4984, 4
      %v4987 = vshll.u32 %v4683, 16
      %v4989 = vrot.slane %v4987, 5
      %v4990 = vor.u32 %v4986, %v4989
      %v4991 = vrot.slane %v4990, 4
      %v4993 = vshll.u32 %v4684, 16
      %v4995 = vrot.slane %v4993, 5
      %v4996 = vsel %vm1163, %v4991, %v4995
      %v4997 = vshrl.u32 %v4684, 16
      %v4999 = vrot.slane %v4997, 4
      %v5000 = vor.u32 %v4999, %v4995
      %v5001 = vrot.slane %v5000, 4
      %v5003 = vshll.u32 %v4685, 16
      %v5005 = vrot.slane %v5003, 5
      %v5006 = vsel %vm1163, %v5001, %v5005
      %v5008 = vshrl.u32 %v4686, 16
      %v5010 = vrot.slane %v5008, 4
      %v5011 = vshll.u32 %v4686, 16
      %v5013 = vrot.slane %v5011, 5
      %v5014 = vor.u32 %v5010, %v5013
      %v5015 = vrot.slane %v5014, 4
      %v5017 = vshll.u32 %v4687, 16
      %v5019 = vrot.slane %v5017, 5
      %v5020 = vsel %vm1163, %v5015, %v5019
      %v5021 = vshrl.u32 %v4687, 16
      %v5023 = vrot.slane %v5021, 4
      %v5024 = vor.u32 %v5023, %v5019
      %v5025 = vrot.slane %v5024, 4
      %v5027 = vshll.u32 %v4688, 16
      %v5029 = vrot.slane %v5027, 5
      %v5030 = vsel %vm1163, %v5025, %v5029
      %v5032 = vshrl.u32 %v4689, 16
      %v5034 = vrot.slane %v5032, 4
      %v5035 = vshll.u32 %v4689, 16
      %v5037 = vrot.slane %v5035, 5
      %v5038 = vor.u32 %v5034, %v5037
      %v5039 = vrot.slane %v5038, 4
      %v5041 = vshll.u32 %v4690, 16
      %v5043 = vrot.slane %v5041, 5
      %v5044 = vsel %vm1163, %v5039, %v5043
      %v5045 = vshrl.u32 %v4690, 16
      %v5047 = vrot.slane %v5045, 4
      %v5048 = vor.u32 %v5047, %v5043
      %v5049 = vrot.slane %v5048, 4
      %v5051 = vshll.u32 %v4691, 16
      %v5053 = vrot.slane %v5051, 5
      %v5054 = vsel %vm1163, %v5049, %v5053
      %v5056 = vshrl.u32 %v4692, 16
      %v5058 = vrot.slane %v5056, 4
      %v5059 = vshll.u32 %v4692, 16
      %v5061 = vrot.slane %v5059, 5
      %v5062 = vor.u32 %v5058, %v5061
      %v5063 = vrot.slane %v5062, 4
      %v5065 = vshll.u32 %v4693, 16
      %v5067 = vrot.slane %v5065, 5
      %v5068 = vsel %vm1163, %v5063, %v5067
      %v5069 = vshrl.u32 %v4693, 16
      %v5071 = vrot.slane %v5069, 4
      %v5072 = vor.u32 %v5071, %v5067
      %v5073 = vrot.slane %v5072, 4
      %v5075 = vshll.u32 %v4694, 16
      %v5077 = vrot.slane %v5075, 5
      %v5078 = vsel %vm1163, %v5073, %v5077
      %v5079 = vld [vmem:[%s3 + $0x1c0] sm:$0xf]
      %v5080 = vld [vmem:[%s3 + $0x1c4] sm:$0xf]
      %v5081 = vld [vmem:[%s3 + $0x1c8] sm:$0xf]
      %v5082 = vld [vmem:[%s3 + $0x1cc] sm:$0xf]
      %v5083 = vld [vmem:[%s3 + $0x1d0] sm:$0xf]
      %v5084 = vld [vmem:[%s3 + $0x1d4] sm:$0xf]
      %v5085 = vld [vmem:[%s3 + $0x1d8] sm:$0xf]
      %v5086 = vld [vmem:[%s3 + $0x1dc] sm:$0xf]
      %v5087 = vld [vmem:[%s3 + $0x1e0] sm:$0xf]
      %v5088 = vld [vmem:[%s3 + $0x1e4] sm:$0xf]
      %v5089 = vld [vmem:[%s3 + $0x1e8] sm:$0xf]
      %v5090 = vld [vmem:[%s3 + $0x1ec] sm:$0xf]
      %v5091 = vld [vmem:[%s3 + $0x1f0] sm:$0xf]
      %v5092 = vld [vmem:[%s3 + $0x1f4] sm:$0xf]
      %v5093 = vld [vmem:[%s3 + $0x1f8] sm:$0xf]
      %v5094 = vld [vmem:[%s3 + $0x1fc] sm:$0xf]
      %v5095 = vunpack.c.l.b16 %v4708
      %v5096 = vunpack.c.l.b16 %v4718
      %v5097 = vunpack.c.l.b16 %v4732
      %v5098 = vunpack.c.l.b16 %v4742
      %v5099 = vunpack.c.l.b16 %v4756
      %v5100 = vunpack.c.l.b16 %v4766
      %v5101 = vunpack.c.l.b16 %v4780
      %v5102 = vunpack.c.l.b16 %v4790
      %v5103 = vunpack.c.l.b16 %v4804
      %v5104 = vunpack.c.l.b16 %v4814
      %v5105 = vunpack.c.l.b16 %v4828
      %v5106 = vunpack.c.l.b16 %v4838
      %v5107 = vunpack.c.l.b16 %v4852
      %v5108 = vunpack.c.l.b16 %v4862
      %v5109 = vunpack.c.l.b16 %v4876
      %v5110 = vunpack.c.l.b16 %v4886
      %v5111 = vunpack.c.l.b16 %v4900
      %v5112 = vunpack.c.l.b16 %v4910
      %v5113 = vunpack.c.l.b16 %v4924
      %v5114 = vunpack.c.l.b16 %v4934
      %v5115 = vunpack.c.l.b16 %v4948
      %v5116 = vunpack.c.l.b16 %v4958
      %v5117 = vunpack.c.l.b16 %v4972
      %v5118 = vunpack.c.l.b16 %v4982
      %v5119 = vunpack.c.l.b16 %v4996
      %v5120 = vunpack.c.l.b16 %v5006
      %v5121 = vunpack.c.l.b16 %v5020
      %v5122 = vunpack.c.l.b16 %v5030
      %v5123 = vunpack.c.l.b16 %v5044
      %v5124 = vunpack.c.l.b16 %v5054
      %v5125 = vunpack.c.l.b16 %v5068
      %v5126 = vunpack.c.l.b16 %v5078
      %v5127 = vpack.c.b16 %v5096, %v5095
      %v5128 = vpack.c.b16 %v5098, %v5097
      %v5129 = vpack.c.b16 %v5100, %v5099
      %v5130 = vpack.c.b16 %v5102, %v5101
      %v5131 = vpack.c.b16 %v5104, %v5103
      %v5132 = vpack.c.b16 %v5106, %v5105
      %v5133 = vpack.c.b16 %v5108, %v5107
      %v5134 = vpack.c.b16 %v5110, %v5109
      %v5135 = vpack.c.b16 %v5112, %v5111
      %v5136 = vpack.c.b16 %v5114, %v5113
      %v5137 = vpack.c.b16 %v5116, %v5115
      %v5138 = vpack.c.b16 %v5118, %v5117
      %v5139 = vpack.c.b16 %v5120, %v5119
      %v5140 = vpack.c.b16 %v5122, %v5121
      %v5141 = vpack.c.b16 %v5124, %v5123
      %v5142 = vpack.c.b16 %v5126, %v5125
      %v5175 = vunpack.c.l.b16 %v5079
      %v5176 = vunpack.c.l.b16 %v5080
      %v5177 = vunpack.c.l.b16 %v5081
      %v5178 = vunpack.c.l.b16 %v5082
      %v5179 = vunpack.c.l.b16 %v5083
      %v5180 = vunpack.c.l.b16 %v5084
      %v5181 = vunpack.c.l.b16 %v5085
      %v5182 = vunpack.c.l.b16 %v5086
      %v5183 = vunpack.c.l.b16 %v5087
      %v5184 = vunpack.c.l.b16 %v5088
      %v5185 = vunpack.c.l.b16 %v5089
      %v5186 = vunpack.c.l.b16 %v5090
      %v5187 = vunpack.c.l.b16 %v5091
      %v5188 = vunpack.c.l.b16 %v5092
      %v5189 = vunpack.c.l.b16 %v5093
      %v5190 = vunpack.c.l.b16 %v5094
      %v5191 = vpack.c.b16 %v5176, %v5175
      %v5192 = vpack.c.b16 %v5178, %v5177
      %v5193 = vpack.c.b16 %v5180, %v5179
      %v5194 = vpack.c.b16 %v5182, %v5181
      %v5195 = vpack.c.b16 %v5184, %v5183
      %v5196 = vpack.c.b16 %v5186, %v5185
      %v5197 = vpack.c.b16 %v5188, %v5187
      %v5198 = vpack.c.b16 %v5190, %v5189
      %5207 = vmatprep.subr.bf16.mxu0 0
      %5208 = vmatpush1.bf16.msra.mxu0 %v5198
      %5209 = vmatprep.subr.bf16.mxu0 0
      %5210 = vmatpush1.bf16.msra.mxu0 %v5197
      %5211 = vmatprep.subr.bf16.mxu0 0
      %5212 = vmatpush1.bf16.msra.mxu0 %v5196
      %5213 = vmatprep.subr.bf16.mxu0 0
      %5214 = vmatpush1.bf16.msra.mxu0 %v5195
      %5215 = vmatprep.subr.bf16.mxu0 0
      %5216 = vmatpush1.bf16.msra.mxu0 %v5194
      %5217 = vmatprep.subr.bf16.mxu0 0
      %5218 = vmatpush1.bf16.msra.mxu0 %v5193
      %5219 = vmatprep.subr.bf16.mxu0 0
      %5220 = vmatpush1.bf16.msra.mxu0 %v5192
      %5221 = vmatprep.subr.bf16.mxu0 0
      %5222 = vmatpush1.bf16.msra.mxu0 %v5191
      %5223 = vmatprep.subr.bf16.mxu0 0
      %5224 = vmatpush2.bf16.msra.mxu0 0
      %5225 = vmatprep.subr.bf16.mxu0 0
      %5226 = vmatpush2.bf16.msra.mxu0 0
      %5227 = vmatprep.subr.bf16.mxu0 0
      %5228 = vmatpush2.bf16.msra.mxu0 0
      %5229 = vmatprep.subr.bf16.mxu0 0
      %5230 = vmatpush2.bf16.msra.mxu0 0
      %5231 = vmatprep.subr.bf16.mxu0 0
      %5232 = vmatpush2.bf16.msra.mxu0 0
      %5233 = vmatprep.subr.bf16.mxu0 0
      %5234 = vmatpush2.bf16.msra.mxu0 0
      %5235 = vmatprep.subr.bf16.mxu0 0
      %5236 = vmatpush2.bf16.msra.mxu0 0
      %5237 = vmatprep.subr.bf16.mxu0 0
      %5238 = vmatpush2.bf16.msra.mxu0 0
      %5239 = vmatprep.mubr.bf16.mxu0 0
      %5240 = vmatmul.mubr.bf16.gmra.mxu0 %v5127
      %v5241 = vpop.f32.mrf.mxu0
      %v5242 = vadd.f32 0.0, %v5241
      %v5243 = vpop.f32.mrf.mxu0
      %v5244 = vpop.f32.mrf.mxu0
      %v5245 = vadd.f32 0.0, %v5244
      %v5246 = vpop.f32.mrf.mxu0
      %5247 = vmatprep.mubr.bf16.mxu0 0
      %5248 = vmatmul.mubr.bf16.gmra.mxu0 %v5128
      %v5249 = vpop.f32.mrf.mxu0
      %v5250 = vadd.f32 0.0, %v5249
      %v5251 = vpop.f32.mrf.mxu0
      %v5252 = vpop.f32.mrf.mxu0
      %v5253 = vadd.f32 0.0, %v5252
      %v5254 = vpop.f32.mrf.mxu0
      %5255 = vmatprep.mubr.bf16.mxu0 0
      %5256 = vmatmul.mubr.bf16.gmra.mxu0 %v5129
      %v5257 = vpop.f32.mrf.mxu0
      %v5258 = vadd.f32 0.0, %v5257
      %v5259 = vpop.f32.mrf.mxu0
      %v5260 = vpop.f32.mrf.mxu0
      %v5261 = vadd.f32 0.0, %v5260
      %v5262 = vpop.f32.mrf.mxu0
      %5263 = vmatprep.mubr.bf16.mxu0 0
      %5264 = vmatmul.mubr.bf16.gmra.mxu0 %v5130
      %v5265 = vpop.f32.mrf.mxu0
      %v5266 = vadd.f32 0.0, %v5265
      %v5267 = vpop.f32.mrf.mxu0
      %v5268 = vpop.f32.mrf.mxu0
      %v5269 = vadd.f32 0.0, %v5268
      %v5270 = vpop.f32.mrf.mxu0
      %5271 = vmatprep.mubr.bf16.mxu0 0
      %5272 = vmatmul.mubr.bf16.gmra.mxu0 %v5131
      %v5273 = vpop.f32.mrf.mxu0
      %v5274 = vadd.f32 0.0, %v5273
      %v5275 = vpop.f32.mrf.mxu0
      %v5276 = vpop.f32.mrf.mxu0
      %v5277 = vadd.f32 0.0, %v5276
      %v5278 = vpop.f32.mrf.mxu0
      %5279 = vmatprep.mubr.bf16.mxu0 0
      %5280 = vmatmul.mubr.bf16.gmra.mxu0 %v5132
      %v5281 = vpop.f32.mrf.mxu0
      %v5282 = vadd.f32 0.0, %v5281
      %v5283 = vpop.f32.mrf.mxu0
      %v5284 = vpop.f32.mrf.mxu0
      %v5285 = vadd.f32 0.0, %v5284
      %v5286 = vpop.f32.mrf.mxu0
      %5287 = vmatprep.mubr.bf16.mxu0 0
      %5288 = vmatmul.mubr.bf16.gmra.mxu0 %v5133
      %v5289 = vpop.f32.mrf.mxu0
      %v5290 = vadd.f32 0.0, %v5289
      %v5291 = vpop.f32.mrf.mxu0
      %v5292 = vpop.f32.mrf.mxu0
      %v5293 = vadd.f32 0.0, %v5292
      %v5294 = vpop.f32.mrf.mxu0
      %5295 = vmatprep.mubr.bf16.mxu0 0
      %5296 = vmatmul.mubr.bf16.gmra.mxu0 %v5134
      %v5297 = vpop.f32.mrf.mxu0
      %v5298 = vadd.f32 0.0, %v5297
      %v5299 = vpop.f32.mrf.mxu0
      %v5300 = vpop.f32.mrf.mxu0
      %v5301 = vadd.f32 0.0, %v5300
      %v5302 = vpop.f32.mrf.mxu0
      %5303 = vmatprep.mubr.bf16.mxu0 0
      %5304 = vmatmul.mubr.bf16.gmra.mxu0 %v5135
      %v5305 = vpop.f32.mrf.mxu0
      %v5306 = vadd.f32 0.0, %v5305
      %v5307 = vpop.f32.mrf.mxu0
      %v5308 = vpop.f32.mrf.mxu0
      %v5309 = vadd.f32 0.0, %v5308
      %v5310 = vpop.f32.mrf.mxu0
      %5311 = vmatprep.mubr.bf16.mxu0 0
      %5312 = vmatmul.mubr.bf16.gmra.mxu0 %v5136
      %v5313 = vpop.f32.mrf.mxu0
      %v5314 = vadd.f32 0.0, %v5313
      %v5315 = vpop.f32.mrf.mxu0
      %v5316 = vpop.f32.mrf.mxu0
      %v5317 = vadd.f32 0.0, %v5316
      %v5318 = vpop.f32.mrf.mxu0
      %5319 = vmatprep.mubr.bf16.mxu0 0
      %5320 = vmatmul.mubr.bf16.gmra.mxu0 %v5137
      %v5321 = vpop.f32.mrf.mxu0
      %v5322 = vadd.f32 0.0, %v5321
      %v5323 = vpop.f32.mrf.mxu0
      %v5324 = vpop.f32.mrf.mxu0
      %v5325 = vadd.f32 0.0, %v5324
      %v5326 = vpop.f32.mrf.mxu0
      %5327 = vmatprep.mubr.bf16.mxu0 0
      %5328 = vmatmul.mubr.bf16.gmra.mxu0 %v5138
      %v5329 = vpop.f32.mrf.mxu0
      %v5330 = vadd.f32 0.0, %v5329
      %v5331 = vpop.f32.mrf.mxu0
      %v5332 = vpop.f32.mrf.mxu0
      %v5333 = vadd.f32 0.0, %v5332
      %v5334 = vpop.f32.mrf.mxu0
      %5335 = vmatprep.mubr.bf16.mxu0 0
      %5336 = vmatmul.mubr.bf16.gmra.mxu0 %v5139
      %v5337 = vpop.f32.mrf.mxu0
      %v5338 = vadd.f32 0.0, %v5337
      %v5339 = vpop.f32.mrf.mxu0
      %v5340 = vpop.f32.mrf.mxu0
      %v5341 = vadd.f32 0.0, %v5340
      %v5342 = vpop.f32.mrf.mxu0
      %5343 = vmatprep.mubr.bf16.mxu0 0
      %5344 = vmatmul.mubr.bf16.gmra.mxu0 %v5140
      %v5345 = vpop.f32.mrf.mxu0
      %v5346 = vadd.f32 0.0, %v5345
      %v5347 = vpop.f32.mrf.mxu0
      %v5348 = vpop.f32.mrf.mxu0
      %v5349 = vadd.f32 0.0, %v5348
      %v5350 = vpop.f32.mrf.mxu0
      %5351 = vmatprep.mubr.bf16.mxu0 0
      %5352 = vmatmul.mubr.bf16.gmra.mxu0 %v5141
      %v5353 = vpop.f32.mrf.mxu0
      %v5354 = vadd.f32 0.0, %v5353
      %v5355 = vpop.f32.mrf.mxu0
      %v5356 = vpop.f32.mrf.mxu0
      %v5357 = vadd.f32 0.0, %v5356
      %v5358 = vpop.f32.mrf.mxu0
      %5359 = vmatprep.mubr.bf16.mxu0 0
      %5360 = vmatmul.mubr.bf16.gmra.mxu0 %v5142
      %v5361 = vpop.f32.mrf.mxu0
      %v5362 = vadd.f32 0.0, %v5361
      %v5363 = vpop.f32.mrf.mxu0
      %v5364 = vpop.f32.mrf.mxu0
      %v5365 = vadd.f32 0.0, %v5364
      %v5366 = vpop.f32.mrf.mxu0
      %5367 = vdwg.mxu0
      %v5368 = vadd.f32 %v4615, %v5242
      %v5369 = vadd.f32 %v4616, %v5245
      %v5370 = vadd.f32 %v4617, %v5250
      %v5371 = vadd.f32 %v4618, %v5253
      %v5372 = vadd.f32 %v4619, %v5258
      %v5373 = vadd.f32 %v4620, %v5261
      %v5374 = vadd.f32 %v4621, %v5266
      %v5375 = vadd.f32 %v4622, %v5269
      %v5376 = vadd.f32 %v4623, %v5274
      %v5377 = vadd.f32 %v4624, %v5277
      %v5378 = vadd.f32 %v4625, %v5282
      %v5379 = vadd.f32 %v4626, %v5285
      %v5380 = vadd.f32 %v4627, %v5290
      %v5381 = vadd.f32 %v4628, %v5293
      %v5382 = vadd.f32 %v4629, %v5298
      %v5383 = vadd.f32 %v4630, %v5301
      %v5384 = vadd.f32 %v4631, %v5306
      %v5385 = vadd.f32 %v4632, %v5309
      %v5386 = vadd.f32 %v4633, %v5314
      %v5387 = vadd.f32 %v4634, %v5317
      %v5388 = vadd.f32 %v4635, %v5322
      %v5389 = vadd.f32 %v4636, %v5325
      %v5390 = vadd.f32 %v4637, %v5330
      %v5391 = vadd.f32 %v4638, %v5333
      %v5392 = vadd.f32 %v4639, %v5338
      %v5393 = vadd.f32 %v4640, %v5341
      %v5394 = vadd.f32 %v4641, %v5346
      %v5395 = vadd.f32 %v4642, %v5349
      %v5396 = vadd.f32 %v4643, %v5354
      %v5397 = vadd.f32 %v4644, %v5357
      %v5398 = vadd.f32 %v4645, %v5362
      %v5399 = vadd.f32 %v4646, %v5365
      %v5400 = vld [vmem:[%s4261] sm:$0xe]
      %v5401 = vld [vmem:[%s4261 + $0xc] sm:$0xe]
      %v5402 = vld [vmem:[%s4261 + $0x18] sm:$0xe]
      %v5403 = vld [vmem:[%s4261 + $0x24] sm:$0xe]
      %v5404 = vld [vmem:[%s4261 + $0x30] sm:$0xe]
      %v5405 = vld [vmem:[%s4261 + $0x3c] sm:$0xe]
      %v5406 = vld [vmem:[%s4261 + $0x48] sm:$0xe]
      %v5407 = vld [vmem:[%s4261 + $0x54] sm:$0xe]
      %v5408 = vld [vmem:[%s4261 + $0x60] sm:$0xe]
      %v5409 = vld [vmem:[%s4261 + $0x6c] sm:$0xe]
      %v5410 = vld [vmem:[%s4261 + $0x78] sm:$0xe]
      %v5411 = vld [vmem:[%s4261 + $0x84] sm:$0xe]
      %v5412 = vld [vmem:[%s4261 + $0x90] sm:$0xe]
      %v5413 = vld [vmem:[%s4261 + $0x9c] sm:$0xe]
      %v5414 = vld [vmem:[%s4261 + $0xa8] sm:$0xe]
      %v5415 = vld [vmem:[%s4261 + $0xb4] sm:$0xe]
      %v5464 = vrot.slane %v5400, 5
      %v5465 = vrot.slane %v5464, 4
      %v5466 = vrot.slane %v4648, 5
      %v5467 = vsel %vm2192, %v5465, %v5466
      %v5468 = vrot.slane %v5466, 4
      %v5469 = vrot.slane %v4649, 5
      %v5470 = vsel %vm2192, %v5468, %v5469
      %v5471 = vrot.slane %v5401, 5
      %v5472 = vrot.slane %v5471, 4
      %v5473 = vrot.slane %v4651, 5
      %v5474 = vsel %vm2192, %v5472, %v5473
      %v5475 = vrot.slane %v5473, 4
      %v5476 = vrot.slane %v4652, 5
      %v5477 = vsel %vm2192, %v5475, %v5476
      %v5478 = vrot.slane %v5402, 5
      %v5479 = vrot.slane %v5478, 4
      %v5480 = vrot.slane %v4654, 5
      %v5481 = vsel %vm2192, %v5479, %v5480
      %v5482 = vrot.slane %v5480, 4
      %v5483 = vrot.slane %v4655, 5
      %v5484 = vsel %vm2192, %v5482, %v5483
      %v5485 = vrot.slane %v5403, 5
      %v5486 = vrot.slane %v5485, 4
      %v5487 = vrot.slane %v4657, 5
      %v5488 = vsel %vm2192, %v5486, %v5487
      %v5489 = vrot.slane %v5487, 4
      %v5490 = vrot.slane %v4658, 5
      %v5491 = vsel %vm2192, %v5489, %v5490
      %v5492 = vrot.slane %v5404, 5
      %v5493 = vrot.slane %v5492, 4
      %v5494 = vrot.slane %v4660, 5
      %v5495 = vsel %vm2192, %v5493, %v5494
      %v5496 = vrot.slane %v5494, 4
      %v5497 = vrot.slane %v4661, 5
      %v5498 = vsel %vm2192, %v5496, %v5497
      %v5499 = vrot.slane %v5405, 5
      %v5500 = vrot.slane %v5499, 4
      %v5501 = vrot.slane %v4663, 5
      %v5502 = vsel %vm2192, %v5500, %v5501
      %v5503 = vrot.slane %v5501, 4
      %v5504 = vrot.slane %v4664, 5
      %v5505 = vsel %vm2192, %v5503, %v5504
      %v5506 = vrot.slane %v5406, 5
      %v5507 = vrot.slane %v5506, 4
      %v5508 = vrot.slane %v4666, 5
      %v5509 = vsel %vm2192, %v5507, %v5508
      %v5510 = vrot.slane %v5508, 4
      %v5511 = vrot.slane %v4667, 5
      %v5512 = vsel %vm2192, %v5510, %v5511
      %v5513 = vrot.slane %v5407, 5
      %v5514 = vrot.slane %v5513, 4
      %v5515 = vrot.slane %v4669, 5
      %v5516 = vsel %vm2192, %v5514, %v5515
      %v5517 = vrot.slane %v5515, 4
      %v5518 = vrot.slane %v4670, 5
      %v5519 = vsel %vm2192, %v5517, %v5518
      %v5520 = vrot.slane %v5408, 5
      %v5521 = vrot.slane %v5520, 4
      %v5522 = vrot.slane %v4672, 5
      %v5523 = vsel %vm2192, %v5521, %v5522
      %v5524 = vrot.slane %v5522, 4
      %v5525 = vrot.slane %v4673, 5
      %v5526 = vsel %vm2192, %v5524, %v5525
      %v5527 = vrot.slane %v5409, 5
      %v5528 = vrot.slane %v5527, 4
      %v5529 = vrot.slane %v4675, 5
      %v5530 = vsel %vm2192, %v5528, %v5529
      %v5531 = vrot.slane %v5529, 4
      %v5532 = vrot.slane %v4676, 5
      %v5533 = vsel %vm2192, %v5531, %v5532
      %v5534 = vrot.slane %v5410, 5
      %v5535 = vrot.slane %v5534, 4
      %v5536 = vrot.slane %v4678, 5
      %v5537 = vsel %vm2192, %v5535, %v5536
      %v5538 = vrot.slane %v5536, 4
      %v5539 = vrot.slane %v4679, 5
      %v5540 = vsel %vm2192, %v5538, %v5539
      %v5541 = vrot.slane %v5411, 5
      %v5542 = vrot.slane %v5541, 4
      %v5543 = vrot.slane %v4681, 5
      %v5544 = vsel %vm2192, %v5542, %v5543
      %v5545 = vrot.slane %v5543, 4
      %v5546 = vrot.slane %v4682, 5
      %v5547 = vsel %vm2192, %v5545, %v5546
      %v5548 = vrot.slane %v5412, 5
      %v5549 = vrot.slane %v5548, 4
      %v5550 = vrot.slane %v4684, 5
      %v5551 = vsel %vm2192, %v5549, %v5550
      %v5552 = vrot.slane %v5550, 4
      %v5553 = vrot.slane %v4685, 5
      %v5554 = vsel %vm2192, %v5552, %v5553
      %v5555 = vrot.slane %v5413, 5
      %v5556 = vrot.slane %v5555, 4
      %v5557 = vrot.slane %v4687, 5
      %v5558 = vsel %vm2192, %v5556, %v5557
      %v5559 = vrot.slane %v5557, 4
      %v5560 = vrot.slane %v4688, 5
      %v5561 = vsel %vm2192, %v5559, %v5560
      %v5562 = vrot.slane %v5414, 5
      %v5563 = vrot.slane %v5562, 4
      %v5564 = vrot.slane %v4690, 5
      %v5565 = vsel %vm2192, %v5563, %v5564
      %v5566 = vrot.slane %v5564, 4
      %v5567 = vrot.slane %v4691, 5
      %v5568 = vsel %vm2192, %v5566, %v5567
      %v5569 = vrot.slane %v5415, 5
      %v5570 = vrot.slane %v5569, 4
      %v5571 = vrot.slane %v4693, 5
      %v5572 = vsel %vm2192, %v5570, %v5571
      %v5573 = vrot.slane %v5571, 4
      %v5574 = vrot.slane %v4694, 5
      %v5575 = vsel %vm2192, %v5573, %v5574
      %v5576 = vld [vmem:[%s3 + $0x200] sm:$0xf]
      %v5577 = vld [vmem:[%s3 + $0x204] sm:$0xf]
      %v5578 = vld [vmem:[%s3 + $0x208] sm:$0xf]
      %v5579 = vld [vmem:[%s3 + $0x20c] sm:$0xf]
      %v5580 = vld [vmem:[%s3 + $0x210] sm:$0xf]
      %v5581 = vld [vmem:[%s3 + $0x214] sm:$0xf]
      %v5582 = vld [vmem:[%s3 + $0x218] sm:$0xf]
      %v5583 = vld [vmem:[%s3 + $0x21c] sm:$0xf]
      %v5584 = vld [vmem:[%s3 + $0x220] sm:$0xf]
      %v5585 = vld [vmem:[%s3 + $0x224] sm:$0xf]
      %v5586 = vld [vmem:[%s3 + $0x228] sm:$0xf]
      %v5587 = vld [vmem:[%s3 + $0x22c] sm:$0xf]
      %v5588 = vld [vmem:[%s3 + $0x230] sm:$0xf]
      %v5589 = vld [vmem:[%s3 + $0x234] sm:$0xf]
      %v5590 = vld [vmem:[%s3 + $0x238] sm:$0xf]
      %v5591 = vld [vmem:[%s3 + $0x23c] sm:$0xf]
      %v5592 = vunpack.c.l.b16 %v5467
      %v5593 = vunpack.c.l.b16 %v5470
      %v5594 = vunpack.c.l.b16 %v5474
      %v5595 = vunpack.c.l.b16 %v5477
      %v5596 = vunpack.c.l.b16 %v5481
      %v5597 = vunpack.c.l.b16 %v5484
      %v5598 = vunpack.c.l.b16 %v5488
      %v5599 = vunpack.c.l.b16 %v5491
      %v5600 = vunpack.c.l.b16 %v5495
      %v5601 = vunpack.c.l.b16 %v5498
      %v5602 = vunpack.c.l.b16 %v5502
      %v5603 = vunpack.c.l.b16 %v5505
      %v5604 = vunpack.c.l.b16 %v5509
      %v5605 = vunpack.c.l.b16 %v5512
      %v5606 = vunpack.c.l.b16 %v5516
      %v5607 = vunpack.c.l.b16 %v5519
      %v5608 = vunpack.c.l.b16 %v5523
      %v5609 = vunpack.c.l.b16 %v5526
      %v5610 = vunpack.c.l.b16 %v5530
      %v5611 = vunpack.c.l.b16 %v5533
      %v5612 = vunpack.c.l.b16 %v5537
      %v5613 = vunpack.c.l.b16 %v5540
      %v5614 = vunpack.c.l.b16 %v5544
      %v5615 = vunpack.c.l.b16 %v5547
      %v5616 = vunpack.c.l.b16 %v5551
      %v5617 = vunpack.c.l.b16 %v5554
      %v5618 = vunpack.c.l.b16 %v5558
      %v5619 = vunpack.c.l.b16 %v5561
      %v5620 = vunpack.c.l.b16 %v5565
      %v5621 = vunpack.c.l.b16 %v5568
      %v5622 = vunpack.c.l.b16 %v5572
      %v5623 = vunpack.c.l.b16 %v5575
      %v5624 = vpack.c.b16 %v5593, %v5592
      %v5625 = vpack.c.b16 %v5595, %v5594
      %v5626 = vpack.c.b16 %v5597, %v5596
      %v5627 = vpack.c.b16 %v5599, %v5598
      %v5628 = vpack.c.b16 %v5601, %v5600
      %v5629 = vpack.c.b16 %v5603, %v5602
      %v5630 = vpack.c.b16 %v5605, %v5604
      %v5631 = vpack.c.b16 %v5607, %v5606
      %v5632 = vpack.c.b16 %v5609, %v5608
      %v5633 = vpack.c.b16 %v5611, %v5610
      %v5634 = vpack.c.b16 %v5613, %v5612
      %v5635 = vpack.c.b16 %v5615, %v5614
      %v5636 = vpack.c.b16 %v5617, %v5616
      %v5637 = vpack.c.b16 %v5619, %v5618
      %v5638 = vpack.c.b16 %v5621, %v5620
      %v5639 = vpack.c.b16 %v5623, %v5622
      %v5672 = vunpack.c.l.b16 %v5576
      %v5673 = vunpack.c.l.b16 %v5577
      %v5674 = vunpack.c.l.b16 %v5578
      %v5675 = vunpack.c.l.b16 %v5579
      %v5676 = vunpack.c.l.b16 %v5580
      %v5677 = vunpack.c.l.b16 %v5581
      %v5678 = vunpack.c.l.b16 %v5582
      %v5679 = vunpack.c.l.b16 %v5583
      %v5680 = vunpack.c.l.b16 %v5584
      %v5681 = vunpack.c.l.b16 %v5585
      %v5682 = vunpack.c.l.b16 %v5586
      %v5683 = vunpack.c.l.b16 %v5587
      %v5684 = vunpack.c.l.b16 %v5588
      %v5685 = vunpack.c.l.b16 %v5589
      %v5686 = vunpack.c.l.b16 %v5590
      %v5687 = vunpack.c.l.b16 %v5591
      %v5688 = vpack.c.b16 %v5673, %v5672
      %v5689 = vpack.c.b16 %v5675, %v5674
      %v5690 = vpack.c.b16 %v5677, %v5676
      %v5691 = vpack.c.b16 %v5679, %v5678
      %v5692 = vpack.c.b16 %v5681, %v5680
      %v5693 = vpack.c.b16 %v5683, %v5682
      %v5694 = vpack.c.b16 %v5685, %v5684
      %v5695 = vpack.c.b16 %v5687, %v5686
      %5704 = vmatprep.subr.bf16.mxu0 0
      %5705 = vmatpush1.bf16.msra.mxu0 %v5695
      %5706 = vmatprep.subr.bf16.mxu0 0
      %5707 = vmatpush1.bf16.msra.mxu0 %v5694
      %5708 = vmatprep.subr.bf16.mxu0 0
      %5709 = vmatpush1.bf16.msra.mxu0 %v5693
      %5710 = vmatprep.subr.bf16.mxu0 0
      %5711 = vmatpush1.bf16.msra.mxu0 %v5692
      %5712 = vmatprep.subr.bf16.mxu0 0
      %5713 = vmatpush1.bf16.msra.mxu0 %v5691
      %5714 = vmatprep.subr.bf16.mxu0 0
      %5715 = vmatpush1.bf16.msra.mxu0 %v5690
      %5716 = vmatprep.subr.bf16.mxu0 0
      %5717 = vmatpush1.bf16.msra.mxu0 %v5689
      %5718 = vmatprep.subr.bf16.mxu0 0
      %5719 = vmatpush1.bf16.msra.mxu0 %v5688
      %5720 = vmatprep.subr.bf16.mxu0 0
      %5721 = vmatpush2.bf16.msra.mxu0 0
      %5722 = vmatprep.subr.bf16.mxu0 0
      %5723 = vmatpush2.bf16.msra.mxu0 0
      %5724 = vmatprep.subr.bf16.mxu0 0
      %5725 = vmatpush2.bf16.msra.mxu0 0
      %5726 = vmatprep.subr.bf16.mxu0 0
      %5727 = vmatpush2.bf16.msra.mxu0 0
      %5728 = vmatprep.subr.bf16.mxu0 0
      %5729 = vmatpush2.bf16.msra.mxu0 0
      %5730 = vmatprep.subr.bf16.mxu0 0
      %5731 = vmatpush2.bf16.msra.mxu0 0
      %5732 = vmatprep.subr.bf16.mxu0 0
      %5733 = vmatpush2.bf16.msra.mxu0 0
      %5734 = vmatprep.subr.bf16.mxu0 0
      %5735 = vmatpush2.bf16.msra.mxu0 0
      %5736 = vmatprep.mubr.bf16.mxu0 0
      %5737 = vmatmul.mubr.bf16.gmra.mxu0 %v5624
      %v5738 = vpop.f32.mrf.mxu0
      %v5739 = vadd.f32 0.0, %v5738
      %v5740 = vpop.f32.mrf.mxu0
      %v5741 = vpop.f32.mrf.mxu0
      %v5742 = vadd.f32 0.0, %v5741
      %v5743 = vpop.f32.mrf.mxu0
      %5744 = vmatprep.mubr.bf16.mxu0 0
      %5745 = vmatmul.mubr.bf16.gmra.mxu0 %v5625
      %v5746 = vpop.f32.mrf.mxu0
      %v5747 = vadd.f32 0.0, %v5746
      %v5748 = vpop.f32.mrf.mxu0
      %v5749 = vpop.f32.mrf.mxu0
      %v5750 = vadd.f32 0.0, %v5749
      %v5751 = vpop.f32.mrf.mxu0
      %5752 = vmatprep.mubr.bf16.mxu0 0
      %5753 = vmatmul.mubr.bf16.gmra.mxu0 %v5626
      %v5754 = vpop.f32.mrf.mxu0
      %v5755 = vadd.f32 0.0, %v5754
      %v5756 = vpop.f32.mrf.mxu0
      %v5757 = vpop.f32.mrf.mxu0
      %v5758 = vadd.f32 0.0, %v5757
      %v5759 = vpop.f32.mrf.mxu0
      %5760 = vmatprep.mubr.bf16.mxu0 0
      %5761 = vmatmul.mubr.bf16.gmra.mxu0 %v5627
      %v5762 = vpop.f32.mrf.mxu0
      %v5763 = vadd.f32 0.0, %v5762
      %v5764 = vpop.f32.mrf.mxu0
      %v5765 = vpop.f32.mrf.mxu0
      %v5766 = vadd.f32 0.0, %v5765
      %v5767 = vpop.f32.mrf.mxu0
      %5768 = vmatprep.mubr.bf16.mxu0 0
      %5769 = vmatmul.mubr.bf16.gmra.mxu0 %v5628
      %v5770 = vpop.f32.mrf.mxu0
      %v5771 = vadd.f32 0.0, %v5770
      %v5772 = vpop.f32.mrf.mxu0
      %v5773 = vpop.f32.mrf.mxu0
      %v5774 = vadd.f32 0.0, %v5773
      %v5775 = vpop.f32.mrf.mxu0
      %5776 = vmatprep.mubr.bf16.mxu0 0
      %5777 = vmatmul.mubr.bf16.gmra.mxu0 %v5629
      %v5778 = vpop.f32.mrf.mxu0
      %v5779 = vadd.f32 0.0, %v5778
      %v5780 = vpop.f32.mrf.mxu0
      %v5781 = vpop.f32.mrf.mxu0
      %v5782 = vadd.f32 0.0, %v5781
      %v5783 = vpop.f32.mrf.mxu0
      %5784 = vmatprep.mubr.bf16.mxu0 0
      %5785 = vmatmul.mubr.bf16.gmra.mxu0 %v5630
      %v5786 = vpop.f32.mrf.mxu0
      %v5787 = vadd.f32 0.0, %v5786
      %v5788 = vpop.f32.mrf.mxu0
      %v5789 = vpop.f32.mrf.mxu0
      %v5790 = vadd.f32 0.0, %v5789
      %v5791 = vpop.f32.mrf.mxu0
      %5792 = vmatprep.mubr.bf16.mxu0 0
      %5793 = vmatmul.mubr.bf16.gmra.mxu0 %v5631
      %v5794 = vpop.f32.mrf.mxu0
      %v5795 = vadd.f32 0.0, %v5794
      %v5796 = vpop.f32.mrf.mxu0
      %v5797 = vpop.f32.mrf.mxu0
      %v5798 = vadd.f32 0.0, %v5797
      %v5799 = vpop.f32.mrf.mxu0
      %5800 = vmatprep.mubr.bf16.mxu0 0
      %5801 = vmatmul.mubr.bf16.gmra.mxu0 %v5632
      %v5802 = vpop.f32.mrf.mxu0
      %v5803 = vadd.f32 0.0, %v5802
      %v5804 = vpop.f32.mrf.mxu0
      %v5805 = vpop.f32.mrf.mxu0
      %v5806 = vadd.f32 0.0, %v5805
      %v5807 = vpop.f32.mrf.mxu0
      %5808 = vmatprep.mubr.bf16.mxu0 0
      %5809 = vmatmul.mubr.bf16.gmra.mxu0 %v5633
      %v5810 = vpop.f32.mrf.mxu0
      %v5811 = vadd.f32 0.0, %v5810
      %v5812 = vpop.f32.mrf.mxu0
      %v5813 = vpop.f32.mrf.mxu0
      %v5814 = vadd.f32 0.0, %v5813
      %v5815 = vpop.f32.mrf.mxu0
      %5816 = vmatprep.mubr.bf16.mxu0 0
      %5817 = vmatmul.mubr.bf16.gmra.mxu0 %v5634
      %v5818 = vpop.f32.mrf.mxu0
      %v5819 = vadd.f32 0.0, %v5818
      %v5820 = vpop.f32.mrf.mxu0
      %v5821 = vpop.f32.mrf.mxu0
      %v5822 = vadd.f32 0.0, %v5821
      %v5823 = vpop.f32.mrf.mxu0
      %5824 = vmatprep.mubr.bf16.mxu0 0
      %5825 = vmatmul.mubr.bf16.gmra.mxu0 %v5635
      %v5826 = vpop.f32.mrf.mxu0
      %v5827 = vadd.f32 0.0, %v5826
      %v5828 = vpop.f32.mrf.mxu0
      %v5829 = vpop.f32.mrf.mxu0
      %v5830 = vadd.f32 0.0, %v5829
      %v5831 = vpop.f32.mrf.mxu0
      %5832 = vmatprep.mubr.bf16.mxu0 0
      %5833 = vmatmul.mubr.bf16.gmra.mxu0 %v5636
      %v5834 = vpop.f32.mrf.mxu0
      %v5835 = vadd.f32 0.0, %v5834
      %v5836 = vpop.f32.mrf.mxu0
      %v5837 = vpop.f32.mrf.mxu0
      %v5838 = vadd.f32 0.0, %v5837
      %v5839 = vpop.f32.mrf.mxu0
      %5840 = vmatprep.mubr.bf16.mxu0 0
      %5841 = vmatmul.mubr.bf16.gmra.mxu0 %v5637
      %v5842 = vpop.f32.mrf.mxu0
      %v5843 = vadd.f32 0.0, %v5842
      %v5844 = vpop.f32.mrf.mxu0
      %v5845 = vpop.f32.mrf.mxu0
      %v5846 = vadd.f32 0.0, %v5845
      %v5847 = vpop.f32.mrf.mxu0
      %5848 = vmatprep.mubr.bf16.mxu0 0
      %5849 = vmatmul.mubr.bf16.gmra.mxu0 %v5638
      %v5850 = vpop.f32.mrf.mxu0
      %v5851 = vadd.f32 0.0, %v5850
      %v5852 = vpop.f32.mrf.mxu0
      %v5853 = vpop.f32.mrf.mxu0
      %v5854 = vadd.f32 0.0, %v5853
      %v5855 = vpop.f32.mrf.mxu0
      %5856 = vmatprep.mubr.bf16.mxu0 0
      %5857 = vmatmul.mubr.bf16.gmra.mxu0 %v5639
      %v5858 = vpop.f32.mrf.mxu0
      %v5859 = vadd.f32 0.0, %v5858
      %v5860 = vpop.f32.mrf.mxu0
      %v5861 = vpop.f32.mrf.mxu0
      %v5862 = vadd.f32 0.0, %v5861
      %v5863 = vpop.f32.mrf.mxu0
      %5864 = vdwg.mxu0
      %v5865 = vadd.f32 %v5368, %v5739
      %v5866 = vadd.f32 %v5369, %v5742
      %v5867 = vadd.f32 %v5370, %v5747
      %v5868 = vadd.f32 %v5371, %v5750
      %v5869 = vadd.f32 %v5372, %v5755
      %v5870 = vadd.f32 %v5373, %v5758
      %v5871 = vadd.f32 %v5374, %v5763
      %v5872 = vadd.f32 %v5375, %v5766
      %v5873 = vadd.f32 %v5376, %v5771
      %v5874 = vadd.f32 %v5377, %v5774
      %v5875 = vadd.f32 %v5378, %v5779
      %v5876 = vadd.f32 %v5379, %v5782
      %v5877 = vadd.f32 %v5380, %v5787
      %v5878 = vadd.f32 %v5381, %v5790
      %v5879 = vadd.f32 %v5382, %v5795
      %v5880 = vadd.f32 %v5383, %v5798
      %v5881 = vadd.f32 %v5384, %v5803
      %v5882 = vadd.f32 %v5385, %v5806
      %v5883 = vadd.f32 %v5386, %v5811
      %v5884 = vadd.f32 %v5387, %v5814
      %v5885 = vadd.f32 %v5388, %v5819
      %v5886 = vadd.f32 %v5389, %v5822
      %v5887 = vadd.f32 %v5390, %v5827
      %v5888 = vadd.f32 %v5391, %v5830
      %v5889 = vadd.f32 %v5392, %v5835
      %v5890 = vadd.f32 %v5393, %v5838
      %v5891 = vadd.f32 %v5394, %v5843
      %v5892 = vadd.f32 %v5395, %v5846
      %v5893 = vadd.f32 %v5396, %v5851
      %v5894 = vadd.f32 %v5397, %v5854
      %v5895 = vadd.f32 %v5398, %v5859
      %v5896 = vadd.f32 %v5399, %v5862
      %v5897 = vpack.c.bf16 %v5866, %v5865
      %v5898 = vpack.c.bf16 %v5868, %v5867
      %v5899 = vpack.c.bf16 %v5870, %v5869
      %v5900 = vpack.c.bf16 %v5872, %v5871
      %v5901 = vpack.c.bf16 %v5874, %v5873
      %v5902 = vpack.c.bf16 %v5876, %v5875
      %v5903 = vpack.c.bf16 %v5878, %v5877
      %v5904 = vpack.c.bf16 %v5880, %v5879
      %v5905 = vpack.c.bf16 %v5882, %v5881
      %v5906 = vpack.c.bf16 %v5884, %v5883
      %v5907 = vpack.c.bf16 %v5886, %v5885
      %v5908 = vpack.c.bf16 %v5888, %v5887
      %v5909 = vpack.c.bf16 %v5890, %v5889
      %v5910 = vpack.c.bf16 %v5892, %v5891
      %v5911 = vpack.c.bf16 %v5894, %v5893
      %v5912 = vpack.c.bf16 %v5896, %v5895
      %v5929 = vunpack.c.l.b16 %v5897
      %v5930 = vunpack.c.h.b16 %v5897
      %v5931 = vunpack.c.l.b16 %v5898
      %v5932 = vunpack.c.h.b16 %v5898
      %v5933 = vunpack.c.l.b16 %v5899
      %v5934 = vunpack.c.h.b16 %v5899
      %v5935 = vunpack.c.l.b16 %v5900
      %v5936 = vunpack.c.h.b16 %v5900
      %v5937 = vunpack.c.l.b16 %v5901
      %v5938 = vunpack.c.h.b16 %v5901
      %v5939 = vunpack.c.l.b16 %v5902
      %v5940 = vunpack.c.h.b16 %v5902
      %v5941 = vunpack.c.l.b16 %v5903
      %v5942 = vunpack.c.h.b16 %v5903
      %v5943 = vunpack.c.l.b16 %v5904
      %v5944 = vunpack.c.h.b16 %v5904
      %v5945 = vunpack.c.l.b16 %v5905
      %v5946 = vunpack.c.h.b16 %v5905
      %v5947 = vunpack.c.l.b16 %v5906
      %v5948 = vunpack.c.h.b16 %v5906
      %v5949 = vunpack.c.l.b16 %v5907
      %v5950 = vunpack.c.h.b16 %v5907
      %v5951 = vunpack.c.l.b16 %v5908
      %v5952 = vunpack.c.h.b16 %v5908
      %v5953 = vunpack.c.l.b16 %v5909
      %v5954 = vunpack.c.h.b16 %v5909
      %v5955 = vunpack.c.l.b16 %v5910
      %v5956 = vunpack.c.h.b16 %v5910
      %v5957 = vunpack.c.l.b16 %v5911
      %v5958 = vunpack.c.h.b16 %v5911
      %v5959 = vunpack.c.l.b16 %v5912
      %v5960 = vunpack.c.h.b16 %v5912
      %v5961 = vpack.c.b16 %v5929, %v5929
      %v5962 = vpack.c.b16 %v5930, %v5930
      %v5963 = vpack.c.b16 %v5931, %v5931
      %v5964 = vpack.c.b16 %v5932, %v5932
      %v5965 = vpack.c.b16 %v5933, %v5933
      %v5966 = vpack.c.b16 %v5934, %v5934
      %v5967 = vpack.c.b16 %v5935, %v5935
      %v5968 = vpack.c.b16 %v5936, %v5936
      %v5969 = vpack.c.b16 %v5937, %v5937
      %v5970 = vpack.c.b16 %v5938, %v5938
      %v5971 = vpack.c.b16 %v5939, %v5939
      %v5972 = vpack.c.b16 %v5940, %v5940
      %v5973 = vpack.c.b16 %v5941, %v5941
      %v5974 = vpack.c.b16 %v5942, %v5942
      %v5975 = vpack.c.b16 %v5943, %v5943
      %v5976 = vpack.c.b16 %v5944, %v5944
      %v5977 = vpack.c.b16 %v5945, %v5945
      %v5978 = vpack.c.b16 %v5946, %v5946
      %v5979 = vpack.c.b16 %v5947, %v5947
      %v5980 = vpack.c.b16 %v5948, %v5948
      %v5981 = vpack.c.b16 %v5949, %v5949
      %v5982 = vpack.c.b16 %v5950, %v5950
      %v5983 = vpack.c.b16 %v5951, %v5951
      %v5984 = vpack.c.b16 %v5952, %v5952
      %v5985 = vpack.c.b16 %v5953, %v5953
      %v5986 = vpack.c.b16 %v5954, %v5954
      %v5987 = vpack.c.b16 %v5955, %v5955
      %v5988 = vpack.c.b16 %v5956, %v5956
      %v5989 = vpack.c.b16 %v5957, %v5957
      %v5990 = vpack.c.b16 %v5958, %v5958
      %v5991 = vpack.c.b16 %v5959, %v5959
      %v5992 = vpack.c.b16 %v5960, %v5960
      %6025 = vst [vmem:[%s262] sm:$0xf] %v5961
      %6026 = vst [vmem:[%s262 + $0x4] sm:$0xf] %v5962
      %6027 = vst [vmem:[%s262 + $0x8] sm:$0xf] %v5963
      %6028 = vst [vmem:[%s262 + $0xc] sm:$0xf] %v5964
      %6029 = vst [vmem:[%s262 + $0x10] sm:$0xf] %v5965
      %6030 = vst [vmem:[%s262 + $0x14] sm:$0xf] %v5966
      %6031 = vst [vmem:[%s262 + $0x18] sm:$0xf] %v5967
      %6032 = vst [vmem:[%s262 + $0x1c] sm:$0xf] %v5968
      %6033 = vst [vmem:[%s262 + $0x20] sm:$0xf] %v5969
      %6034 = vst [vmem:[%s262 + $0x24] sm:$0xf] %v5970
      %6035 = vst [vmem:[%s262 + $0x28] sm:$0xf] %v5971
      %6036 = vst [vmem:[%s262 + $0x2c] sm:$0xf] %v5972
      %6037 = vst [vmem:[%s262 + $0x30] sm:$0xf] %v5973
      %6038 = vst [vmem:[%s262 + $0x34] sm:$0xf] %v5974
      %6039 = vst [vmem:[%s262 + $0x38] sm:$0xf] %v5975
      %6040 = vst [vmem:[%s262 + $0x3c] sm:$0xf] %v5976
      %6041 = vst [vmem:[%s262 + $0x40] sm:$0xf] %v5977
      %6042 = vst [vmem:[%s262 + $0x44] sm:$0xf] %v5978
      %6043 = vst [vmem:[%s262 + $0x48] sm:$0xf] %v5979
      %6044 = vst [vmem:[%s262 + $0x4c] sm:$0xf] %v5980
      %6045 = vst [vmem:[%s262 + $0x50] sm:$0xf] %v5981
      %6046 = vst [vmem:[%s262 + $0x54] sm:$0xf] %v5982
      %6047 = vst [vmem:[%s262 + $0x58] sm:$0xf] %v5983
      %6048 = vst [vmem:[%s262 + $0x5c] sm:$0xf] %v5984
      %6049 = vst [vmem:[%s262 + $0x60] sm:$0xf] %v5985
      %6050 = vst [vmem:[%s262 + $0x64] sm:$0xf] %v5986
      %6051 = vst [vmem:[%s262 + $0x68] sm:$0xf] %v5987
      %6052 = vst [vmem:[%s262 + $0x6c] sm:$0xf] %v5988
      %6053 = vst [vmem:[%s262 + $0x70] sm:$0xf] %v5989
      %6054 = vst [vmem:[%s262 + $0x74] sm:$0xf] %v5990
      %6055 = vst [vmem:[%s262 + $0x78] sm:$0xf] %v5991
      %6056 = vst [vmem:[%s262 + $0x7c] sm:$0xf] %v5992
      %v6057 = vadd.f32 %v5865, %v5866
      %v6058 = vadd.f32 %v6057, %v5867
      %v6059 = vadd.f32 %v6058, %v5868
      %v6060 = vadd.f32 %v6059, %v5869
      %v6061 = vadd.f32 %v6060, %v5870
      %v6062 = vadd.f32 %v6061, %v5871
      %v6063 = vadd.f32 %v6062, %v5872
      %v6064 = vadd.f32 %v6063, %v5873
      %v6065 = vadd.f32 %v6064, %v5874
      %v6066 = vadd.f32 %v6065, %v5875
      %v6067 = vadd.f32 %v6066, %v5876
      %v6068 = vadd.f32 %v6067, %v5877
      %v6069 = vadd.f32 %v6068, %v5878
      %v6070 = vadd.f32 %v6069, %v5879
      %v6071 = vadd.f32 %v6070, %v5880
      %v6072 = vadd.f32 %v6071, %v5881
      %v6073 = vadd.f32 %v6072, %v5882
      %v6074 = vadd.f32 %v6073, %v5883
      %v6075 = vadd.f32 %v6074, %v5884
      %v6076 = vadd.f32 %v6075, %v5885
      %v6077 = vadd.f32 %v6076, %v5886
      %v6078 = vadd.f32 %v6077, %v5887
      %v6079 = vadd.f32 %v6078, %v5888
      %v6080 = vadd.f32 %v6079, %v5889
      %v6081 = vadd.f32 %v6080, %v5890
      %v6082 = vadd.f32 %v6081, %v5891
      %v6083 = vadd.f32 %v6082, %v5892
      %v6084 = vadd.f32 %v6083, %v5893
      %v6085 = vadd.f32 %v6084, %v5894
      %v6086 = vadd.f32 %v6085, %v5895
      %v6087 = vadd.f32 %v6086, %v5896
      %v6088 = vrot.slane %v6087, 4
      %v6089 = vadd.f32 %v6087, %v6088
      %v6090 = vrot.slane %v6089, 2
      %v6091 = vadd.f32 %v6089, %v6090
      %v6092 = vrot.slane %v6091, 1
      %v6093 = vadd.f32 %v6091, %v6092
      %6094 = vst [vmem:[%s265] sm:$0x1] %v6093
      %v6095 = vmul.f32 %v5865, %v5865
      %v6096 = vmul.f32 %v5866, %v5866
      %v6097 = vmul.f32 %v5867, %v5867
      %v6098 = vmul.f32 %v5868, %v5868
      %v6099 = vmul.f32 %v5869, %v5869
      %v6100 = vmul.f32 %v5870, %v5870
      %v6101 = vmul.f32 %v5871, %v5871
      %v6102 = vmul.f32 %v5872, %v5872
      %v6103 = vmul.f32 %v5873, %v5873
      %v6104 = vmul.f32 %v5874, %v5874
      %v6105 = vmul.f32 %v5875, %v5875
      %v6106 = vmul.f32 %v5876, %v5876
      %v6107 = vmul.f32 %v5877, %v5877
      %v6108 = vmul.f32 %v5878, %v5878
      %v6109 = vmul.f32 %v5879, %v5879
      %v6110 = vmul.f32 %v5880, %v5880
      %v6111 = vmul.f32 %v5881, %v5881
      %v6112 = vmul.f32 %v5882, %v5882
      %v6113 = vmul.f32 %v5883, %v5883
      %v6114 = vmul.f32 %v5884, %v5884
      %v6115 = vmul.f32 %v5885, %v5885
      %v6116 = vmul.f32 %v5886, %v5886
      %v6117 = vmul.f32 %v5887, %v5887
      %v6118 = vmul.f32 %v5888, %v5888
      %v6119 = vmul.f32 %v5889, %v5889
      %v6120 = vmul.f32 %v5890, %v5890
      %v6121 = vmul.f32 %v5891, %v5891
      %v6122 = vmul.f32 %v5892, %v5892
      %v6123 = vmul.f32 %v5893, %v5893
      %v6124 = vmul.f32 %v5894, %v5894
      %v6125 = vmul.f32 %v5895, %v5895
      %v6126 = vmul.f32 %v5896, %v5896
      %v6127 = vadd.f32 %v6095, %v6096
      %v6128 = vadd.f32 %v6127, %v6097
      %v6129 = vadd.f32 %v6128, %v6098
      %v6130 = vadd.f32 %v6129, %v6099
      %v6131 = vadd.f32 %v6130, %v6100
      %v6132 = vadd.f32 %v6131, %v6101
      %v6133 = vadd.f32 %v6132, %v6102
      %v6134 = vadd.f32 %v6133, %v6103
      %v6135 = vadd.f32 %v6134, %v6104
      %v6136 = vadd.f32 %v6135, %v6105
      %v6137 = vadd.f32 %v6136, %v6106
      %v6138 = vadd.f32 %v6137, %v6107
      %v6139 = vadd.f32 %v6138, %v6108
      %v6140 = vadd.f32 %v6139, %v6109
      %v6141 = vadd.f32 %v6140, %v6110
      %v6142 = vadd.f32 %v6141, %v6111
      %v6143 = vadd.f32 %v6142, %v6112
      %v6144 = vadd.f32 %v6143, %v6113
      %v6145 = vadd.f32 %v6144, %v6114
      %v6146 = vadd.f32 %v6145, %v6115
      %v6147 = vadd.f32 %v6146, %v6116
      %v6148 = vadd.f32 %v6147, %v6117
      %v6149 = vadd.f32 %v6148, %v6118
      %v6150 = vadd.f32 %v6149, %v6119
      %v6151 = vadd.f32 %v6150, %v6120
      %v6152 = vadd.f32 %v6151, %v6121
      %v6153 = vadd.f32 %v6152, %v6122
      %v6154 = vadd.f32 %v6153, %v6123
      %v6155 = vadd.f32 %v6154, %v6124
      %v6156 = vadd.f32 %v6155, %v6125
      %v6157 = vadd.f32 %v6156, %v6126
      %v6158 = vrot.slane %v6157, 4
      %v6159 = vadd.f32 %v6157, %v6158
      %v6160 = vrot.slane %v6159, 2
      %v6161 = vadd.f32 %v6159, %v6160
      %v6162 = vrot.slane %v6161, 1
      %v6163 = vadd.f32 %v6161, %v6162
      %6164 = vst [vmem:[%s268] sm:$0x1] %v6163
      %p6165 = scmp.lt.s32.totalorder %s18, 1
      %s6166 = scalar_select %p6165, %s18, 1
      %s6167 = smul.addr %s6166, 32
      %s6168 = smul.addr %s6167, 4
      %s6169 = scalar_lea.vmem %s4, %s6168
      %p6170 = scmp.lt.s32.totalorder %s18, 1
      %s6171 = scalar_select %p6170, %s18, 1
      %s6172 = scalar_lea.vmem %s5, %s6171
      %p6173 = scmp.lt.s32.totalorder %s18, 1
      %s6174 = scalar_select %p6173, %s18, 1
      %s6175 = scalar_lea.vmem %s6, %s6174
      // Predicated region
      $region37: #{bottleneck_forward.4} parent=35 // pred_check
        %p6176 = pneg %p125
      $region38: #{bottleneck_forward.4} parent=35 // pred_check_branch
        %6178 = sbr.rel (%p6176) target = $region40
      $region39: #{bottleneck_forward.4} parent=35 // pred_region
        _
      $region40: #{bottleneck_forward.4} parent=35 // pred_fallthru
        _
      // Predicated region
      $region41: #{bottleneck_forward.4} parent=35 // pred_check
        %p6179 = pneg %p151
      $region42: #{bottleneck_forward.4} parent=35 // pred_check_branch
        %6181 = sbr.rel (%p6179) target = $region44
      $region43: #{bottleneck_forward.4} parent=35 // pred_region
        _
      $region44: #{bottleneck_forward.4} parent=35 // pred_fallthru
        _
      // Predicated region
      $region45: #{bottleneck_forward.4} parent=35 // pred_check
        %p6182 = pneg %p177
      $region46: #{bottleneck_forward.4} parent=35 // pred_check_branch
        %6184 = sbr.rel (%p6182) target = $region48
      $region47: #{bottleneck_forward.4} parent=35 // pred_region
        _
      $region48: #{bottleneck_forward.4} parent=35 // pred_fallthru
        _
    $region36: #{bottleneck_forward.4} parent=5 // pred_fallthru
      _
    %p6185 = scmp.le.s32.totalorder 2, %s13
    // Predicated region
    $region49: #{bottleneck_forward.4} parent=5 // pred_check
      %p6186 = pneg %p6185
    $region50: #{bottleneck_forward.4} parent=5 // pred_check_branch
      %6188 = sbr.rel (%p6186) target = $region52
    $region51: #{bottleneck_forward.4} parent=5 // pred_region
      %s6189 = ssub.s32 %s13, 2
      // Predicated region
      $region53: #{bottleneck_forward.4} parent=51 // pred_check
        %p6190 = pneg %p131
      $region54: #{bottleneck_forward.4} parent=51 // pred_check_branch
        %6192 = sbr.rel (%p6190) target = $region56
      $region55: #{bottleneck_forward.4} parent=51 // pred_region
        %p6193 = scmp.lt.s32.totalorder %s19, 1
        %s6194 = scalar_select %p6193, %s19, 1
        %s6195 = smul.addr %s6194, 32
        %s6196 = smul.addr %s6195, 4
        %s6197 = scalar_lea.vmem %s4, %s6196
      $region56: #{bottleneck_forward.4} parent=51 // pred_fallthru
        _
      // Predicated region
      $region57: #{bottleneck_forward.4} parent=51 // pred_check
        %p6198 = pneg %p157
      $region58: #{bottleneck_forward.4} parent=51 // pred_check_branch
        %6200 = sbr.rel (%p6198) target = $region60
      $region59: #{bottleneck_forward.4} parent=51 // pred_region
        %p6201 = scmp.lt.s32.totalorder %s19, 1
        %s6202 = scalar_select %p6201, %s19, 1
        %s6203 = scalar_lea.vmem %s5, %s6202
      $region60: #{bottleneck_forward.4} parent=51 // pred_fallthru
        _
      // Predicated region
      $region61: #{bottleneck_forward.4} parent=51 // pred_check
        %p6204 = pneg %p183
      $region62: #{bottleneck_forward.4} parent=51 // pred_check_branch
        %6206 = sbr.rel (%p6204) target = $region64
      $region63: #{bottleneck_forward.4} parent=51 // pred_region
        %p6207 = scmp.lt.s32.totalorder %s19, 1
        %s6208 = scalar_select %p6207, %s19, 1
        %s6209 = scalar_lea.vmem %s6, %s6208
      $region64: #{bottleneck_forward.4} parent=51 // pred_fallthru
        _
    $region52: #{bottleneck_forward.4} parent=5 // pred_fallthru
      _
  $region6: #{bottleneck_forward.4} parent=0 // loop_footer
    %s17 = sadd.s32 1, %s13
  $region7: #{bottleneck_forward.4} parent=0 // loop_footer_branch
    %12 = sbr.rel target = $region3
  $region8: #{bottleneck_forward.4} parent=0 // loop_exit
    _

</llo_original>
